<compile_context>
chip_gen: v7x
topology: tpu7x:2x2x1
jax: 0.10.0
libtpu: 0.0.40
codegen_flags: <defaults>
</compile_context>

<pallas_src>
import jax
import jax.numpy as jnp
import numpy as np
from jax.experimental import pallas as pl
from jax.experimental.pallas import tpu as pltpu

EMBEDDING_DIM = 300
E_PAD = 384                                    # 3*128: lane-dense x / aligned K-stacking
KERNEL_NUM = 128
WINDOW_SIZES = (1, 2, 3, 5, 8)
NW = len(WINDOW_SIZES)
MAX_WIN = max(WINDOW_SIZES)                    # 8
HIDDEN = KERNEL_NUM                            # fc1 out = 128
HIDDEN2 = KERNEL_NUM // 2                      # fc2 out = 64
NUM_CLASSES = 2                                # fc3 out = 2 (spec)
C_PAD = 128                                    # lane-dense padded class dim

# Conv matmul groups: (shifts, window-indices).  Shifts in a group are K-stacked (the
# 300-row contraction blocks amortize the 256-wide MXU K tiling); windows in a group are
# consecutive so each group writes one lane-contiguous 128-aligned output block.
GROUPS = (
    ((0,), (0,)),                # window 1                 K=384   N=128
    ((0, 1), (1, 2)),            # windows 2,3 (shifts < 2) K=768   N=256
    ((2,), (2,)),                # window 3 remainder       K=384   N=128
    ((0, 1, 2, 3, 4), (3, 4)),   # windows 5,8 (shifts < 5) K=1920  N=256
    ((5, 6, 7), (4,)),           # window 8 remainder       K=1152  N=128
)
NG = len(GROUPS)
_LAST_GROUP = {w: max(gi for gi, (_, ws) in enumerate(GROUPS) if w in ws)
               for w in range(NW)}

# Sanity: groups cover exactly the valid (shift, window) pairs, once each.
_pairs = sorted((r, w) for shifts, windows in GROUPS for r in shifts for w in windows)
assert _pairs == sorted((r, w) for w, win in enumerate(WINDOW_SIZES) for r in range(win))
assert all(r < WINDOW_SIZES[w] for r, w in _pairs)

# Per (batch-row * token) VMEM working set (bytes), conservative:
#   2x768 double-buffered x block + 768 xf_pad copy + <=3840 K-stacked bf16 operand
#   + <=1536 live f32 conv blocks + ~1.5K tanh/mask temporaries + slack.
PER_TOKEN_VMEM_BYTES = 10_000
# Double-buffered grid-invariant weights (~4 MB bf16) + pipeline / misc slack.
FIXED_VMEM_BYTES = 8 << 20


def _round_up(n, m):
    return ((n + m - 1) // m) * m


def _cdiv(a, b):
    return (a + b - 1) // b


def _vmem_capacity_bytes():
    try:
        cap = getattr(pltpu.get_tpu_info(), "vmem_capacity_bytes", None)
        if cap:
            return int(cap)
    except Exception:
        pass
    return 64 << 20                      # conservative: v7x per-TensorCore VMEM


# ----------------------------- Pallas kernel --------------------------------
def textcnn_kernel(x_ref, *refs):
    wg_refs = refs[:NG]                                        # K-stacked conv group weights
    (cb_ref, w1_ref, b1_ref, w2_ref, b2_ref, w3_ref, b3_ref, out_ref) = refs[NG:]

    bt, seq, emb = x_ref.shape                                 # block shape (static)
    m = bt * seq

    xf = x_ref[...].reshape(m, emb)                            # free: seq%8==0, emb%128==0
    # 8 zero rows so every shifted window is a full-length in-bounds slice; cross-sequence
    # contamination / garbage tail positions are masked before the pool.
    xf_pad = jnp.concatenate([xf, jnp.zeros((MAX_WIN, emb), xf.dtype)], axis=0)

    def shifted(r):                                            # rows q -> x[q + r]
        return xf_pad[r:r + m, :]

    pos = jax.lax.broadcasted_iota(jnp.int32, (bt, seq, 1), 1)  # broadcast over lanes

    def pool(w, conv_mk):                                      # bias + tanh + masked max-pool
        win = WINDOW_SIZES[w]
        act = jnp.tanh(conv_mk + cb_ref[w:w + 1, :])           # (M, K)
        act = act.reshape(bt, seq, KERNEL_NUM)
        act = jnp.where(pos < (seq - win + 1), act, -2.0)      # tanh in [-1,1]; mask tail
        return jnp.max(act, axis=1)                            # (bt, K) == PyTorch max_pool1d

    # --- conv stack: one wide K-stacked MXU matmul per group (5 total) ------------
    pooled = [None] * NW
    pending = {}                                               # window -> partial (M, K) f32
    for gi, (shifts, windows) in enumerate(GROUPS):
        if len(shifts) == 1:
            xg = shifted(shifts[0])                            # (M, emb)
        else:                                                  # lane concat at 384-aligned offsets
            xg = jnp.concatenate([shifted(r) for r in shifts], axis=1)
        y = jnp.dot(xg, wg_refs[gi][...],
                    preferred_element_type=jnp.float32)        # (M, len(windows)*K) f32
        for j, w in enumerate(windows):
            blk = y[:, j * KERNEL_NUM:(j + 1) * KERNEL_NUM]    # 128-aligned lane slice
            if w in pending:
                blk = pending.pop(w) + blk
            if gi == _LAST_GROUP[w]:
                pooled[w] = pool(w, blk)                       # finalize early -> y dies early
            else:
                pending[w] = blk

    feats = jnp.concatenate(pooled, axis=1).astype(jnp.bfloat16)   # (bt, NW*K) window-major

    # --- MLP head (bf16 operands, f32 accumulation); Dropout = inference identity ---
    h1 = jnp.maximum(
        jnp.dot(feats, w1_ref[...], preferred_element_type=jnp.float32) + b1_ref[...], 0.0)
    h2 = jnp.maximum(
        jnp.dot(h1.astype(jnp.bfloat16), w2_ref[...],
                preferred_element_type=jnp.float32) + b2_ref[...], 0.0)
    logits = jnp.dot(h2.astype(jnp.bfloat16), w3_ref[...],
                     preferred_element_type=jnp.float32) + b3_ref[...]   # (bt, C_PAD)

    # exact softmax over the padded lane dim (pad bias = -1e30 -> exp == 0 exactly)
    mx = jnp.max(logits, axis=-1, keepdims=True)
    ex = jnp.exp(logits - mx)
    out_ref[...] = ex / jnp.sum(ex, axis=-1, keepdims=True)


# ------------------------------ wrapper --------------------------------------
def textcnn_forward(x, params, *, b_tile=None):
    B, L, E = x.shape
    assert E == EMBEDDING_DIM
    assert L >= MAX_WIN, "sequence shorter than the largest conv window"
    assert L % 8 == 0, "L must be a multiple of 8 (TPU sublane tiling)"
    # TODO(synk): for very large L on v7x (64 MiB VMEM) add an inner sequence-chunk loop
    # with a running per-window max instead of relying on the whole-L working set.

    # ---- VMEM-aware tile sizing -------------------------------------------------
    vmem_cap = _vmem_capacity_bytes()
    vmem_limit = max(32 << 20, min(int(0.8 * vmem_cap), 112 << 20))
    token_budget = max(8 * L, (vmem_limit - FIXED_VMEM_BYTES) // PER_TOKEN_VMEM_BYTES)
    cap_rows = max(8, (token_budget // L) // 8 * 8)            # max batch rows per grid step

    B8 = _round_up(B, 8)
    if b_tile is None:
        min_steps = 2 if B8 >= 16 else 1                       # v7x: feed both TensorCores
        steps = max(min_steps, _cdiv(B8, cap_rows))
        b_tile = _round_up(_cdiv(B8, steps), 8)
    else:
        b_tile = _round_up(b_tile, 8)
    B_pad = _round_up(B, b_tile)

    # ---- inputs / weights (bf16 matmul operands, f32 accumulation) ---------------
    xb = jnp.pad(x, ((0, B_pad - B), (0, 0), (0, E_PAD - E))).astype(jnp.bfloat16)

    conv_ws = [params[f"conv{w}_w"] for w in WINDOW_SIZES]     # (win, E, K) each
    epad = E_PAD - EMBEDDING_DIM
    gweights = []
    for shifts, windows in GROUPS:
        rows = [jnp.pad(jnp.concatenate([conv_ws[w][r] for w in windows], axis=1),
                        ((0, epad), (0, 0)))
                for r in shifts]
        gweights.append(jnp.concatenate(rows, axis=0).astype(jnp.bfloat16))

    cb = params["conv_b"].astype(jnp.float32)                  # (NW, K)

    # PyTorch flattens pooled features channel-major: feat[c*NW + w].  The kernel
    # concatenates window-major [w*K + c], so permute fc1's input columns to match:
    # w1[w*K + c, j] = fc1_w[j, c*NW + w].
    w1 = (params["fc1_w"].reshape(HIDDEN, KERNEL_NUM, NW)
          .transpose(2, 1, 0).reshape(NW * KERNEL_NUM, HIDDEN).astype(jnp.bfloat16))
    b1 = params["fc1_b"].reshape(1, HIDDEN).astype(jnp.float32)
    w2 = params["fc2_w"].T.astype(jnp.bfloat16)                # (128, 64)
    b2 = params["fc2_b"].reshape(1, HIDDEN2).astype(jnp.float32)
    # fc3 padded to a lane-dense 128-wide output; pad bias -1e30 so softmax ignores pads.
    w3 = (jnp.zeros((HIDDEN2, C_PAD), jnp.float32)
          .at[:, :NUM_CLASSES].set(params["fc3_w"].T).astype(jnp.bfloat16))
    b3 = (jnp.full((1, C_PAD), -1e30, jnp.float32)
          .at[:, :NUM_CLASSES].set(params["fc3_b"]))

    weights = gweights + [cb, w1, b1, w2, b2, w3, b3]

    def _full_spec(a):
        zeros = (0,) * a.ndim
        return pl.BlockSpec(a.shape, lambda b, _z=zeros: _z)   # grid-invariant block

    in_specs = [pl.BlockSpec((b_tile, L, E_PAD), lambda b: (b, 0, 0))] + \
               [_full_spec(a) for a in weights]

    out = pl.pallas_call(
        textcnn_kernel,
        out_shape=jax.ShapeDtypeStruct((B_pad, C_PAD), jnp.float32),
        grid_spec=pltpu.PrefetchScalarGridSpec(
            num_scalar_prefetch=0,
            grid=(B_pad // b_tile,),
            in_specs=in_specs,
            out_specs=pl.BlockSpec((b_tile, C_PAD), lambda b: (b, 0)),
        ),
        compiler_params=pltpu.CompilerParams(
            dimension_semantics=("parallel",),
            vmem_limit_bytes=vmem_limit,
        ),
    )(xb, *weights)
    return out[:B, :NUM_CLASSES]                               # (B, 2)


# --------------------------- reference (pure JAX) -----------------------------
def ref_forward(x, params):
    B, L, E = x.shape
    pooled_list = []
    for w_idx, win in enumerate(WINDOW_SIZES):
        W = params[f"conv{win}_w"]                             # (win, E, K)
        b = params["conv_b"][w_idx]
        l_out = L - win + 1
        conv = jnp.zeros((B, l_out, KERNEL_NUM), jnp.float32)
        for r in range(win):
            conv = conv + jnp.einsum("ble,ek->blk", x[:, r:r + l_out, :], W[r])
        act = jnp.tanh(conv + b)
        pooled_list.append(jnp.max(act, axis=1))               # (B, K)
    # torch.cat(dim=2) of (B,K,1) tensors then .view(B,-1): channel-major flatten.
    feats = jnp.stack(pooled_list, axis=-1).reshape(B, KERNEL_NUM * NW)
    h1 = jax.nn.relu(feats @ params["fc1_w"].T + params["fc1_b"])
    h2 = jax.nn.relu(h1 @ params["fc2_w"].T + params["fc2_b"])
    logits = h2 @ params["fc3_w"].T + params["fc3_b"]
    return jax.nn.softmax(logits, axis=1)


# ------------------------------- params ---------------------------------------
def init_params(key):
    keys = jax.random.split(key, 12)
    p = {}
    for i, w in enumerate(WINDOW_SIZES):
        p[f"conv{w}_w"] = 0.05 * jax.random.normal(
            keys[i], (w, EMBEDDING_DIM, KERNEL_NUM), jnp.float32)
    p["conv_b"] = 0.05 * jax.random.normal(keys[5], (NW, KERNEL_NUM), jnp.float32)
    p["fc1_w"] = 0.05 * jax.random.normal(keys[6], (HIDDEN, KERNEL_NUM * NW), jnp.float32)
    p["fc1_b"] = 0.05 * jax.random.normal(keys[7], (HIDDEN,), jnp.float32)
    p["fc2_w"] = 0.05 * jax.random.normal(keys[8], (HIDDEN2, HIDDEN), jnp.float32)
    p["fc2_b"] = 0.05 * jax.random.normal(keys[9], (HIDDEN2,), jnp.float32)
    p["fc3_w"] = 0.05 * jax.random.normal(keys[10], (NUM_CLASSES, HIDDEN2), jnp.float32)
    p["fc3_b"] = 0.05 * jax.random.normal(keys[11], (NUM_CLASSES,), jnp.float32)
    return p


if __name__ == "__main__":
    key = jax.random.PRNGKey(0)
    pkey, xkey = jax.random.split(key)
    params = init_params(pkey)

    B, L = 2, 16                                   # small batch / short sequence
    x = jax.random.normal(xkey, (B, L, EMBEDDING_DIM), jnp.float32)

    out = jax.block_until_ready(textcnn_forward(x, params))
    ref = jax.block_until_ready(ref_forward(x, params))

    assert out.shape == (B, NUM_CLASSES)
    np.testing.assert_allclose(np.asarray(out), np.asarray(ref), rtol=2e-2, atol=2e-2)
    print("KERNEL_OK")
</pallas_src>

<mosaic_0001>
module attributes {stable_mosaic.version = 11 : i64} {
  func.func @textcnn_kernel(%arg0: i32, %arg1: memref<8x16x384xbf16, #tpu.memory_space<vmem>>, %arg2: memref<384x128xbf16, #tpu.memory_space<vmem>>, %arg3: memref<768x256xbf16, #tpu.memory_space<vmem>>, %arg4: memref<384x128xbf16, #tpu.memory_space<vmem>>, %arg5: memref<1920x256xbf16, #tpu.memory_space<vmem>>, %arg6: memref<1152x128xbf16, #tpu.memory_space<vmem>>, %arg7: memref<5x128xf32, #tpu.memory_space<vmem>>, %arg8: memref<640x128xbf16, #tpu.memory_space<vmem>>, %arg9: memref<1x128xf32, #tpu.memory_space<vmem>>, %arg10: memref<128x64xbf16, #tpu.memory_space<vmem>>, %arg11: memref<1x64xf32, #tpu.memory_space<vmem>>, %arg12: memref<64x128xbf16, #tpu.memory_space<vmem>>, %arg13: memref<1x128xf32, #tpu.memory_space<vmem>>, %arg14: memref<8x128xf32, #tpu.memory_space<vmem>>) attributes {dimension_semantics = [#tpu.dimension_semantics<parallel>], iteration_bounds = array<i64: 1>, scalar_prefetch = 0 : i64, scratch_operands = 0 : i64, tpu.core_type = #tpu.core_type<tc>, window_params = [{transform_indices = @transform_0, window_bounds = array<i64: 8, 16, 384>}, {pipeline_mode = #tpu.pipeline_mode<synchronous>, transform_indices = @transform_1, window_bounds = array<i64: 384, 128>}, {pipeline_mode = #tpu.pipeline_mode<synchronous>, transform_indices = @transform_2, window_bounds = array<i64: 768, 256>}, {pipeline_mode = #tpu.pipeline_mode<synchronous>, transform_indices = @transform_3, window_bounds = array<i64: 384, 128>}, {pipeline_mode = #tpu.pipeline_mode<synchronous>, transform_indices = @transform_4, window_bounds = array<i64: 1920, 256>}, {pipeline_mode = #tpu.pipeline_mode<synchronous>, transform_indices = @transform_5, window_bounds = array<i64: 1152, 128>}, {pipeline_mode = #tpu.pipeline_mode<synchronous>, transform_indices = @transform_6, window_bounds = array<i64: 5, 128>}, {pipeline_mode = #tpu.pipeline_mode<synchronous>, transform_indices = @transform_7, window_bounds = array<i64: 640, 128>}, {pipeline_mode = #tpu.pipeline_mode<synchronous>, transform_indices = @transform_8, window_bounds = array<i64: 1, 128>}, {pipeline_mode = #tpu.pipeline_mode<synchronous>, transform_indices = @transform_9, window_bounds = array<i64: 128, 64>}, {pipeline_mode = #tpu.pipeline_mode<synchronous>, transform_indices = @transform_10, window_bounds = array<i64: 1, 64>}, {pipeline_mode = #tpu.pipeline_mode<synchronous>, transform_indices = @transform_11, window_bounds = array<i64: 64, 128>}, {pipeline_mode = #tpu.pipeline_mode<synchronous>, transform_indices = @transform_12, window_bounds = array<i64: 1, 128>}, {transform_indices = @transform_13, window_bounds = array<i64: 8, 128>}]} {
    %c0 = arith.constant 0 : index
    %c0_0 = arith.constant 0 : index
    %c0_1 = arith.constant 0 : index
    %0 = vector.load %arg1[%c0, %c0_0, %c0_1] : memref<8x16x384xbf16, #tpu.memory_space<vmem>>, vector<8x16x384xbf16>
    %1 = vector.shape_cast %0 : vector<8x16x384xbf16> to vector<128x384xbf16>
    %cst = arith.constant 0.000000e+00 : bf16
    %2 = vector.broadcast %cst : bf16 to vector<8x384xbf16>
    %3 = tpu.concatenate %1, %2 in 0 : vector<128x384xbf16>, vector<8x384xbf16> -> vector<136x384xbf16>
    %4 = tpu.iota {dimensions = array<i32: 1>} : vector<8x16x1xi32>
    %5 = vector.extract_strided_slice %3 {offsets = [0, 0], sizes = [128, 384], strides = [1, 1]} : vector<136x384xbf16> to vector<128x384xbf16>
    %c0_2 = arith.constant 0 : index
    %c0_3 = arith.constant 0 : index
    %6 = vector.load %arg2[%c0_2, %c0_3] : memref<384x128xbf16, #tpu.memory_space<vmem>>, vector<384x128xbf16>
    %cst_4 = arith.constant dense<0.000000e+00> : vector<128x128xf32>
    %7 = tpu.matmul %5, %6, %cst_4 {dimension_numbers = #tpu.dot_dimension_numbers<[1], [0], [0], [1], [0, 0, 1, 1], [], []>} : vector<128x384xbf16>, vector<384x128xbf16>, vector<128x128xf32> -> vector<128x128xf32>
    %c0_5 = arith.constant 0 : index
    %c0_6 = arith.constant 0 : index
    %8 = vector.load %arg7[%c0_5, %c0_6] : memref<5x128xf32, #tpu.memory_space<vmem>>, vector<1x128xf32>
    %9 = vector.broadcast %8 : vector<1x128xf32> to vector<128x128xf32>
    %10 = arith.addf %7, %9 : vector<128x128xf32>
    %11 = math.tanh %10 : vector<128x128xf32>
    %12 = vector.shape_cast %11 : vector<128x128xf32> to vector<8x16x128xf32>
    %c16_i32 = arith.constant 16 : i32
    %13 = vector.broadcast %c16_i32 : i32 to vector<8x16x1xi32>
    %14 = arith.cmpi slt, %4, %13 : vector<8x16x1xi32>
    %cst_7 = arith.constant -2.000000e+00 : f32
    %15 = vector.shape_cast %14 : vector<8x16x1xi1> to vector<8x16x1xi1>
    %16 = vector.broadcast %15 : vector<8x16x1xi1> to vector<8x16x128xi1>
    %17 = vector.broadcast %cst_7 : f32 to vector<8x16x128xf32>
    %18 = arith.select %16, %12, %17 : vector<8x16x128xi1>, vector<8x16x128xf32>
    %cst_8 = arith.constant dense<0xFF800000> : vector<8x128xf32>
    %19 = vector.multi_reduction <maximumf>, %18, %cst_8 [1] : vector<8x16x128xf32> to vector<8x128xf32>
    %20 = vector.extract_strided_slice %3 {offsets = [0, 0], sizes = [128, 384], strides = [1, 1]} : vector<136x384xbf16> to vector<128x384xbf16>
    %21 = vector.extract_strided_slice %3 {offsets = [1, 0], sizes = [128, 384], strides = [1, 1]} : vector<136x384xbf16> to vector<128x384xbf16>
    %22 = tpu.concatenate %20, %21 in 1 : vector<128x384xbf16>, vector<128x384xbf16> -> vector<128x768xbf16>
    %c0_9 = arith.constant 0 : index
    %c0_10 = arith.constant 0 : index
    %23 = vector.load %arg3[%c0_9, %c0_10] : memref<768x256xbf16, #tpu.memory_space<vmem>>, vector<768x256xbf16>
    %cst_11 = arith.constant dense<0.000000e+00> : vector<128x256xf32>
    %24 = tpu.matmul %22, %23, %cst_11 {dimension_numbers = #tpu.dot_dimension_numbers<[1], [0], [0], [1], [0, 0, 1, 1], [], []>} : vector<128x768xbf16>, vector<768x256xbf16>, vector<128x256xf32> -> vector<128x256xf32>
    %25 = vector.extract_strided_slice %24 {offsets = [0, 0], sizes = [128, 128], strides = [1, 1]} : vector<128x256xf32> to vector<128x128xf32>
    %c1 = arith.constant 1 : index
    %c0_12 = arith.constant 0 : index
    %26 = vector.load %arg7[%c1, %c0_12] : memref<5x128xf32, #tpu.memory_space<vmem>>, vector<1x128xf32>
    %27 = vector.broadcast %26 : vector<1x128xf32> to vector<128x128xf32>
    %28 = arith.addf %25, %27 : vector<128x128xf32>
    %29 = math.tanh %28 : vector<128x128xf32>
    %30 = vector.shape_cast %29 : vector<128x128xf32> to vector<8x16x128xf32>
    %c15_i32 = arith.constant 15 : i32
    %31 = vector.broadcast %c15_i32 : i32 to vector<8x16x1xi32>
    %32 = arith.cmpi slt, %4, %31 : vector<8x16x1xi32>
    %cst_13 = arith.constant -2.000000e+00 : f32
    %33 = vector.shape_cast %32 : vector<8x16x1xi1> to vector<8x16x1xi1>
    %34 = vector.broadcast %33 : vector<8x16x1xi1> to vector<8x16x128xi1>
    %35 = vector.broadcast %cst_13 : f32 to vector<8x16x128xf32>
    %36 = arith.select %34, %30, %35 : vector<8x16x128xi1>, vector<8x16x128xf32>
    %cst_14 = arith.constant dense<0xFF800000> : vector<8x128xf32>
    %37 = vector.multi_reduction <maximumf>, %36, %cst_14 [1] : vector<8x16x128xf32> to vector<8x128xf32>
    %38 = vector.extract_strided_slice %24 {offsets = [0, 128], sizes = [128, 128], strides = [1, 1]} : vector<128x256xf32> to vector<128x128xf32>
    %39 = vector.extract_strided_slice %3 {offsets = [2, 0], sizes = [128, 384], strides = [1, 1]} : vector<136x384xbf16> to vector<128x384xbf16>
    %c0_15 = arith.constant 0 : index
    %c0_16 = arith.constant 0 : index
    %40 = vector.load %arg4[%c0_15, %c0_16] : memref<384x128xbf16, #tpu.memory_space<vmem>>, vector<384x128xbf16>
    %cst_17 = arith.constant dense<0.000000e+00> : vector<128x128xf32>
    %41 = tpu.matmul %39, %40, %cst_17 {dimension_numbers = #tpu.dot_dimension_numbers<[1], [0], [0], [1], [0, 0, 1, 1], [], []>} : vector<128x384xbf16>, vector<384x128xbf16>, vector<128x128xf32> -> vector<128x128xf32>
    %42 = arith.addf %38, %41 : vector<128x128xf32>
    %c2 = arith.constant 2 : index
    %c0_18 = arith.constant 0 : index
    %43 = vector.load %arg7[%c2, %c0_18] : memref<5x128xf32, #tpu.memory_space<vmem>>, vector<1x128xf32>
    %44 = vector.broadcast %43 : vector<1x128xf32> to vector<128x128xf32>
    %45 = arith.addf %42, %44 : vector<128x128xf32>
    %46 = math.tanh %45 : vector<128x128xf32>
    %47 = vector.shape_cast %46 : vector<128x128xf32> to vector<8x16x128xf32>
    %c14_i32 = arith.constant 14 : i32
    %48 = vector.broadcast %c14_i32 : i32 to vector<8x16x1xi32>
    %49 = arith.cmpi slt, %4, %48 : vector<8x16x1xi32>
    %cst_19 = arith.constant -2.000000e+00 : f32
    %50 = vector.shape_cast %49 : vector<8x16x1xi1> to vector<8x16x1xi1>
    %51 = vector.broadcast %50 : vector<8x16x1xi1> to vector<8x16x128xi1>
    %52 = vector.broadcast %cst_19 : f32 to vector<8x16x128xf32>
    %53 = arith.select %51, %47, %52 : vector<8x16x128xi1>, vector<8x16x128xf32>
    %cst_20 = arith.constant dense<0xFF800000> : vector<8x128xf32>
    %54 = vector.multi_reduction <maximumf>, %53, %cst_20 [1] : vector<8x16x128xf32> to vector<8x128xf32>
    %55 = vector.extract_strided_slice %3 {offsets = [0, 0], sizes = [128, 384], strides = [1, 1]} : vector<136x384xbf16> to vector<128x384xbf16>
    %56 = vector.extract_strided_slice %3 {offsets = [1, 0], sizes = [128, 384], strides = [1, 1]} : vector<136x384xbf16> to vector<128x384xbf16>
    %57 = vector.extract_strided_slice %3 {offsets = [2, 0], sizes = [128, 384], strides = [1, 1]} : vector<136x384xbf16> to vector<128x384xbf16>
    %58 = vector.extract_strided_slice %3 {offsets = [3, 0], sizes = [128, 384], strides = [1, 1]} : vector<136x384xbf16> to vector<128x384xbf16>
    %59 = vector.extract_strided_slice %3 {offsets = [4, 0], sizes = [128, 384], strides = [1, 1]} : vector<136x384xbf16> to vector<128x384xbf16>
    %60 = tpu.concatenate %55, %56, %57, %58, %59 in 1 : vector<128x384xbf16>, vector<128x384xbf16>, vector<128x384xbf16>, vector<128x384xbf16>, vector<128x384xbf16> -> vector<128x1920xbf16>
    %c0_21 = arith.constant 0 : index
    %c0_22 = arith.constant 0 : index
    %61 = vector.load %arg5[%c0_21, %c0_22] : memref<1920x256xbf16, #tpu.memory_space<vmem>>, vector<1920x256xbf16>
    %cst_23 = arith.constant dense<0.000000e+00> : vector<128x256xf32>
    %62 = tpu.matmul %60, %61, %cst_23 {dimension_numbers = #tpu.dot_dimension_numbers<[1], [0], [0], [1], [0, 0, 1, 1], [], []>} : vector<128x1920xbf16>, vector<1920x256xbf16>, vector<128x256xf32> -> vector<128x256xf32>
    %63 = vector.extract_strided_slice %62 {offsets = [0, 0], sizes = [128, 128], strides = [1, 1]} : vector<128x256xf32> to vector<128x128xf32>
    %c3 = arith.constant 3 : index
    %c0_24 = arith.constant 0 : index
    %64 = vector.load %arg7[%c3, %c0_24] : memref<5x128xf32, #tpu.memory_space<vmem>>, vector<1x128xf32>
    %65 = vector.broadcast %64 : vector<1x128xf32> to vector<128x128xf32>
    %66 = arith.addf %63, %65 : vector<128x128xf32>
    %67 = math.tanh %66 : vector<128x128xf32>
    %68 = vector.shape_cast %67 : vector<128x128xf32> to vector<8x16x128xf32>
    %c12_i32 = arith.constant 12 : i32
    %69 = vector.broadcast %c12_i32 : i32 to vector<8x16x1xi32>
    %70 = arith.cmpi slt, %4, %69 : vector<8x16x1xi32>
    %cst_25 = arith.constant -2.000000e+00 : f32
    %71 = vector.shape_cast %70 : vector<8x16x1xi1> to vector<8x16x1xi1>
    %72 = vector.broadcast %71 : vector<8x16x1xi1> to vector<8x16x128xi1>
    %73 = vector.broadcast %cst_25 : f32 to vector<8x16x128xf32>
    %74 = arith.select %72, %68, %73 : vector<8x16x128xi1>, vector<8x16x128xf32>
    %cst_26 = arith.constant dense<0xFF800000> : vector<8x128xf32>
    %75 = vector.multi_reduction <maximumf>, %74, %cst_26 [1] : vector<8x16x128xf32> to vector<8x128xf32>
    %76 = vector.extract_strided_slice %62 {offsets = [0, 128], sizes = [128, 128], strides = [1, 1]} : vector<128x256xf32> to vector<128x128xf32>
    %77 = vector.extract_strided_slice %3 {offsets = [5, 0], sizes = [128, 384], strides = [1, 1]} : vector<136x384xbf16> to vector<128x384xbf16>
    %78 = vector.extract_strided_slice %3 {offsets = [6, 0], sizes = [128, 384], strides = [1, 1]} : vector<136x384xbf16> to vector<128x384xbf16>
    %79 = vector.extract_strided_slice %3 {offsets = [7, 0], sizes = [128, 384], strides = [1, 1]} : vector<136x384xbf16> to vector<128x384xbf16>
    %80 = tpu.concatenate %77, %78, %79 in 1 : vector<128x384xbf16>, vector<128x384xbf16>, vector<128x384xbf16> -> vector<128x1152xbf16>
    %c0_27 = arith.constant 0 : index
    %c0_28 = arith.constant 0 : index
    %81 = vector.load %arg6[%c0_27, %c0_28] : memref<1152x128xbf16, #tpu.memory_space<vmem>>, vector<1152x128xbf16>
    %cst_29 = arith.constant dense<0.000000e+00> : vector<128x128xf32>
    %82 = tpu.matmul %80, %81, %cst_29 {dimension_numbers = #tpu.dot_dimension_numbers<[1], [0], [0], [1], [0, 0, 1, 1], [], []>} : vector<128x1152xbf16>, vector<1152x128xbf16>, vector<128x128xf32> -> vector<128x128xf32>
    %83 = arith.addf %76, %82 : vector<128x128xf32>
    %c4 = arith.constant 4 : index
    %c0_30 = arith.constant 0 : index
    %84 = vector.load %arg7[%c4, %c0_30] : memref<5x128xf32, #tpu.memory_space<vmem>>, vector<1x128xf32>
    %85 = vector.broadcast %84 : vector<1x128xf32> to vector<128x128xf32>
    %86 = arith.addf %83, %85 : vector<128x128xf32>
    %87 = math.tanh %86 : vector<128x128xf32>
    %88 = vector.shape_cast %87 : vector<128x128xf32> to vector<8x16x128xf32>
    %c9_i32 = arith.constant 9 : i32
    %89 = vector.broadcast %c9_i32 : i32 to vector<8x16x1xi32>
    %90 = arith.cmpi slt, %4, %89 : vector<8x16x1xi32>
    %cst_31 = arith.constant -2.000000e+00 : f32
    %91 = vector.shape_cast %90 : vector<8x16x1xi1> to vector<8x16x1xi1>
    %92 = vector.broadcast %91 : vector<8x16x1xi1> to vector<8x16x128xi1>
    %93 = vector.broadcast %cst_31 : f32 to vector<8x16x128xf32>
    %94 = arith.select %92, %88, %93 : vector<8x16x128xi1>, vector<8x16x128xf32>
    %cst_32 = arith.constant dense<0xFF800000> : vector<8x128xf32>
    %95 = vector.multi_reduction <maximumf>, %94, %cst_32 [1] : vector<8x16x128xf32> to vector<8x128xf32>
    %96 = tpu.concatenate %19, %37, %54, %75, %95 in 1 : vector<8x128xf32>, vector<8x128xf32>, vector<8x128xf32>, vector<8x128xf32>, vector<8x128xf32> -> vector<8x640xf32>
    %97 = arith.truncf %96 : vector<8x640xf32> to vector<8x640xbf16>
    %c0_33 = arith.constant 0 : index
    %c0_34 = arith.constant 0 : index
    %98 = vector.load %arg8[%c0_33, %c0_34] : memref<640x128xbf16, #tpu.memory_space<vmem>>, vector<640x128xbf16>
    %cst_35 = arith.constant dense<0.000000e+00> : vector<8x128xf32>
    %99 = tpu.matmul %97, %98, %cst_35 {dimension_numbers = #tpu.dot_dimension_numbers<[1], [0], [0], [1], [0, 0, 1, 1], [], []>} : vector<8x640xbf16>, vector<640x128xbf16>, vector<8x128xf32> -> vector<8x128xf32>
    %c0_36 = arith.constant 0 : index
    %c0_37 = arith.constant 0 : index
    %100 = vector.load %arg9[%c0_36, %c0_37] : memref<1x128xf32, #tpu.memory_space<vmem>>, vector<1x128xf32>
    %101 = vector.broadcast %100 : vector<1x128xf32> to vector<8x128xf32>
    %102 = arith.addf %99, %101 : vector<8x128xf32>
    %cst_38 = arith.constant 0.000000e+00 : f32
    %103 = vector.broadcast %cst_38 : f32 to vector<8x128xf32>
    %104 = arith.maximumf %102, %103 : vector<8x128xf32>
    %105 = arith.truncf %104 : vector<8x128xf32> to vector<8x128xbf16>
    %c0_39 = arith.constant 0 : index
    %c0_40 = arith.constant 0 : index
    %106 = vector.load %arg10[%c0_39, %c0_40] : memref<128x64xbf16, #tpu.memory_space<vmem>>, vector<128x64xbf16>
    %cst_41 = arith.constant dense<0.000000e+00> : vector<8x64xf32>
    %107 = tpu.matmul %105, %106, %cst_41 {dimension_numbers = #tpu.dot_dimension_numbers<[1], [0], [0], [1], [0, 0, 1, 1], [], []>} : vector<8x128xbf16>, vector<128x64xbf16>, vector<8x64xf32> -> vector<8x64xf32>
    %c0_42 = arith.constant 0 : index
    %c0_43 = arith.constant 0 : index
    %108 = vector.load %arg11[%c0_42, %c0_43] : memref<1x64xf32, #tpu.memory_space<vmem>>, vector<1x64xf32>
    %109 = vector.broadcast %108 : vector<1x64xf32> to vector<8x64xf32>
    %110 = arith.addf %107, %109 : vector<8x64xf32>
    %cst_44 = arith.constant 0.000000e+00 : f32
    %111 = vector.broadcast %cst_44 : f32 to vector<8x64xf32>
    %112 = arith.maximumf %110, %111 : vector<8x64xf32>
    %113 = arith.truncf %112 : vector<8x64xf32> to vector<8x64xbf16>
    %c0_45 = arith.constant 0 : index
    %c0_46 = arith.constant 0 : index
    %114 = vector.load %arg12[%c0_45, %c0_46] : memref<64x128xbf16, #tpu.memory_space<vmem>>, vector<64x128xbf16>
    %cst_47 = arith.constant dense<0.000000e+00> : vector<8x128xf32>
    %115 = tpu.matmul %113, %114, %cst_47 {dimension_numbers = #tpu.dot_dimension_numbers<[1], [0], [0], [1], [0, 0, 1, 1], [], []>} : vector<8x64xbf16>, vector<64x128xbf16>, vector<8x128xf32> -> vector<8x128xf32>
    %c0_48 = arith.constant 0 : index
    %c0_49 = arith.constant 0 : index
    %116 = vector.load %arg13[%c0_48, %c0_49] : memref<1x128xf32, #tpu.memory_space<vmem>>, vector<1x128xf32>
    %117 = vector.broadcast %116 : vector<1x128xf32> to vector<8x128xf32>
    %118 = arith.addf %115, %117 : vector<8x128xf32>
    %cst_50 = arith.constant dense<0xFF800000> : vector<8xf32>
    %119 = vector.multi_reduction <maximumf>, %118, %cst_50 [1] : vector<8x128xf32> to vector<8xf32>
    %120 = vector.shape_cast %119 : vector<8xf32> to vector<8x1xf32>
    %121 = vector.broadcast %120 : vector<8x1xf32> to vector<8x128xf32>
    %122 = arith.subf %118, %121 : vector<8x128xf32>
    %123 = math.exp %122 : vector<8x128xf32>
    %cst_51 = arith.constant dense<0.000000e+00> : vector<8xf32>
    %124 = vector.multi_reduction <add>, %123, %cst_51 [1] : vector<8x128xf32> to vector<8xf32>
    %125 = vector.shape_cast %124 : vector<8xf32> to vector<8x1xf32>
    %126 = vector.broadcast %125 : vector<8x1xf32> to vector<8x128xf32>
    %127 = arith.divf %123, %126 : vector<8x128xf32>
    %c0_52 = arith.constant 0 : index
    %c0_53 = arith.constant 0 : index
    %128 = vector.load %arg14[%c0_52, %c0_53] : memref<8x128xf32, #tpu.memory_space<vmem>>, vector<8x128xf32>
    tpu.vector_store %arg14[%c0_52, %c0_53], %127 {strides = array<i32>} : memref<8x128xf32, #tpu.memory_space<vmem>>, vector<8x128xf32>,
    return
  }
  func.func @transform_0(%arg0: i32) -> (i32, i32, i32) {
    %c0_i32 = arith.constant 0 : i32
    %c0_i32_0 = arith.constant 0 : i32
    %c0_i32_1 = arith.constant 0 : i32
    return %arg0, %c0_i32, %c0_i32_0 : i32, i32, i32
  }
  func.func @transform_1(%arg0: i32) -> (i32, i32) {
    %c0_i32 = arith.constant 0 : i32
    %c0_i32_0 = arith.constant 0 : i32
    %c0_i32_1 = arith.constant 0 : i32
    return %c0_i32, %c0_i32_0 : i32, i32
  }
  func.func @transform_2(%arg0: i32) -> (i32, i32) {
    %c0_i32 = arith.constant 0 : i32
    %c0_i32_0 = arith.constant 0 : i32
    %c0_i32_1 = arith.constant 0 : i32
    return %c0_i32, %c0_i32_0 : i32, i32
  }
  func.func @transform_3(%arg0: i32) -> (i32, i32) {
    %c0_i32 = arith.constant 0 : i32
    %c0_i32_0 = arith.constant 0 : i32
    %c0_i32_1 = arith.constant 0 : i32
    return %c0_i32, %c0_i32_0 : i32, i32
  }
  func.func @transform_4(%arg0: i32) -> (i32, i32) {
    %c0_i32 = arith.constant 0 : i32
    %c0_i32_0 = arith.constant 0 : i32
    %c0_i32_1 = arith.constant 0 : i32
    return %c0_i32, %c0_i32_0 : i32, i32
  }
  func.func @transform_5(%arg0: i32) -> (i32, i32) {
    %c0_i32 = arith.constant 0 : i32
    %c0_i32_0 = arith.constant 0 : i32
    %c0_i32_1 = arith.constant 0 : i32
    return %c0_i32, %c0_i32_0 : i32, i32
  }
  func.func @transform_6(%arg0: i32) -> (i32, i32) {
    %c0_i32 = arith.constant 0 : i32
    %c0_i32_0 = arith.constant 0 : i32
    %c0_i32_1 = arith.constant 0 : i32
    return %c0_i32, %c0_i32_0 : i32, i32
  }
  func.func @transform_7(%arg0: i32) -> (i32, i32) {
    %c0_i32 = arith.constant 0 : i32
    %c0_i32_0 = arith.constant 0 : i32
    %c0_i32_1 = arith.constant 0 : i32
    return %c0_i32, %c0_i32_0 : i32, i32
  }
  func.func @transform_8(%arg0: i32) -> (i32, i32) {
    %c0_i32 = arith.constant 0 : i32
    %c0_i32_0 = arith.constant 0 : i32
    %c0_i32_1 = arith.constant 0 : i32
    return %c0_i32, %c0_i32_0 : i32, i32
  }
  func.func @transform_9(%arg0: i32) -> (i32, i32) {
    %c0_i32 = arith.constant 0 : i32
    %c0_i32_0 = arith.constant 0 : i32
    %c0_i32_1 = arith.constant 0 : i32
    return %c0_i32, %c0_i32_0 : i32, i32
  }
  func.func @transform_10(%arg0: i32) -> (i32, i32) {
    %c0_i32 = arith.constant 0 : i32
    %c0_i32_0 = arith.constant 0 : i32
    %c0_i32_1 = arith.constant 0 : i32
    return %c0_i32, %c0_i32_0 : i32, i32
  }
  func.func @transform_11(%arg0: i32) -> (i32, i32) {
    %c0_i32 = arith.constant 0 : i32
    %c0_i32_0 = arith.constant 0 : i32
    %c0_i32_1 = arith.constant 0 : i32
    return %c0_i32, %c0_i32_0 : i32, i32
  }
  func.func @transform_12(%arg0: i32) -> (i32, i32) {
    %c0_i32 = arith.constant 0 : i32
    %c0_i32_0 = arith.constant 0 : i32
    %c0_i32_1 = arith.constant 0 : i32
    return %c0_i32, %c0_i32_0 : i32, i32
  }
  func.func @transform_13(%arg0: i32) -> (i32, i32) {
    %c0_i32 = arith.constant 0 : i32
    %c0_i32_0 = arith.constant 0 : i32
    return %arg0, %c0_i32 : i32, i32
  }
}

</mosaic_0001>

<llo_original>
// kernel: tpu_custom_call.1
$region0: #{tpu_custom_call.1}
  #allocation0 [shape = 'u32[]', space=smem, size = 0x4, offset = 0x4, fixed_abs, tag = 'smem constant byte address 0x4 - core index']
  #allocation1 [shape = 'u32[144,128]{1,0:T(1,128)}', space=vmem, size = 0x12000, scoped, tag = 'internal scratch']
  %s0 = inlined_call_operand.hbm [shape: bf16[8,16,384], index: 0, kind: input, shape index: {}]
  %s1 = inlined_call_operand.hbm [shape: bf16[384,128], index: 1, kind: input, shape index: {}]
  %s2 = inlined_call_operand.hbm [shape: bf16[768,256], index: 2, kind: input, shape index: {}]
  %s3 = inlined_call_operand.hbm [shape: bf16[384,128], index: 3, kind: input, shape index: {}]
  %s4 = inlined_call_operand.hbm [shape: bf16[1920,256], index: 4, kind: input, shape index: {}]
  %s5 = inlined_call_operand.hbm [shape: bf16[1152,128], index: 5, kind: input, shape index: {}]
  %s6 = inlined_call_operand.vmem [shape: f32[5,128], index: 6, kind: input, shape index: {}]
  %s7 = inlined_call_operand.hbm [shape: bf16[640,128], index: 7, kind: input, shape index: {}]
  %s8 = inlined_call_operand.vmem [shape: f32[1,128], index: 8, kind: input, shape index: {}]
  %s9 = inlined_call_operand.vmem [shape: bf16[128,64], index: 9, kind: input, shape index: {}]
  %s10 = inlined_call_operand.vmem [shape: f32[1,64], index: 10, kind: input, shape index: {}]
  %s11 = inlined_call_operand.vmem [shape: bf16[64,128], index: 11, kind: input, shape index: {}]
  %s12 = inlined_call_operand.vmem [shape: f32[1,128], index: 12, kind: input, shape index: {}]
  %s13 = inlined_call_operand.hbm [shape: f32[8,128], index: 13, kind: output, shape index: {}]
  %s14 = sld [smem:[#allocation0]]
  $region90: #{tpu_custom_call.1} parent=0
    _
  %s16 = ssub.s32 1, %s14
  %s17 = scalar_select 0, %s16, %s14
  $region1: #{tpu_custom_call.1} parent=0
    #allocation2 [shape = 'u8[98304]{0}', space=vmem, size = 0x18000, scoped, tag = 'input window, operand 0, single buffered']
    #allocation3 [shape = 's32[1]{0}', space=sflag, size = 0x4, scoped, tag = 'scoped memory for tpu_custom_call.1']
    #allocation4 [shape = 's32[1]{0}', space=sflag, size = 0x4, scoped, tag = 'scoped memory for tpu_custom_call.1']
    #allocation5 [shape = 'u8[98304]{0}', space=vmem, size = 0x18000, scoped, tag = 'input window, operand 1, single buffered']
    #allocation6 [shape = 's32[1]{0}', space=sflag, size = 0x4, scoped, tag = 'scoped memory for tpu_custom_call.1']
    #allocation7 [shape = 'u8[393216]{0}', space=vmem, size = 0x60000, scoped, tag = 'input window, operand 2, single buffered']
    #allocation8 [shape = 'u8[98304]{0}', space=vmem, size = 0x18000, scoped, tag = 'input window, operand 3, single buffered']
    #allocation9 [shape = 's32[1]{0}', space=sflag, size = 0x4, scoped, tag = 'scoped memory for tpu_custom_call.1']
    #allocation10 [shape = 'u8[983040]{0}', space=vmem, size = 0xf0000, scoped, tag = 'input window, operand 4, single buffered']
    #allocation11 [shape = 'u8[294912]{0}', space=vmem, size = 0x48000, scoped, tag = 'input window, operand 5, single buffered']
    #allocation12 [shape = 's32[1]{0}', space=sflag, size = 0x4, scoped, tag = 'scoped memory for tpu_custom_call.1']
    #allocation13 [shape = 'u8[163840]{0}', space=vmem, size = 0x28000, scoped, tag = 'input window, operand 7, single buffered']
    #allocation14 [shape = 'u8[4096]{0}', space=vmem, size = 0x1000, scoped, tag = 'output window, operand 0, single buffered']
    %18 = vsyncpa [#allocation3], 0
    %19 = vsyncpa [#allocation6], 0
    %20 = vsyncpa [#allocation9], 0
    %21 = vsyncpa [#allocation12], 0
    %22 = vsyncpa [#allocation4], 0
    // Predicated region
    $region2: #{tpu_custom_call.1} parent=1 // pred_check
      _
    $region3: #{tpu_custom_call.1} parent=1 // pred_check_branch
      %24 = sbr.rel (0) target = $region5
    $region4: #{tpu_custom_call.1} parent=1 // pred_region
      %s26 = ssub.s32 3072, 3072
      %27 = vsyncadd [#allocation3], %s26
      %s28 = sshll.u32 [#allocation2], 4
      %s29 = int_to_ptr.vmem [resolvable:$true] %s28
      %34 = dma.hbm_to_vmem [thread:$0]  %s0, 3072, %s29, [#allocation3], 192, 192, 12
    $region5: #{tpu_custom_call.1} parent=1 // pred_fallthru
      _
    // Predicated region
    $region6: #{tpu_custom_call.1} parent=1 // pred_check
      _
    $region7: #{tpu_custom_call.1} parent=1 // pred_check_branch
      %36 = sbr.rel (0) target = $region9
    $region8: #{tpu_custom_call.1} parent=1 // pred_region
      %s38 = ssub.s32 3072, 3072
      %39 = vsyncadd [#allocation6], %s38
      %s40 = sshll.u32 [#allocation5], 4
      %s41 = int_to_ptr.vmem [resolvable:$true] %s40
      %46 = dma.hbm_to_vmem [thread:$0]  %s1, 3072, %s41, [#allocation6], 64, 64, 4
    $region9: #{tpu_custom_call.1} parent=1 // pred_fallthru
      _
    // Predicated region
    $region10: #{tpu_custom_call.1} parent=1 // pred_check
      _
    $region11: #{tpu_custom_call.1} parent=1 // pred_check_branch
      %48 = sbr.rel (0) target = $region13
    $region12: #{tpu_custom_call.1} parent=1 // pred_region
      %s50 = ssub.s32 12288, 12288
      %51 = vsyncadd [#allocation6], %s50
      %s52 = sshll.u32 [#allocation7], 4
      %s53 = int_to_ptr.vmem [resolvable:$true] %s52
      %58 = dma.hbm_to_vmem [thread:$0]  %s2, 12288, %s53, [#allocation6], 128, 128, 8
    $region13: #{tpu_custom_call.1} parent=1 // pred_fallthru
      _
    // Predicated region
    $region14: #{tpu_custom_call.1} parent=1 // pred_check
      _
    $region15: #{tpu_custom_call.1} parent=1 // pred_check_branch
      %60 = sbr.rel (0) target = $region17
    $region16: #{tpu_custom_call.1} parent=1 // pred_region
      %s62 = ssub.s32 3072, 3072
      %63 = vsyncadd [#allocation9], %s62
      %s64 = sshll.u32 [#allocation8], 4
      %s65 = int_to_ptr.vmem [resolvable:$true] %s64
      %70 = dma.hbm_to_vmem [thread:$0]  %s3, 3072, %s65, [#allocation9], 64, 64, 4
    $region17: #{tpu_custom_call.1} parent=1 // pred_fallthru
      _
    // Predicated region
    $region18: #{tpu_custom_call.1} parent=1 // pred_check
      _
    $region19: #{tpu_custom_call.1} parent=1 // pred_check_branch
      %72 = sbr.rel (0) target = $region21
    $region20: #{tpu_custom_call.1} parent=1 // pred_region
      %s74 = ssub.s32 30720, 30720
      %75 = vsyncadd [#allocation9], %s74
      %s76 = sshll.u32 [#allocation10], 4
      %s77 = int_to_ptr.vmem [resolvable:$true] %s76
      %82 = dma.hbm_to_vmem [thread:$0]  %s4, 30720, %s77, [#allocation9], 128, 128, 8
    $region21: #{tpu_custom_call.1} parent=1 // pred_fallthru
      _
    // Predicated region
    $region22: #{tpu_custom_call.1} parent=1 // pred_check
      _
    $region23: #{tpu_custom_call.1} parent=1 // pred_check_branch
      %84 = sbr.rel (0) target = $region25
    $region24: #{tpu_custom_call.1} parent=1 // pred_region
      %s86 = ssub.s32 9216, 9216
      %87 = vsyncadd [#allocation12], %s86
      %s88 = sshll.u32 [#allocation11], 4
      %s89 = int_to_ptr.vmem [resolvable:$true] %s88
      %94 = dma.hbm_to_vmem [thread:$0]  %s5, 9216, %s89, [#allocation12], 64, 64, 4
    $region25: #{tpu_custom_call.1} parent=1 // pred_fallthru
      _
    // Predicated region
    $region26: #{tpu_custom_call.1} parent=1 // pred_check
      _
    $region27: #{tpu_custom_call.1} parent=1 // pred_check_branch
      %96 = sbr.rel (0) target = $region29
    $region28: #{tpu_custom_call.1} parent=1 // pred_region
      _
    $region29: #{tpu_custom_call.1} parent=1 // pred_fallthru
      _
    // Predicated region
    $region30: #{tpu_custom_call.1} parent=1 // pred_check
      _
    $region31: #{tpu_custom_call.1} parent=1 // pred_check_branch
      %98 = sbr.rel (0) target = $region33
    $region32: #{tpu_custom_call.1} parent=1 // pred_region
      %s100 = ssub.s32 5120, 5120
      %101 = vsyncadd [#allocation12], %s100
      %s102 = sshll.u32 [#allocation13], 4
      %s103 = int_to_ptr.vmem [resolvable:$true] %s102
      %108 = dma.hbm_to_vmem [thread:$0]  %s7, 5120, %s103, [#allocation12], 64, 64, 4
    $region33: #{tpu_custom_call.1} parent=1 // pred_fallthru
      _
    // Predicated region
    $region34: #{tpu_custom_call.1} parent=1 // pred_check
      _
    $region35: #{tpu_custom_call.1} parent=1 // pred_check_branch
      %110 = sbr.rel (0) target = $region37
    $region36: #{tpu_custom_call.1} parent=1 // pred_region
      _
    $region37: #{tpu_custom_call.1} parent=1 // pred_fallthru
      _
    // Predicated region
    $region38: #{tpu_custom_call.1} parent=1 // pred_check
      _
    $region39: #{tpu_custom_call.1} parent=1 // pred_check_branch
      %112 = sbr.rel (0) target = $region41
    $region40: #{tpu_custom_call.1} parent=1 // pred_region
      _
    $region41: #{tpu_custom_call.1} parent=1 // pred_fallthru
      _
    // Predicated region
    $region42: #{tpu_custom_call.1} parent=1 // pred_check
      _
    $region43: #{tpu_custom_call.1} parent=1 // pred_check_branch
      %114 = sbr.rel (0) target = $region45
    $region44: #{tpu_custom_call.1} parent=1 // pred_region
      _
    $region45: #{tpu_custom_call.1} parent=1 // pred_fallthru
      _
    // Predicated region
    $region46: #{tpu_custom_call.1} parent=1 // pred_check
      _
    $region47: #{tpu_custom_call.1} parent=1 // pred_check_branch
      %116 = sbr.rel (0) target = $region49
    $region48: #{tpu_custom_call.1} parent=1 // pred_region
      _
    $region49: #{tpu_custom_call.1} parent=1 // pred_fallthru
      _
    // Predicated region
    $region50: #{tpu_custom_call.1} parent=1 // pred_check
      _
    $region51: #{tpu_custom_call.1} parent=1 // pred_check_branch
      %118 = sbr.rel (0) target = $region53
    $region52: #{tpu_custom_call.1} parent=1 // pred_region
      _
    $region53: #{tpu_custom_call.1} parent=1 // pred_fallthru
      _
    // Predicated region
    $region54: #{tpu_custom_call.1} parent=1 // pred_check
      _
    $region55: #{tpu_custom_call.1} parent=1 // pred_check_branch
      %120 = sbr.rel (0) target = $region57
    $region56: #{tpu_custom_call.1} parent=1 // pred_region
      %121 = dma.done [#allocation3], 3072
    $region57: #{tpu_custom_call.1} parent=1 // pred_fallthru
      _
    // Predicated region
    $region58: #{tpu_custom_call.1} parent=1 // pred_check
      _
    $region59: #{tpu_custom_call.1} parent=1 // pred_check_branch
      %123 = sbr.rel (0) target = $region61
    $region60: #{tpu_custom_call.1} parent=1 // pred_region
      %124 = dma.done [#allocation6], 3072
    $region61: #{tpu_custom_call.1} parent=1 // pred_fallthru
      _
    // Predicated region
    $region62: #{tpu_custom_call.1} parent=1 // pred_check
      _
    $region63: #{tpu_custom_call.1} parent=1 // pred_check_branch
      %126 = sbr.rel (0) target = $region65
    $region64: #{tpu_custom_call.1} parent=1 // pred_region
      %127 = dma.done [#allocation6], 12288
    $region65: #{tpu_custom_call.1} parent=1 // pred_fallthru
      _
    // Predicated region
    $region66: #{tpu_custom_call.1} parent=1 // pred_check
      _
    $region67: #{tpu_custom_call.1} parent=1 // pred_check_branch
      %129 = sbr.rel (0) target = $region69
    $region68: #{tpu_custom_call.1} parent=1 // pred_region
      %130 = dma.done [#allocation9], 3072
    $region69: #{tpu_custom_call.1} parent=1 // pred_fallthru
      _
    // Predicated region
    $region70: #{tpu_custom_call.1} parent=1 // pred_check
      _
    $region71: #{tpu_custom_call.1} parent=1 // pred_check_branch
      %132 = sbr.rel (0) target = $region73
    $region72: #{tpu_custom_call.1} parent=1 // pred_region
      %133 = dma.done [#allocation9], 30720
    $region73: #{tpu_custom_call.1} parent=1 // pred_fallthru
      _
    // Predicated region
    $region74: #{tpu_custom_call.1} parent=1 // pred_check
      _
    $region75: #{tpu_custom_call.1} parent=1 // pred_check_branch
      %135 = sbr.rel (0) target = $region77
    $region76: #{tpu_custom_call.1} parent=1 // pred_region
      %136 = dma.done [#allocation12], 9216
    $region77: #{tpu_custom_call.1} parent=1 // pred_fallthru
      _
    // Predicated region
    $region78: #{tpu_custom_call.1} parent=1 // pred_check
      _
    $region79: #{tpu_custom_call.1} parent=1 // pred_check_branch
      %138 = sbr.rel (0) target = $region81
    $region80: #{tpu_custom_call.1} parent=1 // pred_region
      %139 = dma.done [#allocation12], 5120
    $region81: #{tpu_custom_call.1} parent=1 // pred_fallthru
      _
    %v141 = vld [vmem:[#allocation2] sm:$0xff]
    %v142 = vld [vmem:[#allocation2 + $0x8] sm:$0xf]
    %v143 = vld [vmem:[#allocation2 + $0xc] sm:$0xff]
    %v144 = vld [vmem:[#allocation2 + $0x14] sm:$0xf]
    %v145 = vld [vmem:[#allocation2 + $0x18] sm:$0xff]
    %v146 = vld [vmem:[#allocation2 + $0x20] sm:$0xf]
    %v147 = vld [vmem:[#allocation2 + $0x24] sm:$0xff]
    %v148 = vld [vmem:[#allocation2 + $0x2c] sm:$0xf]
    %v149 = vld [vmem:[#allocation2 + $0x30] sm:$0xff]
    %v150 = vld [vmem:[#allocation2 + $0x38] sm:$0xf]
    %v151 = vld [vmem:[#allocation2 + $0x3c] sm:$0xff]
    %v152 = vld [vmem:[#allocation2 + $0x44] sm:$0xf]
    %v153 = vld [vmem:[#allocation2 + $0x48] sm:$0xff]
    %v154 = vld [vmem:[#allocation2 + $0x50] sm:$0xf]
    %v155 = vld [vmem:[#allocation2 + $0x54] sm:$0xff]
    %v156 = vld [vmem:[#allocation2 + $0x5c] sm:$0xf]
    %v157 = vld [vmem:[#allocation2 + $0x60] sm:$0xff]
    %v158 = vld [vmem:[#allocation2 + $0x68] sm:$0xf]
    %v159 = vld [vmem:[#allocation2 + $0x6c] sm:$0xff]
    %v160 = vld [vmem:[#allocation2 + $0x74] sm:$0xf]
    %v161 = vld [vmem:[#allocation2 + $0x78] sm:$0xff]
    %v162 = vld [vmem:[#allocation2 + $0x80] sm:$0xf]
    %v163 = vld [vmem:[#allocation2 + $0x84] sm:$0xff]
    %v164 = vld [vmem:[#allocation2 + $0x8c] sm:$0xf]
    %v165 = vld [vmem:[#allocation2 + $0x90] sm:$0xff]
    %v166 = vld [vmem:[#allocation2 + $0x98] sm:$0xf]
    %v167 = vld [vmem:[#allocation2 + $0x9c] sm:$0xff]
    %v168 = vld [vmem:[#allocation2 + $0xa4] sm:$0xf]
    %v169 = vld [vmem:[#allocation2 + $0xa8] sm:$0xff]
    %v170 = vld [vmem:[#allocation2 + $0xb0] sm:$0xf]
    %v171 = vld [vmem:[#allocation2 + $0xb4] sm:$0xff]
    %v172 = vld [vmem:[#allocation2 + $0xbc] sm:$0xf]
    %v205 = vunpack.c.l.b16 %v141
    %v206 = vunpack.c.h.b16 %v141
    %v207 = vunpack.c.l.b16 %v142
    %v208 = vunpack.c.l.b16 %v143
    %v209 = vunpack.c.h.b16 %v143
    %v210 = vunpack.c.l.b16 %v144
    %v211 = vunpack.c.l.b16 %v145
    %v212 = vunpack.c.h.b16 %v145
    %v213 = vunpack.c.l.b16 %v146
    %v214 = vunpack.c.l.b16 %v147
    %v215 = vunpack.c.h.b16 %v147
    %v216 = vunpack.c.l.b16 %v148
    %v217 = vunpack.c.l.b16 %v149
    %v218 = vunpack.c.h.b16 %v149
    %v219 = vunpack.c.l.b16 %v150
    %v220 = vunpack.c.l.b16 %v151
    %v221 = vunpack.c.h.b16 %v151
    %v222 = vunpack.c.l.b16 %v152
    %v223 = vunpack.c.l.b16 %v153
    %v224 = vunpack.c.h.b16 %v153
    %v225 = vunpack.c.l.b16 %v154
    %v226 = vunpack.c.l.b16 %v155
    %v227 = vunpack.c.h.b16 %v155
    %v228 = vunpack.c.l.b16 %v156
    %v229 = vunpack.c.l.b16 %v157
    %v230 = vunpack.c.h.b16 %v157
    %v231 = vunpack.c.l.b16 %v158
    %v232 = vunpack.c.l.b16 %v159
    %v233 = vunpack.c.h.b16 %v159
    %v234 = vunpack.c.l.b16 %v160
    %v235 = vunpack.c.l.b16 %v161
    %v236 = vunpack.c.h.b16 %v161
    %v237 = vunpack.c.l.b16 %v162
    %v238 = vunpack.c.l.b16 %v163
    %v239 = vunpack.c.h.b16 %v163
    %v240 = vunpack.c.l.b16 %v164
    %v241 = vunpack.c.l.b16 %v165
    %v242 = vunpack.c.h.b16 %v165
    %v243 = vunpack.c.l.b16 %v166
    %v244 = vunpack.c.l.b16 %v167
    %v245 = vunpack.c.h.b16 %v167
    %v246 = vunpack.c.l.b16 %v168
    %v247 = vunpack.c.l.b16 %v169
    %v248 = vunpack.c.h.b16 %v169
    %v249 = vunpack.c.l.b16 %v170
    %v250 = vunpack.c.l.b16 %v171
    %v251 = vunpack.c.h.b16 %v171
    %v252 = vunpack.c.l.b16 %v172
    %v253 = vpack.c.b16 %v208, %v205
    %v254 = vpack.c.b16 %v209, %v206
    %v255 = vpack.c.b16 %v210, %v207
    %v256 = vpack.c.b16 %v214, %v211
    %v257 = vpack.c.b16 %v215, %v212
    %v258 = vpack.c.b16 %v216, %v213
    %v259 = vpack.c.b16 %v220, %v217
    %v260 = vpack.c.b16 %v221, %v218
    %v261 = vpack.c.b16 %v222, %v219
    %v262 = vpack.c.b16 %v226, %v223
    %v263 = vpack.c.b16 %v227, %v224
    %v264 = vpack.c.b16 %v228, %v225
    %v265 = vpack.c.b16 %v232, %v229
    %v266 = vpack.c.b16 %v233, %v230
    %v267 = vpack.c.b16 %v234, %v231
    %v268 = vpack.c.b16 %v238, %v235
    %v269 = vpack.c.b16 %v239, %v236
    %v270 = vpack.c.b16 %v240, %v237
    %v271 = vpack.c.b16 %v244, %v241
    %v272 = vpack.c.b16 %v245, %v242
    %v273 = vpack.c.b16 %v246, %v243
    %v274 = vpack.c.b16 %v250, %v247
    %v275 = vpack.c.b16 %v251, %v248
    %v276 = vpack.c.b16 %v252, %v249
    %v301 = vlaneseq
    %v302 = vshrl.u32 %v301, 7
    %v303 = vadd.s32 %v302, 8
    %v304 = vld [vmem:[#allocation5] sm:$0xf]
    %v305 = vld [vmem:[#allocation5 + $0x4] sm:$0xf]
    %v306 = vld [vmem:[#allocation5 + $0x8] sm:$0xf]
    %v307 = vld [vmem:[#allocation5 + $0xc] sm:$0xf]
    %v308 = vld [vmem:[#allocation5 + $0x10] sm:$0xf]
    %v309 = vld [vmem:[#allocation5 + $0x14] sm:$0xf]
    %v310 = vld [vmem:[#allocation5 + $0x18] sm:$0xf]
    %v311 = vld [vmem:[#allocation5 + $0x1c] sm:$0xf]
    %v312 = vld [vmem:[#allocation5 + $0x20] sm:$0xf]
    %v313 = vld [vmem:[#allocation5 + $0x24] sm:$0xf]
    %v314 = vld [vmem:[#allocation5 + $0x28] sm:$0xf]
    %v315 = vld [vmem:[#allocation5 + $0x2c] sm:$0xf]
    %v316 = vld [vmem:[#allocation5 + $0x30] sm:$0xf]
    %v317 = vld [vmem:[#allocation5 + $0x34] sm:$0xf]
    %v318 = vld [vmem:[#allocation5 + $0x38] sm:$0xf]
    %v319 = vld [vmem:[#allocation5 + $0x3c] sm:$0xf]
    %v320 = vld [vmem:[#allocation5 + $0x40] sm:$0xf]
    %v321 = vld [vmem:[#allocation5 + $0x44] sm:$0xf]
    %v322 = vld [vmem:[#allocation5 + $0x48] sm:$0xf]
    %v323 = vld [vmem:[#allocation5 + $0x4c] sm:$0xf]
    %v324 = vld [vmem:[#allocation5 + $0x50] sm:$0xf]
    %v325 = vld [vmem:[#allocation5 + $0x54] sm:$0xf]
    %v326 = vld [vmem:[#allocation5 + $0x58] sm:$0xf]
    %v327 = vld [vmem:[#allocation5 + $0x5c] sm:$0xf]
    %v328 = vld [vmem:[#allocation5 + $0x60] sm:$0xf]
    %v329 = vld [vmem:[#allocation5 + $0x64] sm:$0xf]
    %v330 = vld [vmem:[#allocation5 + $0x68] sm:$0xf]
    %v331 = vld [vmem:[#allocation5 + $0x6c] sm:$0xf]
    %v332 = vld [vmem:[#allocation5 + $0x70] sm:$0xf]
    %v333 = vld [vmem:[#allocation5 + $0x74] sm:$0xf]
    %v334 = vld [vmem:[#allocation5 + $0x78] sm:$0xf]
    %v335 = vld [vmem:[#allocation5 + $0x7c] sm:$0xf]
    %v336 = vld [vmem:[#allocation5 + $0x80] sm:$0xf]
    %v337 = vld [vmem:[#allocation5 + $0x84] sm:$0xf]
    %v338 = vld [vmem:[#allocation5 + $0x88] sm:$0xf]
    %v339 = vld [vmem:[#allocation5 + $0x8c] sm:$0xf]
    %v340 = vld [vmem:[#allocation5 + $0x90] sm:$0xf]
    %v341 = vld [vmem:[#allocation5 + $0x94] sm:$0xf]
    %v342 = vld [vmem:[#allocation5 + $0x98] sm:$0xf]
    %v343 = vld [vmem:[#allocation5 + $0x9c] sm:$0xf]
    %v344 = vld [vmem:[#allocation5 + $0xa0] sm:$0xf]
    %v345 = vld [vmem:[#allocation5 + $0xa4] sm:$0xf]
    %v346 = vld [vmem:[#allocation5 + $0xa8] sm:$0xf]
    %v347 = vld [vmem:[#allocation5 + $0xac] sm:$0xf]
    %v348 = vld [vmem:[#allocation5 + $0xb0] sm:$0xf]
    %v349 = vld [vmem:[#allocation5 + $0xb4] sm:$0xf]
    %v350 = vld [vmem:[#allocation5 + $0xb8] sm:$0xf]
    %v351 = vld [vmem:[#allocation5 + $0xbc] sm:$0xf]
    %v352 = vld [vmem:[%s6] sm:$0x1]
    %v353 = vlaneseq
    %v354 = vshrl.u32 %v353, 7
    %v355 = vsub.s32 0, %v354
    %v356 = vrot.slane %v352, %v355
    %v405 = vunpack.c.l.b16 %v304
    %v406 = vunpack.c.l.b16 %v305
    %v407 = vunpack.c.l.b16 %v306
    %v408 = vunpack.c.l.b16 %v307
    %v409 = vunpack.c.l.b16 %v308
    %v410 = vunpack.c.l.b16 %v309
    %v411 = vunpack.c.l.b16 %v310
    %v412 = vunpack.c.l.b16 %v311
    %v413 = vunpack.c.l.b16 %v312
    %v414 = vunpack.c.l.b16 %v313
    %v415 = vunpack.c.l.b16 %v314
    %v416 = vunpack.c.l.b16 %v315
    %v417 = vunpack.c.l.b16 %v316
    %v418 = vunpack.c.l.b16 %v317
    %v419 = vunpack.c.l.b16 %v318
    %v420 = vunpack.c.l.b16 %v319
    %v421 = vunpack.c.l.b16 %v320
    %v422 = vunpack.c.l.b16 %v321
    %v423 = vunpack.c.l.b16 %v322
    %v424 = vunpack.c.l.b16 %v323
    %v425 = vunpack.c.l.b16 %v324
    %v426 = vunpack.c.l.b16 %v325
    %v427 = vunpack.c.l.b16 %v326
    %v428 = vunpack.c.l.b16 %v327
    %v429 = vunpack.c.l.b16 %v328
    %v430 = vunpack.c.l.b16 %v329
    %v431 = vunpack.c.l.b16 %v330
    %v432 = vunpack.c.l.b16 %v331
    %v433 = vunpack.c.l.b16 %v332
    %v434 = vunpack.c.l.b16 %v333
    %v435 = vunpack.c.l.b16 %v334
    %v436 = vunpack.c.l.b16 %v335
    %v437 = vunpack.c.l.b16 %v336
    %v438 = vunpack.c.l.b16 %v337
    %v439 = vunpack.c.l.b16 %v338
    %v440 = vunpack.c.l.b16 %v339
    %v441 = vunpack.c.l.b16 %v340
    %v442 = vunpack.c.l.b16 %v341
    %v443 = vunpack.c.l.b16 %v342
    %v444 = vunpack.c.l.b16 %v343
    %v445 = vunpack.c.l.b16 %v344
    %v446 = vunpack.c.l.b16 %v345
    %v447 = vunpack.c.l.b16 %v346
    %v448 = vunpack.c.l.b16 %v347
    %v449 = vunpack.c.l.b16 %v348
    %v450 = vunpack.c.l.b16 %v349
    %v451 = vunpack.c.l.b16 %v350
    %v452 = vunpack.c.l.b16 %v351
    %v453 = vpack.c.b16 %v406, %v405
    %v454 = vpack.c.b16 %v408, %v407
    %v455 = vpack.c.b16 %v410, %v409
    %v456 = vpack.c.b16 %v412, %v411
    %v457 = vpack.c.b16 %v414, %v413
    %v458 = vpack.c.b16 %v416, %v415
    %v459 = vpack.c.b16 %v418, %v417
    %v460 = vpack.c.b16 %v420, %v419
    %v461 = vpack.c.b16 %v422, %v421
    %v462 = vpack.c.b16 %v424, %v423
    %v463 = vpack.c.b16 %v426, %v425
    %v464 = vpack.c.b16 %v428, %v427
    %v465 = vpack.c.b16 %v430, %v429
    %v466 = vpack.c.b16 %v432, %v431
    %v467 = vpack.c.b16 %v434, %v433
    %v468 = vpack.c.b16 %v436, %v435
    %v469 = vpack.c.b16 %v438, %v437
    %v470 = vpack.c.b16 %v440, %v439
    %v471 = vpack.c.b16 %v442, %v441
    %v472 = vpack.c.b16 %v444, %v443
    %v473 = vpack.c.b16 %v446, %v445
    %v474 = vpack.c.b16 %v448, %v447
    %v475 = vpack.c.b16 %v450, %v449
    %v476 = vpack.c.b16 %v452, %v451
    %501 = vmatprep.subr.bf16.mxu0 0
    %502 = vmatpush1.bf16.msra.mxu0 %v453
    %503 = vmatprep.subr.bf16.mxu0 0
    %504 = vmatpush1.bf16.msra.mxu0 %v454
    %505 = vmatprep.subr.bf16.mxu0 0
    %506 = vmatpush1.bf16.msra.mxu0 %v455
    %507 = vmatprep.subr.bf16.mxu0 0
    %508 = vmatpush1.bf16.msra.mxu0 %v456
    %509 = vmatprep.subr.bf16.mxu0 0
    %510 = vmatpush1.bf16.msra.mxu0 %v457
    %511 = vmatprep.subr.bf16.mxu0 0
    %512 = vmatpush1.bf16.msra.mxu0 %v458
    %513 = vmatprep.subr.bf16.mxu0 0
    %514 = vmatpush1.bf16.msra.mxu0 %v459
    %515 = vmatprep.subr.bf16.mxu0 0
    %516 = vmatpush1.bf16.msra.mxu0 %v460
    %517 = vmatprep.subr.bf16.mxu0 0
    %518 = vmatpush1.bf16.msra.mxu0 %v461
    %519 = vmatprep.subr.bf16.mxu0 0
    %520 = vmatpush1.bf16.msra.mxu0 %v462
    %521 = vmatprep.subr.bf16.mxu0 0
    %522 = vmatpush1.bf16.msra.mxu0 %v463
    %523 = vmatprep.subr.bf16.mxu0 0
    %524 = vmatpush1.bf16.msra.mxu0 %v464
    %525 = vmatprep.subr.bf16.mxu0 0
    %526 = vmatpush1.bf16.msra.mxu0 %v465
    %527 = vmatprep.subr.bf16.mxu0 0
    %528 = vmatpush1.bf16.msra.mxu0 %v466
    %529 = vmatprep.subr.bf16.mxu0 0
    %530 = vmatpush1.bf16.msra.mxu0 %v467
    %531 = vmatprep.subr.bf16.mxu0 0
    %532 = vmatpush1.bf16.msra.mxu0 %v468
    %533 = vmatprep.mubr.bf16.mxu0 %v254
    %534 = vmatmul.mubr.bf16.gmra.mrb[0].mxu0 %v253
    %v535 = vpop.f32.mrb[0].mxu0
    %v536 = vadd.f32 %v356, %v535
    %v537 = vpop.f32.mrb[0].mxu0
    %v538 = vpop.f32.mrb[0].mxu0
    %v539 = vadd.f32 %v356, %v538
    %v540 = vpop.f32.mrb[0].mxu0
    %541 = vmatprep.mubr.bf16.mxu0 %v257
    %542 = vmatmul.mubr.bf16.gmra.mrb[0].mxu0 %v256
    %v543 = vpop.f32.mrb[0].mxu0
    %v544 = vadd.f32 %v356, %v543
    %v545 = vpop.f32.mrb[0].mxu0
    %v546 = vpop.f32.mrb[0].mxu0
    %v547 = vadd.f32 %v356, %v546
    %v548 = vpop.f32.mrb[0].mxu0
    %549 = vmatprep.mubr.bf16.mxu0 %v260
    %550 = vmatmul.mubr.bf16.gmra.mrb[0].mxu0 %v259
    %v551 = vpop.f32.mrb[0].mxu0
    %v552 = vadd.f32 %v356, %v551
    %v553 = vpop.f32.mrb[0].mxu0
    %v554 = vpop.f32.mrb[0].mxu0
    %v555 = vadd.f32 %v356, %v554
    %v556 = vpop.f32.mrb[0].mxu0
    %557 = vmatprep.mubr.bf16.mxu0 %v263
    %558 = vmatmul.mubr.bf16.gmra.mrb[0].mxu0 %v262
    %v559 = vpop.f32.mrb[0].mxu0
    %v560 = vadd.f32 %v356, %v559
    %v561 = vpop.f32.mrb[0].mxu0
    %v562 = vpop.f32.mrb[0].mxu0
    %v563 = vadd.f32 %v356, %v562
    %v564 = vpop.f32.mrb[0].mxu0
    %565 = vmatprep.mubr.bf16.mxu0 %v266
    %566 = vmatmul.mubr.bf16.gmra.mrb[0].mxu0 %v265
    %v567 = vpop.f32.mrb[0].mxu0
    %v568 = vadd.f32 %v356, %v567
    %v569 = vpop.f32.mrb[0].mxu0
    %v570 = vpop.f32.mrb[0].mxu0
    %v571 = vadd.f32 %v356, %v570
    %v572 = vpop.f32.mrb[0].mxu0
    %573 = vmatprep.mubr.bf16.mxu0 %v269
    %574 = vmatmul.mubr.bf16.gmra.mrb[0].mxu0 %v268
    %v575 = vpop.f32.mrb[0].mxu0
    %v576 = vadd.f32 %v356, %v575
    %v577 = vpop.f32.mrb[0].mxu0
    %v578 = vpop.f32.mrb[0].mxu0
    %v579 = vadd.f32 %v356, %v578
    %v580 = vpop.f32.mrb[0].mxu0
    %581 = vmatprep.mubr.bf16.mxu0 %v272
    %582 = vmatmul.mubr.bf16.gmra.mrb[0].mxu0 %v271
    %v583 = vpop.f32.mrb[0].mxu0
    %v584 = vadd.f32 %v356, %v583
    %v585 = vpop.f32.mrb[0].mxu0
    %v586 = vpop.f32.mrb[0].mxu0
    %v587 = vadd.f32 %v356, %v586
    %v588 = vpop.f32.mrb[0].mxu0
    %589 = vmatprep.mubr.bf16.mxu0 %v275
    %590 = vmatmul.mubr.bf16.gmra.mrb[0].mxu0 %v274
    %v591 = vpop.f32.mrb[0].mxu0
    %v592 = vadd.f32 %v356, %v591
    %v593 = vpop.f32.mrb[0].mxu0
    %v594 = vpop.f32.mrb[0].mxu0
    %v595 = vadd.f32 %v356, %v594
    %v596 = vpop.f32.mrb[0].mxu0
    %597 = vdwg.mxu0
    %598 = vmatprep.subr.bf16.mxu0 0
    %599 = vmatpush1.bf16.msra.mxu0 %v469
    %600 = vmatprep.subr.bf16.mxu0 0
    %601 = vmatpush1.bf16.msra.mxu0 %v470
    %602 = vmatprep.subr.bf16.mxu0 0
    %603 = vmatpush1.bf16.msra.mxu0 %v471
    %604 = vmatprep.subr.bf16.mxu0 0
    %605 = vmatpush1.bf16.msra.mxu0 %v472
    %606 = vmatprep.subr.bf16.mxu0 0
    %607 = vmatpush1.bf16.msra.mxu0 %v473
    %608 = vmatprep.subr.bf16.mxu0 0
    %609 = vmatpush1.bf16.msra.mxu0 %v474
    %610 = vmatprep.subr.bf16.mxu0 0
    %611 = vmatpush1.bf16.msra.mxu0 %v475
    %612 = vmatprep.subr.bf16.mxu0 0
    %613 = vmatpush1.bf16.msra.mxu0 %v476
    %614 = vmatprep.subr.bf16.mxu0 0
    %615 = vmatpush1.bf16.msra.mxu0 0
    %616 = vmatprep.subr.bf16.mxu0 0
    %617 = vmatpush1.bf16.msra.mxu0 0
    %618 = vmatprep.subr.bf16.mxu0 0
    %619 = vmatpush1.bf16.msra.mxu0 0
    %620 = vmatprep.subr.bf16.mxu0 0
    %621 = vmatpush1.bf16.msra.mxu0 0
    %622 = vmatprep.subr.bf16.mxu0 0
    %623 = vmatpush1.bf16.msra.mxu0 0
    %624 = vmatprep.subr.bf16.mxu0 0
    %625 = vmatpush1.bf16.msra.mxu0 0
    %626 = vmatprep.subr.bf16.mxu0 0
    %627 = vmatpush1.bf16.msra.mxu0 0
    %628 = vmatprep.subr.bf16.mxu0 0
    %629 = vmatpush1.bf16.msra.mxu0 0
    %630 = vmatprep.mubr.bf16.mxu0 0
    %631 = vmatmul.mubr.bf16.gmra.mrb[0].mxu0 %v255
    %v632 = vpop.f32.mrb[0].mxu0
    %v633 = vadd.f32 %v536, %v632
    %v634 = vpop.f32.mrb[0].mxu0
    %v635 = vpop.f32.mrb[0].mxu0
    %v636 = vadd.f32 %v539, %v635
    %v637 = vpop.f32.mrb[0].mxu0
    %638 = vmatprep.mubr.bf16.mxu0 0
    %639 = vmatmul.mubr.bf16.gmra.mrb[0].mxu0 %v258
    %v640 = vpop.f32.mrb[0].mxu0
    %v641 = vadd.f32 %v544, %v640
    %v642 = vpop.f32.mrb[0].mxu0
    %v643 = vpop.f32.mrb[0].mxu0
    %v644 = vadd.f32 %v547, %v643
    %v645 = vpop.f32.mrb[0].mxu0
    %646 = vmatprep.mubr.bf16.mxu0 0
    %647 = vmatmul.mubr.bf16.gmra.mrb[0].mxu0 %v261
    %v648 = vpop.f32.mrb[0].mxu0
    %v649 = vadd.f32 %v552, %v648
    %v650 = vpop.f32.mrb[0].mxu0
    %v651 = vpop.f32.mrb[0].mxu0
    %v652 = vadd.f32 %v555, %v651
    %v653 = vpop.f32.mrb[0].mxu0
    %654 = vmatprep.mubr.bf16.mxu0 0
    %655 = vmatmul.mubr.bf16.gmra.mrb[0].mxu0 %v264
    %v656 = vpop.f32.mrb[0].mxu0
    %v657 = vadd.f32 %v560, %v656
    %v658 = vpop.f32.mrb[0].mxu0
    %v659 = vpop.f32.mrb[0].mxu0
    %v660 = vadd.f32 %v563, %v659
    %v661 = vpop.f32.mrb[0].mxu0
    %662 = vmatprep.mubr.bf16.mxu0 0
    %663 = vmatmul.mubr.bf16.gmra.mrb[0].mxu0 %v267
    %v664 = vpop.f32.mrb[0].mxu0
    %v665 = vadd.f32 %v568, %v664
    %v666 = vpop.f32.mrb[0].mxu0
    %v667 = vpop.f32.mrb[0].mxu0
    %v668 = vadd.f32 %v571, %v667
    %v669 = vpop.f32.mrb[0].mxu0
    %670 = vmatprep.mubr.bf16.mxu0 0
    %671 = vmatmul.mubr.bf16.gmra.mrb[0].mxu0 %v270
    %v672 = vpop.f32.mrb[0].mxu0
    %v673 = vadd.f32 %v576, %v672
    %v674 = vpop.f32.mrb[0].mxu0
    %v675 = vpop.f32.mrb[0].mxu0
    %v676 = vadd.f32 %v579, %v675
    %v677 = vpop.f32.mrb[0].mxu0
    %678 = vmatprep.mubr.bf16.mxu0 0
    %679 = vmatmul.mubr.bf16.gmra.mrb[0].mxu0 %v273
    %v680 = vpop.f32.mrb[0].mxu0
    %v681 = vadd.f32 %v584, %v680
    %v682 = vpop.f32.mrb[0].mxu0
    %v683 = vpop.f32.mrb[0].mxu0
    %v684 = vadd.f32 %v587, %v683
    %v685 = vpop.f32.mrb[0].mxu0
    %686 = vmatprep.mubr.bf16.mxu0 0
    %687 = vmatmul.mubr.bf16.gmra.mrb[0].mxu0 %v276
    %v688 = vpop.f32.mrb[0].mxu0
    %v689 = vadd.f32 %v592, %v688
    %v690 = vpop.f32.mrb[0].mxu0
    %v691 = vpop.f32.mrb[0].mxu0
    %v692 = vadd.f32 %v595, %v691
    %v693 = vpop.f32.mrb[0].mxu0
    %694 = vdwg.mxu0
    %v695 = vtanh.pop %v633
    %v696 = vtanh.pop %v636
    %v697 = vtanh.pop %v641
    %v698 = vtanh.pop %v644
    %v699 = vtanh.pop %v649
    %v700 = vtanh.pop %v652
    %v701 = vtanh.pop %v657
    %v702 = vtanh.pop %v660
    %v703 = vtanh.pop %v665
    %v704 = vtanh.pop %v668
    %v705 = vtanh.pop %v673
    %v706 = vtanh.pop %v676
    %v707 = vtanh.pop %v681
    %v708 = vtanh.pop %v684
    %v709 = vtanh.pop %v689
    %v710 = vtanh.pop %v692
    %vm711 = vcmp.lt.s32.totalorder %v302, 16
    %vm712 = vcmp.lt.s32.totalorder %v303, 16
    %v713 = vsel %vm711, 1, 0
    %v714 = vsel %vm712, 1, 0
    %vm715 = vcmp.eq.s32.totalorder %v713, 1
    %vm716 = vcmp.eq.s32.totalorder %v714, 1
    %v717 = vsel %vm715, %v695, -2.0
    %v718 = vsel %vm716, %v696, -2.0
    %v719 = vsel %vm715, %v697, -2.0
    %v720 = vsel %vm716, %v698, -2.0
    %v721 = vsel %vm715, %v699, -2.0
    %v722 = vsel %vm716, %v700, -2.0
    %v723 = vsel %vm715, %v701, -2.0
    %v724 = vsel %vm716, %v702, -2.0
    %v725 = vsel %vm715, %v703, -2.0
    %v726 = vsel %vm716, %v704, -2.0
    %v727 = vsel %vm715, %v705, -2.0
    %v728 = vsel %vm716, %v706, -2.0
    %v729 = vsel %vm715, %v707, -2.0
    %v730 = vsel %vm716, %v708, -2.0
    %v731 = vsel %vm715, %v709, -2.0
    %v732 = vsel %vm716, %v710, -2.0
    %v733 = vmax.f32 %v717, %v718
    %v734 = vrot.slane %v733, 4
    %v735 = vmax.f32 %v733, %v734
    %v736 = vrot.slane %v735, 2
    %v737 = vmax.f32 %v735, %v736
    %v738 = vrot.slane %v737, 1
    %v739 = vmax.f32 %v737, %v738
    %v740 = vmax.f32 %v719, %v720
    %v741 = vrot.slane %v740, 4
    %v742 = vmax.f32 %v740, %v741
    %v743 = vrot.slane %v742, 2
    %v744 = vmax.f32 %v742, %v743
    %v745 = vrot.slane %v744, 1
    %v746 = vmax.f32 %v744, %v745
    %v747 = vmax.f32 %v721, %v722
    %v748 = vrot.slane %v747, 4
    %v749 = vmax.f32 %v747, %v748
    %v750 = vrot.slane %v749, 2
    %v751 = vmax.f32 %v749, %v750
    %v752 = vrot.slane %v751, 1
    %v753 = vmax.f32 %v751, %v752
    %v754 = vmax.f32 %v723, %v724
    %v755 = vrot.slane %v754, 4
    %v756 = vmax.f32 %v754, %v755
    %v757 = vrot.slane %v756, 2
    %v758 = vmax.f32 %v756, %v757
    %v759 = vrot.slane %v758, 1
    %v760 = vmax.f32 %v758, %v759
    %v761 = vmax.f32 %v725, %v726
    %v762 = vrot.slane %v761, 4
    %v763 = vmax.f32 %v761, %v762
    %v764 = vrot.slane %v763, 2
    %v765 = vmax.f32 %v763, %v764
    %v766 = vrot.slane %v765, 1
    %v767 = vmax.f32 %v765, %v766
    %v768 = vmax.f32 %v727, %v728
    %v769 = vrot.slane %v768, 4
    %v770 = vmax.f32 %v768, %v769
    %v771 = vrot.slane %v770, 2
    %v772 = vmax.f32 %v770, %v771
    %v773 = vrot.slane %v772, 1
    %v774 = vmax.f32 %v772, %v773
    %v775 = vmax.f32 %v729, %v730
    %v776 = vrot.slane %v775, 4
    %v777 = vmax.f32 %v775, %v776
    %v778 = vrot.slane %v777, 2
    %v779 = vmax.f32 %v777, %v778
    %v780 = vrot.slane %v779, 1
    %v781 = vmax.f32 %v779, %v780
    %v782 = vmax.f32 %v731, %v732
    %v783 = vrot.slane %v782, 4
    %v784 = vmax.f32 %v782, %v783
    %v785 = vrot.slane %v784, 2
    %v786 = vmax.f32 %v784, %v785
    %v787 = vrot.slane %v786, 1
    %v788 = vmax.f32 %v786, %v787
    %vm789 = vsmask.f32 7424
    %v791 = vshrl.u32 %v253, 16
    %v793 = vshll.u32 %v253, 16
    %v795 = vrot.slane %v793, 1
    %v796 = vor.u32 %v791, %v795
    %v798 = vshll.u32 %v256, 16
    %v800 = vrot.slane %v798, 1
    %v801 = vsel %vm789, %v796, %v800
    %v803 = vshrl.u32 %v254, 16
    %v805 = vshll.u32 %v254, 16
    %v807 = vrot.slane %v805, 1
    %v808 = vor.u32 %v803, %v807
    %v810 = vshll.u32 %v257, 16
    %v812 = vrot.slane %v810, 1
    %v813 = vsel %vm789, %v808, %v812
    %v815 = vshrl.u32 %v255, 16
    %v817 = vshll.u32 %v255, 16
    %v819 = vrot.slane %v817, 1
    %v820 = vor.u32 %v815, %v819
    %v822 = vshll.u32 %v258, 16
    %v824 = vrot.slane %v822, 1
    %v825 = vsel %vm789, %v820, %v824
    %v826 = vshrl.u32 %v256, 16
    %v828 = vor.u32 %v826, %v800
    %v830 = vshll.u32 %v259, 16
    %v832 = vrot.slane %v830, 1
    %v833 = vsel %vm789, %v828, %v832
    %v834 = vshrl.u32 %v257, 16
    %v836 = vor.u32 %v834, %v812
    %v838 = vshll.u32 %v260, 16
    %v840 = vrot.slane %v838, 1
    %v841 = vsel %vm789, %v836, %v840
    %v842 = vshrl.u32 %v258, 16
    %v844 = vor.u32 %v842, %v824
    %v846 = vshll.u32 %v261, 16
    %v848 = vrot.slane %v846, 1
    %v849 = vsel %vm789, %v844, %v848
    %v850 = vshrl.u32 %v259, 16
    %v852 = vor.u32 %v850, %v832
    %v854 = vshll.u32 %v262, 16
    %v856 = vrot.slane %v854, 1
    %v857 = vsel %vm789, %v852, %v856
    %v858 = vshrl.u32 %v260, 16
    %v860 = vor.u32 %v858, %v840
    %v862 = vshll.u32 %v263, 16
    %v864 = vrot.slane %v862, 1
    %v865 = vsel %vm789, %v860, %v864
    %v866 = vshrl.u32 %v261, 16
    %v868 = vor.u32 %v866, %v848
    %v870 = vshll.u32 %v264, 16
    %v872 = vrot.slane %v870, 1
    %v873 = vsel %vm789, %v868, %v872
    %v874 = vshrl.u32 %v262, 16
    %v876 = vor.u32 %v874, %v856
    %v878 = vshll.u32 %v265, 16
    %v880 = vrot.slane %v878, 1
    %v881 = vsel %vm789, %v876, %v880
    %v882 = vshrl.u32 %v263, 16
    %v884 = vor.u32 %v882, %v864
    %v886 = vshll.u32 %v266, 16
    %v888 = vrot.slane %v886, 1
    %v889 = vsel %vm789, %v884, %v888
    %v890 = vshrl.u32 %v264, 16
    %v892 = vor.u32 %v890, %v872
    %v894 = vshll.u32 %v267, 16
    %v896 = vrot.slane %v894, 1
    %v897 = vsel %vm789, %v892, %v896
    %v898 = vshrl.u32 %v265, 16
    %v900 = vor.u32 %v898, %v880
    %v902 = vshll.u32 %v268, 16
    %v904 = vrot.slane %v902, 1
    %v905 = vsel %vm789, %v900, %v904
    %v906 = vshrl.u32 %v266, 16
    %v908 = vor.u32 %v906, %v888
    %v910 = vshll.u32 %v269, 16
    %v912 = vrot.slane %v910, 1
    %v913 = vsel %vm789, %v908, %v912
    %v914 = vshrl.u32 %v267, 16
    %v916 = vor.u32 %v914, %v896
    %v918 = vshll.u32 %v270, 16
    %v920 = vrot.slane %v918, 1
    %v921 = vsel %vm789, %v916, %v920
    %v922 = vshrl.u32 %v268, 16
    %v924 = vor.u32 %v922, %v904
    %v926 = vshll.u32 %v271, 16
    %v928 = vrot.slane %v926, 1
    %v929 = vsel %vm789, %v924, %v928
    %v930 = vshrl.u32 %v269, 16
    %v932 = vor.u32 %v930, %v912
    %v934 = vshll.u32 %v272, 16
    %v936 = vrot.slane %v934, 1
    %v937 = vsel %vm789, %v932, %v936
    %v938 = vshrl.u32 %v270, 16
    %v940 = vor.u32 %v938, %v920
    %v942 = vshll.u32 %v273, 16
    %v944 = vrot.slane %v942, 1
    %v945 = vsel %vm789, %v940, %v944
    %v946 = vshrl.u32 %v271, 16
    %v948 = vor.u32 %v946, %v928
    %v950 = vshll.u32 %v274, 16
    %v952 = vrot.slane %v950, 1
    %v953 = vsel %vm789, %v948, %v952
    %v954 = vshrl.u32 %v272, 16
    %v956 = vor.u32 %v954, %v936
    %v958 = vshll.u32 %v275, 16
    %v960 = vrot.slane %v958, 1
    %v961 = vsel %vm789, %v956, %v960
    %v962 = vshrl.u32 %v273, 16
    %v964 = vor.u32 %v962, %v944
    %v966 = vshll.u32 %v276, 16
    %v968 = vrot.slane %v966, 1
    %v969 = vsel %vm789, %v964, %v968
    %v970 = vshrl.u32 %v274, 16
    %v972 = vor.u32 %v970, %v952
    %v974 = vshll.u32 0, 16
    %v976 = vrot.slane %v974, 1
    %v977 = vsel %vm789, %v972, %v976
    %v978 = vshrl.u32 %v275, 16
    %v980 = vor.u32 %v978, %v960
    %v981 = vsel %vm789, %v980, %v976
    %v982 = vshrl.u32 %v276, 16
    %v984 = vor.u32 %v982, %v968
    %v985 = vsel %vm789, %v984, %v976
    %v1010 = vld [vmem:[#allocation7] sm:$0xff]
    %v1011 = vld [vmem:[#allocation7 + $0x8] sm:$0xff]
    %v1012 = vld [vmem:[#allocation7 + $0x10] sm:$0xff]
    %v1013 = vld [vmem:[#allocation7 + $0x18] sm:$0xff]
    %v1014 = vld [vmem:[#allocation7 + $0x20] sm:$0xff]
    %v1015 = vld [vmem:[#allocation7 + $0x28] sm:$0xff]
    %v1016 = vld [vmem:[#allocation7 + $0x30] sm:$0xff]
    %v1017 = vld [vmem:[#allocation7 + $0x38] sm:$0xff]
    %v1018 = vld [vmem:[#allocation7 + $0x40] sm:$0xff]
    %v1019 = vld [vmem:[#allocation7 + $0x48] sm:$0xff]
    %v1020 = vld [vmem:[#allocation7 + $0x50] sm:$0xff]
    %v1021 = vld [vmem:[#allocation7 + $0x58] sm:$0xff]
    %v1022 = vld [vmem:[#allocation7 + $0x60] sm:$0xff]
    %v1023 = vld [vmem:[#allocation7 + $0x68] sm:$0xff]
    %v1024 = vld [vmem:[#allocation7 + $0x70] sm:$0xff]
    %v1025 = vld [vmem:[#allocation7 + $0x78] sm:$0xff]
    %v1026 = vld [vmem:[#allocation7 + $0x80] sm:$0xff]
    %v1027 = vld [vmem:[#allocation7 + $0x88] sm:$0xff]
    %v1028 = vld [vmem:[#allocation7 + $0x90] sm:$0xff]
    %v1029 = vld [vmem:[#allocation7 + $0x98] sm:$0xff]
    %v1030 = vld [vmem:[#allocation7 + $0xa0] sm:$0xff]
    %v1031 = vld [vmem:[#allocation7 + $0xa8] sm:$0xff]
    %v1032 = vld [vmem:[#allocation7 + $0xb0] sm:$0xff]
    %v1033 = vld [vmem:[#allocation7 + $0xb8] sm:$0xff]
    %v1034 = vld [vmem:[#allocation7 + $0xc0] sm:$0xff]
    %v1035 = vld [vmem:[#allocation7 + $0xc8] sm:$0xff]
    %v1036 = vld [vmem:[#allocation7 + $0xd0] sm:$0xff]
    %v1037 = vld [vmem:[#allocation7 + $0xd8] sm:$0xff]
    %v1038 = vld [vmem:[#allocation7 + $0xe0] sm:$0xff]
    %v1039 = vld [vmem:[#allocation7 + $0xe8] sm:$0xff]
    %v1040 = vld [vmem:[#allocation7 + $0xf0] sm:$0xff]
    %v1041 = vld [vmem:[#allocation7 + $0xf8] sm:$0xff]
    %v1042 = vld [vmem:[#allocation7 + $0x100] sm:$0xff]
    %v1043 = vld [vmem:[#allocation7 + $0x108] sm:$0xff]
    %v1044 = vld [vmem:[#allocation7 + $0x110] sm:$0xff]
    %v1045 = vld [vmem:[#allocation7 + $0x118] sm:$0xff]
    %v1046 = vld [vmem:[#allocation7 + $0x120] sm:$0xff]
    %v1047 = vld [vmem:[#allocation7 + $0x128] sm:$0xff]
    %v1048 = vld [vmem:[#allocation7 + $0x130] sm:$0xff]
    %v1049 = vld [vmem:[#allocation7 + $0x138] sm:$0xff]
    %v1050 = vld [vmem:[#allocation7 + $0x140] sm:$0xff]
    %v1051 = vld [vmem:[#allocation7 + $0x148] sm:$0xff]
    %v1052 = vld [vmem:[#allocation7 + $0x150] sm:$0xff]
    %v1053 = vld [vmem:[#allocation7 + $0x158] sm:$0xff]
    %v1054 = vld [vmem:[#allocation7 + $0x160] sm:$0xff]
    %v1055 = vld [vmem:[#allocation7 + $0x168] sm:$0xff]
    %v1056 = vld [vmem:[#allocation7 + $0x170] sm:$0xff]
    %v1057 = vld [vmem:[#allocation7 + $0x178] sm:$0xff]
    %v1058 = vld [vmem:[#allocation7 + $0x180] sm:$0xff]
    %v1059 = vld [vmem:[#allocation7 + $0x188] sm:$0xff]
    %v1060 = vld [vmem:[#allocation7 + $0x190] sm:$0xff]
    %v1061 = vld [vmem:[#allocation7 + $0x198] sm:$0xff]
    %v1062 = vld [vmem:[#allocation7 + $0x1a0] sm:$0xff]
    %v1063 = vld [vmem:[#allocation7 + $0x1a8] sm:$0xff]
    %v1064 = vld [vmem:[#allocation7 + $0x1b0] sm:$0xff]
    %v1065 = vld [vmem:[#allocation7 + $0x1b8] sm:$0xff]
    %v1066 = vld [vmem:[#allocation7 + $0x1c0] sm:$0xff]
    %v1067 = vld [vmem:[#allocation7 + $0x1c8] sm:$0xff]
    %v1068 = vld [vmem:[#allocation7 + $0x1d0] sm:$0xff]
    %v1069 = vld [vmem:[#allocation7 + $0x1d8] sm:$0xff]
    %v1070 = vld [vmem:[#allocation7 + $0x1e0] sm:$0xff]
    %v1071 = vld [vmem:[#allocation7 + $0x1e8] sm:$0xff]
    %v1072 = vld [vmem:[#allocation7 + $0x1f0] sm:$0xff]
    %v1073 = vld [vmem:[#allocation7 + $0x1f8] sm:$0xff]
    %v1074 = vld [vmem:[#allocation7 + $0x200] sm:$0xff]
    %v1075 = vld [vmem:[#allocation7 + $0x208] sm:$0xff]
    %v1076 = vld [vmem:[#allocation7 + $0x210] sm:$0xff]
    %v1077 = vld [vmem:[#allocation7 + $0x218] sm:$0xff]
    %v1078 = vld [vmem:[#allocation7 + $0x220] sm:$0xff]
    %v1079 = vld [vmem:[#allocation7 + $0x228] sm:$0xff]
    %v1080 = vld [vmem:[#allocation7 + $0x230] sm:$0xff]
    %v1081 = vld [vmem:[#allocation7 + $0x238] sm:$0xff]
    %v1082 = vld [vmem:[#allocation7 + $0x240] sm:$0xff]
    %v1083 = vld [vmem:[#allocation7 + $0x248] sm:$0xff]
    %v1084 = vld [vmem:[#allocation7 + $0x250] sm:$0xff]
    %v1085 = vld [vmem:[#allocation7 + $0x258] sm:$0xff]
    %v1086 = vld [vmem:[#allocation7 + $0x260] sm:$0xff]
    %v1087 = vld [vmem:[#allocation7 + $0x268] sm:$0xff]
    %v1088 = vld [vmem:[#allocation7 + $0x270] sm:$0xff]
    %v1089 = vld [vmem:[#allocation7 + $0x278] sm:$0xff]
    %v1090 = vld [vmem:[#allocation7 + $0x280] sm:$0xff]
    %v1091 = vld [vmem:[#allocation7 + $0x288] sm:$0xff]
    %v1092 = vld [vmem:[#allocation7 + $0x290] sm:$0xff]
    %v1093 = vld [vmem:[#allocation7 + $0x298] sm:$0xff]
    %v1094 = vld [vmem:[#allocation7 + $0x2a0] sm:$0xff]
    %v1095 = vld [vmem:[#allocation7 + $0x2a8] sm:$0xff]
    %v1096 = vld [vmem:[#allocation7 + $0x2b0] sm:$0xff]
    %v1097 = vld [vmem:[#allocation7 + $0x2b8] sm:$0xff]
    %v1098 = vld [vmem:[#allocation7 + $0x2c0] sm:$0xff]
    %v1099 = vld [vmem:[#allocation7 + $0x2c8] sm:$0xff]
    %v1100 = vld [vmem:[#allocation7 + $0x2d0] sm:$0xff]
    %v1101 = vld [vmem:[#allocation7 + $0x2d8] sm:$0xff]
    %v1102 = vld [vmem:[#allocation7 + $0x2e0] sm:$0xff]
    %v1103 = vld [vmem:[#allocation7 + $0x2e8] sm:$0xff]
    %v1104 = vld [vmem:[#allocation7 + $0x2f0] sm:$0xff]
    %v1105 = vld [vmem:[#allocation7 + $0x2f8] sm:$0xff]
    %v1202 = vunpack.c.l.b16 %v1010
    %v1203 = vunpack.c.h.b16 %v1010
    %v1204 = vunpack.c.l.b16 %v1011
    %v1205 = vunpack.c.h.b16 %v1011
    %v1206 = vunpack.c.l.b16 %v1012
    %v1207 = vunpack.c.h.b16 %v1012
    %v1208 = vunpack.c.l.b16 %v1013
    %v1209 = vunpack.c.h.b16 %v1013
    %v1210 = vunpack.c.l.b16 %v1014
    %v1211 = vunpack.c.h.b16 %v1014
    %v1212 = vunpack.c.l.b16 %v1015
    %v1213 = vunpack.c.h.b16 %v1015
    %v1214 = vunpack.c.l.b16 %v1016
    %v1215 = vunpack.c.h.b16 %v1016
    %v1216 = vunpack.c.l.b16 %v1017
    %v1217 = vunpack.c.h.b16 %v1017
    %v1218 = vunpack.c.l.b16 %v1018
    %v1219 = vunpack.c.h.b16 %v1018
    %v1220 = vunpack.c.l.b16 %v1019
    %v1221 = vunpack.c.h.b16 %v1019
    %v1222 = vunpack.c.l.b16 %v1020
    %v1223 = vunpack.c.h.b16 %v1020
    %v1224 = vunpack.c.l.b16 %v1021
    %v1225 = vunpack.c.h.b16 %v1021
    %v1226 = vunpack.c.l.b16 %v1022
    %v1227 = vunpack.c.h.b16 %v1022
    %v1228 = vunpack.c.l.b16 %v1023
    %v1229 = vunpack.c.h.b16 %v1023
    %v1230 = vunpack.c.l.b16 %v1024
    %v1231 = vunpack.c.h.b16 %v1024
    %v1232 = vunpack.c.l.b16 %v1025
    %v1233 = vunpack.c.h.b16 %v1025
    %v1234 = vunpack.c.l.b16 %v1026
    %v1235 = vunpack.c.h.b16 %v1026
    %v1236 = vunpack.c.l.b16 %v1027
    %v1237 = vunpack.c.h.b16 %v1027
    %v1238 = vunpack.c.l.b16 %v1028
    %v1239 = vunpack.c.h.b16 %v1028
    %v1240 = vunpack.c.l.b16 %v1029
    %v1241 = vunpack.c.h.b16 %v1029
    %v1242 = vunpack.c.l.b16 %v1030
    %v1243 = vunpack.c.h.b16 %v1030
    %v1244 = vunpack.c.l.b16 %v1031
    %v1245 = vunpack.c.h.b16 %v1031
    %v1246 = vunpack.c.l.b16 %v1032
    %v1247 = vunpack.c.h.b16 %v1032
    %v1248 = vunpack.c.l.b16 %v1033
    %v1249 = vunpack.c.h.b16 %v1033
    %v1250 = vunpack.c.l.b16 %v1034
    %v1251 = vunpack.c.h.b16 %v1034
    %v1252 = vunpack.c.l.b16 %v1035
    %v1253 = vunpack.c.h.b16 %v1035
    %v1254 = vunpack.c.l.b16 %v1036
    %v1255 = vunpack.c.h.b16 %v1036
    %v1256 = vunpack.c.l.b16 %v1037
    %v1257 = vunpack.c.h.b16 %v1037
    %v1258 = vunpack.c.l.b16 %v1038
    %v1259 = vunpack.c.h.b16 %v1038
    %v1260 = vunpack.c.l.b16 %v1039
    %v1261 = vunpack.c.h.b16 %v1039
    %v1262 = vunpack.c.l.b16 %v1040
    %v1263 = vunpack.c.h.b16 %v1040
    %v1264 = vunpack.c.l.b16 %v1041
    %v1265 = vunpack.c.h.b16 %v1041
    %v1266 = vunpack.c.l.b16 %v1042
    %v1267 = vunpack.c.h.b16 %v1042
    %v1268 = vunpack.c.l.b16 %v1043
    %v1269 = vunpack.c.h.b16 %v1043
    %v1270 = vunpack.c.l.b16 %v1044
    %v1271 = vunpack.c.h.b16 %v1044
    %v1272 = vunpack.c.l.b16 %v1045
    %v1273 = vunpack.c.h.b16 %v1045
    %v1274 = vunpack.c.l.b16 %v1046
    %v1275 = vunpack.c.h.b16 %v1046
    %v1276 = vunpack.c.l.b16 %v1047
    %v1277 = vunpack.c.h.b16 %v1047
    %v1278 = vunpack.c.l.b16 %v1048
    %v1279 = vunpack.c.h.b16 %v1048
    %v1280 = vunpack.c.l.b16 %v1049
    %v1281 = vunpack.c.h.b16 %v1049
    %v1282 = vunpack.c.l.b16 %v1050
    %v1283 = vunpack.c.h.b16 %v1050
    %v1284 = vunpack.c.l.b16 %v1051
    %v1285 = vunpack.c.h.b16 %v1051
    %v1286 = vunpack.c.l.b16 %v1052
    %v1287 = vunpack.c.h.b16 %v1052
    %v1288 = vunpack.c.l.b16 %v1053
    %v1289 = vunpack.c.h.b16 %v1053
    %v1290 = vunpack.c.l.b16 %v1054
    %v1291 = vunpack.c.h.b16 %v1054
    %v1292 = vunpack.c.l.b16 %v1055
    %v1293 = vunpack.c.h.b16 %v1055
    %v1294 = vunpack.c.l.b16 %v1056
    %v1295 = vunpack.c.h.b16 %v1056
    %v1296 = vunpack.c.l.b16 %v1057
    %v1297 = vunpack.c.h.b16 %v1057
    %v1298 = vunpack.c.l.b16 %v1058
    %v1299 = vunpack.c.h.b16 %v1058
    %v1300 = vunpack.c.l.b16 %v1059
    %v1301 = vunpack.c.h.b16 %v1059
    %v1302 = vunpack.c.l.b16 %v1060
    %v1303 = vunpack.c.h.b16 %v1060
    %v1304 = vunpack.c.l.b16 %v1061
    %v1305 = vunpack.c.h.b16 %v1061
    %v1306 = vunpack.c.l.b16 %v1062
    %v1307 = vunpack.c.h.b16 %v1062
    %v1308 = vunpack.c.l.b16 %v1063
    %v1309 = vunpack.c.h.b16 %v1063
    %v1310 = vunpack.c.l.b16 %v1064
    %v1311 = vunpack.c.h.b16 %v1064
    %v1312 = vunpack.c.l.b16 %v1065
    %v1313 = vunpack.c.h.b16 %v1065
    %v1314 = vunpack.c.l.b16 %v1066
    %v1315 = vunpack.c.h.b16 %v1066
    %v1316 = vunpack.c.l.b16 %v1067
    %v1317 = vunpack.c.h.b16 %v1067
    %v1318 = vunpack.c.l.b16 %v1068
    %v1319 = vunpack.c.h.b16 %v1068
    %v1320 = vunpack.c.l.b16 %v1069
    %v1321 = vunpack.c.h.b16 %v1069
    %v1322 = vunpack.c.l.b16 %v1070
    %v1323 = vunpack.c.h.b16 %v1070
    %v1324 = vunpack.c.l.b16 %v1071
    %v1325 = vunpack.c.h.b16 %v1071
    %v1326 = vunpack.c.l.b16 %v1072
    %v1327 = vunpack.c.h.b16 %v1072
    %v1328 = vunpack.c.l.b16 %v1073
    %v1329 = vunpack.c.h.b16 %v1073
    %v1330 = vunpack.c.l.b16 %v1074
    %v1331 = vunpack.c.h.b16 %v1074
    %v1332 = vunpack.c.l.b16 %v1075
    %v1333 = vunpack.c.h.b16 %v1075
    %v1334 = vunpack.c.l.b16 %v1076
    %v1335 = vunpack.c.h.b16 %v1076
    %v1336 = vunpack.c.l.b16 %v1077
    %v1337 = vunpack.c.h.b16 %v1077
    %v1338 = vunpack.c.l.b16 %v1078
    %v1339 = vunpack.c.h.b16 %v1078
    %v1340 = vunpack.c.l.b16 %v1079
    %v1341 = vunpack.c.h.b16 %v1079
    %v1342 = vunpack.c.l.b16 %v1080
    %v1343 = vunpack.c.h.b16 %v1080
    %v1344 = vunpack.c.l.b16 %v1081
    %v1345 = vunpack.c.h.b16 %v1081
    %v1346 = vunpack.c.l.b16 %v1082
    %v1347 = vunpack.c.h.b16 %v1082
    %v1348 = vunpack.c.l.b16 %v1083
    %v1349 = vunpack.c.h.b16 %v1083
    %v1350 = vunpack.c.l.b16 %v1084
    %v1351 = vunpack.c.h.b16 %v1084
    %v1352 = vunpack.c.l.b16 %v1085
    %v1353 = vunpack.c.h.b16 %v1085
    %v1354 = vunpack.c.l.b16 %v1086
    %v1355 = vunpack.c.h.b16 %v1086
    %v1356 = vunpack.c.l.b16 %v1087
    %v1357 = vunpack.c.h.b16 %v1087
    %v1358 = vunpack.c.l.b16 %v1088
    %v1359 = vunpack.c.h.b16 %v1088
    %v1360 = vunpack.c.l.b16 %v1089
    %v1361 = vunpack.c.h.b16 %v1089
    %v1362 = vunpack.c.l.b16 %v1090
    %v1363 = vunpack.c.h.b16 %v1090
    %v1364 = vunpack.c.l.b16 %v1091
    %v1365 = vunpack.c.h.b16 %v1091
    %v1366 = vunpack.c.l.b16 %v1092
    %v1367 = vunpack.c.h.b16 %v1092
    %v1368 = vunpack.c.l.b16 %v1093
    %v1369 = vunpack.c.h.b16 %v1093
    %v1370 = vunpack.c.l.b16 %v1094
    %v1371 = vunpack.c.h.b16 %v1094
    %v1372 = vunpack.c.l.b16 %v1095
    %v1373 = vunpack.c.h.b16 %v1095
    %v1374 = vunpack.c.l.b16 %v1096
    %v1375 = vunpack.c.h.b16 %v1096
    %v1376 = vunpack.c.l.b16 %v1097
    %v1377 = vunpack.c.h.b16 %v1097
    %v1378 = vunpack.c.l.b16 %v1098
    %v1379 = vunpack.c.h.b16 %v1098
    %v1380 = vunpack.c.l.b16 %v1099
    %v1381 = vunpack.c.h.b16 %v1099
    %v1382 = vunpack.c.l.b16 %v1100
    %v1383 = vunpack.c.h.b16 %v1100
    %v1384 = vunpack.c.l.b16 %v1101
    %v1385 = vunpack.c.h.b16 %v1101
    %v1386 = vunpack.c.l.b16 %v1102
    %v1387 = vunpack.c.h.b16 %v1102
    %v1388 = vunpack.c.l.b16 %v1103
    %v1389 = vunpack.c.h.b16 %v1103
    %v1390 = vunpack.c.l.b16 %v1104
    %v1391 = vunpack.c.h.b16 %v1104
    %v1392 = vunpack.c.l.b16 %v1105
    %v1393 = vunpack.c.h.b16 %v1105
    %v1394 = vpack.c.b16 %v1204, %v1202
    %v1395 = vpack.c.b16 %v1205, %v1203
    %v1396 = vpack.c.b16 %v1208, %v1206
    %v1397 = vpack.c.b16 %v1209, %v1207
    %v1398 = vpack.c.b16 %v1212, %v1210
    %v1399 = vpack.c.b16 %v1213, %v1211
    %v1400 = vpack.c.b16 %v1216, %v1214
    %v1401 = vpack.c.b16 %v1217, %v1215
    %v1402 = vpack.c.b16 %v1220, %v1218
    %v1403 = vpack.c.b16 %v1221, %v1219
    %v1404 = vpack.c.b16 %v1224, %v1222
    %v1405 = vpack.c.b16 %v1225, %v1223
    %v1406 = vpack.c.b16 %v1228, %v1226
    %v1407 = vpack.c.b16 %v1229, %v1227
    %v1408 = vpack.c.b16 %v1232, %v1230
    %v1409 = vpack.c.b16 %v1233, %v1231
    %v1410 = vpack.c.b16 %v1236, %v1234
    %v1411 = vpack.c.b16 %v1237, %v1235
    %v1412 = vpack.c.b16 %v1240, %v1238
    %v1413 = vpack.c.b16 %v1241, %v1239
    %v1414 = vpack.c.b16 %v1244, %v1242
    %v1415 = vpack.c.b16 %v1245, %v1243
    %v1416 = vpack.c.b16 %v1248, %v1246
    %v1417 = vpack.c.b16 %v1249, %v1247
    %v1418 = vpack.c.b16 %v1252, %v1250
    %v1419 = vpack.c.b16 %v1253, %v1251
    %v1420 = vpack.c.b16 %v1256, %v1254
    %v1421 = vpack.c.b16 %v1257, %v1255
    %v1422 = vpack.c.b16 %v1260, %v1258
    %v1423 = vpack.c.b16 %v1261, %v1259
    %v1424 = vpack.c.b16 %v1264, %v1262
    %v1425 = vpack.c.b16 %v1265, %v1263
    %v1426 = vpack.c.b16 %v1268, %v1266
    %v1427 = vpack.c.b16 %v1269, %v1267
    %v1428 = vpack.c.b16 %v1272, %v1270
    %v1429 = vpack.c.b16 %v1273, %v1271
    %v1430 = vpack.c.b16 %v1276, %v1274
    %v1431 = vpack.c.b16 %v1277, %v1275
    %v1432 = vpack.c.b16 %v1280, %v1278
    %v1433 = vpack.c.b16 %v1281, %v1279
    %v1434 = vpack.c.b16 %v1284, %v1282
    %v1435 = vpack.c.b16 %v1285, %v1283
    %v1436 = vpack.c.b16 %v1288, %v1286
    %v1437 = vpack.c.b16 %v1289, %v1287
    %v1438 = vpack.c.b16 %v1292, %v1290
    %v1439 = vpack.c.b16 %v1293, %v1291
    %v1440 = vpack.c.b16 %v1296, %v1294
    %v1441 = vpack.c.b16 %v1297, %v1295
    %v1442 = vpack.c.b16 %v1300, %v1298
    %v1443 = vpack.c.b16 %v1301, %v1299
    %v1444 = vpack.c.b16 %v1304, %v1302
    %v1445 = vpack.c.b16 %v1305, %v1303
    %v1446 = vpack.c.b16 %v1308, %v1306
    %v1447 = vpack.c.b16 %v1309, %v1307
    %v1448 = vpack.c.b16 %v1312, %v1310
    %v1449 = vpack.c.b16 %v1313, %v1311
    %v1450 = vpack.c.b16 %v1316, %v1314
    %v1451 = vpack.c.b16 %v1317, %v1315
    %v1452 = vpack.c.b16 %v1320, %v1318
    %v1453 = vpack.c.b16 %v1321, %v1319
    %v1454 = vpack.c.b16 %v1324, %v1322
    %v1455 = vpack.c.b16 %v1325, %v1323
    %v1456 = vpack.c.b16 %v1328, %v1326
    %v1457 = vpack.c.b16 %v1329, %v1327
    %v1458 = vpack.c.b16 %v1332, %v1330
    %v1459 = vpack.c.b16 %v1333, %v1331
    %v1460 = vpack.c.b16 %v1336, %v1334
    %v1461 = vpack.c.b16 %v1337, %v1335
    %v1462 = vpack.c.b16 %v1340, %v1338
    %v1463 = vpack.c.b16 %v1341, %v1339
    %v1464 = vpack.c.b16 %v1344, %v1342
    %v1465 = vpack.c.b16 %v1345, %v1343
    %v1466 = vpack.c.b16 %v1348, %v1346
    %v1467 = vpack.c.b16 %v1349, %v1347
    %v1468 = vpack.c.b16 %v1352, %v1350
    %v1469 = vpack.c.b16 %v1353, %v1351
    %v1470 = vpack.c.b16 %v1356, %v1354
    %v1471 = vpack.c.b16 %v1357, %v1355
    %v1472 = vpack.c.b16 %v1360, %v1358
    %v1473 = vpack.c.b16 %v1361, %v1359
    %v1474 = vpack.c.b16 %v1364, %v1362
    %v1475 = vpack.c.b16 %v1365, %v1363
    %v1476 = vpack.c.b16 %v1368, %v1366
    %v1477 = vpack.c.b16 %v1369, %v1367
    %v1478 = vpack.c.b16 %v1372, %v1370
    %v1479 = vpack.c.b16 %v1373, %v1371
    %v1480 = vpack.c.b16 %v1376, %v1374
    %v1481 = vpack.c.b16 %v1377, %v1375
    %v1482 = vpack.c.b16 %v1380, %v1378
    %v1483 = vpack.c.b16 %v1381, %v1379
    %v1484 = vpack.c.b16 %v1384, %v1382
    %v1485 = vpack.c.b16 %v1385, %v1383
    %v1486 = vpack.c.b16 %v1388, %v1386
    %v1487 = vpack.c.b16 %v1389, %v1387
    %v1488 = vpack.c.b16 %v1392, %v1390
    %v1489 = vpack.c.b16 %v1393, %v1391
    %1586 = vmatprep.subr.bf16.mxu0 %v1395
    %1587 = vmatpush1.bf16.msra.mxu0 %v1394
    %1588 = vmatprep.subr.bf16.mxu0 %v1397
    %1589 = vmatpush1.bf16.msra.mxu0 %v1396
    %1590 = vmatprep.subr.bf16.mxu0 %v1399
    %1591 = vmatpush1.bf16.msra.mxu0 %v1398
    %1592 = vmatprep.subr.bf16.mxu0 %v1401
    %1593 = vmatpush1.bf16.msra.mxu0 %v1400
    %1594 = vmatprep.subr.bf16.mxu0 %v1403
    %1595 = vmatpush1.bf16.msra.mxu0 %v1402
    %1596 = vmatprep.subr.bf16.mxu0 %v1405
    %1597 = vmatpush1.bf16.msra.mxu0 %v1404
    %1598 = vmatprep.subr.bf16.mxu0 %v1407
    %1599 = vmatpush1.bf16.msra.mxu0 %v1406
    %1600 = vmatprep.subr.bf16.mxu0 %v1409
    %1601 = vmatpush1.bf16.msra.mxu0 %v1408
    %1602 = vmatprep.subr.bf16.mxu0 %v1411
    %1603 = vmatpush1.bf16.msra.mxu0 %v1410
    %1604 = vmatprep.subr.bf16.mxu0 %v1413
    %1605 = vmatpush1.bf16.msra.mxu0 %v1412
    %1606 = vmatprep.subr.bf16.mxu0 %v1415
    %1607 = vmatpush1.bf16.msra.mxu0 %v1414
    %1608 = vmatprep.subr.bf16.mxu0 %v1417
    %1609 = vmatpush1.bf16.msra.mxu0 %v1416
    %1610 = vmatprep.subr.bf16.mxu0 %v1419
    %1611 = vmatpush1.bf16.msra.mxu0 %v1418
    %1612 = vmatprep.subr.bf16.mxu0 %v1421
    %1613 = vmatpush1.bf16.msra.mxu0 %v1420
    %1614 = vmatprep.subr.bf16.mxu0 %v1423
    %1615 = vmatpush1.bf16.msra.mxu0 %v1422
    %1616 = vmatprep.subr.bf16.mxu0 %v1425
    %1617 = vmatpush1.bf16.msra.mxu0 %v1424
    %1618 = vmatprep.mubr.bf16.mxu0 %v254
    %1619 = vmatmul.mubr.bf16.gmra.mrb[0].mxu0 %v253
    %v1620 = vpop.f32.mrb[0].mxu0
    %v1621 = vadd.f32 0.0, %v1620
    %v1622 = vpop.f32.mrb[0].mxu0
    %v1623 = vadd.f32 0.0, %v1622
    %v1624 = vpop.f32.mrb[0].mxu0
    %v1625 = vadd.f32 0.0, %v1624
    %v1626 = vpop.f32.mrb[0].mxu0
    %v1627 = vadd.f32 0.0, %v1626
    %1628 = vmatprep.mubr.bf16.mxu0 %v257
    %1629 = vmatmul.mubr.bf16.gmra.mrb[0].mxu0 %v256
    %v1630 = vpop.f32.mrb[0].mxu0
    %v1631 = vadd.f32 0.0, %v1630
    %v1632 = vpop.f32.mrb[0].mxu0
    %v1633 = vadd.f32 0.0, %v1632
    %v1634 = vpop.f32.mrb[0].mxu0
    %v1635 = vadd.f32 0.0, %v1634
    %v1636 = vpop.f32.mrb[0].mxu0
    %v1637 = vadd.f32 0.0, %v1636
    %1638 = vmatprep.mubr.bf16.mxu0 %v260
    %1639 = vmatmul.mubr.bf16.gmra.mrb[0].mxu0 %v259
    %v1640 = vpop.f32.mrb[0].mxu0
    %v1641 = vadd.f32 0.0, %v1640
    %v1642 = vpop.f32.mrb[0].mxu0
    %v1643 = vadd.f32 0.0, %v1642
    %v1644 = vpop.f32.mrb[0].mxu0
    %v1645 = vadd.f32 0.0, %v1644
    %v1646 = vpop.f32.mrb[0].mxu0
    %v1647 = vadd.f32 0.0, %v1646
    %1648 = vmatprep.mubr.bf16.mxu0 %v263
    %1649 = vmatmul.mubr.bf16.gmra.mrb[0].mxu0 %v262
    %v1650 = vpop.f32.mrb[0].mxu0
    %v1651 = vadd.f32 0.0, %v1650
    %v1652 = vpop.f32.mrb[0].mxu0
    %v1653 = vadd.f32 0.0, %v1652
    %v1654 = vpop.f32.mrb[0].mxu0
    %v1655 = vadd.f32 0.0, %v1654
    %v1656 = vpop.f32.mrb[0].mxu0
    %v1657 = vadd.f32 0.0, %v1656
    %1658 = vmatprep.mubr.bf16.mxu0 %v266
    %1659 = vmatmul.mubr.bf16.gmra.mrb[0].mxu0 %v265
    %v1660 = vpop.f32.mrb[0].mxu0
    %v1661 = vadd.f32 0.0, %v1660
    %v1662 = vpop.f32.mrb[0].mxu0
    %v1663 = vadd.f32 0.0, %v1662
    %v1664 = vpop.f32.mrb[0].mxu0
    %v1665 = vadd.f32 0.0, %v1664
    %v1666 = vpop.f32.mrb[0].mxu0
    %v1667 = vadd.f32 0.0, %v1666
    %1668 = vmatprep.mubr.bf16.mxu0 %v269
    %1669 = vmatmul.mubr.bf16.gmra.mrb[0].mxu0 %v268
    %v1670 = vpop.f32.mrb[0].mxu0
    %v1671 = vadd.f32 0.0, %v1670
    %v1672 = vpop.f32.mrb[0].mxu0
    %v1673 = vadd.f32 0.0, %v1672
    %v1674 = vpop.f32.mrb[0].mxu0
    %v1675 = vadd.f32 0.0, %v1674
    %v1676 = vpop.f32.mrb[0].mxu0
    %v1677 = vadd.f32 0.0, %v1676
    %1678 = vmatprep.mubr.bf16.mxu0 %v272
    %1679 = vmatmul.mubr.bf16.gmra.mrb[0].mxu0 %v271
    %v1680 = vpop.f32.mrb[0].mxu0
    %v1681 = vadd.f32 0.0, %v1680
    %v1682 = vpop.f32.mrb[0].mxu0
    %v1683 = vadd.f32 0.0, %v1682
    %v1684 = vpop.f32.mrb[0].mxu0
    %v1685 = vadd.f32 0.0, %v1684
    %v1686 = vpop.f32.mrb[0].mxu0
    %v1687 = vadd.f32 0.0, %v1686
    %1688 = vmatprep.mubr.bf16.mxu0 %v275
    %1689 = vmatmul.mubr.bf16.gmra.mrb[0].mxu0 %v274
    %v1690 = vpop.f32.mrb[0].mxu0
    %v1691 = vadd.f32 0.0, %v1690
    %v1692 = vpop.f32.mrb[0].mxu0
    %v1693 = vadd.f32 0.0, %v1692
    %v1694 = vpop.f32.mrb[0].mxu0
    %v1695 = vadd.f32 0.0, %v1694
    %v1696 = vpop.f32.mrb[0].mxu0
    %v1697 = vadd.f32 0.0, %v1696
    %1698 = vdwg.mxu0
    %1699 = vmatprep.subr.bf16.mxu0 %v1427
    %1700 = vmatpush1.bf16.msra.mxu0 %v1426
    %1701 = vmatprep.subr.bf16.mxu0 %v1429
    %1702 = vmatpush1.bf16.msra.mxu0 %v1428
    %1703 = vmatprep.subr.bf16.mxu0 %v1431
    %1704 = vmatpush1.bf16.msra.mxu0 %v1430
    %1705 = vmatprep.subr.bf16.mxu0 %v1433
    %1706 = vmatpush1.bf16.msra.mxu0 %v1432
    %1707 = vmatprep.subr.bf16.mxu0 %v1435
    %1708 = vmatpush1.bf16.msra.mxu0 %v1434
    %1709 = vmatprep.subr.bf16.mxu0 %v1437
    %1710 = vmatpush1.bf16.msra.mxu0 %v1436
    %1711 = vmatprep.subr.bf16.mxu0 %v1439
    %1712 = vmatpush1.bf16.msra.mxu0 %v1438
    %1713 = vmatprep.subr.bf16.mxu0 %v1441
    %1714 = vmatpush1.bf16.msra.mxu0 %v1440
    %1715 = vmatprep.subr.bf16.mxu0 %v1443
    %1716 = vmatpush1.bf16.msra.mxu0 %v1442
    %1717 = vmatprep.subr.bf16.mxu0 %v1445
    %1718 = vmatpush1.bf16.msra.mxu0 %v1444
    %1719 = vmatprep.subr.bf16.mxu0 %v1447
    %1720 = vmatpush1.bf16.msra.mxu0 %v1446
    %1721 = vmatprep.subr.bf16.mxu0 %v1449
    %1722 = vmatpush1.bf16.msra.mxu0 %v1448
    %1723 = vmatprep.subr.bf16.mxu0 %v1451
    %1724 = vmatpush1.bf16.msra.mxu0 %v1450
    %1725 = vmatprep.subr.bf16.mxu0 %v1453
    %1726 = vmatpush1.bf16.msra.mxu0 %v1452
    %1727 = vmatprep.subr.bf16.mxu0 %v1455
    %1728 = vmatpush1.bf16.msra.mxu0 %v1454
    %1729 = vmatprep.subr.bf16.mxu0 %v1457
    %1730 = vmatpush1.bf16.msra.mxu0 %v1456
    %1731 = vmatprep.mubr.bf16.mxu0 %v801
    %1732 = vmatmul.mubr.bf16.gmra.mrb[0].mxu0 %v255
    %v1733 = vpop.f32.mrb[0].mxu0
    %v1734 = vadd.f32 %v1621, %v1733
    %v1735 = vpop.f32.mrb[0].mxu0
    %v1736 = vadd.f32 %v1623, %v1735
    %v1737 = vpop.f32.mrb[0].mxu0
    %v1738 = vadd.f32 %v1625, %v1737
    %v1739 = vpop.f32.mrb[0].mxu0
    %v1740 = vadd.f32 %v1627, %v1739
    %1741 = vmatprep.mubr.bf16.mxu0 %v833
    %1742 = vmatmul.mubr.bf16.gmra.mrb[0].mxu0 %v258
    %v1743 = vpop.f32.mrb[0].mxu0
    %v1744 = vadd.f32 %v1631, %v1743
    %v1745 = vpop.f32.mrb[0].mxu0
    %v1746 = vadd.f32 %v1633, %v1745
    %v1747 = vpop.f32.mrb[0].mxu0
    %v1748 = vadd.f32 %v1635, %v1747
    %v1749 = vpop.f32.mrb[0].mxu0
    %v1750 = vadd.f32 %v1637, %v1749
    %1751 = vmatprep.mubr.bf16.mxu0 %v857
    %1752 = vmatmul.mubr.bf16.gmra.mrb[0].mxu0 %v261
    %v1753 = vpop.f32.mrb[0].mxu0
    %v1754 = vadd.f32 %v1641, %v1753
    %v1755 = vpop.f32.mrb[0].mxu0
    %v1756 = vadd.f32 %v1643, %v1755
    %v1757 = vpop.f32.mrb[0].mxu0
    %v1758 = vadd.f32 %v1645, %v1757
    %v1759 = vpop.f32.mrb[0].mxu0
    %v1760 = vadd.f32 %v1647, %v1759
    %1761 = vmatprep.mubr.bf16.mxu0 %v881
    %1762 = vmatmul.mubr.bf16.gmra.mrb[0].mxu0 %v264
    %v1763 = vpop.f32.mrb[0].mxu0
    %v1764 = vadd.f32 %v1651, %v1763
    %v1765 = vpop.f32.mrb[0].mxu0
    %v1766 = vadd.f32 %v1653, %v1765
    %v1767 = vpop.f32.mrb[0].mxu0
    %v1768 = vadd.f32 %v1655, %v1767
    %v1769 = vpop.f32.mrb[0].mxu0
    %v1770 = vadd.f32 %v1657, %v1769
    %1771 = vmatprep.mubr.bf16.mxu0 %v905
    %1772 = vmatmul.mubr.bf16.gmra.mrb[0].mxu0 %v267
    %v1773 = vpop.f32.mrb[0].mxu0
    %v1774 = vadd.f32 %v1661, %v1773
    %v1775 = vpop.f32.mrb[0].mxu0
    %v1776 = vadd.f32 %v1663, %v1775
    %v1777 = vpop.f32.mrb[0].mxu0
    %v1778 = vadd.f32 %v1665, %v1777
    %v1779 = vpop.f32.mrb[0].mxu0
    %v1780 = vadd.f32 %v1667, %v1779
    %1781 = vmatprep.mubr.bf16.mxu0 %v929
    %1782 = vmatmul.mubr.bf16.gmra.mrb[0].mxu0 %v270
    %v1783 = vpop.f32.mrb[0].mxu0
    %v1784 = vadd.f32 %v1671, %v1783
    %v1785 = vpop.f32.mrb[0].mxu0
    %v1786 = vadd.f32 %v1673, %v1785
    %v1787 = vpop.f32.mrb[0].mxu0
    %v1788 = vadd.f32 %v1675, %v1787
    %v1789 = vpop.f32.mrb[0].mxu0
    %v1790 = vadd.f32 %v1677, %v1789
    %1791 = vmatprep.mubr.bf16.mxu0 %v953
    %1792 = vmatmul.mubr.bf16.gmra.mrb[0].mxu0 %v273
    %v1793 = vpop.f32.mrb[0].mxu0
    %v1794 = vadd.f32 %v1681, %v1793
    %v1795 = vpop.f32.mrb[0].mxu0
    %v1796 = vadd.f32 %v1683, %v1795
    %v1797 = vpop.f32.mrb[0].mxu0
    %v1798 = vadd.f32 %v1685, %v1797
    %v1799 = vpop.f32.mrb[0].mxu0
    %v1800 = vadd.f32 %v1687, %v1799
    %1801 = vmatprep.mubr.bf16.mxu0 %v977
    %1802 = vmatmul.mubr.bf16.gmra.mrb[0].mxu0 %v276
    %v1803 = vpop.f32.mrb[0].mxu0
    %v1804 = vadd.f32 %v1691, %v1803
    %v1805 = vpop.f32.mrb[0].mxu0
    %v1806 = vadd.f32 %v1693, %v1805
    %v1807 = vpop.f32.mrb[0].mxu0
    %v1808 = vadd.f32 %v1695, %v1807
    %v1809 = vpop.f32.mrb[0].mxu0
    %v1810 = vadd.f32 %v1697, %v1809
    %1811 = vdwg.mxu0
    %1812 = vmatprep.subr.bf16.mxu0 %v1459
    %1813 = vmatpush1.bf16.msra.mxu0 %v1458
    %1814 = vmatprep.subr.bf16.mxu0 %v1461
    %1815 = vmatpush1.bf16.msra.mxu0 %v1460
    %1816 = vmatprep.subr.bf16.mxu0 %v1463
    %1817 = vmatpush1.bf16.msra.mxu0 %v1462
    %1818 = vmatprep.subr.bf16.mxu0 %v1465
    %1819 = vmatpush1.bf16.msra.mxu0 %v1464
    %1820 = vmatprep.subr.bf16.mxu0 %v1467
    %1821 = vmatpush1.bf16.msra.mxu0 %v1466
    %1822 = vmatprep.subr.bf16.mxu0 %v1469
    %1823 = vmatpush1.bf16.msra.mxu0 %v1468
    %1824 = vmatprep.subr.bf16.mxu0 %v1471
    %1825 = vmatpush1.bf16.msra.mxu0 %v1470
    %1826 = vmatprep.subr.bf16.mxu0 %v1473
    %1827 = vmatpush1.bf16.msra.mxu0 %v1472
    %1828 = vmatprep.subr.bf16.mxu0 %v1475
    %1829 = vmatpush1.bf16.msra.mxu0 %v1474
    %1830 = vmatprep.subr.bf16.mxu0 %v1477
    %1831 = vmatpush1.bf16.msra.mxu0 %v1476
    %1832 = vmatprep.subr.bf16.mxu0 %v1479
    %1833 = vmatpush1.bf16.msra.mxu0 %v1478
    %1834 = vmatprep.subr.bf16.mxu0 %v1481
    %1835 = vmatpush1.bf16.msra.mxu0 %v1480
    %1836 = vmatprep.subr.bf16.mxu0 %v1483
    %1837 = vmatpush1.bf16.msra.mxu0 %v1482
    %1838 = vmatprep.subr.bf16.mxu0 %v1485
    %1839 = vmatpush1.bf16.msra.mxu0 %v1484
    %1840 = vmatprep.subr.bf16.mxu0 %v1487
    %1841 = vmatpush1.bf16.msra.mxu0 %v1486
    %1842 = vmatprep.subr.bf16.mxu0 %v1489
    %1843 = vmatpush1.bf16.msra.mxu0 %v1488
    %1844 = vmatprep.mubr.bf16.mxu0 %v825
    %1845 = vmatmul.mubr.bf16.gmra.mrb[0].mxu0 %v813
    %v1846 = vpop.f32.mrb[0].mxu0
    %v1847 = vadd.f32 %v1734, %v1846
    %v1848 = vpop.f32.mrb[0].mxu0
    %v1849 = vadd.f32 %v1736, %v1848
    %v1850 = vpop.f32.mrb[0].mxu0
    %v1851 = vadd.f32 %v1738, %v1850
    %v1852 = vpop.f32.mrb[0].mxu0
    %v1853 = vadd.f32 %v1740, %v1852
    %1854 = vmatprep.mubr.bf16.mxu0 %v849
    %1855 = vmatmul.mubr.bf16.gmra.mrb[0].mxu0 %v841
    %v1856 = vpop.f32.mrb[0].mxu0
    %v1857 = vadd.f32 %v1744, %v1856
    %v1858 = vpop.f32.mrb[0].mxu0
    %v1859 = vadd.f32 %v1746, %v1858
    %v1860 = vpop.f32.mrb[0].mxu0
    %v1861 = vadd.f32 %v1748, %v1860
    %v1862 = vpop.f32.mrb[0].mxu0
    %v1863 = vadd.f32 %v1750, %v1862
    %1864 = vmatprep.mubr.bf16.mxu0 %v873
    %1865 = vmatmul.mubr.bf16.gmra.mrb[0].mxu0 %v865
    %v1866 = vpop.f32.mrb[0].mxu0
    %v1867 = vadd.f32 %v1754, %v1866
    %v1868 = vpop.f32.mrb[0].mxu0
    %v1869 = vadd.f32 %v1756, %v1868
    %v1870 = vpop.f32.mrb[0].mxu0
    %v1871 = vadd.f32 %v1758, %v1870
    %v1872 = vpop.f32.mrb[0].mxu0
    %v1873 = vadd.f32 %v1760, %v1872
    %1874 = vmatprep.mubr.bf16.mxu0 %v897
    %1875 = vmatmul.mubr.bf16.gmra.mrb[0].mxu0 %v889
    %v1876 = vpop.f32.mrb[0].mxu0
    %v1877 = vadd.f32 %v1764, %v1876
    %v1878 = vpop.f32.mrb[0].mxu0
    %v1879 = vadd.f32 %v1766, %v1878
    %v1880 = vpop.f32.mrb[0].mxu0
    %v1881 = vadd.f32 %v1768, %v1880
    %v1882 = vpop.f32.mrb[0].mxu0
    %v1883 = vadd.f32 %v1770, %v1882
    %1884 = vmatprep.mubr.bf16.mxu0 %v921
    %1885 = vmatmul.mubr.bf16.gmra.mrb[0].mxu0 %v913
    %v1886 = vpop.f32.mrb[0].mxu0
    %v1887 = vadd.f32 %v1774, %v1886
    %v1888 = vpop.f32.mrb[0].mxu0
    %v1889 = vadd.f32 %v1776, %v1888
    %v1890 = vpop.f32.mrb[0].mxu0
    %v1891 = vadd.f32 %v1778, %v1890
    %v1892 = vpop.f32.mrb[0].mxu0
    %v1893 = vadd.f32 %v1780, %v1892
    %1894 = vmatprep.mubr.bf16.mxu0 %v945
    %1895 = vmatmul.mubr.bf16.gmra.mrb[0].mxu0 %v937
    %v1896 = vpop.f32.mrb[0].mxu0
    %v1897 = vadd.f32 %v1784, %v1896
    %v1898 = vpop.f32.mrb[0].mxu0
    %v1899 = vadd.f32 %v1786, %v1898
    %v1900 = vpop.f32.mrb[0].mxu0
    %v1901 = vadd.f32 %v1788, %v1900
    %v1902 = vpop.f32.mrb[0].mxu0
    %v1903 = vadd.f32 %v1790, %v1902
    %1904 = vmatprep.mubr.bf16.mxu0 %v969
    %1905 = vmatmul.mubr.bf16.gmra.mrb[0].mxu0 %v961
    %v1906 = vpop.f32.mrb[0].mxu0
    %v1907 = vadd.f32 %v1794, %v1906
    %v1908 = vpop.f32.mrb[0].mxu0
    %v1909 = vadd.f32 %v1796, %v1908
    %v1910 = vpop.f32.mrb[0].mxu0
    %v1911 = vadd.f32 %v1798, %v1910
    %v1912 = vpop.f32.mrb[0].mxu0
    %v1913 = vadd.f32 %v1800, %v1912
    %1914 = vmatprep.mubr.bf16.mxu0 %v985
    %1915 = vmatmul.mubr.bf16.gmra.mrb[0].mxu0 %v981
    %v1916 = vpop.f32.mrb[0].mxu0
    %v1917 = vadd.f32 %v1804, %v1916
    %v1918 = vpop.f32.mrb[0].mxu0
    %v1919 = vadd.f32 %v1806, %v1918
    %v1920 = vpop.f32.mrb[0].mxu0
    %v1921 = vadd.f32 %v1808, %v1920
    %v1922 = vpop.f32.mrb[0].mxu0
    %v1923 = vadd.f32 %v1810, %v1922
    %1924 = vdwg.mxu0
    %v1925 = vld [vmem:[%s6 + $0x1] sm:$0x1]
    %v1926 = vlaneseq
    %v1927 = vshrl.u32 %v1926, 7
    %v1928 = vsub.s32 0, %v1927
    %v1929 = vrot.slane %v1925, %v1928
    %v1930 = vadd.f32 %v1847, %v1929
    %v1931 = vadd.f32 %v1851, %v1929
    %v1932 = vadd.f32 %v1857, %v1929
    %v1933 = vadd.f32 %v1861, %v1929
    %v1934 = vadd.f32 %v1867, %v1929
    %v1935 = vadd.f32 %v1871, %v1929
    %v1936 = vadd.f32 %v1877, %v1929
    %v1937 = vadd.f32 %v1881, %v1929
    %v1938 = vadd.f32 %v1887, %v1929
    %v1939 = vadd.f32 %v1891, %v1929
    %v1940 = vadd.f32 %v1897, %v1929
    %v1941 = vadd.f32 %v1901, %v1929
    %v1942 = vadd.f32 %v1907, %v1929
    %v1943 = vadd.f32 %v1911, %v1929
    %v1944 = vadd.f32 %v1917, %v1929
    %v1945 = vadd.f32 %v1921, %v1929
    %v1946 = vtanh.pop %v1930
    %v1947 = vtanh.pop %v1931
    %v1948 = vtanh.pop %v1932
    %v1949 = vtanh.pop %v1933
    %v1950 = vtanh.pop %v1934
    %v1951 = vtanh.pop %v1935
    %v1952 = vtanh.pop %v1936
    %v1953 = vtanh.pop %v1937
    %v1954 = vtanh.pop %v1938
    %v1955 = vtanh.pop %v1939
    %v1956 = vtanh.pop %v1940
    %v1957 = vtanh.pop %v1941
    %v1958 = vtanh.pop %v1942
    %v1959 = vtanh.pop %v1943
    %v1960 = vtanh.pop %v1944
    %v1961 = vtanh.pop %v1945
    %vm1962 = vcmp.lt.s32.totalorder %v302, 15
    %vm1963 = vcmp.lt.s32.totalorder %v303, 15
    %v1964 = vsel %vm1962, 1, 0
    %v1965 = vsel %vm1963, 1, 0
    %vm1966 = vcmp.eq.s32.totalorder %v1964, 1
    %vm1967 = vcmp.eq.s32.totalorder %v1965, 1
    %v1968 = vsel %vm1966, %v1946, -2.0
    %v1969 = vsel %vm1967, %v1947, -2.0
    %v1970 = vsel %vm1966, %v1948, -2.0
    %v1971 = vsel %vm1967, %v1949, -2.0
    %v1972 = vsel %vm1966, %v1950, -2.0
    %v1973 = vsel %vm1967, %v1951, -2.0
    %v1974 = vsel %vm1966, %v1952, -2.0
    %v1975 = vsel %vm1967, %v1953, -2.0
    %v1976 = vsel %vm1966, %v1954, -2.0
    %v1977 = vsel %vm1967, %v1955, -2.0
    %v1978 = vsel %vm1966, %v1956, -2.0
    %v1979 = vsel %vm1967, %v1957, -2.0
    %v1980 = vsel %vm1966, %v1958, -2.0
    %v1981 = vsel %vm1967, %v1959, -2.0
    %v1982 = vsel %vm1966, %v1960, -2.0
    %v1983 = vsel %vm1967, %v1961, -2.0
    %v1984 = vmax.f32 %v1968, %v1969
    %v1985 = vrot.slane %v1984, 4
    %v1986 = vmax.f32 %v1984, %v1985
    %v1987 = vrot.slane %v1986, 2
    %v1988 = vmax.f32 %v1986, %v1987
    %v1989 = vrot.slane %v1988, 1
    %v1990 = vmax.f32 %v1988, %v1989
    %v1991 = vmax.f32 %v1970, %v1971
    %v1992 = vrot.slane %v1991, 4
    %v1993 = vmax.f32 %v1991, %v1992
    %v1994 = vrot.slane %v1993, 2
    %v1995 = vmax.f32 %v1993, %v1994
    %v1996 = vrot.slane %v1995, 1
    %v1997 = vmax.f32 %v1995, %v1996
    %v1998 = vmax.f32 %v1972, %v1973
    %v1999 = vrot.slane %v1998, 4
    %v2000 = vmax.f32 %v1998, %v1999
    %v2001 = vrot.slane %v2000, 2
    %v2002 = vmax.f32 %v2000, %v2001
    %v2003 = vrot.slane %v2002, 1
    %v2004 = vmax.f32 %v2002, %v2003
    %v2005 = vmax.f32 %v1974, %v1975
    %v2006 = vrot.slane %v2005, 4
    %v2007 = vmax.f32 %v2005, %v2006
    %v2008 = vrot.slane %v2007, 2
    %v2009 = vmax.f32 %v2007, %v2008
    %v2010 = vrot.slane %v2009, 1
    %v2011 = vmax.f32 %v2009, %v2010
    %v2012 = vmax.f32 %v1976, %v1977
    %v2013 = vrot.slane %v2012, 4
    %v2014 = vmax.f32 %v2012, %v2013
    %v2015 = vrot.slane %v2014, 2
    %v2016 = vmax.f32 %v2014, %v2015
    %v2017 = vrot.slane %v2016, 1
    %v2018 = vmax.f32 %v2016, %v2017
    %v2019 = vmax.f32 %v1978, %v1979
    %v2020 = vrot.slane %v2019, 4
    %v2021 = vmax.f32 %v2019, %v2020
    %v2022 = vrot.slane %v2021, 2
    %v2023 = vmax.f32 %v2021, %v2022
    %v2024 = vrot.slane %v2023, 1
    %v2025 = vmax.f32 %v2023, %v2024
    %v2026 = vmax.f32 %v1980, %v1981
    %v2027 = vrot.slane %v2026, 4
    %v2028 = vmax.f32 %v2026, %v2027
    %v2029 = vrot.slane %v2028, 2
    %v2030 = vmax.f32 %v2028, %v2029
    %v2031 = vrot.slane %v2030, 1
    %v2032 = vmax.f32 %v2030, %v2031
    %v2033 = vmax.f32 %v1982, %v1983
    %v2034 = vrot.slane %v2033, 4
    %v2035 = vmax.f32 %v2033, %v2034
    %v2036 = vrot.slane %v2035, 2
    %v2037 = vmax.f32 %v2035, %v2036
    %v2038 = vrot.slane %v2037, 1
    %v2039 = vmax.f32 %v2037, %v2038
    %v2040 = vld [vmem:[#allocation8] sm:$0xf]
    %v2041 = vld [vmem:[#allocation8 + $0x4] sm:$0xf]
    %v2042 = vld [vmem:[#allocation8 + $0x8] sm:$0xf]
    %v2043 = vld [vmem:[#allocation8 + $0xc] sm:$0xf]
    %v2044 = vld [vmem:[#allocation8 + $0x10] sm:$0xf]
    %v2045 = vld [vmem:[#allocation8 + $0x14] sm:$0xf]
    %v2046 = vld [vmem:[#allocation8 + $0x18] sm:$0xf]
    %v2047 = vld [vmem:[#allocation8 + $0x1c] sm:$0xf]
    %v2048 = vld [vmem:[#allocation8 + $0x20] sm:$0xf]
    %v2049 = vld [vmem:[#allocation8 + $0x24] sm:$0xf]
    %v2050 = vld [vmem:[#allocation8 + $0x28] sm:$0xf]
    %v2051 = vld [vmem:[#allocation8 + $0x2c] sm:$0xf]
    %v2052 = vld [vmem:[#allocation8 + $0x30] sm:$0xf]
    %v2053 = vld [vmem:[#allocation8 + $0x34] sm:$0xf]
    %v2054 = vld [vmem:[#allocation8 + $0x38] sm:$0xf]
    %v2055 = vld [vmem:[#allocation8 + $0x3c] sm:$0xf]
    %v2056 = vld [vmem:[#allocation8 + $0x40] sm:$0xf]
    %v2057 = vld [vmem:[#allocation8 + $0x44] sm:$0xf]
    %v2058 = vld [vmem:[#allocation8 + $0x48] sm:$0xf]
    %v2059 = vld [vmem:[#allocation8 + $0x4c] sm:$0xf]
    %v2060 = vld [vmem:[#allocation8 + $0x50] sm:$0xf]
    %v2061 = vld [vmem:[#allocation8 + $0x54] sm:$0xf]
    %v2062 = vld [vmem:[#allocation8 + $0x58] sm:$0xf]
    %v2063 = vld [vmem:[#allocation8 + $0x5c] sm:$0xf]
    %v2064 = vld [vmem:[#allocation8 + $0x60] sm:$0xf]
    %v2065 = vld [vmem:[#allocation8 + $0x64] sm:$0xf]
    %v2066 = vld [vmem:[#allocation8 + $0x68] sm:$0xf]
    %v2067 = vld [vmem:[#allocation8 + $0x6c] sm:$0xf]
    %v2068 = vld [vmem:[#allocation8 + $0x70] sm:$0xf]
    %v2069 = vld [vmem:[#allocation8 + $0x74] sm:$0xf]
    %v2070 = vld [vmem:[#allocation8 + $0x78] sm:$0xf]
    %v2071 = vld [vmem:[#allocation8 + $0x7c] sm:$0xf]
    %v2072 = vld [vmem:[#allocation8 + $0x80] sm:$0xf]
    %v2073 = vld [vmem:[#allocation8 + $0x84] sm:$0xf]
    %v2074 = vld [vmem:[#allocation8 + $0x88] sm:$0xf]
    %v2075 = vld [vmem:[#allocation8 + $0x8c] sm:$0xf]
    %v2076 = vld [vmem:[#allocation8 + $0x90] sm:$0xf]
    %v2077 = vld [vmem:[#allocation8 + $0x94] sm:$0xf]
    %v2078 = vld [vmem:[#allocation8 + $0x98] sm:$0xf]
    %v2079 = vld [vmem:[#allocation8 + $0x9c] sm:$0xf]
    %v2080 = vld [vmem:[#allocation8 + $0xa0] sm:$0xf]
    %v2081 = vld [vmem:[#allocation8 + $0xa4] sm:$0xf]
    %v2082 = vld [vmem:[#allocation8 + $0xa8] sm:$0xf]
    %v2083 = vld [vmem:[#allocation8 + $0xac] sm:$0xf]
    %v2084 = vld [vmem:[#allocation8 + $0xb0] sm:$0xf]
    %v2085 = vld [vmem:[#allocation8 + $0xb4] sm:$0xf]
    %v2086 = vld [vmem:[#allocation8 + $0xb8] sm:$0xf]
    %v2087 = vld [vmem:[#allocation8 + $0xbc] sm:$0xf]
    %vm2089 = vcmask 1046528
    %v2090 = vrot.slane %v253, 1
    %v2091 = vrot.slane %v256, 1
    %v2092 = vsel %vm2089, %v2090, %v2091
    %v2093 = vrot.slane %v254, 1
    %v2094 = vrot.slane %v257, 1
    %v2095 = vsel %vm2089, %v2093, %v2094
    %v2096 = vrot.slane %v255, 1
    %v2097 = vrot.slane %v258, 1
    %v2098 = vsel %vm2089, %v2096, %v2097
    %v2099 = vrot.slane %v259, 1
    %v2100 = vsel %vm2089, %v2091, %v2099
    %v2101 = vrot.slane %v260, 1
    %v2102 = vsel %vm2089, %v2094, %v2101
    %v2103 = vrot.slane %v261, 1
    %v2104 = vsel %vm2089, %v2097, %v2103
    %v2105 = vrot.slane %v262, 1
    %v2106 = vsel %vm2089, %v2099, %v2105
    %v2107 = vrot.slane %v263, 1
    %v2108 = vsel %vm2089, %v2101, %v2107
    %v2109 = vrot.slane %v264, 1
    %v2110 = vsel %vm2089, %v2103, %v2109
    %v2111 = vrot.slane %v265, 1
    %v2112 = vsel %vm2089, %v2105, %v2111
    %v2113 = vrot.slane %v266, 1
    %v2114 = vsel %vm2089, %v2107, %v2113
    %v2115 = vrot.slane %v267, 1
    %v2116 = vsel %vm2089, %v2109, %v2115
    %v2117 = vrot.slane %v268, 1
    %v2118 = vsel %vm2089, %v2111, %v2117
    %v2119 = vrot.slane %v269, 1
    %v2120 = vsel %vm2089, %v2113, %v2119
    %v2121 = vrot.slane %v270, 1
    %v2122 = vsel %vm2089, %v2115, %v2121
    %v2123 = vrot.slane %v271, 1
    %v2124 = vsel %vm2089, %v2117, %v2123
    %v2125 = vrot.slane %v272, 1
    %v2126 = vsel %vm2089, %v2119, %v2125
    %v2127 = vrot.slane %v273, 1
    %v2128 = vsel %vm2089, %v2121, %v2127
    %v2129 = vrot.slane %v274, 1
    %v2130 = vsel %vm2089, %v2123, %v2129
    %v2131 = vrot.slane %v275, 1
    %v2132 = vsel %vm2089, %v2125, %v2131
    %v2133 = vrot.slane %v276, 1
    %v2134 = vsel %vm2089, %v2127, %v2133
    %v2135 = vrot.slane 0, 1
    %v2136 = vsel %vm2089, %v2129, %v2135
    %v2137 = vsel %vm2089, %v2131, %v2135
    %v2138 = vsel %vm2089, %v2133, %v2135
    %v2211 = vunpack.c.l.b16 %v2040
    %v2212 = vunpack.c.l.b16 %v2041
    %v2213 = vunpack.c.l.b16 %v2042
    %v2214 = vunpack.c.l.b16 %v2043
    %v2215 = vunpack.c.l.b16 %v2044
    %v2216 = vunpack.c.l.b16 %v2045
    %v2217 = vunpack.c.l.b16 %v2046
    %v2218 = vunpack.c.l.b16 %v2047
    %v2219 = vunpack.c.l.b16 %v2048
    %v2220 = vunpack.c.l.b16 %v2049
    %v2221 = vunpack.c.l.b16 %v2050
    %v2222 = vunpack.c.l.b16 %v2051
    %v2223 = vunpack.c.l.b16 %v2052
    %v2224 = vunpack.c.l.b16 %v2053
    %v2225 = vunpack.c.l.b16 %v2054
    %v2226 = vunpack.c.l.b16 %v2055
    %v2227 = vunpack.c.l.b16 %v2056
    %v2228 = vunpack.c.l.b16 %v2057
    %v2229 = vunpack.c.l.b16 %v2058
    %v2230 = vunpack.c.l.b16 %v2059
    %v2231 = vunpack.c.l.b16 %v2060
    %v2232 = vunpack.c.l.b16 %v2061
    %v2233 = vunpack.c.l.b16 %v2062
    %v2234 = vunpack.c.l.b16 %v2063
    %v2235 = vunpack.c.l.b16 %v2064
    %v2236 = vunpack.c.l.b16 %v2065
    %v2237 = vunpack.c.l.b16 %v2066
    %v2238 = vunpack.c.l.b16 %v2067
    %v2239 = vunpack.c.l.b16 %v2068
    %v2240 = vunpack.c.l.b16 %v2069
    %v2241 = vunpack.c.l.b16 %v2070
    %v2242 = vunpack.c.l.b16 %v2071
    %v2243 = vunpack.c.l.b16 %v2072
    %v2244 = vunpack.c.l.b16 %v2073
    %v2245 = vunpack.c.l.b16 %v2074
    %v2246 = vunpack.c.l.b16 %v2075
    %v2247 = vunpack.c.l.b16 %v2076
    %v2248 = vunpack.c.l.b16 %v2077
    %v2249 = vunpack.c.l.b16 %v2078
    %v2250 = vunpack.c.l.b16 %v2079
    %v2251 = vunpack.c.l.b16 %v2080
    %v2252 = vunpack.c.l.b16 %v2081
    %v2253 = vunpack.c.l.b16 %v2082
    %v2254 = vunpack.c.l.b16 %v2083
    %v2255 = vunpack.c.l.b16 %v2084
    %v2256 = vunpack.c.l.b16 %v2085
    %v2257 = vunpack.c.l.b16 %v2086
    %v2258 = vunpack.c.l.b16 %v2087
    %v2259 = vpack.c.b16 %v2212, %v2211
    %v2260 = vpack.c.b16 %v2214, %v2213
    %v2261 = vpack.c.b16 %v2216, %v2215
    %v2262 = vpack.c.b16 %v2218, %v2217
    %v2263 = vpack.c.b16 %v2220, %v2219
    %v2264 = vpack.c.b16 %v2222, %v2221
    %v2265 = vpack.c.b16 %v2224, %v2223
    %v2266 = vpack.c.b16 %v2226, %v2225
    %v2267 = vpack.c.b16 %v2228, %v2227
    %v2268 = vpack.c.b16 %v2230, %v2229
    %v2269 = vpack.c.b16 %v2232, %v2231
    %v2270 = vpack.c.b16 %v2234, %v2233
    %v2271 = vpack.c.b16 %v2236, %v2235
    %v2272 = vpack.c.b16 %v2238, %v2237
    %v2273 = vpack.c.b16 %v2240, %v2239
    %v2274 = vpack.c.b16 %v2242, %v2241
    %v2275 = vpack.c.b16 %v2244, %v2243
    %v2276 = vpack.c.b16 %v2246, %v2245
    %v2277 = vpack.c.b16 %v2248, %v2247
    %v2278 = vpack.c.b16 %v2250, %v2249
    %v2279 = vpack.c.b16 %v2252, %v2251
    %v2280 = vpack.c.b16 %v2254, %v2253
    %v2281 = vpack.c.b16 %v2256, %v2255
    %v2282 = vpack.c.b16 %v2258, %v2257
    %2307 = vmatprep.subr.bf16.mxu0 0
    %2308 = vmatpush1.bf16.msra.mxu0 %v2259
    %2309 = vmatprep.subr.bf16.mxu0 0
    %2310 = vmatpush1.bf16.msra.mxu0 %v2260
    %2311 = vmatprep.subr.bf16.mxu0 0
    %2312 = vmatpush1.bf16.msra.mxu0 %v2261
    %2313 = vmatprep.subr.bf16.mxu0 0
    %2314 = vmatpush1.bf16.msra.mxu0 %v2262
    %2315 = vmatprep.subr.bf16.mxu0 0
    %2316 = vmatpush1.bf16.msra.mxu0 %v2263
    %2317 = vmatprep.subr.bf16.mxu0 0
    %2318 = vmatpush1.bf16.msra.mxu0 %v2264
    %2319 = vmatprep.subr.bf16.mxu0 0
    %2320 = vmatpush1.bf16.msra.mxu0 %v2265
    %2321 = vmatprep.subr.bf16.mxu0 0
    %2322 = vmatpush1.bf16.msra.mxu0 %v2266
    %2323 = vmatprep.subr.bf16.mxu0 0
    %2324 = vmatpush1.bf16.msra.mxu0 %v2267
    %2325 = vmatprep.subr.bf16.mxu0 0
    %2326 = vmatpush1.bf16.msra.mxu0 %v2268
    %2327 = vmatprep.subr.bf16.mxu0 0
    %2328 = vmatpush1.bf16.msra.mxu0 %v2269
    %2329 = vmatprep.subr.bf16.mxu0 0
    %2330 = vmatpush1.bf16.msra.mxu0 %v2270
    %2331 = vmatprep.subr.bf16.mxu0 0
    %2332 = vmatpush1.bf16.msra.mxu0 %v2271
    %2333 = vmatprep.subr.bf16.mxu0 0
    %2334 = vmatpush1.bf16.msra.mxu0 %v2272
    %2335 = vmatprep.subr.bf16.mxu0 0
    %2336 = vmatpush1.bf16.msra.mxu0 %v2273
    %2337 = vmatprep.subr.bf16.mxu0 0
    %2338 = vmatpush1.bf16.msra.mxu0 %v2274
    %2339 = vmatprep.mubr.bf16.mxu0 %v2095
    %2340 = vmatmul.mubr.bf16.gmra.mrb[0].mxu0 %v2092
    %v2341 = vpop.f32.mrb[0].mxu0
    %v2342 = vadd.f32 0.0, %v2341
    %v2343 = vpop.f32.mrb[0].mxu0
    %v2344 = vpop.f32.mrb[0].mxu0
    %v2345 = vadd.f32 0.0, %v2344
    %v2346 = vpop.f32.mrb[0].mxu0
    %2347 = vmatprep.mubr.bf16.mxu0 %v2102
    %2348 = vmatmul.mubr.bf16.gmra.mrb[0].mxu0 %v2100
    %v2349 = vpop.f32.mrb[0].mxu0
    %v2350 = vadd.f32 0.0, %v2349
    %v2351 = vpop.f32.mrb[0].mxu0
    %v2352 = vpop.f32.mrb[0].mxu0
    %v2353 = vadd.f32 0.0, %v2352
    %v2354 = vpop.f32.mrb[0].mxu0
    %2355 = vmatprep.mubr.bf16.mxu0 %v2108
    %2356 = vmatmul.mubr.bf16.gmra.mrb[0].mxu0 %v2106
    %v2357 = vpop.f32.mrb[0].mxu0
    %v2358 = vadd.f32 0.0, %v2357
    %v2359 = vpop.f32.mrb[0].mxu0
    %v2360 = vpop.f32.mrb[0].mxu0
    %v2361 = vadd.f32 0.0, %v2360
    %v2362 = vpop.f32.mrb[0].mxu0
    %2363 = vmatprep.mubr.bf16.mxu0 %v2114
    %2364 = vmatmul.mubr.bf16.gmra.mrb[0].mxu0 %v2112
    %v2365 = vpop.f32.mrb[0].mxu0
    %v2366 = vadd.f32 0.0, %v2365
    %v2367 = vpop.f32.mrb[0].mxu0
    %v2368 = vpop.f32.mrb[0].mxu0
    %v2369 = vadd.f32 0.0, %v2368
    %v2370 = vpop.f32.mrb[0].mxu0
    %2371 = vmatprep.mubr.bf16.mxu0 %v2120
    %2372 = vmatmul.mubr.bf16.gmra.mrb[0].mxu0 %v2118
    %v2373 = vpop.f32.mrb[0].mxu0
    %v2374 = vadd.f32 0.0, %v2373
    %v2375 = vpop.f32.mrb[0].mxu0
    %v2376 = vpop.f32.mrb[0].mxu0
    %v2377 = vadd.f32 0.0, %v2376
    %v2378 = vpop.f32.mrb[0].mxu0
    %2379 = vmatprep.mubr.bf16.mxu0 %v2126
    %2380 = vmatmul.mubr.bf16.gmra.mrb[0].mxu0 %v2124
    %v2381 = vpop.f32.mrb[0].mxu0
    %v2382 = vadd.f32 0.0, %v2381
    %v2383 = vpop.f32.mrb[0].mxu0
    %v2384 = vpop.f32.mrb[0].mxu0
    %v2385 = vadd.f32 0.0, %v2384
    %v2386 = vpop.f32.mrb[0].mxu0
    %2387 = vmatprep.mubr.bf16.mxu0 %v2132
    %2388 = vmatmul.mubr.bf16.gmra.mrb[0].mxu0 %v2130
    %v2389 = vpop.f32.mrb[0].mxu0
    %v2390 = vadd.f32 0.0, %v2389
    %v2391 = vpop.f32.mrb[0].mxu0
    %v2392 = vpop.f32.mrb[0].mxu0
    %v2393 = vadd.f32 0.0, %v2392
    %v2394 = vpop.f32.mrb[0].mxu0
    %2395 = vmatprep.mubr.bf16.mxu0 %v2137
    %2396 = vmatmul.mubr.bf16.gmra.mrb[0].mxu0 %v2136
    %v2397 = vpop.f32.mrb[0].mxu0
    %v2398 = vadd.f32 0.0, %v2397
    %v2399 = vpop.f32.mrb[0].mxu0
    %v2400 = vpop.f32.mrb[0].mxu0
    %v2401 = vadd.f32 0.0, %v2400
    %v2402 = vpop.f32.mrb[0].mxu0
    %2403 = vdwg.mxu0
    %2404 = vmatprep.subr.bf16.mxu0 0
    %2405 = vmatpush1.bf16.msra.mxu0 %v2275
    %2406 = vmatprep.subr.bf16.mxu0 0
    %2407 = vmatpush1.bf16.msra.mxu0 %v2276
    %2408 = vmatprep.subr.bf16.mxu0 0
    %2409 = vmatpush1.bf16.msra.mxu0 %v2277
    %2410 = vmatprep.subr.bf16.mxu0 0
    %2411 = vmatpush1.bf16.msra.mxu0 %v2278
    %2412 = vmatprep.subr.bf16.mxu0 0
    %2413 = vmatpush1.bf16.msra.mxu0 %v2279
    %2414 = vmatprep.subr.bf16.mxu0 0
    %2415 = vmatpush1.bf16.msra.mxu0 %v2280
    %2416 = vmatprep.subr.bf16.mxu0 0
    %2417 = vmatpush1.bf16.msra.mxu0 %v2281
    %2418 = vmatprep.subr.bf16.mxu0 0
    %2419 = vmatpush1.bf16.msra.mxu0 %v2282
    %2420 = vmatprep.subr.bf16.mxu0 0
    %2421 = vmatpush1.bf16.msra.mxu0 0
    %2422 = vmatprep.subr.bf16.mxu0 0
    %2423 = vmatpush1.bf16.msra.mxu0 0
    %2424 = vmatprep.subr.bf16.mxu0 0
    %2425 = vmatpush1.bf16.msra.mxu0 0
    %2426 = vmatprep.subr.bf16.mxu0 0
    %2427 = vmatpush1.bf16.msra.mxu0 0
    %2428 = vmatprep.subr.bf16.mxu0 0
    %2429 = vmatpush1.bf16.msra.mxu0 0
    %2430 = vmatprep.subr.bf16.mxu0 0
    %2431 = vmatpush1.bf16.msra.mxu0 0
    %2432 = vmatprep.subr.bf16.mxu0 0
    %2433 = vmatpush1.bf16.msra.mxu0 0
    %2434 = vmatprep.subr.bf16.mxu0 0
    %2435 = vmatpush1.bf16.msra.mxu0 0
    %2436 = vmatprep.mubr.bf16.mxu0 0
    %2437 = vmatmul.mubr.bf16.gmra.mrb[0].mxu0 %v2098
    %v2438 = vpop.f32.mrb[0].mxu0
    %v2439 = vadd.f32 %v2342, %v2438
    %v2440 = vpop.f32.mrb[0].mxu0
    %v2441 = vpop.f32.mrb[0].mxu0
    %v2442 = vadd.f32 %v2345, %v2441
    %v2443 = vpop.f32.mrb[0].mxu0
    %2444 = vmatprep.mubr.bf16.mxu0 0
    %2445 = vmatmul.mubr.bf16.gmra.mrb[0].mxu0 %v2104
    %v2446 = vpop.f32.mrb[0].mxu0
    %v2447 = vadd.f32 %v2350, %v2446
    %v2448 = vpop.f32.mrb[0].mxu0
    %v2449 = vpop.f32.mrb[0].mxu0
    %v2450 = vadd.f32 %v2353, %v2449
    %v2451 = vpop.f32.mrb[0].mxu0
    %2452 = vmatprep.mubr.bf16.mxu0 0
    %2453 = vmatmul.mubr.bf16.gmra.mrb[0].mxu0 %v2110
    %v2454 = vpop.f32.mrb[0].mxu0
    %v2455 = vadd.f32 %v2358, %v2454
    %v2456 = vpop.f32.mrb[0].mxu0
    %v2457 = vpop.f32.mrb[0].mxu0
    %v2458 = vadd.f32 %v2361, %v2457
    %v2459 = vpop.f32.mrb[0].mxu0
    %2460 = vmatprep.mubr.bf16.mxu0 0
    %2461 = vmatmul.mubr.bf16.gmra.mrb[0].mxu0 %v2116
    %v2462 = vpop.f32.mrb[0].mxu0
    %v2463 = vadd.f32 %v2366, %v2462
    %v2464 = vpop.f32.mrb[0].mxu0
    %v2465 = vpop.f32.mrb[0].mxu0
    %v2466 = vadd.f32 %v2369, %v2465
    %v2467 = vpop.f32.mrb[0].mxu0
    %2468 = vmatprep.mubr.bf16.mxu0 0
    %2469 = vmatmul.mubr.bf16.gmra.mrb[0].mxu0 %v2122
    %v2470 = vpop.f32.mrb[0].mxu0
    %v2471 = vadd.f32 %v2374, %v2470
    %v2472 = vpop.f32.mrb[0].mxu0
    %v2473 = vpop.f32.mrb[0].mxu0
    %v2474 = vadd.f32 %v2377, %v2473
    %v2475 = vpop.f32.mrb[0].mxu0
    %2476 = vmatprep.mubr.bf16.mxu0 0
    %2477 = vmatmul.mubr.bf16.gmra.mrb[0].mxu0 %v2128
    %v2478 = vpop.f32.mrb[0].mxu0
    %v2479 = vadd.f32 %v2382, %v2478
    %v2480 = vpop.f32.mrb[0].mxu0
    %v2481 = vpop.f32.mrb[0].mxu0
    %v2482 = vadd.f32 %v2385, %v2481
    %v2483 = vpop.f32.mrb[0].mxu0
    %2484 = vmatprep.mubr.bf16.mxu0 0
    %2485 = vmatmul.mubr.bf16.gmra.mrb[0].mxu0 %v2134
    %v2486 = vpop.f32.mrb[0].mxu0
    %v2487 = vadd.f32 %v2390, %v2486
    %v2488 = vpop.f32.mrb[0].mxu0
    %v2489 = vpop.f32.mrb[0].mxu0
    %v2490 = vadd.f32 %v2393, %v2489
    %v2491 = vpop.f32.mrb[0].mxu0
    %2492 = vmatprep.mubr.bf16.mxu0 0
    %2493 = vmatmul.mubr.bf16.gmra.mrb[0].mxu0 %v2138
    %v2494 = vpop.f32.mrb[0].mxu0
    %v2495 = vadd.f32 %v2398, %v2494
    %v2496 = vpop.f32.mrb[0].mxu0
    %v2497 = vpop.f32.mrb[0].mxu0
    %v2498 = vadd.f32 %v2401, %v2497
    %v2499 = vpop.f32.mrb[0].mxu0
    %2500 = vdwg.mxu0
    %v2501 = vadd.f32 %v1849, %v2439
    %v2502 = vadd.f32 %v1853, %v2442
    %v2503 = vadd.f32 %v1859, %v2447
    %v2504 = vadd.f32 %v1863, %v2450
    %v2505 = vadd.f32 %v1869, %v2455
    %v2506 = vadd.f32 %v1873, %v2458
    %v2507 = vadd.f32 %v1879, %v2463
    %v2508 = vadd.f32 %v1883, %v2466
    %v2509 = vadd.f32 %v1889, %v2471
    %v2510 = vadd.f32 %v1893, %v2474
    %v2511 = vadd.f32 %v1899, %v2479
    %v2512 = vadd.f32 %v1903, %v2482
    %v2513 = vadd.f32 %v1909, %v2487
    %v2514 = vadd.f32 %v1913, %v2490
    %v2515 = vadd.f32 %v1919, %v2495
    %v2516 = vadd.f32 %v1923, %v2498
    %v2517 = vld [vmem:[%s6 + $0x2] sm:$0x1]
    %v2518 = vlaneseq
    %v2519 = vshrl.u32 %v2518, 7
    %v2520 = vsub.s32 0, %v2519
    %v2521 = vrot.slane %v2517, %v2520
    %v2522 = vadd.f32 %v2501, %v2521
    %v2523 = vadd.f32 %v2502, %v2521
    %v2524 = vadd.f32 %v2503, %v2521
    %v2525 = vadd.f32 %v2504, %v2521
    %v2526 = vadd.f32 %v2505, %v2521
    %v2527 = vadd.f32 %v2506, %v2521
    %v2528 = vadd.f32 %v2507, %v2521
    %v2529 = vadd.f32 %v2508, %v2521
    %v2530 = vadd.f32 %v2509, %v2521
    %v2531 = vadd.f32 %v2510, %v2521
    %v2532 = vadd.f32 %v2511, %v2521
    %v2533 = vadd.f32 %v2512, %v2521
    %v2534 = vadd.f32 %v2513, %v2521
    %v2535 = vadd.f32 %v2514, %v2521
    %v2536 = vadd.f32 %v2515, %v2521
    %v2537 = vadd.f32 %v2516, %v2521
    %v2538 = vtanh.pop %v2522
    %v2539 = vtanh.pop %v2523
    %v2540 = vtanh.pop %v2524
    %v2541 = vtanh.pop %v2525
    %v2542 = vtanh.pop %v2526
    %v2543 = vtanh.pop %v2527
    %v2544 = vtanh.pop %v2528
    %v2545 = vtanh.pop %v2529
    %v2546 = vtanh.pop %v2530
    %v2547 = vtanh.pop %v2531
    %v2548 = vtanh.pop %v2532
    %v2549 = vtanh.pop %v2533
    %v2550 = vtanh.pop %v2534
    %v2551 = vtanh.pop %v2535
    %v2552 = vtanh.pop %v2536
    %v2553 = vtanh.pop %v2537
    %vm2554 = vcmp.lt.s32.totalorder %v302, 14
    %vm2555 = vcmp.lt.s32.totalorder %v303, 14
    %v2556 = vsel %vm2554, 1, 0
    %v2557 = vsel %vm2555, 1, 0
    %vm2558 = vcmp.eq.s32.totalorder %v2556, 1
    %vm2559 = vcmp.eq.s32.totalorder %v2557, 1
    %v2560 = vsel %vm2558, %v2538, -2.0
    %v2561 = vsel %vm2559, %v2539, -2.0
    %v2562 = vsel %vm2558, %v2540, -2.0
    %v2563 = vsel %vm2559, %v2541, -2.0
    %v2564 = vsel %vm2558, %v2542, -2.0
    %v2565 = vsel %vm2559, %v2543, -2.0
    %v2566 = vsel %vm2558, %v2544, -2.0
    %v2567 = vsel %vm2559, %v2545, -2.0
    %v2568 = vsel %vm2558, %v2546, -2.0
    %v2569 = vsel %vm2559, %v2547, -2.0
    %v2570 = vsel %vm2558, %v2548, -2.0
    %v2571 = vsel %vm2559, %v2549, -2.0
    %v2572 = vsel %vm2558, %v2550, -2.0
    %v2573 = vsel %vm2559, %v2551, -2.0
    %v2574 = vsel %vm2558, %v2552, -2.0
    %v2575 = vsel %vm2559, %v2553, -2.0
    %v2576 = vmax.f32 %v2560, %v2561
    %v2577 = vrot.slane %v2576, 4
    %v2578 = vmax.f32 %v2576, %v2577
    %v2579 = vrot.slane %v2578, 2
    %v2580 = vmax.f32 %v2578, %v2579
    %v2581 = vrot.slane %v2580, 1
    %v2582 = vmax.f32 %v2580, %v2581
    %v2583 = vmax.f32 %v2562, %v2563
    %v2584 = vrot.slane %v2583, 4
    %v2585 = vmax.f32 %v2583, %v2584
    %v2586 = vrot.slane %v2585, 2
    %v2587 = vmax.f32 %v2585, %v2586
    %v2588 = vrot.slane %v2587, 1
    %v2589 = vmax.f32 %v2587, %v2588
    %v2590 = vmax.f32 %v2564, %v2565
    %v2591 = vrot.slane %v2590, 4
    %v2592 = vmax.f32 %v2590, %v2591
    %v2593 = vrot.slane %v2592, 2
    %v2594 = vmax.f32 %v2592, %v2593
    %v2595 = vrot.slane %v2594, 1
    %v2596 = vmax.f32 %v2594, %v2595
    %v2597 = vmax.f32 %v2566, %v2567
    %v2598 = vrot.slane %v2597, 4
    %v2599 = vmax.f32 %v2597, %v2598
    %v2600 = vrot.slane %v2599, 2
    %v2601 = vmax.f32 %v2599, %v2600
    %v2602 = vrot.slane %v2601, 1
    %v2603 = vmax.f32 %v2601, %v2602
    %v2604 = vmax.f32 %v2568, %v2569
    %v2605 = vrot.slane %v2604, 4
    %v2606 = vmax.f32 %v2604, %v2605
    %v2607 = vrot.slane %v2606, 2
    %v2608 = vmax.f32 %v2606, %v2607
    %v2609 = vrot.slane %v2608, 1
    %v2610 = vmax.f32 %v2608, %v2609
    %v2611 = vmax.f32 %v2570, %v2571
    %v2612 = vrot.slane %v2611, 4
    %v2613 = vmax.f32 %v2611, %v2612
    %v2614 = vrot.slane %v2613, 2
    %v2615 = vmax.f32 %v2613, %v2614
    %v2616 = vrot.slane %v2615, 1
    %v2617 = vmax.f32 %v2615, %v2616
    %v2618 = vmax.f32 %v2572, %v2573
    %v2619 = vrot.slane %v2618, 4
    %v2620 = vmax.f32 %v2618, %v2619
    %v2621 = vrot.slane %v2620, 2
    %v2622 = vmax.f32 %v2620, %v2621
    %v2623 = vrot.slane %v2622, 1
    %v2624 = vmax.f32 %v2622, %v2623
    %v2625 = vmax.f32 %v2574, %v2575
    %v2626 = vrot.slane %v2625, 4
    %v2627 = vmax.f32 %v2625, %v2626
    %v2628 = vrot.slane %v2627, 2
    %v2629 = vmax.f32 %v2627, %v2628
    %v2630 = vrot.slane %v2629, 1
    %v2631 = vmax.f32 %v2629, %v2630
    %vm2632 = vsmask.f32 6400
    %v2633 = vrot.slane %v791, 1
    %v2634 = vrot.slane %v793, 2
    %v2635 = vor.u32 %v2633, %v2634
    %v2636 = vrot.slane %v826, 1
    %v2637 = vrot.slane %v798, 2
    %v2638 = vor.u32 %v2636, %v2637
    %v2639 = vsel %vm2632, %v2635, %v2638
    %v2640 = vrot.slane %v803, 1
    %v2641 = vrot.slane %v805, 2
    %v2642 = vor.u32 %v2640, %v2641
    %v2643 = vrot.slane %v834, 1
    %v2644 = vrot.slane %v810, 2
    %v2645 = vor.u32 %v2643, %v2644
    %v2646 = vsel %vm2632, %v2642, %v2645
    %v2647 = vrot.slane %v815, 1
    %v2648 = vrot.slane %v817, 2
    %v2649 = vor.u32 %v2647, %v2648
    %v2650 = vrot.slane %v842, 1
    %v2651 = vrot.slane %v822, 2
    %v2652 = vor.u32 %v2650, %v2651
    %v2653 = vsel %vm2632, %v2649, %v2652
    %v2654 = vrot.slane %v850, 1
    %v2655 = vrot.slane %v830, 2
    %v2656 = vor.u32 %v2654, %v2655
    %v2657 = vsel %vm2632, %v2638, %v2656
    %v2658 = vrot.slane %v858, 1
    %v2659 = vrot.slane %v838, 2
    %v2660 = vor.u32 %v2658, %v2659
    %v2661 = vsel %vm2632, %v2645, %v2660
    %v2662 = vrot.slane %v866, 1
    %v2663 = vrot.slane %v846, 2
    %v2664 = vor.u32 %v2662, %v2663
    %v2665 = vsel %vm2632, %v2652, %v2664
    %v2666 = vrot.slane %v874, 1
    %v2667 = vrot.slane %v854, 2
    %v2668 = vor.u32 %v2666, %v2667
    %v2669 = vsel %vm2632, %v2656, %v2668
    %v2670 = vrot.slane %v882, 1
    %v2671 = vrot.slane %v862, 2
    %v2672 = vor.u32 %v2670, %v2671
    %v2673 = vsel %vm2632, %v2660, %v2672
    %v2674 = vrot.slane %v890, 1
    %v2675 = vrot.slane %v870, 2
    %v2676 = vor.u32 %v2674, %v2675
    %v2677 = vsel %vm2632, %v2664, %v2676
    %v2678 = vrot.slane %v898, 1
    %v2679 = vrot.slane %v878, 2
    %v2680 = vor.u32 %v2678, %v2679
    %v2681 = vsel %vm2632, %v2668, %v2680
    %v2682 = vrot.slane %v906, 1
    %v2683 = vrot.slane %v886, 2
    %v2684 = vor.u32 %v2682, %v2683
    %v2685 = vsel %vm2632, %v2672, %v2684
    %v2686 = vrot.slane %v914, 1
    %v2687 = vrot.slane %v894, 2
    %v2688 = vor.u32 %v2686, %v2687
    %v2689 = vsel %vm2632, %v2676, %v2688
    %v2690 = vrot.slane %v922, 1
    %v2691 = vrot.slane %v902, 2
    %v2692 = vor.u32 %v2690, %v2691
    %v2693 = vsel %vm2632, %v2680, %v2692
    %v2694 = vrot.slane %v930, 1
    %v2695 = vrot.slane %v910, 2
    %v2696 = vor.u32 %v2694, %v2695
    %v2697 = vsel %vm2632, %v2684, %v2696
    %v2698 = vrot.slane %v938, 1
    %v2699 = vrot.slane %v918, 2
    %v2700 = vor.u32 %v2698, %v2699
    %v2701 = vsel %vm2632, %v2688, %v2700
    %v2702 = vrot.slane %v946, 1
    %v2703 = vrot.slane %v926, 2
    %v2704 = vor.u32 %v2702, %v2703
    %v2705 = vsel %vm2632, %v2692, %v2704
    %v2706 = vrot.slane %v954, 1
    %v2707 = vrot.slane %v934, 2
    %v2708 = vor.u32 %v2706, %v2707
    %v2709 = vsel %vm2632, %v2696, %v2708
    %v2710 = vrot.slane %v962, 1
    %v2711 = vrot.slane %v942, 2
    %v2712 = vor.u32 %v2710, %v2711
    %v2713 = vsel %vm2632, %v2700, %v2712
    %v2714 = vrot.slane %v970, 1
    %v2715 = vrot.slane %v950, 2
    %v2716 = vor.u32 %v2714, %v2715
    %v2717 = vsel %vm2632, %v2704, %v2716
    %v2718 = vrot.slane %v978, 1
    %v2719 = vrot.slane %v958, 2
    %v2720 = vor.u32 %v2718, %v2719
    %v2721 = vsel %vm2632, %v2708, %v2720
    %v2722 = vrot.slane %v982, 1
    %v2723 = vrot.slane %v966, 2
    %v2724 = vor.u32 %v2722, %v2723
    %v2725 = vsel %vm2632, %v2712, %v2724
    %v2726 = vshrl.u32 0, 16
    %v2728 = vrot.slane %v2726, 1
    %v2729 = vrot.slane %v974, 2
    %v2730 = vor.u32 %v2728, %v2729
    %v2731 = vsel %vm2632, %v2716, %v2730
    %v2732 = vsel %vm2632, %v2720, %v2730
    %v2733 = vsel %vm2632, %v2724, %v2730
    %vm2758 = vcmask 1045504
    %v2759 = vrot.slane %v253, 2
    %v2760 = vrot.slane %v256, 2
    %v2761 = vsel %vm2758, %v2759, %v2760
    %v2762 = vrot.slane %v254, 2
    %v2763 = vrot.slane %v257, 2
    %v2764 = vsel %vm2758, %v2762, %v2763
    %v2765 = vrot.slane %v255, 2
    %v2766 = vrot.slane %v258, 2
    %v2767 = vsel %vm2758, %v2765, %v2766
    %v2768 = vrot.slane %v259, 2
    %v2769 = vsel %vm2758, %v2760, %v2768
    %v2770 = vrot.slane %v260, 2
    %v2771 = vsel %vm2758, %v2763, %v2770
    %v2772 = vrot.slane %v261, 2
    %v2773 = vsel %vm2758, %v2766, %v2772
    %v2774 = vrot.slane %v262, 2
    %v2775 = vsel %vm2758, %v2768, %v2774
    %v2776 = vrot.slane %v263, 2
    %v2777 = vsel %vm2758, %v2770, %v2776
    %v2778 = vrot.slane %v264, 2
    %v2779 = vsel %vm2758, %v2772, %v2778
    %v2780 = vrot.slane %v265, 2
    %v2781 = vsel %vm2758, %v2774, %v2780
    %v2782 = vrot.slane %v266, 2
    %v2783 = vsel %vm2758, %v2776, %v2782
    %v2784 = vrot.slane %v267, 2
    %v2785 = vsel %vm2758, %v2778, %v2784
    %v2786 = vrot.slane %v268, 2
    %v2787 = vsel %vm2758, %v2780, %v2786
    %v2788 = vrot.slane %v269, 2
    %v2789 = vsel %vm2758, %v2782, %v2788
    %v2790 = vrot.slane %v270, 2
    %v2791 = vsel %vm2758, %v2784, %v2790
    %v2792 = vrot.slane %v271, 2
    %v2793 = vsel %vm2758, %v2786, %v2792
    %v2794 = vrot.slane %v272, 2
    %v2795 = vsel %vm2758, %v2788, %v2794
    %v2796 = vrot.slane %v273, 2
    %v2797 = vsel %vm2758, %v2790, %v2796
    %v2798 = vrot.slane %v274, 2
    %v2799 = vsel %vm2758, %v2792, %v2798
    %v2800 = vrot.slane %v275, 2
    %v2801 = vsel %vm2758, %v2794, %v2800
    %v2802 = vrot.slane %v276, 2
    %v2803 = vsel %vm2758, %v2796, %v2802
    %v2804 = vrot.slane 0, 2
    %v2805 = vsel %vm2758, %v2798, %v2804
    %v2806 = vsel %vm2758, %v2800, %v2804
    %v2807 = vsel %vm2758, %v2802, %v2804
    %v2832 = vld [vmem:[#allocation10] sm:$0xff]
    %v2833 = vld [vmem:[#allocation10 + $0x8] sm:$0xff]
    %v2834 = vld [vmem:[#allocation10 + $0x10] sm:$0xff]
    %v2835 = vld [vmem:[#allocation10 + $0x18] sm:$0xff]
    %v2836 = vld [vmem:[#allocation10 + $0x20] sm:$0xff]
    %v2837 = vld [vmem:[#allocation10 + $0x28] sm:$0xff]
    %v2838 = vld [vmem:[#allocation10 + $0x30] sm:$0xff]
    %v2839 = vld [vmem:[#allocation10 + $0x38] sm:$0xff]
    %v2840 = vld [vmem:[#allocation10 + $0x40] sm:$0xff]
    %v2841 = vld [vmem:[#allocation10 + $0x48] sm:$0xff]
    %v2842 = vld [vmem:[#allocation10 + $0x50] sm:$0xff]
    %v2843 = vld [vmem:[#allocation10 + $0x58] sm:$0xff]
    %v2844 = vld [vmem:[#allocation10 + $0x60] sm:$0xff]
    %v2845 = vld [vmem:[#allocation10 + $0x68] sm:$0xff]
    %v2846 = vld [vmem:[#allocation10 + $0x70] sm:$0xff]
    %v2847 = vld [vmem:[#allocation10 + $0x78] sm:$0xff]
    %v2848 = vld [vmem:[#allocation10 + $0x80] sm:$0xff]
    %v2849 = vld [vmem:[#allocation10 + $0x88] sm:$0xff]
    %v2850 = vld [vmem:[#allocation10 + $0x90] sm:$0xff]
    %v2851 = vld [vmem:[#allocation10 + $0x98] sm:$0xff]
    %v2852 = vld [vmem:[#allocation10 + $0xa0] sm:$0xff]
    %v2853 = vld [vmem:[#allocation10 + $0xa8] sm:$0xff]
    %v2854 = vld [vmem:[#allocation10 + $0xb0] sm:$0xff]
    %v2855 = vld [vmem:[#allocation10 + $0xb8] sm:$0xff]
    %v2856 = vld [vmem:[#allocation10 + $0xc0] sm:$0xff]
    %v2857 = vld [vmem:[#allocation10 + $0xc8] sm:$0xff]
    %v2858 = vld [vmem:[#allocation10 + $0xd0] sm:$0xff]
    %v2859 = vld [vmem:[#allocation10 + $0xd8] sm:$0xff]
    %v2860 = vld [vmem:[#allocation10 + $0xe0] sm:$0xff]
    %v2861 = vld [vmem:[#allocation10 + $0xe8] sm:$0xff]
    %v2862 = vld [vmem:[#allocation10 + $0xf0] sm:$0xff]
    %v2863 = vld [vmem:[#allocation10 + $0xf8] sm:$0xff]
    %v2864 = vld [vmem:[#allocation10 + $0x100] sm:$0xff]
    %v2865 = vld [vmem:[#allocation10 + $0x108] sm:$0xff]
    %v2866 = vld [vmem:[#allocation10 + $0x110] sm:$0xff]
    %v2867 = vld [vmem:[#allocation10 + $0x118] sm:$0xff]
    %v2868 = vld [vmem:[#allocation10 + $0x120] sm:$0xff]
    %v2869 = vld [vmem:[#allocation10 + $0x128] sm:$0xff]
    %v2870 = vld [vmem:[#allocation10 + $0x130] sm:$0xff]
    %v2871 = vld [vmem:[#allocation10 + $0x138] sm:$0xff]
    %v2872 = vld [vmem:[#allocation10 + $0x140] sm:$0xff]
    %v2873 = vld [vmem:[#allocation10 + $0x148] sm:$0xff]
    %v2874 = vld [vmem:[#allocation10 + $0x150] sm:$0xff]
    %v2875 = vld [vmem:[#allocation10 + $0x158] sm:$0xff]
    %v2876 = vld [vmem:[#allocation10 + $0x160] sm:$0xff]
    %v2877 = vld [vmem:[#allocation10 + $0x168] sm:$0xff]
    %v2878 = vld [vmem:[#allocation10 + $0x170] sm:$0xff]
    %v2879 = vld [vmem:[#allocation10 + $0x178] sm:$0xff]
    %v2880 = vld [vmem:[#allocation10 + $0x180] sm:$0xff]
    %v2881 = vld [vmem:[#allocation10 + $0x188] sm:$0xff]
    %v2882 = vld [vmem:[#allocation10 + $0x190] sm:$0xff]
    %v2883 = vld [vmem:[#allocation10 + $0x198] sm:$0xff]
    %v2884 = vld [vmem:[#allocation10 + $0x1a0] sm:$0xff]
    %v2885 = vld [vmem:[#allocation10 + $0x1a8] sm:$0xff]
    %v2886 = vld [vmem:[#allocation10 + $0x1b0] sm:$0xff]
    %v2887 = vld [vmem:[#allocation10 + $0x1b8] sm:$0xff]
    %v2888 = vld [vmem:[#allocation10 + $0x1c0] sm:$0xff]
    %v2889 = vld [vmem:[#allocation10 + $0x1c8] sm:$0xff]
    %v2890 = vld [vmem:[#allocation10 + $0x1d0] sm:$0xff]
    %v2891 = vld [vmem:[#allocation10 + $0x1d8] sm:$0xff]
    %v2892 = vld [vmem:[#allocation10 + $0x1e0] sm:$0xff]
    %v2893 = vld [vmem:[#allocation10 + $0x1e8] sm:$0xff]
    %v2894 = vld [vmem:[#allocation10 + $0x1f0] sm:$0xff]
    %v2895 = vld [vmem:[#allocation10 + $0x1f8] sm:$0xff]
    %v2896 = vld [vmem:[#allocation10 + $0x200] sm:$0xff]
    %v2897 = vld [vmem:[#allocation10 + $0x208] sm:$0xff]
    %v2898 = vld [vmem:[#allocation10 + $0x210] sm:$0xff]
    %v2899 = vld [vmem:[#allocation10 + $0x218] sm:$0xff]
    %v2900 = vld [vmem:[#allocation10 + $0x220] sm:$0xff]
    %v2901 = vld [vmem:[#allocation10 + $0x228] sm:$0xff]
    %v2902 = vld [vmem:[#allocation10 + $0x230] sm:$0xff]
    %v2903 = vld [vmem:[#allocation10 + $0x238] sm:$0xff]
    %v2904 = vld [vmem:[#allocation10 + $0x240] sm:$0xff]
    %v2905 = vld [vmem:[#allocation10 + $0x248] sm:$0xff]
    %v2906 = vld [vmem:[#allocation10 + $0x250] sm:$0xff]
    %v2907 = vld [vmem:[#allocation10 + $0x258] sm:$0xff]
    %v2908 = vld [vmem:[#allocation10 + $0x260] sm:$0xff]
    %v2909 = vld [vmem:[#allocation10 + $0x268] sm:$0xff]
    %v2910 = vld [vmem:[#allocation10 + $0x270] sm:$0xff]
    %v2911 = vld [vmem:[#allocation10 + $0x278] sm:$0xff]
    %v2912 = vld [vmem:[#allocation10 + $0x280] sm:$0xff]
    %v2913 = vld [vmem:[#allocation10 + $0x288] sm:$0xff]
    %v2914 = vld [vmem:[#allocation10 + $0x290] sm:$0xff]
    %v2915 = vld [vmem:[#allocation10 + $0x298] sm:$0xff]
    %v2916 = vld [vmem:[#allocation10 + $0x2a0] sm:$0xff]
    %v2917 = vld [vmem:[#allocation10 + $0x2a8] sm:$0xff]
    %v2918 = vld [vmem:[#allocation10 + $0x2b0] sm:$0xff]
    %v2919 = vld [vmem:[#allocation10 + $0x2b8] sm:$0xff]
    %v2920 = vld [vmem:[#allocation10 + $0x2c0] sm:$0xff]
    %v2921 = vld [vmem:[#allocation10 + $0x2c8] sm:$0xff]
    %v2922 = vld [vmem:[#allocation10 + $0x2d0] sm:$0xff]
    %v2923 = vld [vmem:[#allocation10 + $0x2d8] sm:$0xff]
    %v2924 = vld [vmem:[#allocation10 + $0x2e0] sm:$0xff]
    %v2925 = vld [vmem:[#allocation10 + $0x2e8] sm:$0xff]
    %v2926 = vld [vmem:[#allocation10 + $0x2f0] sm:$0xff]
    %v2927 = vld [vmem:[#allocation10 + $0x2f8] sm:$0xff]
    %v2928 = vld [vmem:[#allocation10 + $0x300] sm:$0xff]
    %v2929 = vld [vmem:[#allocation10 + $0x308] sm:$0xff]
    %v2930 = vld [vmem:[#allocation10 + $0x310] sm:$0xff]
    %v2931 = vld [vmem:[#allocation10 + $0x318] sm:$0xff]
    %v2932 = vld [vmem:[#allocation10 + $0x320] sm:$0xff]
    %v2933 = vld [vmem:[#allocation10 + $0x328] sm:$0xff]
    %v2934 = vld [vmem:[#allocation10 + $0x330] sm:$0xff]
    %v2935 = vld [vmem:[#allocation10 + $0x338] sm:$0xff]
    %v2936 = vld [vmem:[#allocation10 + $0x340] sm:$0xff]
    %v2937 = vld [vmem:[#allocation10 + $0x348] sm:$0xff]
    %v2938 = vld [vmem:[#allocation10 + $0x350] sm:$0xff]
    %v2939 = vld [vmem:[#allocation10 + $0x358] sm:$0xff]
    %v2940 = vld [vmem:[#allocation10 + $0x360] sm:$0xff]
    %v2941 = vld [vmem:[#allocation10 + $0x368] sm:$0xff]
    %v2942 = vld [vmem:[#allocation10 + $0x370] sm:$0xff]
    %v2943 = vld [vmem:[#allocation10 + $0x378] sm:$0xff]
    %v2944 = vld [vmem:[#allocation10 + $0x380] sm:$0xff]
    %v2945 = vld [vmem:[#allocation10 + $0x388] sm:$0xff]
    %v2946 = vld [vmem:[#allocation10 + $0x390] sm:$0xff]
    %v2947 = vld [vmem:[#allocation10 + $0x398] sm:$0xff]
    %v2948 = vld [vmem:[#allocation10 + $0x3a0] sm:$0xff]
    %v2949 = vld [vmem:[#allocation10 + $0x3a8] sm:$0xff]
    %v2950 = vld [vmem:[#allocation10 + $0x3b0] sm:$0xff]
    %v2951 = vld [vmem:[#allocation10 + $0x3b8] sm:$0xff]
    %v2952 = vld [vmem:[#allocation10 + $0x3c0] sm:$0xff]
    %v2953 = vld [vmem:[#allocation10 + $0x3c8] sm:$0xff]
    %v2954 = vld [vmem:[#allocation10 + $0x3d0] sm:$0xff]
    %v2955 = vld [vmem:[#allocation10 + $0x3d8] sm:$0xff]
    %v2956 = vld [vmem:[#allocation10 + $0x3e0] sm:$0xff]
    %v2957 = vld [vmem:[#allocation10 + $0x3e8] sm:$0xff]
    %v2958 = vld [vmem:[#allocation10 + $0x3f0] sm:$0xff]
    %v2959 = vld [vmem:[#allocation10 + $0x3f8] sm:$0xff]
    %v2960 = vld [vmem:[#allocation10 + $0x400] sm:$0xff]
    %v2961 = vld [vmem:[#allocation10 + $0x408] sm:$0xff]
    %v2962 = vld [vmem:[#allocation10 + $0x410] sm:$0xff]
    %v2963 = vld [vmem:[#allocation10 + $0x418] sm:$0xff]
    %v2964 = vld [vmem:[#allocation10 + $0x420] sm:$0xff]
    %v2965 = vld [vmem:[#allocation10 + $0x428] sm:$0xff]
    %v2966 = vld [vmem:[#allocation10 + $0x430] sm:$0xff]
    %v2967 = vld [vmem:[#allocation10 + $0x438] sm:$0xff]
    %v2968 = vld [vmem:[#allocation10 + $0x440] sm:$0xff]
    %v2969 = vld [vmem:[#allocation10 + $0x448] sm:$0xff]
    %v2970 = vld [vmem:[#allocation10 + $0x450] sm:$0xff]
    %v2971 = vld [vmem:[#allocation10 + $0x458] sm:$0xff]
    %v2972 = vld [vmem:[#allocation10 + $0x460] sm:$0xff]
    %v2973 = vld [vmem:[#allocation10 + $0x468] sm:$0xff]
    %v2974 = vld [vmem:[#allocation10 + $0x470] sm:$0xff]
    %v2975 = vld [vmem:[#allocation10 + $0x478] sm:$0xff]
    %v2976 = vld [vmem:[#allocation10 + $0x480] sm:$0xff]
    %v2977 = vld [vmem:[#allocation10 + $0x488] sm:$0xff]
    %v2978 = vld [vmem:[#allocation10 + $0x490] sm:$0xff]
    %v2979 = vld [vmem:[#allocation10 + $0x498] sm:$0xff]
    %v2980 = vld [vmem:[#allocation10 + $0x4a0] sm:$0xff]
    %v2981 = vld [vmem:[#allocation10 + $0x4a8] sm:$0xff]
    %v2982 = vld [vmem:[#allocation10 + $0x4b0] sm:$0xff]
    %v2983 = vld [vmem:[#allocation10 + $0x4b8] sm:$0xff]
    %v2984 = vld [vmem:[#allocation10 + $0x4c0] sm:$0xff]
    %v2985 = vld [vmem:[#allocation10 + $0x4c8] sm:$0xff]
    %v2986 = vld [vmem:[#allocation10 + $0x4d0] sm:$0xff]
    %v2987 = vld [vmem:[#allocation10 + $0x4d8] sm:$0xff]
    %v2988 = vld [vmem:[#allocation10 + $0x4e0] sm:$0xff]
    %v2989 = vld [vmem:[#allocation10 + $0x4e8] sm:$0xff]
    %v2990 = vld [vmem:[#allocation10 + $0x4f0] sm:$0xff]
    %v2991 = vld [vmem:[#allocation10 + $0x4f8] sm:$0xff]
    %v2992 = vld [vmem:[#allocation10 + $0x500] sm:$0xff]
    %v2993 = vld [vmem:[#allocation10 + $0x508] sm:$0xff]
    %v2994 = vld [vmem:[#allocation10 + $0x510] sm:$0xff]
    %v2995 = vld [vmem:[#allocation10 + $0x518] sm:$0xff]
    %v2996 = vld [vmem:[#allocation10 + $0x520] sm:$0xff]
    %v2997 = vld [vmem:[#allocation10 + $0x528] sm:$0xff]
    %v2998 = vld [vmem:[#allocation10 + $0x530] sm:$0xff]
    %v2999 = vld [vmem:[#allocation10 + $0x538] sm:$0xff]
    %v3000 = vld [vmem:[#allocation10 + $0x540] sm:$0xff]
    %v3001 = vld [vmem:[#allocation10 + $0x548] sm:$0xff]
    %v3002 = vld [vmem:[#allocation10 + $0x550] sm:$0xff]
    %v3003 = vld [vmem:[#allocation10 + $0x558] sm:$0xff]
    %v3004 = vld [vmem:[#allocation10 + $0x560] sm:$0xff]
    %v3005 = vld [vmem:[#allocation10 + $0x568] sm:$0xff]
    %v3006 = vld [vmem:[#allocation10 + $0x570] sm:$0xff]
    %v3007 = vld [vmem:[#allocation10 + $0x578] sm:$0xff]
    %v3008 = vld [vmem:[#allocation10 + $0x580] sm:$0xff]
    %v3009 = vld [vmem:[#allocation10 + $0x588] sm:$0xff]
    %v3010 = vld [vmem:[#allocation10 + $0x590] sm:$0xff]
    %v3011 = vld [vmem:[#allocation10 + $0x598] sm:$0xff]
    %v3012 = vld [vmem:[#allocation10 + $0x5a0] sm:$0xff]
    %v3013 = vld [vmem:[#allocation10 + $0x5a8] sm:$0xff]
    %v3014 = vld [vmem:[#allocation10 + $0x5b0] sm:$0xff]
    %v3015 = vld [vmem:[#allocation10 + $0x5b8] sm:$0xff]
    %v3016 = vld [vmem:[#allocation10 + $0x5c0] sm:$0xff]
    %v3017 = vld [vmem:[#allocation10 + $0x5c8] sm:$0xff]
    %v3018 = vld [vmem:[#allocation10 + $0x5d0] sm:$0xff]
    %v3019 = vld [vmem:[#allocation10 + $0x5d8] sm:$0xff]
    %v3020 = vld [vmem:[#allocation10 + $0x5e0] sm:$0xff]
    %v3021 = vld [vmem:[#allocation10 + $0x5e8] sm:$0xff]
    %v3022 = vld [vmem:[#allocation10 + $0x5f0] sm:$0xff]
    %v3023 = vld [vmem:[#allocation10 + $0x5f8] sm:$0xff]
    %v3024 = vld [vmem:[#allocation10 + $0x600] sm:$0xff]
    %v3025 = vld [vmem:[#allocation10 + $0x608] sm:$0xff]
    %v3026 = vld [vmem:[#allocation10 + $0x610] sm:$0xff]
    %v3027 = vld [vmem:[#allocation10 + $0x618] sm:$0xff]
    %v3028 = vld [vmem:[#allocation10 + $0x620] sm:$0xff]
    %v3029 = vld [vmem:[#allocation10 + $0x628] sm:$0xff]
    %v3030 = vld [vmem:[#allocation10 + $0x630] sm:$0xff]
    %v3031 = vld [vmem:[#allocation10 + $0x638] sm:$0xff]
    %v3032 = vld [vmem:[#allocation10 + $0x640] sm:$0xff]
    %v3033 = vld [vmem:[#allocation10 + $0x648] sm:$0xff]
    %v3034 = vld [vmem:[#allocation10 + $0x650] sm:$0xff]
    %v3035 = vld [vmem:[#allocation10 + $0x658] sm:$0xff]
    %v3036 = vld [vmem:[#allocation10 + $0x660] sm:$0xff]
    %v3037 = vld [vmem:[#allocation10 + $0x668] sm:$0xff]
    %v3038 = vld [vmem:[#allocation10 + $0x670] sm:$0xff]
    %v3039 = vld [vmem:[#allocation10 + $0x678] sm:$0xff]
    %v3040 = vld [vmem:[#allocation10 + $0x680] sm:$0xff]
    %v3041 = vld [vmem:[#allocation10 + $0x688] sm:$0xff]
    %v3042 = vld [vmem:[#allocation10 + $0x690] sm:$0xff]
    %v3043 = vld [vmem:[#allocation10 + $0x698] sm:$0xff]
    %v3044 = vld [vmem:[#allocation10 + $0x6a0] sm:$0xff]
    %v3045 = vld [vmem:[#allocation10 + $0x6a8] sm:$0xff]
    %v3046 = vld [vmem:[#allocation10 + $0x6b0] sm:$0xff]
    %v3047 = vld [vmem:[#allocation10 + $0x6b8] sm:$0xff]
    %v3048 = vld [vmem:[#allocation10 + $0x6c0] sm:$0xff]
    %v3049 = vld [vmem:[#allocation10 + $0x6c8] sm:$0xff]
    %v3050 = vld [vmem:[#allocation10 + $0x6d0] sm:$0xff]
    %v3051 = vld [vmem:[#allocation10 + $0x6d8] sm:$0xff]
    %v3052 = vld [vmem:[#allocation10 + $0x6e0] sm:$0xff]
    %v3053 = vld [vmem:[#allocation10 + $0x6e8] sm:$0xff]
    %v3054 = vld [vmem:[#allocation10 + $0x6f0] sm:$0xff]
    %v3055 = vld [vmem:[#allocation10 + $0x6f8] sm:$0xff]
    %v3056 = vld [vmem:[#allocation10 + $0x700] sm:$0xff]
    %v3057 = vld [vmem:[#allocation10 + $0x708] sm:$0xff]
    %v3058 = vld [vmem:[#allocation10 + $0x710] sm:$0xff]
    %v3059 = vld [vmem:[#allocation10 + $0x718] sm:$0xff]
    %v3060 = vld [vmem:[#allocation10 + $0x720] sm:$0xff]
    %v3061 = vld [vmem:[#allocation10 + $0x728] sm:$0xff]
    %v3062 = vld [vmem:[#allocation10 + $0x730] sm:$0xff]
    %v3063 = vld [vmem:[#allocation10 + $0x738] sm:$0xff]
    %v3064 = vld [vmem:[#allocation10 + $0x740] sm:$0xff]
    %v3065 = vld [vmem:[#allocation10 + $0x748] sm:$0xff]
    %v3066 = vld [vmem:[#allocation10 + $0x750] sm:$0xff]
    %v3067 = vld [vmem:[#allocation10 + $0x758] sm:$0xff]
    %v3068 = vld [vmem:[#allocation10 + $0x760] sm:$0xff]
    %v3069 = vld [vmem:[#allocation10 + $0x768] sm:$0xff]
    %v3070 = vld [vmem:[#allocation10 + $0x770] sm:$0xff]
    %v3071 = vld [vmem:[#allocation10 + $0x778] sm:$0xff]
    %v3312 = vunpack.c.l.b16 %v2832
    %v3313 = vunpack.c.h.b16 %v2832
    %v3314 = vunpack.c.l.b16 %v2833
    %v3315 = vunpack.c.h.b16 %v2833
    %v3316 = vunpack.c.l.b16 %v2834
    %v3317 = vunpack.c.h.b16 %v2834
    %v3318 = vunpack.c.l.b16 %v2835
    %v3319 = vunpack.c.h.b16 %v2835
    %v3320 = vunpack.c.l.b16 %v2836
    %v3321 = vunpack.c.h.b16 %v2836
    %v3322 = vunpack.c.l.b16 %v2837
    %v3323 = vunpack.c.h.b16 %v2837
    %v3324 = vunpack.c.l.b16 %v2838
    %v3325 = vunpack.c.h.b16 %v2838
    %v3326 = vunpack.c.l.b16 %v2839
    %v3327 = vunpack.c.h.b16 %v2839
    %v3328 = vunpack.c.l.b16 %v2840
    %v3329 = vunpack.c.h.b16 %v2840
    %v3330 = vunpack.c.l.b16 %v2841
    %v3331 = vunpack.c.h.b16 %v2841
    %v3332 = vunpack.c.l.b16 %v2842
    %v3333 = vunpack.c.h.b16 %v2842
    %v3334 = vunpack.c.l.b16 %v2843
    %v3335 = vunpack.c.h.b16 %v2843
    %v3336 = vunpack.c.l.b16 %v2844
    %v3337 = vunpack.c.h.b16 %v2844
    %v3338 = vunpack.c.l.b16 %v2845
    %v3339 = vunpack.c.h.b16 %v2845
    %v3340 = vunpack.c.l.b16 %v2846
    %v3341 = vunpack.c.h.b16 %v2846
    %v3342 = vunpack.c.l.b16 %v2847
    %v3343 = vunpack.c.h.b16 %v2847
    %v3344 = vunpack.c.l.b16 %v2848
    %v3345 = vunpack.c.h.b16 %v2848
    %v3346 = vunpack.c.l.b16 %v2849
    %v3347 = vunpack.c.h.b16 %v2849
    %v3348 = vunpack.c.l.b16 %v2850
    %v3349 = vunpack.c.h.b16 %v2850
    %v3350 = vunpack.c.l.b16 %v2851
    %v3351 = vunpack.c.h.b16 %v2851
    %v3352 = vunpack.c.l.b16 %v2852
    %v3353 = vunpack.c.h.b16 %v2852
    %v3354 = vunpack.c.l.b16 %v2853
    %v3355 = vunpack.c.h.b16 %v2853
    %v3356 = vunpack.c.l.b16 %v2854
    %v3357 = vunpack.c.h.b16 %v2854
    %v3358 = vunpack.c.l.b16 %v2855
    %v3359 = vunpack.c.h.b16 %v2855
    %v3360 = vunpack.c.l.b16 %v2856
    %v3361 = vunpack.c.h.b16 %v2856
    %v3362 = vunpack.c.l.b16 %v2857
    %v3363 = vunpack.c.h.b16 %v2857
    %v3364 = vunpack.c.l.b16 %v2858
    %v3365 = vunpack.c.h.b16 %v2858
    %v3366 = vunpack.c.l.b16 %v2859
    %v3367 = vunpack.c.h.b16 %v2859
    %v3368 = vunpack.c.l.b16 %v2860
    %v3369 = vunpack.c.h.b16 %v2860
    %v3370 = vunpack.c.l.b16 %v2861
    %v3371 = vunpack.c.h.b16 %v2861
    %v3372 = vunpack.c.l.b16 %v2862
    %v3373 = vunpack.c.h.b16 %v2862
    %v3374 = vunpack.c.l.b16 %v2863
    %v3375 = vunpack.c.h.b16 %v2863
    %v3376 = vunpack.c.l.b16 %v2864
    %v3377 = vunpack.c.h.b16 %v2864
    %v3378 = vunpack.c.l.b16 %v2865
    %v3379 = vunpack.c.h.b16 %v2865
    %v3380 = vunpack.c.l.b16 %v2866
    %v3381 = vunpack.c.h.b16 %v2866
    %v3382 = vunpack.c.l.b16 %v2867
    %v3383 = vunpack.c.h.b16 %v2867
    %v3384 = vunpack.c.l.b16 %v2868
    %v3385 = vunpack.c.h.b16 %v2868
    %v3386 = vunpack.c.l.b16 %v2869
    %v3387 = vunpack.c.h.b16 %v2869
    %v3388 = vunpack.c.l.b16 %v2870
    %v3389 = vunpack.c.h.b16 %v2870
    %v3390 = vunpack.c.l.b16 %v2871
    %v3391 = vunpack.c.h.b16 %v2871
    %v3392 = vunpack.c.l.b16 %v2872
    %v3393 = vunpack.c.h.b16 %v2872
    %v3394 = vunpack.c.l.b16 %v2873
    %v3395 = vunpack.c.h.b16 %v2873
    %v3396 = vunpack.c.l.b16 %v2874
    %v3397 = vunpack.c.h.b16 %v2874
    %v3398 = vunpack.c.l.b16 %v2875
    %v3399 = vunpack.c.h.b16 %v2875
    %v3400 = vunpack.c.l.b16 %v2876
    %v3401 = vunpack.c.h.b16 %v2876
    %v3402 = vunpack.c.l.b16 %v2877
    %v3403 = vunpack.c.h.b16 %v2877
    %v3404 = vunpack.c.l.b16 %v2878
    %v3405 = vunpack.c.h.b16 %v2878
    %v3406 = vunpack.c.l.b16 %v2879
    %v3407 = vunpack.c.h.b16 %v2879
    %v3408 = vunpack.c.l.b16 %v2880
    %v3409 = vunpack.c.h.b16 %v2880
    %v3410 = vunpack.c.l.b16 %v2881
    %v3411 = vunpack.c.h.b16 %v2881
    %v3412 = vunpack.c.l.b16 %v2882
    %v3413 = vunpack.c.h.b16 %v2882
    %v3414 = vunpack.c.l.b16 %v2883
    %v3415 = vunpack.c.h.b16 %v2883
    %v3416 = vunpack.c.l.b16 %v2884
    %v3417 = vunpack.c.h.b16 %v2884
    %v3418 = vunpack.c.l.b16 %v2885
    %v3419 = vunpack.c.h.b16 %v2885
    %v3420 = vunpack.c.l.b16 %v2886
    %v3421 = vunpack.c.h.b16 %v2886
    %v3422 = vunpack.c.l.b16 %v2887
    %v3423 = vunpack.c.h.b16 %v2887
    %v3424 = vunpack.c.l.b16 %v2888
    %v3425 = vunpack.c.h.b16 %v2888
    %v3426 = vunpack.c.l.b16 %v2889
    %v3427 = vunpack.c.h.b16 %v2889
    %v3428 = vunpack.c.l.b16 %v2890
    %v3429 = vunpack.c.h.b16 %v2890
    %v3430 = vunpack.c.l.b16 %v2891
    %v3431 = vunpack.c.h.b16 %v2891
    %v3432 = vunpack.c.l.b16 %v2892
    %v3433 = vunpack.c.h.b16 %v2892
    %v3434 = vunpack.c.l.b16 %v2893
    %v3435 = vunpack.c.h.b16 %v2893
    %v3436 = vunpack.c.l.b16 %v2894
    %v3437 = vunpack.c.h.b16 %v2894
    %v3438 = vunpack.c.l.b16 %v2895
    %v3439 = vunpack.c.h.b16 %v2895
    %v3440 = vunpack.c.l.b16 %v2896
    %v3441 = vunpack.c.h.b16 %v2896
    %v3442 = vunpack.c.l.b16 %v2897
    %v3443 = vunpack.c.h.b16 %v2897
    %v3444 = vunpack.c.l.b16 %v2898
    %v3445 = vunpack.c.h.b16 %v2898
    %v3446 = vunpack.c.l.b16 %v2899
    %v3447 = vunpack.c.h.b16 %v2899
    %v3448 = vunpack.c.l.b16 %v2900
    %v3449 = vunpack.c.h.b16 %v2900
    %v3450 = vunpack.c.l.b16 %v2901
    %v3451 = vunpack.c.h.b16 %v2901
    %v3452 = vunpack.c.l.b16 %v2902
    %v3453 = vunpack.c.h.b16 %v2902
    %v3454 = vunpack.c.l.b16 %v2903
    %v3455 = vunpack.c.h.b16 %v2903
    %v3456 = vunpack.c.l.b16 %v2904
    %v3457 = vunpack.c.h.b16 %v2904
    %v3458 = vunpack.c.l.b16 %v2905
    %v3459 = vunpack.c.h.b16 %v2905
    %v3460 = vunpack.c.l.b16 %v2906
    %v3461 = vunpack.c.h.b16 %v2906
    %v3462 = vunpack.c.l.b16 %v2907
    %v3463 = vunpack.c.h.b16 %v2907
    %v3464 = vunpack.c.l.b16 %v2908
    %v3465 = vunpack.c.h.b16 %v2908
    %v3466 = vunpack.c.l.b16 %v2909
    %v3467 = vunpack.c.h.b16 %v2909
    %v3468 = vunpack.c.l.b16 %v2910
    %v3469 = vunpack.c.h.b16 %v2910
    %v3470 = vunpack.c.l.b16 %v2911
    %v3471 = vunpack.c.h.b16 %v2911
    %v3472 = vunpack.c.l.b16 %v2912
    %v3473 = vunpack.c.h.b16 %v2912
    %v3474 = vunpack.c.l.b16 %v2913
    %v3475 = vunpack.c.h.b16 %v2913
    %v3476 = vunpack.c.l.b16 %v2914
    %v3477 = vunpack.c.h.b16 %v2914
    %v3478 = vunpack.c.l.b16 %v2915
    %v3479 = vunpack.c.h.b16 %v2915
    %v3480 = vunpack.c.l.b16 %v2916
    %v3481 = vunpack.c.h.b16 %v2916
    %v3482 = vunpack.c.l.b16 %v2917
    %v3483 = vunpack.c.h.b16 %v2917
    %v3484 = vunpack.c.l.b16 %v2918
    %v3485 = vunpack.c.h.b16 %v2918
    %v3486 = vunpack.c.l.b16 %v2919
    %v3487 = vunpack.c.h.b16 %v2919
    %v3488 = vunpack.c.l.b16 %v2920
    %v3489 = vunpack.c.h.b16 %v2920
    %v3490 = vunpack.c.l.b16 %v2921
    %v3491 = vunpack.c.h.b16 %v2921
    %v3492 = vunpack.c.l.b16 %v2922
    %v3493 = vunpack.c.h.b16 %v2922
    %v3494 = vunpack.c.l.b16 %v2923
    %v3495 = vunpack.c.h.b16 %v2923
    %v3496 = vunpack.c.l.b16 %v2924
    %v3497 = vunpack.c.h.b16 %v2924
    %v3498 = vunpack.c.l.b16 %v2925
    %v3499 = vunpack.c.h.b16 %v2925
    %v3500 = vunpack.c.l.b16 %v2926
    %v3501 = vunpack.c.h.b16 %v2926
    %v3502 = vunpack.c.l.b16 %v2927
    %v3503 = vunpack.c.h.b16 %v2927
    %v3504 = vunpack.c.l.b16 %v2928
    %v3505 = vunpack.c.h.b16 %v2928
    %v3506 = vunpack.c.l.b16 %v2929
    %v3507 = vunpack.c.h.b16 %v2929
    %v3508 = vunpack.c.l.b16 %v2930
    %v3509 = vunpack.c.h.b16 %v2930
    %v3510 = vunpack.c.l.b16 %v2931
    %v3511 = vunpack.c.h.b16 %v2931
    %v3512 = vunpack.c.l.b16 %v2932
    %v3513 = vunpack.c.h.b16 %v2932
    %v3514 = vunpack.c.l.b16 %v2933
    %v3515 = vunpack.c.h.b16 %v2933
    %v3516 = vunpack.c.l.b16 %v2934
    %v3517 = vunpack.c.h.b16 %v2934
    %v3518 = vunpack.c.l.b16 %v2935
    %v3519 = vunpack.c.h.b16 %v2935
    %v3520 = vunpack.c.l.b16 %v2936
    %v3521 = vunpack.c.h.b16 %v2936
    %v3522 = vunpack.c.l.b16 %v2937
    %v3523 = vunpack.c.h.b16 %v2937
    %v3524 = vunpack.c.l.b16 %v2938
    %v3525 = vunpack.c.h.b16 %v2938
    %v3526 = vunpack.c.l.b16 %v2939
    %v3527 = vunpack.c.h.b16 %v2939
    %v3528 = vunpack.c.l.b16 %v2940
    %v3529 = vunpack.c.h.b16 %v2940
    %v3530 = vunpack.c.l.b16 %v2941
    %v3531 = vunpack.c.h.b16 %v2941
    %v3532 = vunpack.c.l.b16 %v2942
    %v3533 = vunpack.c.h.b16 %v2942
    %v3534 = vunpack.c.l.b16 %v2943
    %v3535 = vunpack.c.h.b16 %v2943
    %v3536 = vunpack.c.l.b16 %v2944
    %v3537 = vunpack.c.h.b16 %v2944
    %v3538 = vunpack.c.l.b16 %v2945
    %v3539 = vunpack.c.h.b16 %v2945
    %v3540 = vunpack.c.l.b16 %v2946
    %v3541 = vunpack.c.h.b16 %v2946
    %v3542 = vunpack.c.l.b16 %v2947
    %v3543 = vunpack.c.h.b16 %v2947
    %v3544 = vunpack.c.l.b16 %v2948
    %v3545 = vunpack.c.h.b16 %v2948
    %v3546 = vunpack.c.l.b16 %v2949
    %v3547 = vunpack.c.h.b16 %v2949
    %v3548 = vunpack.c.l.b16 %v2950
    %v3549 = vunpack.c.h.b16 %v2950
    %v3550 = vunpack.c.l.b16 %v2951
    %v3551 = vunpack.c.h.b16 %v2951
    %v3552 = vunpack.c.l.b16 %v2952
    %v3553 = vunpack.c.h.b16 %v2952
    %v3554 = vunpack.c.l.b16 %v2953
    %v3555 = vunpack.c.h.b16 %v2953
    %v3556 = vunpack.c.l.b16 %v2954
    %v3557 = vunpack.c.h.b16 %v2954
    %v3558 = vunpack.c.l.b16 %v2955
    %v3559 = vunpack.c.h.b16 %v2955
    %v3560 = vunpack.c.l.b16 %v2956
    %v3561 = vunpack.c.h.b16 %v2956
    %v3562 = vunpack.c.l.b16 %v2957
    %v3563 = vunpack.c.h.b16 %v2957
    %v3564 = vunpack.c.l.b16 %v2958
    %v3565 = vunpack.c.h.b16 %v2958
    %v3566 = vunpack.c.l.b16 %v2959
    %v3567 = vunpack.c.h.b16 %v2959
    %v3568 = vunpack.c.l.b16 %v2960
    %v3569 = vunpack.c.h.b16 %v2960
    %v3570 = vunpack.c.l.b16 %v2961
    %v3571 = vunpack.c.h.b16 %v2961
    %v3572 = vunpack.c.l.b16 %v2962
    %v3573 = vunpack.c.h.b16 %v2962
    %v3574 = vunpack.c.l.b16 %v2963
    %v3575 = vunpack.c.h.b16 %v2963
    %v3576 = vunpack.c.l.b16 %v2964
    %v3577 = vunpack.c.h.b16 %v2964
    %v3578 = vunpack.c.l.b16 %v2965
    %v3579 = vunpack.c.h.b16 %v2965
    %v3580 = vunpack.c.l.b16 %v2966
    %v3581 = vunpack.c.h.b16 %v2966
    %v3582 = vunpack.c.l.b16 %v2967
    %v3583 = vunpack.c.h.b16 %v2967
    %v3584 = vunpack.c.l.b16 %v2968
    %v3585 = vunpack.c.h.b16 %v2968
    %v3586 = vunpack.c.l.b16 %v2969
    %v3587 = vunpack.c.h.b16 %v2969
    %v3588 = vunpack.c.l.b16 %v2970
    %v3589 = vunpack.c.h.b16 %v2970
    %v3590 = vunpack.c.l.b16 %v2971
    %v3591 = vunpack.c.h.b16 %v2971
    %v3592 = vunpack.c.l.b16 %v2972
    %v3593 = vunpack.c.h.b16 %v2972
    %v3594 = vunpack.c.l.b16 %v2973
    %v3595 = vunpack.c.h.b16 %v2973
    %v3596 = vunpack.c.l.b16 %v2974
    %v3597 = vunpack.c.h.b16 %v2974
    %v3598 = vunpack.c.l.b16 %v2975
    %v3599 = vunpack.c.h.b16 %v2975
    %v3600 = vunpack.c.l.b16 %v2976
    %v3601 = vunpack.c.h.b16 %v2976
    %v3602 = vunpack.c.l.b16 %v2977
    %v3603 = vunpack.c.h.b16 %v2977
    %v3604 = vunpack.c.l.b16 %v2978
    %v3605 = vunpack.c.h.b16 %v2978
    %v3606 = vunpack.c.l.b16 %v2979
    %v3607 = vunpack.c.h.b16 %v2979
    %v3608 = vunpack.c.l.b16 %v2980
    %v3609 = vunpack.c.h.b16 %v2980
    %v3610 = vunpack.c.l.b16 %v2981
    %v3611 = vunpack.c.h.b16 %v2981
    %v3612 = vunpack.c.l.b16 %v2982
    %v3613 = vunpack.c.h.b16 %v2982
    %v3614 = vunpack.c.l.b16 %v2983
    %v3615 = vunpack.c.h.b16 %v2983
    %v3616 = vunpack.c.l.b16 %v2984
    %v3617 = vunpack.c.h.b16 %v2984
    %v3618 = vunpack.c.l.b16 %v2985
    %v3619 = vunpack.c.h.b16 %v2985
    %v3620 = vunpack.c.l.b16 %v2986
    %v3621 = vunpack.c.h.b16 %v2986
    %v3622 = vunpack.c.l.b16 %v2987
    %v3623 = vunpack.c.h.b16 %v2987
    %v3624 = vunpack.c.l.b16 %v2988
    %v3625 = vunpack.c.h.b16 %v2988
    %v3626 = vunpack.c.l.b16 %v2989
    %v3627 = vunpack.c.h.b16 %v2989
    %v3628 = vunpack.c.l.b16 %v2990
    %v3629 = vunpack.c.h.b16 %v2990
    %v3630 = vunpack.c.l.b16 %v2991
    %v3631 = vunpack.c.h.b16 %v2991
    %v3632 = vunpack.c.l.b16 %v2992
    %v3633 = vunpack.c.h.b16 %v2992
    %v3634 = vunpack.c.l.b16 %v2993
    %v3635 = vunpack.c.h.b16 %v2993
    %v3636 = vunpack.c.l.b16 %v2994
    %v3637 = vunpack.c.h.b16 %v2994
    %v3638 = vunpack.c.l.b16 %v2995
    %v3639 = vunpack.c.h.b16 %v2995
    %v3640 = vunpack.c.l.b16 %v2996
    %v3641 = vunpack.c.h.b16 %v2996
    %v3642 = vunpack.c.l.b16 %v2997
    %v3643 = vunpack.c.h.b16 %v2997
    %v3644 = vunpack.c.l.b16 %v2998
    %v3645 = vunpack.c.h.b16 %v2998
    %v3646 = vunpack.c.l.b16 %v2999
    %v3647 = vunpack.c.h.b16 %v2999
    %v3648 = vunpack.c.l.b16 %v3000
    %v3649 = vunpack.c.h.b16 %v3000
    %v3650 = vunpack.c.l.b16 %v3001
    %v3651 = vunpack.c.h.b16 %v3001
    %v3652 = vunpack.c.l.b16 %v3002
    %v3653 = vunpack.c.h.b16 %v3002
    %v3654 = vunpack.c.l.b16 %v3003
    %v3655 = vunpack.c.h.b16 %v3003
    %v3656 = vunpack.c.l.b16 %v3004
    %v3657 = vunpack.c.h.b16 %v3004
    %v3658 = vunpack.c.l.b16 %v3005
    %v3659 = vunpack.c.h.b16 %v3005
    %v3660 = vunpack.c.l.b16 %v3006
    %v3661 = vunpack.c.h.b16 %v3006
    %v3662 = vunpack.c.l.b16 %v3007
    %v3663 = vunpack.c.h.b16 %v3007
    %v3664 = vunpack.c.l.b16 %v3008
    %v3665 = vunpack.c.h.b16 %v3008
    %v3666 = vunpack.c.l.b16 %v3009
    %v3667 = vunpack.c.h.b16 %v3009
    %v3668 = vunpack.c.l.b16 %v3010
    %v3669 = vunpack.c.h.b16 %v3010
    %v3670 = vunpack.c.l.b16 %v3011
    %v3671 = vunpack.c.h.b16 %v3011
    %v3672 = vunpack.c.l.b16 %v3012
    %v3673 = vunpack.c.h.b16 %v3012
    %v3674 = vunpack.c.l.b16 %v3013
    %v3675 = vunpack.c.h.b16 %v3013
    %v3676 = vunpack.c.l.b16 %v3014
    %v3677 = vunpack.c.h.b16 %v3014
    %v3678 = vunpack.c.l.b16 %v3015
    %v3679 = vunpack.c.h.b16 %v3015
    %v3680 = vunpack.c.l.b16 %v3016
    %v3681 = vunpack.c.h.b16 %v3016
    %v3682 = vunpack.c.l.b16 %v3017
    %v3683 = vunpack.c.h.b16 %v3017
    %v3684 = vunpack.c.l.b16 %v3018
    %v3685 = vunpack.c.h.b16 %v3018
    %v3686 = vunpack.c.l.b16 %v3019
    %v3687 = vunpack.c.h.b16 %v3019
    %v3688 = vunpack.c.l.b16 %v3020
    %v3689 = vunpack.c.h.b16 %v3020
    %v3690 = vunpack.c.l.b16 %v3021
    %v3691 = vunpack.c.h.b16 %v3021
    %v3692 = vunpack.c.l.b16 %v3022
    %v3693 = vunpack.c.h.b16 %v3022
    %v3694 = vunpack.c.l.b16 %v3023
    %v3695 = vunpack.c.h.b16 %v3023
    %v3696 = vunpack.c.l.b16 %v3024
    %v3697 = vunpack.c.h.b16 %v3024
    %v3698 = vunpack.c.l.b16 %v3025
    %v3699 = vunpack.c.h.b16 %v3025
    %v3700 = vunpack.c.l.b16 %v3026
    %v3701 = vunpack.c.h.b16 %v3026
    %v3702 = vunpack.c.l.b16 %v3027
    %v3703 = vunpack.c.h.b16 %v3027
    %v3704 = vunpack.c.l.b16 %v3028
    %v3705 = vunpack.c.h.b16 %v3028
    %v3706 = vunpack.c.l.b16 %v3029
    %v3707 = vunpack.c.h.b16 %v3029
    %v3708 = vunpack.c.l.b16 %v3030
    %v3709 = vunpack.c.h.b16 %v3030
    %v3710 = vunpack.c.l.b16 %v3031
    %v3711 = vunpack.c.h.b16 %v3031
    %v3712 = vunpack.c.l.b16 %v3032
    %v3713 = vunpack.c.h.b16 %v3032
    %v3714 = vunpack.c.l.b16 %v3033
    %v3715 = vunpack.c.h.b16 %v3033
    %v3716 = vunpack.c.l.b16 %v3034
    %v3717 = vunpack.c.h.b16 %v3034
    %v3718 = vunpack.c.l.b16 %v3035
    %v3719 = vunpack.c.h.b16 %v3035
    %v3720 = vunpack.c.l.b16 %v3036
    %v3721 = vunpack.c.h.b16 %v3036
    %v3722 = vunpack.c.l.b16 %v3037
    %v3723 = vunpack.c.h.b16 %v3037
    %v3724 = vunpack.c.l.b16 %v3038
    %v3725 = vunpack.c.h.b16 %v3038
    %v3726 = vunpack.c.l.b16 %v3039
    %v3727 = vunpack.c.h.b16 %v3039
    %v3728 = vunpack.c.l.b16 %v3040
    %v3729 = vunpack.c.h.b16 %v3040
    %v3730 = vunpack.c.l.b16 %v3041
    %v3731 = vunpack.c.h.b16 %v3041
    %v3732 = vunpack.c.l.b16 %v3042
    %v3733 = vunpack.c.h.b16 %v3042
    %v3734 = vunpack.c.l.b16 %v3043
    %v3735 = vunpack.c.h.b16 %v3043
    %v3736 = vunpack.c.l.b16 %v3044
    %v3737 = vunpack.c.h.b16 %v3044
    %v3738 = vunpack.c.l.b16 %v3045
    %v3739 = vunpack.c.h.b16 %v3045
    %v3740 = vunpack.c.l.b16 %v3046
    %v3741 = vunpack.c.h.b16 %v3046
    %v3742 = vunpack.c.l.b16 %v3047
    %v3743 = vunpack.c.h.b16 %v3047
    %v3744 = vunpack.c.l.b16 %v3048
    %v3745 = vunpack.c.h.b16 %v3048
    %v3746 = vunpack.c.l.b16 %v3049
    %v3747 = vunpack.c.h.b16 %v3049
    %v3748 = vunpack.c.l.b16 %v3050
    %v3749 = vunpack.c.h.b16 %v3050
    %v3750 = vunpack.c.l.b16 %v3051
    %v3751 = vunpack.c.h.b16 %v3051
    %v3752 = vunpack.c.l.b16 %v3052
    %v3753 = vunpack.c.h.b16 %v3052
    %v3754 = vunpack.c.l.b16 %v3053
    %v3755 = vunpack.c.h.b16 %v3053
    %v3756 = vunpack.c.l.b16 %v3054
    %v3757 = vunpack.c.h.b16 %v3054
    %v3758 = vunpack.c.l.b16 %v3055
    %v3759 = vunpack.c.h.b16 %v3055
    %v3760 = vunpack.c.l.b16 %v3056
    %v3761 = vunpack.c.h.b16 %v3056
    %v3762 = vunpack.c.l.b16 %v3057
    %v3763 = vunpack.c.h.b16 %v3057
    %v3764 = vunpack.c.l.b16 %v3058
    %v3765 = vunpack.c.h.b16 %v3058
    %v3766 = vunpack.c.l.b16 %v3059
    %v3767 = vunpack.c.h.b16 %v3059
    %v3768 = vunpack.c.l.b16 %v3060
    %v3769 = vunpack.c.h.b16 %v3060
    %v3770 = vunpack.c.l.b16 %v3061
    %v3771 = vunpack.c.h.b16 %v3061
    %v3772 = vunpack.c.l.b16 %v3062
    %v3773 = vunpack.c.h.b16 %v3062
    %v3774 = vunpack.c.l.b16 %v3063
    %v3775 = vunpack.c.h.b16 %v3063
    %v3776 = vunpack.c.l.b16 %v3064
    %v3777 = vunpack.c.h.b16 %v3064
    %v3778 = vunpack.c.l.b16 %v3065
    %v3779 = vunpack.c.h.b16 %v3065
    %v3780 = vunpack.c.l.b16 %v3066
    %v3781 = vunpack.c.h.b16 %v3066
    %v3782 = vunpack.c.l.b16 %v3067
    %v3783 = vunpack.c.h.b16 %v3067
    %v3784 = vunpack.c.l.b16 %v3068
    %v3785 = vunpack.c.h.b16 %v3068
    %v3786 = vunpack.c.l.b16 %v3069
    %v3787 = vunpack.c.h.b16 %v3069
    %v3788 = vunpack.c.l.b16 %v3070
    %v3789 = vunpack.c.h.b16 %v3070
    %v3790 = vunpack.c.l.b16 %v3071
    %v3791 = vunpack.c.h.b16 %v3071
    %v3792 = vpack.c.b16 %v3314, %v3312
    %v3793 = vpack.c.b16 %v3315, %v3313
    %v3794 = vpack.c.b16 %v3318, %v3316
    %v3795 = vpack.c.b16 %v3319, %v3317
    %v3796 = vpack.c.b16 %v3322, %v3320
    %v3797 = vpack.c.b16 %v3323, %v3321
    %v3798 = vpack.c.b16 %v3326, %v3324
    %v3799 = vpack.c.b16 %v3327, %v3325
    %v3800 = vpack.c.b16 %v3330, %v3328
    %v3801 = vpack.c.b16 %v3331, %v3329
    %v3802 = vpack.c.b16 %v3334, %v3332
    %v3803 = vpack.c.b16 %v3335, %v3333
    %v3804 = vpack.c.b16 %v3338, %v3336
    %v3805 = vpack.c.b16 %v3339, %v3337
    %v3806 = vpack.c.b16 %v3342, %v3340
    %v3807 = vpack.c.b16 %v3343, %v3341
    %v3808 = vpack.c.b16 %v3346, %v3344
    %v3809 = vpack.c.b16 %v3347, %v3345
    %v3810 = vpack.c.b16 %v3350, %v3348
    %v3811 = vpack.c.b16 %v3351, %v3349
    %v3812 = vpack.c.b16 %v3354, %v3352
    %v3813 = vpack.c.b16 %v3355, %v3353
    %v3814 = vpack.c.b16 %v3358, %v3356
    %v3815 = vpack.c.b16 %v3359, %v3357
    %v3816 = vpack.c.b16 %v3362, %v3360
    %v3817 = vpack.c.b16 %v3363, %v3361
    %v3818 = vpack.c.b16 %v3366, %v3364
    %v3819 = vpack.c.b16 %v3367, %v3365
    %v3820 = vpack.c.b16 %v3370, %v3368
    %v3821 = vpack.c.b16 %v3371, %v3369
    %v3822 = vpack.c.b16 %v3374, %v3372
    %v3823 = vpack.c.b16 %v3375, %v3373
    %v3824 = vpack.c.b16 %v3378, %v3376
    %v3825 = vpack.c.b16 %v3379, %v3377
    %v3826 = vpack.c.b16 %v3382, %v3380
    %v3827 = vpack.c.b16 %v3383, %v3381
    %v3828 = vpack.c.b16 %v3386, %v3384
    %v3829 = vpack.c.b16 %v3387, %v3385
    %v3830 = vpack.c.b16 %v3390, %v3388
    %v3831 = vpack.c.b16 %v3391, %v3389
    %v3832 = vpack.c.b16 %v3394, %v3392
    %v3833 = vpack.c.b16 %v3395, %v3393
    %v3834 = vpack.c.b16 %v3398, %v3396
    %v3835 = vpack.c.b16 %v3399, %v3397
    %v3836 = vpack.c.b16 %v3402, %v3400
    %v3837 = vpack.c.b16 %v3403, %v3401
    %v3838 = vpack.c.b16 %v3406, %v3404
    %v3839 = vpack.c.b16 %v3407, %v3405
    %v3840 = vpack.c.b16 %v3410, %v3408
    %v3841 = vpack.c.b16 %v3411, %v3409
    %v3842 = vpack.c.b16 %v3414, %v3412
    %v3843 = vpack.c.b16 %v3415, %v3413
    %v3844 = vpack.c.b16 %v3418, %v3416
    %v3845 = vpack.c.b16 %v3419, %v3417
    %v3846 = vpack.c.b16 %v3422, %v3420
    %v3847 = vpack.c.b16 %v3423, %v3421
    %v3848 = vpack.c.b16 %v3426, %v3424
    %v3849 = vpack.c.b16 %v3427, %v3425
    %v3850 = vpack.c.b16 %v3430, %v3428
    %v3851 = vpack.c.b16 %v3431, %v3429
    %v3852 = vpack.c.b16 %v3434, %v3432
    %v3853 = vpack.c.b16 %v3435, %v3433
    %v3854 = vpack.c.b16 %v3438, %v3436
    %v3855 = vpack.c.b16 %v3439, %v3437
    %v3856 = vpack.c.b16 %v3442, %v3440
    %v3857 = vpack.c.b16 %v3443, %v3441
    %v3858 = vpack.c.b16 %v3446, %v3444
    %v3859 = vpack.c.b16 %v3447, %v3445
    %v3860 = vpack.c.b16 %v3450, %v3448
    %v3861 = vpack.c.b16 %v3451, %v3449
    %v3862 = vpack.c.b16 %v3454, %v3452
    %v3863 = vpack.c.b16 %v3455, %v3453
    %v3864 = vpack.c.b16 %v3458, %v3456
    %v3865 = vpack.c.b16 %v3459, %v3457
    %v3866 = vpack.c.b16 %v3462, %v3460
    %v3867 = vpack.c.b16 %v3463, %v3461
    %v3868 = vpack.c.b16 %v3466, %v3464
    %v3869 = vpack.c.b16 %v3467, %v3465
    %v3870 = vpack.c.b16 %v3470, %v3468
    %v3871 = vpack.c.b16 %v3471, %v3469
    %v3872 = vpack.c.b16 %v3474, %v3472
    %v3873 = vpack.c.b16 %v3475, %v3473
    %v3874 = vpack.c.b16 %v3478, %v3476
    %v3875 = vpack.c.b16 %v3479, %v3477
    %v3876 = vpack.c.b16 %v3482, %v3480
    %v3877 = vpack.c.b16 %v3483, %v3481
    %v3878 = vpack.c.b16 %v3486, %v3484
    %v3879 = vpack.c.b16 %v3487, %v3485
    %v3880 = vpack.c.b16 %v3490, %v3488
    %v3881 = vpack.c.b16 %v3491, %v3489
    %v3882 = vpack.c.b16 %v3494, %v3492
    %v3883 = vpack.c.b16 %v3495, %v3493
    %v3884 = vpack.c.b16 %v3498, %v3496
    %v3885 = vpack.c.b16 %v3499, %v3497
    %v3886 = vpack.c.b16 %v3502, %v3500
    %v3887 = vpack.c.b16 %v3503, %v3501
    %v3888 = vpack.c.b16 %v3506, %v3504
    %v3889 = vpack.c.b16 %v3507, %v3505
    %v3890 = vpack.c.b16 %v3510, %v3508
    %v3891 = vpack.c.b16 %v3511, %v3509
    %v3892 = vpack.c.b16 %v3514, %v3512
    %v3893 = vpack.c.b16 %v3515, %v3513
    %v3894 = vpack.c.b16 %v3518, %v3516
    %v3895 = vpack.c.b16 %v3519, %v3517
    %v3896 = vpack.c.b16 %v3522, %v3520
    %v3897 = vpack.c.b16 %v3523, %v3521
    %v3898 = vpack.c.b16 %v3526, %v3524
    %v3899 = vpack.c.b16 %v3527, %v3525
    %v3900 = vpack.c.b16 %v3530, %v3528
    %v3901 = vpack.c.b16 %v3531, %v3529
    %v3902 = vpack.c.b16 %v3534, %v3532
    %v3903 = vpack.c.b16 %v3535, %v3533
    %v3904 = vpack.c.b16 %v3538, %v3536
    %v3905 = vpack.c.b16 %v3539, %v3537
    %v3906 = vpack.c.b16 %v3542, %v3540
    %v3907 = vpack.c.b16 %v3543, %v3541
    %v3908 = vpack.c.b16 %v3546, %v3544
    %v3909 = vpack.c.b16 %v3547, %v3545
    %v3910 = vpack.c.b16 %v3550, %v3548
    %v3911 = vpack.c.b16 %v3551, %v3549
    %v3912 = vpack.c.b16 %v3554, %v3552
    %v3913 = vpack.c.b16 %v3555, %v3553
    %v3914 = vpack.c.b16 %v3558, %v3556
    %v3915 = vpack.c.b16 %v3559, %v3557
    %v3916 = vpack.c.b16 %v3562, %v3560
    %v3917 = vpack.c.b16 %v3563, %v3561
    %v3918 = vpack.c.b16 %v3566, %v3564
    %v3919 = vpack.c.b16 %v3567, %v3565
    %v3920 = vpack.c.b16 %v3570, %v3568
    %v3921 = vpack.c.b16 %v3571, %v3569
    %v3922 = vpack.c.b16 %v3574, %v3572
    %v3923 = vpack.c.b16 %v3575, %v3573
    %v3924 = vpack.c.b16 %v3578, %v3576
    %v3925 = vpack.c.b16 %v3579, %v3577
    %v3926 = vpack.c.b16 %v3582, %v3580
    %v3927 = vpack.c.b16 %v3583, %v3581
    %v3928 = vpack.c.b16 %v3586, %v3584
    %v3929 = vpack.c.b16 %v3587, %v3585
    %v3930 = vpack.c.b16 %v3590, %v3588
    %v3931 = vpack.c.b16 %v3591, %v3589
    %v3932 = vpack.c.b16 %v3594, %v3592
    %v3933 = vpack.c.b16 %v3595, %v3593
    %v3934 = vpack.c.b16 %v3598, %v3596
    %v3935 = vpack.c.b16 %v3599, %v3597
    %v3936 = vpack.c.b16 %v3602, %v3600
    %v3937 = vpack.c.b16 %v3603, %v3601
    %v3938 = vpack.c.b16 %v3606, %v3604
    %v3939 = vpack.c.b16 %v3607, %v3605
    %v3940 = vpack.c.b16 %v3610, %v3608
    %v3941 = vpack.c.b16 %v3611, %v3609
    %v3942 = vpack.c.b16 %v3614, %v3612
    %v3943 = vpack.c.b16 %v3615, %v3613
    %v3944 = vpack.c.b16 %v3618, %v3616
    %v3945 = vpack.c.b16 %v3619, %v3617
    %v3946 = vpack.c.b16 %v3622, %v3620
    %v3947 = vpack.c.b16 %v3623, %v3621
    %v3948 = vpack.c.b16 %v3626, %v3624
    %v3949 = vpack.c.b16 %v3627, %v3625
    %v3950 = vpack.c.b16 %v3630, %v3628
    %v3951 = vpack.c.b16 %v3631, %v3629
    %v3952 = vpack.c.b16 %v3634, %v3632
    %v3953 = vpack.c.b16 %v3635, %v3633
    %v3954 = vpack.c.b16 %v3638, %v3636
    %v3955 = vpack.c.b16 %v3639, %v3637
    %v3956 = vpack.c.b16 %v3642, %v3640
    %v3957 = vpack.c.b16 %v3643, %v3641
    %v3958 = vpack.c.b16 %v3646, %v3644
    %v3959 = vpack.c.b16 %v3647, %v3645
    %v3960 = vpack.c.b16 %v3650, %v3648
    %v3961 = vpack.c.b16 %v3651, %v3649
    %v3962 = vpack.c.b16 %v3654, %v3652
    %v3963 = vpack.c.b16 %v3655, %v3653
    %v3964 = vpack.c.b16 %v3658, %v3656
    %v3965 = vpack.c.b16 %v3659, %v3657
    %v3966 = vpack.c.b16 %v3662, %v3660
    %v3967 = vpack.c.b16 %v3663, %v3661
    %v3968 = vpack.c.b16 %v3666, %v3664
    %v3969 = vpack.c.b16 %v3667, %v3665
    %v3970 = vpack.c.b16 %v3670, %v3668
    %v3971 = vpack.c.b16 %v3671, %v3669
    %v3972 = vpack.c.b16 %v3674, %v3672
    %v3973 = vpack.c.b16 %v3675, %v3673
    %v3974 = vpack.c.b16 %v3678, %v3676
    %v3975 = vpack.c.b16 %v3679, %v3677
    %v3976 = vpack.c.b16 %v3682, %v3680
    %v3977 = vpack.c.b16 %v3683, %v3681
    %v3978 = vpack.c.b16 %v3686, %v3684
    %v3979 = vpack.c.b16 %v3687, %v3685
    %v3980 = vpack.c.b16 %v3690, %v3688
    %v3981 = vpack.c.b16 %v3691, %v3689
    %v3982 = vpack.c.b16 %v3694, %v3692
    %v3983 = vpack.c.b16 %v3695, %v3693
    %v3984 = vpack.c.b16 %v3698, %v3696
    %v3985 = vpack.c.b16 %v3699, %v3697
    %v3986 = vpack.c.b16 %v3702, %v3700
    %v3987 = vpack.c.b16 %v3703, %v3701
    %v3988 = vpack.c.b16 %v3706, %v3704
    %v3989 = vpack.c.b16 %v3707, %v3705
    %v3990 = vpack.c.b16 %v3710, %v3708
    %v3991 = vpack.c.b16 %v3711, %v3709
    %v3992 = vpack.c.b16 %v3714, %v3712
    %v3993 = vpack.c.b16 %v3715, %v3713
    %v3994 = vpack.c.b16 %v3718, %v3716
    %v3995 = vpack.c.b16 %v3719, %v3717
    %v3996 = vpack.c.b16 %v3722, %v3720
    %v3997 = vpack.c.b16 %v3723, %v3721
    %v3998 = vpack.c.b16 %v3726, %v3724
    %v3999 = vpack.c.b16 %v3727, %v3725
    %v4000 = vpack.c.b16 %v3730, %v3728
    %v4001 = vpack.c.b16 %v3731, %v3729
    %v4002 = vpack.c.b16 %v3734, %v3732
    %v4003 = vpack.c.b16 %v3735, %v3733
    %v4004 = vpack.c.b16 %v3738, %v3736
    %v4005 = vpack.c.b16 %v3739, %v3737
    %v4006 = vpack.c.b16 %v3742, %v3740
    %v4007 = vpack.c.b16 %v3743, %v3741
    %v4008 = vpack.c.b16 %v3746, %v3744
    %v4009 = vpack.c.b16 %v3747, %v3745
    %v4010 = vpack.c.b16 %v3750, %v3748
    %v4011 = vpack.c.b16 %v3751, %v3749
    %v4012 = vpack.c.b16 %v3754, %v3752
    %v4013 = vpack.c.b16 %v3755, %v3753
    %v4014 = vpack.c.b16 %v3758, %v3756
    %v4015 = vpack.c.b16 %v3759, %v3757
    %v4016 = vpack.c.b16 %v3762, %v3760
    %v4017 = vpack.c.b16 %v3763, %v3761
    %v4018 = vpack.c.b16 %v3766, %v3764
    %v4019 = vpack.c.b16 %v3767, %v3765
    %v4020 = vpack.c.b16 %v3770, %v3768
    %v4021 = vpack.c.b16 %v3771, %v3769
    %v4022 = vpack.c.b16 %v3774, %v3772
    %v4023 = vpack.c.b16 %v3775, %v3773
    %v4024 = vpack.c.b16 %v3778, %v3776
    %v4025 = vpack.c.b16 %v3779, %v3777
    %v4026 = vpack.c.b16 %v3782, %v3780
    %v4027 = vpack.c.b16 %v3783, %v3781
    %v4028 = vpack.c.b16 %v3786, %v3784
    %v4029 = vpack.c.b16 %v3787, %v3785
    %v4030 = vpack.c.b16 %v3790, %v3788
    %v4031 = vpack.c.b16 %v3791, %v3789
    %4272 = vmatprep.subr.bf16.mxu0 %v3793
    %4273 = vmatpush1.bf16.msra.mxu0 %v3792
    %4274 = vmatprep.subr.bf16.mxu0 %v3795
    %4275 = vmatpush1.bf16.msra.mxu0 %v3794
    %4276 = vmatprep.subr.bf16.mxu0 %v3797
    %4277 = vmatpush1.bf16.msra.mxu0 %v3796
    %4278 = vmatprep.subr.bf16.mxu0 %v3799
    %4279 = vmatpush1.bf16.msra.mxu0 %v3798
    %4280 = vmatprep.subr.bf16.mxu0 %v3801
    %4281 = vmatpush1.bf16.msra.mxu0 %v3800
    %4282 = vmatprep.subr.bf16.mxu0 %v3803
    %4283 = vmatpush1.bf16.msra.mxu0 %v3802
    %4284 = vmatprep.subr.bf16.mxu0 %v3805
    %4285 = vmatpush1.bf16.msra.mxu0 %v3804
    %4286 = vmatprep.subr.bf16.mxu0 %v3807
    %4287 = vmatpush1.bf16.msra.mxu0 %v3806
    %4288 = vmatprep.subr.bf16.mxu0 %v3809
    %4289 = vmatpush1.bf16.msra.mxu0 %v3808
    %4290 = vmatprep.subr.bf16.mxu0 %v3811
    %4291 = vmatpush1.bf16.msra.mxu0 %v3810
    %4292 = vmatprep.subr.bf16.mxu0 %v3813
    %4293 = vmatpush1.bf16.msra.mxu0 %v3812
    %4294 = vmatprep.subr.bf16.mxu0 %v3815
    %4295 = vmatpush1.bf16.msra.mxu0 %v3814
    %4296 = vmatprep.subr.bf16.mxu0 %v3817
    %4297 = vmatpush1.bf16.msra.mxu0 %v3816
    %4298 = vmatprep.subr.bf16.mxu0 %v3819
    %4299 = vmatpush1.bf16.msra.mxu0 %v3818
    %4300 = vmatprep.subr.bf16.mxu0 %v3821
    %4301 = vmatpush1.bf16.msra.mxu0 %v3820
    %4302 = vmatprep.subr.bf16.mxu0 %v3823
    %4303 = vmatpush1.bf16.msra.mxu0 %v3822
    %4304 = vmatprep.mubr.bf16.mxu0 %v254
    %4305 = vmatmul.mubr.bf16.gmra.mrb[0].mxu0 %v253
    %v4306 = vpop.f32.mrb[0].mxu0
    %v4307 = vadd.f32 0.0, %v4306
    %v4308 = vpop.f32.mrb[0].mxu0
    %v4309 = vadd.f32 0.0, %v4308
    %v4310 = vpop.f32.mrb[0].mxu0
    %v4311 = vadd.f32 0.0, %v4310
    %v4312 = vpop.f32.mrb[0].mxu0
    %v4313 = vadd.f32 0.0, %v4312
    %4314 = vmatprep.mubr.bf16.mxu0 %v257
    %4315 = vmatmul.mubr.bf16.gmra.mrb[0].mxu0 %v256
    %v4316 = vpop.f32.mrb[0].mxu0
    %v4317 = vadd.f32 0.0, %v4316
    %v4318 = vpop.f32.mrb[0].mxu0
    %v4319 = vadd.f32 0.0, %v4318
    %v4320 = vpop.f32.mrb[0].mxu0
    %v4321 = vadd.f32 0.0, %v4320
    %v4322 = vpop.f32.mrb[0].mxu0
    %v4323 = vadd.f32 0.0, %v4322
    %4324 = vmatprep.mubr.bf16.mxu0 %v260
    %4325 = vmatmul.mubr.bf16.gmra.mrb[0].mxu0 %v259
    %v4326 = vpop.f32.mrb[0].mxu0
    %v4327 = vadd.f32 0.0, %v4326
    %v4328 = vpop.f32.mrb[0].mxu0
    %v4329 = vadd.f32 0.0, %v4328
    %v4330 = vpop.f32.mrb[0].mxu0
    %v4331 = vadd.f32 0.0, %v4330
    %v4332 = vpop.f32.mrb[0].mxu0
    %v4333 = vadd.f32 0.0, %v4332
    %4334 = vmatprep.mubr.bf16.mxu0 %v263
    %4335 = vmatmul.mubr.bf16.gmra.mrb[0].mxu0 %v262
    %v4336 = vpop.f32.mrb[0].mxu0
    %v4337 = vadd.f32 0.0, %v4336
    %v4338 = vpop.f32.mrb[0].mxu0
    %v4339 = vadd.f32 0.0, %v4338
    %v4340 = vpop.f32.mrb[0].mxu0
    %v4341 = vadd.f32 0.0, %v4340
    %v4342 = vpop.f32.mrb[0].mxu0
    %v4343 = vadd.f32 0.0, %v4342
    %4344 = vmatprep.mubr.bf16.mxu0 %v266
    %4345 = vmatmul.mubr.bf16.gmra.mrb[0].mxu0 %v265
    %v4346 = vpop.f32.mrb[0].mxu0
    %v4347 = vadd.f32 0.0, %v4346
    %v4348 = vpop.f32.mrb[0].mxu0
    %v4349 = vadd.f32 0.0, %v4348
    %v4350 = vpop.f32.mrb[0].mxu0
    %v4351 = vadd.f32 0.0, %v4350
    %v4352 = vpop.f32.mrb[0].mxu0
    %v4353 = vadd.f32 0.0, %v4352
    %4354 = vmatprep.mubr.bf16.mxu0 %v269
    %4355 = vmatmul.mubr.bf16.gmra.mrb[0].mxu0 %v268
    %v4356 = vpop.f32.mrb[0].mxu0
    %v4357 = vadd.f32 0.0, %v4356
    %v4358 = vpop.f32.mrb[0].mxu0
    %v4359 = vadd.f32 0.0, %v4358
    %v4360 = vpop.f32.mrb[0].mxu0
    %v4361 = vadd.f32 0.0, %v4360
    %v4362 = vpop.f32.mrb[0].mxu0
    %v4363 = vadd.f32 0.0, %v4362
    %4364 = vmatprep.mubr.bf16.mxu0 %v272
    %4365 = vmatmul.mubr.bf16.gmra.mrb[0].mxu0 %v271
    %v4366 = vpop.f32.mrb[0].mxu0
    %v4367 = vadd.f32 0.0, %v4366
    %v4368 = vpop.f32.mrb[0].mxu0
    %v4369 = vadd.f32 0.0, %v4368
    %v4370 = vpop.f32.mrb[0].mxu0
    %v4371 = vadd.f32 0.0, %v4370
    %v4372 = vpop.f32.mrb[0].mxu0
    %v4373 = vadd.f32 0.0, %v4372
    %4374 = vmatprep.mubr.bf16.mxu0 %v275
    %4375 = vmatmul.mubr.bf16.gmra.mrb[0].mxu0 %v274
    %v4376 = vpop.f32.mrb[0].mxu0
    %v4377 = vadd.f32 0.0, %v4376
    %v4378 = vpop.f32.mrb[0].mxu0
    %v4379 = vadd.f32 0.0, %v4378
    %v4380 = vpop.f32.mrb[0].mxu0
    %v4381 = vadd.f32 0.0, %v4380
    %v4382 = vpop.f32.mrb[0].mxu0
    %v4383 = vadd.f32 0.0, %v4382
    %4384 = vdwg.mxu0
    %4385 = vmatprep.subr.bf16.mxu0 %v3825
    %4386 = vmatpush1.bf16.msra.mxu0 %v3824
    %4387 = vmatprep.subr.bf16.mxu0 %v3827
    %4388 = vmatpush1.bf16.msra.mxu0 %v3826
    %4389 = vmatprep.subr.bf16.mxu0 %v3829
    %4390 = vmatpush1.bf16.msra.mxu0 %v3828
    %4391 = vmatprep.subr.bf16.mxu0 %v3831
    %4392 = vmatpush1.bf16.msra.mxu0 %v3830
    %4393 = vmatprep.subr.bf16.mxu0 %v3833
    %4394 = vmatpush1.bf16.msra.mxu0 %v3832
    %4395 = vmatprep.subr.bf16.mxu0 %v3835
    %4396 = vmatpush1.bf16.msra.mxu0 %v3834
    %4397 = vmatprep.subr.bf16.mxu0 %v3837
    %4398 = vmatpush1.bf16.msra.mxu0 %v3836
    %4399 = vmatprep.subr.bf16.mxu0 %v3839
    %4400 = vmatpush1.bf16.msra.mxu0 %v3838
    %4401 = vmatprep.subr.bf16.mxu0 %v3841
    %4402 = vmatpush1.bf16.msra.mxu0 %v3840
    %4403 = vmatprep.subr.bf16.mxu0 %v3843
    %4404 = vmatpush1.bf16.msra.mxu0 %v3842
    %4405 = vmatprep.subr.bf16.mxu0 %v3845
    %4406 = vmatpush1.bf16.msra.mxu0 %v3844
    %4407 = vmatprep.subr.bf16.mxu0 %v3847
    %4408 = vmatpush1.bf16.msra.mxu0 %v3846
    %4409 = vmatprep.subr.bf16.mxu0 %v3849
    %4410 = vmatpush1.bf16.msra.mxu0 %v3848
    %4411 = vmatprep.subr.bf16.mxu0 %v3851
    %4412 = vmatpush1.bf16.msra.mxu0 %v3850
    %4413 = vmatprep.subr.bf16.mxu0 %v3853
    %4414 = vmatpush1.bf16.msra.mxu0 %v3852
    %4415 = vmatprep.subr.bf16.mxu0 %v3855
    %4416 = vmatpush1.bf16.msra.mxu0 %v3854
    %4417 = vmatprep.mubr.bf16.mxu0 %v801
    %4418 = vmatmul.mubr.bf16.gmra.mrb[0].mxu0 %v255
    %v4419 = vpop.f32.mrb[0].mxu0
    %v4420 = vadd.f32 %v4307, %v4419
    %v4421 = vpop.f32.mrb[0].mxu0
    %v4422 = vadd.f32 %v4309, %v4421
    %v4423 = vpop.f32.mrb[0].mxu0
    %v4424 = vadd.f32 %v4311, %v4423
    %v4425 = vpop.f32.mrb[0].mxu0
    %v4426 = vadd.f32 %v4313, %v4425
    %4427 = vmatprep.mubr.bf16.mxu0 %v833
    %4428 = vmatmul.mubr.bf16.gmra.mrb[0].mxu0 %v258
    %v4429 = vpop.f32.mrb[0].mxu0
    %v4430 = vadd.f32 %v4317, %v4429
    %v4431 = vpop.f32.mrb[0].mxu0
    %v4432 = vadd.f32 %v4319, %v4431
    %v4433 = vpop.f32.mrb[0].mxu0
    %v4434 = vadd.f32 %v4321, %v4433
    %v4435 = vpop.f32.mrb[0].mxu0
    %v4436 = vadd.f32 %v4323, %v4435
    %4437 = vmatprep.mubr.bf16.mxu0 %v857
    %4438 = vmatmul.mubr.bf16.gmra.mrb[0].mxu0 %v261
    %v4439 = vpop.f32.mrb[0].mxu0
    %v4440 = vadd.f32 %v4327, %v4439
    %v4441 = vpop.f32.mrb[0].mxu0
    %v4442 = vadd.f32 %v4329, %v4441
    %v4443 = vpop.f32.mrb[0].mxu0
    %v4444 = vadd.f32 %v4331, %v4443
    %v4445 = vpop.f32.mrb[0].mxu0
    %v4446 = vadd.f32 %v4333, %v4445
    %4447 = vmatprep.mubr.bf16.mxu0 %v881
    %4448 = vmatmul.mubr.bf16.gmra.mrb[0].mxu0 %v264
    %v4449 = vpop.f32.mrb[0].mxu0
    %v4450 = vadd.f32 %v4337, %v4449
    %v4451 = vpop.f32.mrb[0].mxu0
    %v4452 = vadd.f32 %v4339, %v4451
    %v4453 = vpop.f32.mrb[0].mxu0
    %v4454 = vadd.f32 %v4341, %v4453
    %v4455 = vpop.f32.mrb[0].mxu0
    %v4456 = vadd.f32 %v4343, %v4455
    %4457 = vmatprep.mubr.bf16.mxu0 %v905
    %4458 = vmatmul.mubr.bf16.gmra.mrb[0].mxu0 %v267
    %v4459 = vpop.f32.mrb[0].mxu0
    %v4460 = vadd.f32 %v4347, %v4459
    %v4461 = vpop.f32.mrb[0].mxu0
    %v4462 = vadd.f32 %v4349, %v4461
    %v4463 = vpop.f32.mrb[0].mxu0
    %v4464 = vadd.f32 %v4351, %v4463
    %v4465 = vpop.f32.mrb[0].mxu0
    %v4466 = vadd.f32 %v4353, %v4465
    %4467 = vmatprep.mubr.bf16.mxu0 %v929
    %4468 = vmatmul.mubr.bf16.gmra.mrb[0].mxu0 %v270
    %v4469 = vpop.f32.mrb[0].mxu0
    %v4470 = vadd.f32 %v4357, %v4469
    %v4471 = vpop.f32.mrb[0].mxu0
    %v4472 = vadd.f32 %v4359, %v4471
    %v4473 = vpop.f32.mrb[0].mxu0
    %v4474 = vadd.f32 %v4361, %v4473
    %v4475 = vpop.f32.mrb[0].mxu0
    %v4476 = vadd.f32 %v4363, %v4475
    %4477 = vmatprep.mubr.bf16.mxu0 %v953
    %4478 = vmatmul.mubr.bf16.gmra.mrb[0].mxu0 %v273
    %v4479 = vpop.f32.mrb[0].mxu0
    %v4480 = vadd.f32 %v4367, %v4479
    %v4481 = vpop.f32.mrb[0].mxu0
    %v4482 = vadd.f32 %v4369, %v4481
    %v4483 = vpop.f32.mrb[0].mxu0
    %v4484 = vadd.f32 %v4371, %v4483
    %v4485 = vpop.f32.mrb[0].mxu0
    %v4486 = vadd.f32 %v4373, %v4485
    %4487 = vmatprep.mubr.bf16.mxu0 %v977
    %4488 = vmatmul.mubr.bf16.gmra.mrb[0].mxu0 %v276
    %v4489 = vpop.f32.mrb[0].mxu0
    %v4490 = vadd.f32 %v4377, %v4489
    %v4491 = vpop.f32.mrb[0].mxu0
    %v4492 = vadd.f32 %v4379, %v4491
    %v4493 = vpop.f32.mrb[0].mxu0
    %v4494 = vadd.f32 %v4381, %v4493
    %v4495 = vpop.f32.mrb[0].mxu0
    %v4496 = vadd.f32 %v4383, %v4495
    %4497 = vdwg.mxu0
    %4498 = vmatprep.subr.bf16.mxu0 %v3857
    %4499 = vmatpush1.bf16.msra.mxu0 %v3856
    %4500 = vmatprep.subr.bf16.mxu0 %v3859
    %4501 = vmatpush1.bf16.msra.mxu0 %v3858
    %4502 = vmatprep.subr.bf16.mxu0 %v3861
    %4503 = vmatpush1.bf16.msra.mxu0 %v3860
    %4504 = vmatprep.subr.bf16.mxu0 %v3863
    %4505 = vmatpush1.bf16.msra.mxu0 %v3862
    %4506 = vmatprep.subr.bf16.mxu0 %v3865
    %4507 = vmatpush1.bf16.msra.mxu0 %v3864
    %4508 = vmatprep.subr.bf16.mxu0 %v3867
    %4509 = vmatpush1.bf16.msra.mxu0 %v3866
    %4510 = vmatprep.subr.bf16.mxu0 %v3869
    %4511 = vmatpush1.bf16.msra.mxu0 %v3868
    %4512 = vmatprep.subr.bf16.mxu0 %v3871
    %4513 = vmatpush1.bf16.msra.mxu0 %v3870
    %4514 = vmatprep.subr.bf16.mxu0 %v3873
    %4515 = vmatpush1.bf16.msra.mxu0 %v3872
    %4516 = vmatprep.subr.bf16.mxu0 %v3875
    %4517 = vmatpush1.bf16.msra.mxu0 %v3874
    %4518 = vmatprep.subr.bf16.mxu0 %v3877
    %4519 = vmatpush1.bf16.msra.mxu0 %v3876
    %4520 = vmatprep.subr.bf16.mxu0 %v3879
    %4521 = vmatpush1.bf16.msra.mxu0 %v3878
    %4522 = vmatprep.subr.bf16.mxu0 %v3881
    %4523 = vmatpush1.bf16.msra.mxu0 %v3880
    %4524 = vmatprep.subr.bf16.mxu0 %v3883
    %4525 = vmatpush1.bf16.msra.mxu0 %v3882
    %4526 = vmatprep.subr.bf16.mxu0 %v3885
    %4527 = vmatpush1.bf16.msra.mxu0 %v3884
    %4528 = vmatprep.subr.bf16.mxu0 %v3887
    %4529 = vmatpush1.bf16.msra.mxu0 %v3886
    %4530 = vmatprep.mubr.bf16.mxu0 %v825
    %4531 = vmatmul.mubr.bf16.gmra.mrb[0].mxu0 %v813
    %v4532 = vpop.f32.mrb[0].mxu0
    %v4533 = vadd.f32 %v4420, %v4532
    %v4534 = vpop.f32.mrb[0].mxu0
    %v4535 = vadd.f32 %v4422, %v4534
    %v4536 = vpop.f32.mrb[0].mxu0
    %v4537 = vadd.f32 %v4424, %v4536
    %v4538 = vpop.f32.mrb[0].mxu0
    %v4539 = vadd.f32 %v4426, %v4538
    %4540 = vmatprep.mubr.bf16.mxu0 %v849
    %4541 = vmatmul.mubr.bf16.gmra.mrb[0].mxu0 %v841
    %v4542 = vpop.f32.mrb[0].mxu0
    %v4543 = vadd.f32 %v4430, %v4542
    %v4544 = vpop.f32.mrb[0].mxu0
    %v4545 = vadd.f32 %v4432, %v4544
    %v4546 = vpop.f32.mrb[0].mxu0
    %v4547 = vadd.f32 %v4434, %v4546
    %v4548 = vpop.f32.mrb[0].mxu0
    %v4549 = vadd.f32 %v4436, %v4548
    %4550 = vmatprep.mubr.bf16.mxu0 %v873
    %4551 = vmatmul.mubr.bf16.gmra.mrb[0].mxu0 %v865
    %v4552 = vpop.f32.mrb[0].mxu0
    %v4553 = vadd.f32 %v4440, %v4552
    %v4554 = vpop.f32.mrb[0].mxu0
    %v4555 = vadd.f32 %v4442, %v4554
    %v4556 = vpop.f32.mrb[0].mxu0
    %v4557 = vadd.f32 %v4444, %v4556
    %v4558 = vpop.f32.mrb[0].mxu0
    %v4559 = vadd.f32 %v4446, %v4558
    %4560 = vmatprep.mubr.bf16.mxu0 %v897
    %4561 = vmatmul.mubr.bf16.gmra.mrb[0].mxu0 %v889
    %v4562 = vpop.f32.mrb[0].mxu0
    %v4563 = vadd.f32 %v4450, %v4562
    %v4564 = vpop.f32.mrb[0].mxu0
    %v4565 = vadd.f32 %v4452, %v4564
    %v4566 = vpop.f32.mrb[0].mxu0
    %v4567 = vadd.f32 %v4454, %v4566
    %v4568 = vpop.f32.mrb[0].mxu0
    %v4569 = vadd.f32 %v4456, %v4568
    %4570 = vmatprep.mubr.bf16.mxu0 %v921
    %4571 = vmatmul.mubr.bf16.gmra.mrb[0].mxu0 %v913
    %v4572 = vpop.f32.mrb[0].mxu0
    %v4573 = vadd.f32 %v4460, %v4572
    %v4574 = vpop.f32.mrb[0].mxu0
    %v4575 = vadd.f32 %v4462, %v4574
    %v4576 = vpop.f32.mrb[0].mxu0
    %v4577 = vadd.f32 %v4464, %v4576
    %v4578 = vpop.f32.mrb[0].mxu0
    %v4579 = vadd.f32 %v4466, %v4578
    %4580 = vmatprep.mubr.bf16.mxu0 %v945
    %4581 = vmatmul.mubr.bf16.gmra.mrb[0].mxu0 %v937
    %v4582 = vpop.f32.mrb[0].mxu0
    %v4583 = vadd.f32 %v4470, %v4582
    %v4584 = vpop.f32.mrb[0].mxu0
    %v4585 = vadd.f32 %v4472, %v4584
    %v4586 = vpop.f32.mrb[0].mxu0
    %v4587 = vadd.f32 %v4474, %v4586
    %v4588 = vpop.f32.mrb[0].mxu0
    %v4589 = vadd.f32 %v4476, %v4588
    %4590 = vmatprep.mubr.bf16.mxu0 %v969
    %4591 = vmatmul.mubr.bf16.gmra.mrb[0].mxu0 %v961
    %v4592 = vpop.f32.mrb[0].mxu0
    %v4593 = vadd.f32 %v4480, %v4592
    %v4594 = vpop.f32.mrb[0].mxu0
    %v4595 = vadd.f32 %v4482, %v4594
    %v4596 = vpop.f32.mrb[0].mxu0
    %v4597 = vadd.f32 %v4484, %v4596
    %v4598 = vpop.f32.mrb[0].mxu0
    %v4599 = vadd.f32 %v4486, %v4598
    %4600 = vmatprep.mubr.bf16.mxu0 %v985
    %4601 = vmatmul.mubr.bf16.gmra.mrb[0].mxu0 %v981
    %v4602 = vpop.f32.mrb[0].mxu0
    %v4603 = vadd.f32 %v4490, %v4602
    %v4604 = vpop.f32.mrb[0].mxu0
    %v4605 = vadd.f32 %v4492, %v4604
    %v4606 = vpop.f32.mrb[0].mxu0
    %v4607 = vadd.f32 %v4494, %v4606
    %v4608 = vpop.f32.mrb[0].mxu0
    %v4609 = vadd.f32 %v4496, %v4608
    %4610 = vdwg.mxu0
    %4611 = vmatprep.subr.bf16.mxu0 %v3889
    %4612 = vmatpush1.bf16.msra.mxu0 %v3888
    %4613 = vmatprep.subr.bf16.mxu0 %v3891
    %4614 = vmatpush1.bf16.msra.mxu0 %v3890
    %4615 = vmatprep.subr.bf16.mxu0 %v3893
    %4616 = vmatpush1.bf16.msra.mxu0 %v3892
    %4617 = vmatprep.subr.bf16.mxu0 %v3895
    %4618 = vmatpush1.bf16.msra.mxu0 %v3894
    %4619 = vmatprep.subr.bf16.mxu0 %v3897
    %4620 = vmatpush1.bf16.msra.mxu0 %v3896
    %4621 = vmatprep.subr.bf16.mxu0 %v3899
    %4622 = vmatpush1.bf16.msra.mxu0 %v3898
    %4623 = vmatprep.subr.bf16.mxu0 %v3901
    %4624 = vmatpush1.bf16.msra.mxu0 %v3900
    %4625 = vmatprep.subr.bf16.mxu0 %v3903
    %4626 = vmatpush1.bf16.msra.mxu0 %v3902
    %4627 = vmatprep.subr.bf16.mxu0 %v3905
    %4628 = vmatpush1.bf16.msra.mxu0 %v3904
    %4629 = vmatprep.subr.bf16.mxu0 %v3907
    %4630 = vmatpush1.bf16.msra.mxu0 %v3906
    %4631 = vmatprep.subr.bf16.mxu0 %v3909
    %4632 = vmatpush1.bf16.msra.mxu0 %v3908
    %4633 = vmatprep.subr.bf16.mxu0 %v3911
    %4634 = vmatpush1.bf16.msra.mxu0 %v3910
    %4635 = vmatprep.subr.bf16.mxu0 %v3913
    %4636 = vmatpush1.bf16.msra.mxu0 %v3912
    %4637 = vmatprep.subr.bf16.mxu0 %v3915
    %4638 = vmatpush1.bf16.msra.mxu0 %v3914
    %4639 = vmatprep.subr.bf16.mxu0 %v3917
    %4640 = vmatpush1.bf16.msra.mxu0 %v3916
    %4641 = vmatprep.subr.bf16.mxu0 %v3919
    %4642 = vmatpush1.bf16.msra.mxu0 %v3918
    %4643 = vmatprep.mubr.bf16.mxu0 %v2095
    %4644 = vmatmul.mubr.bf16.gmra.mrb[0].mxu0 %v2092
    %v4645 = vpop.f32.mrb[0].mxu0
    %v4646 = vadd.f32 %v4533, %v4645
    %v4647 = vpop.f32.mrb[0].mxu0
    %v4648 = vadd.f32 %v4535, %v4647
    %v4649 = vpop.f32.mrb[0].mxu0
    %v4650 = vadd.f32 %v4537, %v4649
    %v4651 = vpop.f32.mrb[0].mxu0
    %v4652 = vadd.f32 %v4539, %v4651
    %4653 = vmatprep.mubr.bf16.mxu0 %v2102
    %4654 = vmatmul.mubr.bf16.gmra.mrb[0].mxu0 %v2100
    %v4655 = vpop.f32.mrb[0].mxu0
    %v4656 = vadd.f32 %v4543, %v4655
    %v4657 = vpop.f32.mrb[0].mxu0
    %v4658 = vadd.f32 %v4545, %v4657
    %v4659 = vpop.f32.mrb[0].mxu0
    %v4660 = vadd.f32 %v4547, %v4659
    %v4661 = vpop.f32.mrb[0].mxu0
    %v4662 = vadd.f32 %v4549, %v4661
    %4663 = vmatprep.mubr.bf16.mxu0 %v2108
    %4664 = vmatmul.mubr.bf16.gmra.mrb[0].mxu0 %v2106
    %v4665 = vpop.f32.mrb[0].mxu0
    %v4666 = vadd.f32 %v4553, %v4665
    %v4667 = vpop.f32.mrb[0].mxu0
    %v4668 = vadd.f32 %v4555, %v4667
    %v4669 = vpop.f32.mrb[0].mxu0
    %v4670 = vadd.f32 %v4557, %v4669
    %v4671 = vpop.f32.mrb[0].mxu0
    %v4672 = vadd.f32 %v4559, %v4671
    %4673 = vmatprep.mubr.bf16.mxu0 %v2114
    %4674 = vmatmul.mubr.bf16.gmra.mrb[0].mxu0 %v2112
    %v4675 = vpop.f32.mrb[0].mxu0
    %v4676 = vadd.f32 %v4563, %v4675
    %v4677 = vpop.f32.mrb[0].mxu0
    %v4678 = vadd.f32 %v4565, %v4677
    %v4679 = vpop.f32.mrb[0].mxu0
    %v4680 = vadd.f32 %v4567, %v4679
    %v4681 = vpop.f32.mrb[0].mxu0
    %v4682 = vadd.f32 %v4569, %v4681
    %4683 = vmatprep.mubr.bf16.mxu0 %v2120
    %4684 = vmatmul.mubr.bf16.gmra.mrb[0].mxu0 %v2118
    %v4685 = vpop.f32.mrb[0].mxu0
    %v4686 = vadd.f32 %v4573, %v4685
    %v4687 = vpop.f32.mrb[0].mxu0
    %v4688 = vadd.f32 %v4575, %v4687
    %v4689 = vpop.f32.mrb[0].mxu0
    %v4690 = vadd.f32 %v4577, %v4689
    %v4691 = vpop.f32.mrb[0].mxu0
    %v4692 = vadd.f32 %v4579, %v4691
    %4693 = vmatprep.mubr.bf16.mxu0 %v2126
    %4694 = vmatmul.mubr.bf16.gmra.mrb[0].mxu0 %v2124
    %v4695 = vpop.f32.mrb[0].mxu0
    %v4696 = vadd.f32 %v4583, %v4695
    %v4697 = vpop.f32.mrb[0].mxu0
    %v4698 = vadd.f32 %v4585, %v4697
    %v4699 = vpop.f32.mrb[0].mxu0
    %v4700 = vadd.f32 %v4587, %v4699
    %v4701 = vpop.f32.mrb[0].mxu0
    %v4702 = vadd.f32 %v4589, %v4701
    %4703 = vmatprep.mubr.bf16.mxu0 %v2132
    %4704 = vmatmul.mubr.bf16.gmra.mrb[0].mxu0 %v2130
    %v4705 = vpop.f32.mrb[0].mxu0
    %v4706 = vadd.f32 %v4593, %v4705
    %v4707 = vpop.f32.mrb[0].mxu0
    %v4708 = vadd.f32 %v4595, %v4707
    %v4709 = vpop.f32.mrb[0].mxu0
    %v4710 = vadd.f32 %v4597, %v4709
    %v4711 = vpop.f32.mrb[0].mxu0
    %v4712 = vadd.f32 %v4599, %v4711
    %4713 = vmatprep.mubr.bf16.mxu0 %v2137
    %4714 = vmatmul.mubr.bf16.gmra.mrb[0].mxu0 %v2136
    %v4715 = vpop.f32.mrb[0].mxu0
    %v4716 = vadd.f32 %v4603, %v4715
    %v4717 = vpop.f32.mrb[0].mxu0
    %v4718 = vadd.f32 %v4605, %v4717
    %v4719 = vpop.f32.mrb[0].mxu0
    %v4720 = vadd.f32 %v4607, %v4719
    %v4721 = vpop.f32.mrb[0].mxu0
    %v4722 = vadd.f32 %v4609, %v4721
    %4723 = vdwg.mxu0
    %4724 = vmatprep.subr.bf16.mxu0 %v3921
    %4725 = vmatpush1.bf16.msra.mxu0 %v3920
    %4726 = vmatprep.subr.bf16.mxu0 %v3923
    %4727 = vmatpush1.bf16.msra.mxu0 %v3922
    %4728 = vmatprep.subr.bf16.mxu0 %v3925
    %4729 = vmatpush1.bf16.msra.mxu0 %v3924
    %4730 = vmatprep.subr.bf16.mxu0 %v3927
    %4731 = vmatpush1.bf16.msra.mxu0 %v3926
    %4732 = vmatprep.subr.bf16.mxu0 %v3929
    %4733 = vmatpush1.bf16.msra.mxu0 %v3928
    %4734 = vmatprep.subr.bf16.mxu0 %v3931
    %4735 = vmatpush1.bf16.msra.mxu0 %v3930
    %4736 = vmatprep.subr.bf16.mxu0 %v3933
    %4737 = vmatpush1.bf16.msra.mxu0 %v3932
    %4738 = vmatprep.subr.bf16.mxu0 %v3935
    %4739 = vmatpush1.bf16.msra.mxu0 %v3934
    %4740 = vmatprep.subr.bf16.mxu0 %v3937
    %4741 = vmatpush1.bf16.msra.mxu0 %v3936
    %4742 = vmatprep.subr.bf16.mxu0 %v3939
    %4743 = vmatpush1.bf16.msra.mxu0 %v3938
    %4744 = vmatprep.subr.bf16.mxu0 %v3941
    %4745 = vmatpush1.bf16.msra.mxu0 %v3940
    %4746 = vmatprep.subr.bf16.mxu0 %v3943
    %4747 = vmatpush1.bf16.msra.mxu0 %v3942
    %4748 = vmatprep.subr.bf16.mxu0 %v3945
    %4749 = vmatpush1.bf16.msra.mxu0 %v3944
    %4750 = vmatprep.subr.bf16.mxu0 %v3947
    %4751 = vmatpush1.bf16.msra.mxu0 %v3946
    %4752 = vmatprep.subr.bf16.mxu0 %v3949
    %4753 = vmatpush1.bf16.msra.mxu0 %v3948
    %4754 = vmatprep.subr.bf16.mxu0 %v3951
    %4755 = vmatpush1.bf16.msra.mxu0 %v3950
    %4756 = vmatprep.mubr.bf16.mxu0 %v2639
    %4757 = vmatmul.mubr.bf16.gmra.mrb[0].mxu0 %v2098
    %v4758 = vpop.f32.mrb[0].mxu0
    %v4759 = vadd.f32 %v4646, %v4758
    %v4760 = vpop.f32.mrb[0].mxu0
    %v4761 = vadd.f32 %v4648, %v4760
    %v4762 = vpop.f32.mrb[0].mxu0
    %v4763 = vadd.f32 %v4650, %v4762
    %v4764 = vpop.f32.mrb[0].mxu0
    %v4765 = vadd.f32 %v4652, %v4764
    %4766 = vmatprep.mubr.bf16.mxu0 %v2657
    %4767 = vmatmul.mubr.bf16.gmra.mrb[0].mxu0 %v2104
    %v4768 = vpop.f32.mrb[0].mxu0
    %v4769 = vadd.f32 %v4656, %v4768
    %v4770 = vpop.f32.mrb[0].mxu0
    %v4771 = vadd.f32 %v4658, %v4770
    %v4772 = vpop.f32.mrb[0].mxu0
    %v4773 = vadd.f32 %v4660, %v4772
    %v4774 = vpop.f32.mrb[0].mxu0
    %v4775 = vadd.f32 %v4662, %v4774
    %4776 = vmatprep.mubr.bf16.mxu0 %v2669
    %4777 = vmatmul.mubr.bf16.gmra.mrb[0].mxu0 %v2110
    %v4778 = vpop.f32.mrb[0].mxu0
    %v4779 = vadd.f32 %v4666, %v4778
    %v4780 = vpop.f32.mrb[0].mxu0
    %v4781 = vadd.f32 %v4668, %v4780
    %v4782 = vpop.f32.mrb[0].mxu0
    %v4783 = vadd.f32 %v4670, %v4782
    %v4784 = vpop.f32.mrb[0].mxu0
    %v4785 = vadd.f32 %v4672, %v4784
    %4786 = vmatprep.mubr.bf16.mxu0 %v2681
    %4787 = vmatmul.mubr.bf16.gmra.mrb[0].mxu0 %v2116
    %v4788 = vpop.f32.mrb[0].mxu0
    %v4789 = vadd.f32 %v4676, %v4788
    %v4790 = vpop.f32.mrb[0].mxu0
    %v4791 = vadd.f32 %v4678, %v4790
    %v4792 = vpop.f32.mrb[0].mxu0
    %v4793 = vadd.f32 %v4680, %v4792
    %v4794 = vpop.f32.mrb[0].mxu0
    %v4795 = vadd.f32 %v4682, %v4794
    %4796 = vmatprep.mubr.bf16.mxu0 %v2693
    %4797 = vmatmul.mubr.bf16.gmra.mrb[0].mxu0 %v2122
    %v4798 = vpop.f32.mrb[0].mxu0
    %v4799 = vadd.f32 %v4686, %v4798
    %v4800 = vpop.f32.mrb[0].mxu0
    %v4801 = vadd.f32 %v4688, %v4800
    %v4802 = vpop.f32.mrb[0].mxu0
    %v4803 = vadd.f32 %v4690, %v4802
    %v4804 = vpop.f32.mrb[0].mxu0
    %v4805 = vadd.f32 %v4692, %v4804
    %4806 = vmatprep.mubr.bf16.mxu0 %v2705
    %4807 = vmatmul.mubr.bf16.gmra.mrb[0].mxu0 %v2128
    %v4808 = vpop.f32.mrb[0].mxu0
    %v4809 = vadd.f32 %v4696, %v4808
    %v4810 = vpop.f32.mrb[0].mxu0
    %v4811 = vadd.f32 %v4698, %v4810
    %v4812 = vpop.f32.mrb[0].mxu0
    %v4813 = vadd.f32 %v4700, %v4812
    %v4814 = vpop.f32.mrb[0].mxu0
    %v4815 = vadd.f32 %v4702, %v4814
    %4816 = vmatprep.mubr.bf16.mxu0 %v2717
    %4817 = vmatmul.mubr.bf16.gmra.mrb[0].mxu0 %v2134
    %v4818 = vpop.f32.mrb[0].mxu0
    %v4819 = vadd.f32 %v4706, %v4818
    %v4820 = vpop.f32.mrb[0].mxu0
    %v4821 = vadd.f32 %v4708, %v4820
    %v4822 = vpop.f32.mrb[0].mxu0
    %v4823 = vadd.f32 %v4710, %v4822
    %v4824 = vpop.f32.mrb[0].mxu0
    %v4825 = vadd.f32 %v4712, %v4824
    %4826 = vmatprep.mubr.bf16.mxu0 %v2731
    %4827 = vmatmul.mubr.bf16.gmra.mrb[0].mxu0 %v2138
    %v4828 = vpop.f32.mrb[0].mxu0
    %v4829 = vadd.f32 %v4716, %v4828
    %v4830 = vpop.f32.mrb[0].mxu0
    %v4831 = vadd.f32 %v4718, %v4830
    %v4832 = vpop.f32.mrb[0].mxu0
    %v4833 = vadd.f32 %v4720, %v4832
    %v4834 = vpop.f32.mrb[0].mxu0
    %v4835 = vadd.f32 %v4722, %v4834
    %4836 = vdwg.mxu0
    %4837 = vmatprep.subr.bf16.mxu0 %v3953
    %4838 = vmatpush1.bf16.msra.mxu0 %v3952
    %4839 = vmatprep.subr.bf16.mxu0 %v3955
    %4840 = vmatpush1.bf16.msra.mxu0 %v3954
    %4841 = vmatprep.subr.bf16.mxu0 %v3957
    %4842 = vmatpush1.bf16.msra.mxu0 %v3956
    %4843 = vmatprep.subr.bf16.mxu0 %v3959
    %4844 = vmatpush1.bf16.msra.mxu0 %v3958
    %4845 = vmatprep.subr.bf16.mxu0 %v3961
    %4846 = vmatpush1.bf16.msra.mxu0 %v3960
    %4847 = vmatprep.subr.bf16.mxu0 %v3963
    %4848 = vmatpush1.bf16.msra.mxu0 %v3962
    %4849 = vmatprep.subr.bf16.mxu0 %v3965
    %4850 = vmatpush1.bf16.msra.mxu0 %v3964
    %4851 = vmatprep.subr.bf16.mxu0 %v3967
    %4852 = vmatpush1.bf16.msra.mxu0 %v3966
    %4853 = vmatprep.subr.bf16.mxu0 %v3969
    %4854 = vmatpush1.bf16.msra.mxu0 %v3968
    %4855 = vmatprep.subr.bf16.mxu0 %v3971
    %4856 = vmatpush1.bf16.msra.mxu0 %v3970
    %4857 = vmatprep.subr.bf16.mxu0 %v3973
    %4858 = vmatpush1.bf16.msra.mxu0 %v3972
    %4859 = vmatprep.subr.bf16.mxu0 %v3975
    %4860 = vmatpush1.bf16.msra.mxu0 %v3974
    %4861 = vmatprep.subr.bf16.mxu0 %v3977
    %4862 = vmatpush1.bf16.msra.mxu0 %v3976
    %4863 = vmatprep.subr.bf16.mxu0 %v3979
    %4864 = vmatpush1.bf16.msra.mxu0 %v3978
    %4865 = vmatprep.subr.bf16.mxu0 %v3981
    %4866 = vmatpush1.bf16.msra.mxu0 %v3980
    %4867 = vmatprep.subr.bf16.mxu0 %v3983
    %4868 = vmatpush1.bf16.msra.mxu0 %v3982
    %4869 = vmatprep.mubr.bf16.mxu0 %v2653
    %4870 = vmatmul.mubr.bf16.gmra.mrb[0].mxu0 %v2646
    %v4871 = vpop.f32.mrb[0].mxu0
    %v4872 = vadd.f32 %v4759, %v4871
    %v4873 = vpop.f32.mrb[0].mxu0
    %v4874 = vadd.f32 %v4761, %v4873
    %v4875 = vpop.f32.mrb[0].mxu0
    %v4876 = vadd.f32 %v4763, %v4875
    %v4877 = vpop.f32.mrb[0].mxu0
    %v4878 = vadd.f32 %v4765, %v4877
    %4879 = vmatprep.mubr.bf16.mxu0 %v2665
    %4880 = vmatmul.mubr.bf16.gmra.mrb[0].mxu0 %v2661
    %v4881 = vpop.f32.mrb[0].mxu0
    %v4882 = vadd.f32 %v4769, %v4881
    %v4883 = vpop.f32.mrb[0].mxu0
    %v4884 = vadd.f32 %v4771, %v4883
    %v4885 = vpop.f32.mrb[0].mxu0
    %v4886 = vadd.f32 %v4773, %v4885
    %v4887 = vpop.f32.mrb[0].mxu0
    %v4888 = vadd.f32 %v4775, %v4887
    %4889 = vmatprep.mubr.bf16.mxu0 %v2677
    %4890 = vmatmul.mubr.bf16.gmra.mrb[0].mxu0 %v2673
    %v4891 = vpop.f32.mrb[0].mxu0
    %v4892 = vadd.f32 %v4779, %v4891
    %v4893 = vpop.f32.mrb[0].mxu0
    %v4894 = vadd.f32 %v4781, %v4893
    %v4895 = vpop.f32.mrb[0].mxu0
    %v4896 = vadd.f32 %v4783, %v4895
    %v4897 = vpop.f32.mrb[0].mxu0
    %v4898 = vadd.f32 %v4785, %v4897
    %4899 = vmatprep.mubr.bf16.mxu0 %v2689
    %4900 = vmatmul.mubr.bf16.gmra.mrb[0].mxu0 %v2685
    %v4901 = vpop.f32.mrb[0].mxu0
    %v4902 = vadd.f32 %v4789, %v4901
    %v4903 = vpop.f32.mrb[0].mxu0
    %v4904 = vadd.f32 %v4791, %v4903
    %v4905 = vpop.f32.mrb[0].mxu0
    %v4906 = vadd.f32 %v4793, %v4905
    %v4907 = vpop.f32.mrb[0].mxu0
    %v4908 = vadd.f32 %v4795, %v4907
    %4909 = vmatprep.mubr.bf16.mxu0 %v2701
    %4910 = vmatmul.mubr.bf16.gmra.mrb[0].mxu0 %v2697
    %v4911 = vpop.f32.mrb[0].mxu0
    %v4912 = vadd.f32 %v4799, %v4911
    %v4913 = vpop.f32.mrb[0].mxu0
    %v4914 = vadd.f32 %v4801, %v4913
    %v4915 = vpop.f32.mrb[0].mxu0
    %v4916 = vadd.f32 %v4803, %v4915
    %v4917 = vpop.f32.mrb[0].mxu0
    %v4918 = vadd.f32 %v4805, %v4917
    %4919 = vmatprep.mubr.bf16.mxu0 %v2713
    %4920 = vmatmul.mubr.bf16.gmra.mrb[0].mxu0 %v2709
    %v4921 = vpop.f32.mrb[0].mxu0
    %v4922 = vadd.f32 %v4809, %v4921
    %v4923 = vpop.f32.mrb[0].mxu0
    %v4924 = vadd.f32 %v4811, %v4923
    %v4925 = vpop.f32.mrb[0].mxu0
    %v4926 = vadd.f32 %v4813, %v4925
    %v4927 = vpop.f32.mrb[0].mxu0
    %v4928 = vadd.f32 %v4815, %v4927
    %4929 = vmatprep.mubr.bf16.mxu0 %v2725
    %4930 = vmatmul.mubr.bf16.gmra.mrb[0].mxu0 %v2721
    %v4931 = vpop.f32.mrb[0].mxu0
    %v4932 = vadd.f32 %v4819, %v4931
    %v4933 = vpop.f32.mrb[0].mxu0
    %v4934 = vadd.f32 %v4821, %v4933
    %v4935 = vpop.f32.mrb[0].mxu0
    %v4936 = vadd.f32 %v4823, %v4935
    %v4937 = vpop.f32.mrb[0].mxu0
    %v4938 = vadd.f32 %v4825, %v4937
    %4939 = vmatprep.mubr.bf16.mxu0 %v2733
    %4940 = vmatmul.mubr.bf16.gmra.mrb[0].mxu0 %v2732
    %v4941 = vpop.f32.mrb[0].mxu0
    %v4942 = vadd.f32 %v4829, %v4941
    %v4943 = vpop.f32.mrb[0].mxu0
    %v4944 = vadd.f32 %v4831, %v4943
    %v4945 = vpop.f32.mrb[0].mxu0
    %v4946 = vadd.f32 %v4833, %v4945
    %v4947 = vpop.f32.mrb[0].mxu0
    %v4948 = vadd.f32 %v4835, %v4947
    %4949 = vdwg.mxu0
    %4950 = vmatprep.subr.bf16.mxu0 %v3985
    %4951 = vmatpush1.bf16.msra.mxu0 %v3984
    %4952 = vmatprep.subr.bf16.mxu0 %v3987
    %4953 = vmatpush1.bf16.msra.mxu0 %v3986
    %4954 = vmatprep.subr.bf16.mxu0 %v3989
    %4955 = vmatpush1.bf16.msra.mxu0 %v3988
    %4956 = vmatprep.subr.bf16.mxu0 %v3991
    %4957 = vmatpush1.bf16.msra.mxu0 %v3990
    %4958 = vmatprep.subr.bf16.mxu0 %v3993
    %4959 = vmatpush1.bf16.msra.mxu0 %v3992
    %4960 = vmatprep.subr.bf16.mxu0 %v3995
    %4961 = vmatpush1.bf16.msra.mxu0 %v3994
    %4962 = vmatprep.subr.bf16.mxu0 %v3997
    %4963 = vmatpush1.bf16.msra.mxu0 %v3996
    %4964 = vmatprep.subr.bf16.mxu0 %v3999
    %4965 = vmatpush1.bf16.msra.mxu0 %v3998
    %4966 = vmatprep.subr.bf16.mxu0 %v4001
    %4967 = vmatpush1.bf16.msra.mxu0 %v4000
    %4968 = vmatprep.subr.bf16.mxu0 %v4003
    %4969 = vmatpush1.bf16.msra.mxu0 %v4002
    %4970 = vmatprep.subr.bf16.mxu0 %v4005
    %4971 = vmatpush1.bf16.msra.mxu0 %v4004
    %4972 = vmatprep.subr.bf16.mxu0 %v4007
    %4973 = vmatpush1.bf16.msra.mxu0 %v4006
    %4974 = vmatprep.subr.bf16.mxu0 %v4009
    %4975 = vmatpush1.bf16.msra.mxu0 %v4008
    %4976 = vmatprep.subr.bf16.mxu0 %v4011
    %4977 = vmatpush1.bf16.msra.mxu0 %v4010
    %4978 = vmatprep.subr.bf16.mxu0 %v4013
    %4979 = vmatpush1.bf16.msra.mxu0 %v4012
    %4980 = vmatprep.subr.bf16.mxu0 %v4015
    %4981 = vmatpush1.bf16.msra.mxu0 %v4014
    %4982 = vmatprep.mubr.bf16.mxu0 %v2764
    %4983 = vmatmul.mubr.bf16.gmra.mrb[0].mxu0 %v2761
    %v4984 = vpop.f32.mrb[0].mxu0
    %v4985 = vadd.f32 %v4872, %v4984
    %v4986 = vpop.f32.mrb[0].mxu0
    %v4987 = vadd.f32 %v4874, %v4986
    %v4988 = vpop.f32.mrb[0].mxu0
    %v4989 = vadd.f32 %v4876, %v4988
    %v4990 = vpop.f32.mrb[0].mxu0
    %v4991 = vadd.f32 %v4878, %v4990
    %4992 = vmatprep.mubr.bf16.mxu0 %v2771
    %4993 = vmatmul.mubr.bf16.gmra.mrb[0].mxu0 %v2769
    %v4994 = vpop.f32.mrb[0].mxu0
    %v4995 = vadd.f32 %v4882, %v4994
    %v4996 = vpop.f32.mrb[0].mxu0
    %v4997 = vadd.f32 %v4884, %v4996
    %v4998 = vpop.f32.mrb[0].mxu0
    %v4999 = vadd.f32 %v4886, %v4998
    %v5000 = vpop.f32.mrb[0].mxu0
    %v5001 = vadd.f32 %v4888, %v5000
    %5002 = vmatprep.mubr.bf16.mxu0 %v2777
    %5003 = vmatmul.mubr.bf16.gmra.mrb[0].mxu0 %v2775
    %v5004 = vpop.f32.mrb[0].mxu0
    %v5005 = vadd.f32 %v4892, %v5004
    %v5006 = vpop.f32.mrb[0].mxu0
    %v5007 = vadd.f32 %v4894, %v5006
    %v5008 = vpop.f32.mrb[0].mxu0
    %v5009 = vadd.f32 %v4896, %v5008
    %v5010 = vpop.f32.mrb[0].mxu0
    %v5011 = vadd.f32 %v4898, %v5010
    %5012 = vmatprep.mubr.bf16.mxu0 %v2783
    %5013 = vmatmul.mubr.bf16.gmra.mrb[0].mxu0 %v2781
    %v5014 = vpop.f32.mrb[0].mxu0
    %v5015 = vadd.f32 %v4902, %v5014
    %v5016 = vpop.f32.mrb[0].mxu0
    %v5017 = vadd.f32 %v4904, %v5016
    %v5018 = vpop.f32.mrb[0].mxu0
    %v5019 = vadd.f32 %v4906, %v5018
    %v5020 = vpop.f32.mrb[0].mxu0
    %v5021 = vadd.f32 %v4908, %v5020
    %5022 = vmatprep.mubr.bf16.mxu0 %v2789
    %5023 = vmatmul.mubr.bf16.gmra.mrb[0].mxu0 %v2787
    %v5024 = vpop.f32.mrb[0].mxu0
    %v5025 = vadd.f32 %v4912, %v5024
    %v5026 = vpop.f32.mrb[0].mxu0
    %v5027 = vadd.f32 %v4914, %v5026
    %v5028 = vpop.f32.mrb[0].mxu0
    %v5029 = vadd.f32 %v4916, %v5028
    %v5030 = vpop.f32.mrb[0].mxu0
    %v5031 = vadd.f32 %v4918, %v5030
    %5032 = vmatprep.mubr.bf16.mxu0 %v2795
    %5033 = vmatmul.mubr.bf16.gmra.mrb[0].mxu0 %v2793
    %v5034 = vpop.f32.mrb[0].mxu0
    %v5035 = vadd.f32 %v4922, %v5034
    %v5036 = vpop.f32.mrb[0].mxu0
    %v5037 = vadd.f32 %v4924, %v5036
    %v5038 = vpop.f32.mrb[0].mxu0
    %v5039 = vadd.f32 %v4926, %v5038
    %v5040 = vpop.f32.mrb[0].mxu0
    %v5041 = vadd.f32 %v4928, %v5040
    %5042 = vmatprep.mubr.bf16.mxu0 %v2801
    %5043 = vmatmul.mubr.bf16.gmra.mrb[0].mxu0 %v2799
    %v5044 = vpop.f32.mrb[0].mxu0
    %v5045 = vadd.f32 %v4932, %v5044
    %v5046 = vpop.f32.mrb[0].mxu0
    %v5047 = vadd.f32 %v4934, %v5046
    %v5048 = vpop.f32.mrb[0].mxu0
    %v5049 = vadd.f32 %v4936, %v5048
    %v5050 = vpop.f32.mrb[0].mxu0
    %v5051 = vadd.f32 %v4938, %v5050
    %5052 = vmatprep.mubr.bf16.mxu0 %v2806
    %5053 = vmatmul.mubr.bf16.gmra.mrb[0].mxu0 %v2805
    %v5054 = vpop.f32.mrb[0].mxu0
    %v5055 = vadd.f32 %v4942, %v5054
    %v5056 = vpop.f32.mrb[0].mxu0
    %v5057 = vadd.f32 %v4944, %v5056
    %v5058 = vpop.f32.mrb[0].mxu0
    %v5059 = vadd.f32 %v4946, %v5058
    %v5060 = vpop.f32.mrb[0].mxu0
    %v5061 = vadd.f32 %v4948, %v5060
    %5062 = vdwg.mxu0
    %5063 = vmatprep.subr.bf16.mxu0 %v4017
    %5064 = vmatpush1.bf16.msra.mxu0 %v4016
    %5065 = vmatprep.subr.bf16.mxu0 %v4019
    %5066 = vmatpush1.bf16.msra.mxu0 %v4018
    %5067 = vmatprep.subr.bf16.mxu0 %v4021
    %5068 = vmatpush1.bf16.msra.mxu0 %v4020
    %5069 = vmatprep.subr.bf16.mxu0 %v4023
    %5070 = vmatpush1.bf16.msra.mxu0 %v4022
    %5071 = vmatprep.subr.bf16.mxu0 %v4025
    %5072 = vmatpush1.bf16.msra.mxu0 %v4024
    %5073 = vmatprep.subr.bf16.mxu0 %v4027
    %5074 = vmatpush1.bf16.msra.mxu0 %v4026
    %5075 = vmatprep.subr.bf16.mxu0 %v4029
    %5076 = vmatpush1.bf16.msra.mxu0 %v4028
    %5077 = vmatprep.subr.bf16.mxu0 %v4031
    %5078 = vmatpush1.bf16.msra.mxu0 %v4030
    %5079 = vmatprep.subr.bf16.mxu0 0
    %5080 = vmatpush1.bf16.msra.mxu0 0
    %5081 = vmatprep.subr.bf16.mxu0 0
    %5082 = vmatpush1.bf16.msra.mxu0 0
    %5083 = vmatprep.subr.bf16.mxu0 0
    %5084 = vmatpush1.bf16.msra.mxu0 0
    %5085 = vmatprep.subr.bf16.mxu0 0
    %5086 = vmatpush1.bf16.msra.mxu0 0
    %5087 = vmatprep.subr.bf16.mxu0 0
    %5088 = vmatpush1.bf16.msra.mxu0 0
    %5089 = vmatprep.subr.bf16.mxu0 0
    %5090 = vmatpush1.bf16.msra.mxu0 0
    %5091 = vmatprep.subr.bf16.mxu0 0
    %5092 = vmatpush1.bf16.msra.mxu0 0
    %5093 = vmatprep.subr.bf16.mxu0 0
    %5094 = vmatpush1.bf16.msra.mxu0 0
    %5095 = vmatprep.mubr.bf16.mxu0 0
    %5096 = vmatmul.mubr.bf16.gmra.mrb[0].mxu0 %v2767
    %v5097 = vpop.f32.mrb[0].mxu0
    %v5098 = vadd.f32 %v4985, %v5097
    %v5099 = vpop.f32.mrb[0].mxu0
    %v5100 = vadd.f32 %v4987, %v5099
    %v5101 = vpop.f32.mrb[0].mxu0
    %v5102 = vadd.f32 %v4989, %v5101
    %v5103 = vpop.f32.mrb[0].mxu0
    %v5104 = vadd.f32 %v4991, %v5103
    %5105 = vmatprep.mubr.bf16.mxu0 0
    %5106 = vmatmul.mubr.bf16.gmra.mrb[0].mxu0 %v2773
    %v5107 = vpop.f32.mrb[0].mxu0
    %v5108 = vadd.f32 %v4995, %v5107
    %v5109 = vpop.f32.mrb[0].mxu0
    %v5110 = vadd.f32 %v4997, %v5109
    %v5111 = vpop.f32.mrb[0].mxu0
    %v5112 = vadd.f32 %v4999, %v5111
    %v5113 = vpop.f32.mrb[0].mxu0
    %v5114 = vadd.f32 %v5001, %v5113
    %5115 = vmatprep.mubr.bf16.mxu0 0
    %5116 = vmatmul.mubr.bf16.gmra.mrb[0].mxu0 %v2779
    %v5117 = vpop.f32.mrb[0].mxu0
    %v5118 = vadd.f32 %v5005, %v5117
    %v5119 = vpop.f32.mrb[0].mxu0
    %v5120 = vadd.f32 %v5007, %v5119
    %v5121 = vpop.f32.mrb[0].mxu0
    %v5122 = vadd.f32 %v5009, %v5121
    %v5123 = vpop.f32.mrb[0].mxu0
    %v5124 = vadd.f32 %v5011, %v5123
    %5125 = vmatprep.mubr.bf16.mxu0 0
    %5126 = vmatmul.mubr.bf16.gmra.mrb[0].mxu0 %v2785
    %v5127 = vpop.f32.mrb[0].mxu0
    %v5128 = vadd.f32 %v5015, %v5127
    %v5129 = vpop.f32.mrb[0].mxu0
    %v5130 = vadd.f32 %v5017, %v5129
    %v5131 = vpop.f32.mrb[0].mxu0
    %v5132 = vadd.f32 %v5019, %v5131
    %v5133 = vpop.f32.mrb[0].mxu0
    %v5134 = vadd.f32 %v5021, %v5133
    %5135 = vmatprep.mubr.bf16.mxu0 0
    %5136 = vmatmul.mubr.bf16.gmra.mrb[0].mxu0 %v2791
    %v5137 = vpop.f32.mrb[0].mxu0
    %v5138 = vadd.f32 %v5025, %v5137
    %v5139 = vpop.f32.mrb[0].mxu0
    %v5140 = vadd.f32 %v5027, %v5139
    %v5141 = vpop.f32.mrb[0].mxu0
    %v5142 = vadd.f32 %v5029, %v5141
    %v5143 = vpop.f32.mrb[0].mxu0
    %v5144 = vadd.f32 %v5031, %v5143
    %5145 = vmatprep.mubr.bf16.mxu0 0
    %5146 = vmatmul.mubr.bf16.gmra.mrb[0].mxu0 %v2797
    %v5147 = vpop.f32.mrb[0].mxu0
    %v5148 = vadd.f32 %v5035, %v5147
    %v5149 = vpop.f32.mrb[0].mxu0
    %v5150 = vadd.f32 %v5037, %v5149
    %v5151 = vpop.f32.mrb[0].mxu0
    %v5152 = vadd.f32 %v5039, %v5151
    %v5153 = vpop.f32.mrb[0].mxu0
    %v5154 = vadd.f32 %v5041, %v5153
    %5155 = vmatprep.mubr.bf16.mxu0 0
    %5156 = vmatmul.mubr.bf16.gmra.mrb[0].mxu0 %v2803
    %v5157 = vpop.f32.mrb[0].mxu0
    %v5158 = vadd.f32 %v5045, %v5157
    %v5159 = vpop.f32.mrb[0].mxu0
    %v5160 = vadd.f32 %v5047, %v5159
    %v5161 = vpop.f32.mrb[0].mxu0
    %v5162 = vadd.f32 %v5049, %v5161
    %v5163 = vpop.f32.mrb[0].mxu0
    %v5164 = vadd.f32 %v5051, %v5163
    %5165 = vmatprep.mubr.bf16.mxu0 0
    %5166 = vmatmul.mubr.bf16.gmra.mrb[0].mxu0 %v2807
    %v5167 = vpop.f32.mrb[0].mxu0
    %v5168 = vadd.f32 %v5055, %v5167
    %v5169 = vpop.f32.mrb[0].mxu0
    %v5170 = vadd.f32 %v5057, %v5169
    %v5171 = vpop.f32.mrb[0].mxu0
    %v5172 = vadd.f32 %v5059, %v5171
    %v5173 = vpop.f32.mrb[0].mxu0
    %v5174 = vadd.f32 %v5061, %v5173
    %5175 = vdwg.mxu0
    %v5176 = vld [vmem:[%s6 + $0x3] sm:$0x1]
    %v5177 = vlaneseq
    %v5178 = vshrl.u32 %v5177, 7
    %v5179 = vsub.s32 0, %v5178
    %v5180 = vrot.slane %v5176, %v5179
    %v5181 = vadd.f32 %v5098, %v5180
    %v5182 = vadd.f32 %v5102, %v5180
    %v5183 = vadd.f32 %v5108, %v5180
    %v5184 = vadd.f32 %v5112, %v5180
    %v5185 = vadd.f32 %v5118, %v5180
    %v5186 = vadd.f32 %v5122, %v5180
    %v5187 = vadd.f32 %v5128, %v5180
    %v5188 = vadd.f32 %v5132, %v5180
    %v5189 = vadd.f32 %v5138, %v5180
    %v5190 = vadd.f32 %v5142, %v5180
    %v5191 = vadd.f32 %v5148, %v5180
    %v5192 = vadd.f32 %v5152, %v5180
    %v5193 = vadd.f32 %v5158, %v5180
    %v5194 = vadd.f32 %v5162, %v5180
    %v5195 = vadd.f32 %v5168, %v5180
    %v5196 = vadd.f32 %v5172, %v5180
    %v5197 = vtanh.pop %v5181
    %v5198 = vtanh.pop %v5182
    %v5199 = vtanh.pop %v5183
    %v5200 = vtanh.pop %v5184
    %v5201 = vtanh.pop %v5185
    %v5202 = vtanh.pop %v5186
    %v5203 = vtanh.pop %v5187
    %v5204 = vtanh.pop %v5188
    %v5205 = vtanh.pop %v5189
    %v5206 = vtanh.pop %v5190
    %v5207 = vtanh.pop %v5191
    %v5208 = vtanh.pop %v5192
    %v5209 = vtanh.pop %v5193
    %v5210 = vtanh.pop %v5194
    %v5211 = vtanh.pop %v5195
    %v5212 = vtanh.pop %v5196
    %vm5213 = vcmp.lt.s32.totalorder %v302, 12
    %vm5214 = vcmp.lt.s32.totalorder %v303, 12
    %v5215 = vsel %vm5213, 1, 0
    %v5216 = vsel %vm5214, 1, 0
    %vm5217 = vcmp.eq.s32.totalorder %v5215, 1
    %vm5218 = vcmp.eq.s32.totalorder %v5216, 1
    %v5219 = vsel %vm5217, %v5197, -2.0
    %v5220 = vsel %vm5218, %v5198, -2.0
    %v5221 = vsel %vm5217, %v5199, -2.0
    %v5222 = vsel %vm5218, %v5200, -2.0
    %v5223 = vsel %vm5217, %v5201, -2.0
    %v5224 = vsel %vm5218, %v5202, -2.0
    %v5225 = vsel %vm5217, %v5203, -2.0
    %v5226 = vsel %vm5218, %v5204, -2.0
    %v5227 = vsel %vm5217, %v5205, -2.0
    %v5228 = vsel %vm5218, %v5206, -2.0
    %v5229 = vsel %vm5217, %v5207, -2.0
    %v5230 = vsel %vm5218, %v5208, -2.0
    %v5231 = vsel %vm5217, %v5209, -2.0
    %v5232 = vsel %vm5218, %v5210, -2.0
    %v5233 = vsel %vm5217, %v5211, -2.0
    %v5234 = vsel %vm5218, %v5212, -2.0
    %v5235 = vmax.f32 %v5219, %v5220
    %v5236 = vrot.slane %v5235, 4
    %v5237 = vmax.f32 %v5235, %v5236
    %v5238 = vrot.slane %v5237, 2
    %v5239 = vmax.f32 %v5237, %v5238
    %v5240 = vrot.slane %v5239, 1
    %v5241 = vmax.f32 %v5239, %v5240
    %v5242 = vmax.f32 %v5221, %v5222
    %v5243 = vrot.slane %v5242, 4
    %v5244 = vmax.f32 %v5242, %v5243
    %v5245 = vrot.slane %v5244, 2
    %v5246 = vmax.f32 %v5244, %v5245
    %v5247 = vrot.slane %v5246, 1
    %v5248 = vmax.f32 %v5246, %v5247
    %v5249 = vmax.f32 %v5223, %v5224
    %v5250 = vrot.slane %v5249, 4
    %v5251 = vmax.f32 %v5249, %v5250
    %v5252 = vrot.slane %v5251, 2
    %v5253 = vmax.f32 %v5251, %v5252
    %v5254 = vrot.slane %v5253, 1
    %v5255 = vmax.f32 %v5253, %v5254
    %v5256 = vmax.f32 %v5225, %v5226
    %v5257 = vrot.slane %v5256, 4
    %v5258 = vmax.f32 %v5256, %v5257
    %v5259 = vrot.slane %v5258, 2
    %v5260 = vmax.f32 %v5258, %v5259
    %v5261 = vrot.slane %v5260, 1
    %v5262 = vmax.f32 %v5260, %v5261
    %v5263 = vmax.f32 %v5227, %v5228
    %v5264 = vrot.slane %v5263, 4
    %v5265 = vmax.f32 %v5263, %v5264
    %v5266 = vrot.slane %v5265, 2
    %v5267 = vmax.f32 %v5265, %v5266
    %v5268 = vrot.slane %v5267, 1
    %v5269 = vmax.f32 %v5267, %v5268
    %v5270 = vmax.f32 %v5229, %v5230
    %v5271 = vrot.slane %v5270, 4
    %v5272 = vmax.f32 %v5270, %v5271
    %v5273 = vrot.slane %v5272, 2
    %v5274 = vmax.f32 %v5272, %v5273
    %v5275 = vrot.slane %v5274, 1
    %v5276 = vmax.f32 %v5274, %v5275
    %v5277 = vmax.f32 %v5231, %v5232
    %v5278 = vrot.slane %v5277, 4
    %v5279 = vmax.f32 %v5277, %v5278
    %v5280 = vrot.slane %v5279, 2
    %v5281 = vmax.f32 %v5279, %v5280
    %v5282 = vrot.slane %v5281, 1
    %v5283 = vmax.f32 %v5281, %v5282
    %v5284 = vmax.f32 %v5233, %v5234
    %v5285 = vrot.slane %v5284, 4
    %v5286 = vmax.f32 %v5284, %v5285
    %v5287 = vrot.slane %v5286, 2
    %v5288 = vmax.f32 %v5286, %v5287
    %v5289 = vrot.slane %v5288, 1
    %v5290 = vmax.f32 %v5288, %v5289
    %v5291 = vor.u32 %v2726, %v976
    %v5292 = vld [vmem:[#allocation11] sm:$0xf]
    %v5293 = vld [vmem:[#allocation11 + $0x4] sm:$0xf]
    %v5294 = vld [vmem:[#allocation11 + $0x8] sm:$0xf]
    %v5295 = vld [vmem:[#allocation11 + $0xc] sm:$0xf]
    %v5296 = vld [vmem:[#allocation11 + $0x10] sm:$0xf]
    %v5297 = vld [vmem:[#allocation11 + $0x14] sm:$0xf]
    %v5298 = vld [vmem:[#allocation11 + $0x18] sm:$0xf]
    %v5299 = vld [vmem:[#allocation11 + $0x1c] sm:$0xf]
    %v5300 = vld [vmem:[#allocation11 + $0x20] sm:$0xf]
    %v5301 = vld [vmem:[#allocation11 + $0x24] sm:$0xf]
    %v5302 = vld [vmem:[#allocation11 + $0x28] sm:$0xf]
    %v5303 = vld [vmem:[#allocation11 + $0x2c] sm:$0xf]
    %v5304 = vld [vmem:[#allocation11 + $0x30] sm:$0xf]
    %v5305 = vld [vmem:[#allocation11 + $0x34] sm:$0xf]
    %v5306 = vld [vmem:[#allocation11 + $0x38] sm:$0xf]
    %v5307 = vld [vmem:[#allocation11 + $0x3c] sm:$0xf]
    %v5308 = vld [vmem:[#allocation11 + $0x40] sm:$0xf]
    %v5309 = vld [vmem:[#allocation11 + $0x44] sm:$0xf]
    %v5310 = vld [vmem:[#allocation11 + $0x48] sm:$0xf]
    %v5311 = vld [vmem:[#allocation11 + $0x4c] sm:$0xf]
    %v5312 = vld [vmem:[#allocation11 + $0x50] sm:$0xf]
    %v5313 = vld [vmem:[#allocation11 + $0x54] sm:$0xf]
    %v5314 = vld [vmem:[#allocation11 + $0x58] sm:$0xf]
    %v5315 = vld [vmem:[#allocation11 + $0x5c] sm:$0xf]
    %v5316 = vld [vmem:[#allocation11 + $0x60] sm:$0xf]
    %v5317 = vld [vmem:[#allocation11 + $0x64] sm:$0xf]
    %v5318 = vld [vmem:[#allocation11 + $0x68] sm:$0xf]
    %v5319 = vld [vmem:[#allocation11 + $0x6c] sm:$0xf]
    %v5320 = vld [vmem:[#allocation11 + $0x70] sm:$0xf]
    %v5321 = vld [vmem:[#allocation11 + $0x74] sm:$0xf]
    %v5322 = vld [vmem:[#allocation11 + $0x78] sm:$0xf]
    %v5323 = vld [vmem:[#allocation11 + $0x7c] sm:$0xf]
    %v5324 = vld [vmem:[#allocation11 + $0x80] sm:$0xf]
    %v5325 = vld [vmem:[#allocation11 + $0x84] sm:$0xf]
    %v5326 = vld [vmem:[#allocation11 + $0x88] sm:$0xf]
    %v5327 = vld [vmem:[#allocation11 + $0x8c] sm:$0xf]
    %v5328 = vld [vmem:[#allocation11 + $0x90] sm:$0xf]
    %v5329 = vld [vmem:[#allocation11 + $0x94] sm:$0xf]
    %v5330 = vld [vmem:[#allocation11 + $0x98] sm:$0xf]
    %v5331 = vld [vmem:[#allocation11 + $0x9c] sm:$0xf]
    %v5332 = vld [vmem:[#allocation11 + $0xa0] sm:$0xf]
    %v5333 = vld [vmem:[#allocation11 + $0xa4] sm:$0xf]
    %v5334 = vld [vmem:[#allocation11 + $0xa8] sm:$0xf]
    %v5335 = vld [vmem:[#allocation11 + $0xac] sm:$0xf]
    %v5336 = vld [vmem:[#allocation11 + $0xb0] sm:$0xf]
    %v5337 = vld [vmem:[#allocation11 + $0xb4] sm:$0xf]
    %v5338 = vld [vmem:[#allocation11 + $0xb8] sm:$0xf]
    %v5339 = vld [vmem:[#allocation11 + $0xbc] sm:$0xf]
    %v5340 = vld [vmem:[#allocation11 + $0xc0] sm:$0xf]
    %v5341 = vld [vmem:[#allocation11 + $0xc4] sm:$0xf]
    %v5342 = vld [vmem:[#allocation11 + $0xc8] sm:$0xf]
    %v5343 = vld [vmem:[#allocation11 + $0xcc] sm:$0xf]
    %v5344 = vld [vmem:[#allocation11 + $0xd0] sm:$0xf]
    %v5345 = vld [vmem:[#allocation11 + $0xd4] sm:$0xf]
    %v5346 = vld [vmem:[#allocation11 + $0xd8] sm:$0xf]
    %v5347 = vld [vmem:[#allocation11 + $0xdc] sm:$0xf]
    %v5348 = vld [vmem:[#allocation11 + $0xe0] sm:$0xf]
    %v5349 = vld [vmem:[#allocation11 + $0xe4] sm:$0xf]
    %v5350 = vld [vmem:[#allocation11 + $0xe8] sm:$0xf]
    %v5351 = vld [vmem:[#allocation11 + $0xec] sm:$0xf]
    %v5352 = vld [vmem:[#allocation11 + $0xf0] sm:$0xf]
    %v5353 = vld [vmem:[#allocation11 + $0xf4] sm:$0xf]
    %v5354 = vld [vmem:[#allocation11 + $0xf8] sm:$0xf]
    %v5355 = vld [vmem:[#allocation11 + $0xfc] sm:$0xf]
    %v5356 = vld [vmem:[#allocation11 + $0x100] sm:$0xf]
    %v5357 = vld [vmem:[#allocation11 + $0x104] sm:$0xf]
    %v5358 = vld [vmem:[#allocation11 + $0x108] sm:$0xf]
    %v5359 = vld [vmem:[#allocation11 + $0x10c] sm:$0xf]
    %v5360 = vld [vmem:[#allocation11 + $0x110] sm:$0xf]
    %v5361 = vld [vmem:[#allocation11 + $0x114] sm:$0xf]
    %v5362 = vld [vmem:[#allocation11 + $0x118] sm:$0xf]
    %v5363 = vld [vmem:[#allocation11 + $0x11c] sm:$0xf]
    %v5364 = vld [vmem:[#allocation11 + $0x120] sm:$0xf]
    %v5365 = vld [vmem:[#allocation11 + $0x124] sm:$0xf]
    %v5366 = vld [vmem:[#allocation11 + $0x128] sm:$0xf]
    %v5367 = vld [vmem:[#allocation11 + $0x12c] sm:$0xf]
    %v5368 = vld [vmem:[#allocation11 + $0x130] sm:$0xf]
    %v5369 = vld [vmem:[#allocation11 + $0x134] sm:$0xf]
    %v5370 = vld [vmem:[#allocation11 + $0x138] sm:$0xf]
    %v5371 = vld [vmem:[#allocation11 + $0x13c] sm:$0xf]
    %v5372 = vld [vmem:[#allocation11 + $0x140] sm:$0xf]
    %v5373 = vld [vmem:[#allocation11 + $0x144] sm:$0xf]
    %v5374 = vld [vmem:[#allocation11 + $0x148] sm:$0xf]
    %v5375 = vld [vmem:[#allocation11 + $0x14c] sm:$0xf]
    %v5376 = vld [vmem:[#allocation11 + $0x150] sm:$0xf]
    %v5377 = vld [vmem:[#allocation11 + $0x154] sm:$0xf]
    %v5378 = vld [vmem:[#allocation11 + $0x158] sm:$0xf]
    %v5379 = vld [vmem:[#allocation11 + $0x15c] sm:$0xf]
    %v5380 = vld [vmem:[#allocation11 + $0x160] sm:$0xf]
    %v5381 = vld [vmem:[#allocation11 + $0x164] sm:$0xf]
    %v5382 = vld [vmem:[#allocation11 + $0x168] sm:$0xf]
    %v5383 = vld [vmem:[#allocation11 + $0x16c] sm:$0xf]
    %v5384 = vld [vmem:[#allocation11 + $0x170] sm:$0xf]
    %v5385 = vld [vmem:[#allocation11 + $0x174] sm:$0xf]
    %v5386 = vld [vmem:[#allocation11 + $0x178] sm:$0xf]
    %v5387 = vld [vmem:[#allocation11 + $0x17c] sm:$0xf]
    %v5388 = vld [vmem:[#allocation11 + $0x180] sm:$0xf]
    %v5389 = vld [vmem:[#allocation11 + $0x184] sm:$0xf]
    %v5390 = vld [vmem:[#allocation11 + $0x188] sm:$0xf]
    %v5391 = vld [vmem:[#allocation11 + $0x18c] sm:$0xf]
    %v5392 = vld [vmem:[#allocation11 + $0x190] sm:$0xf]
    %v5393 = vld [vmem:[#allocation11 + $0x194] sm:$0xf]
    %v5394 = vld [vmem:[#allocation11 + $0x198] sm:$0xf]
    %v5395 = vld [vmem:[#allocation11 + $0x19c] sm:$0xf]
    %v5396 = vld [vmem:[#allocation11 + $0x1a0] sm:$0xf]
    %v5397 = vld [vmem:[#allocation11 + $0x1a4] sm:$0xf]
    %v5398 = vld [vmem:[#allocation11 + $0x1a8] sm:$0xf]
    %v5399 = vld [vmem:[#allocation11 + $0x1ac] sm:$0xf]
    %v5400 = vld [vmem:[#allocation11 + $0x1b0] sm:$0xf]
    %v5401 = vld [vmem:[#allocation11 + $0x1b4] sm:$0xf]
    %v5402 = vld [vmem:[#allocation11 + $0x1b8] sm:$0xf]
    %v5403 = vld [vmem:[#allocation11 + $0x1bc] sm:$0xf]
    %v5404 = vld [vmem:[#allocation11 + $0x1c0] sm:$0xf]
    %v5405 = vld [vmem:[#allocation11 + $0x1c4] sm:$0xf]
    %v5406 = vld [vmem:[#allocation11 + $0x1c8] sm:$0xf]
    %v5407 = vld [vmem:[#allocation11 + $0x1cc] sm:$0xf]
    %v5408 = vld [vmem:[#allocation11 + $0x1d0] sm:$0xf]
    %v5409 = vld [vmem:[#allocation11 + $0x1d4] sm:$0xf]
    %v5410 = vld [vmem:[#allocation11 + $0x1d8] sm:$0xf]
    %v5411 = vld [vmem:[#allocation11 + $0x1dc] sm:$0xf]
    %v5412 = vld [vmem:[#allocation11 + $0x1e0] sm:$0xf]
    %v5413 = vld [vmem:[#allocation11 + $0x1e4] sm:$0xf]
    %v5414 = vld [vmem:[#allocation11 + $0x1e8] sm:$0xf]
    %v5415 = vld [vmem:[#allocation11 + $0x1ec] sm:$0xf]
    %v5416 = vld [vmem:[#allocation11 + $0x1f0] sm:$0xf]
    %v5417 = vld [vmem:[#allocation11 + $0x1f4] sm:$0xf]
    %v5418 = vld [vmem:[#allocation11 + $0x1f8] sm:$0xf]
    %v5419 = vld [vmem:[#allocation11 + $0x1fc] sm:$0xf]
    %v5420 = vld [vmem:[#allocation11 + $0x200] sm:$0xf]
    %v5421 = vld [vmem:[#allocation11 + $0x204] sm:$0xf]
    %v5422 = vld [vmem:[#allocation11 + $0x208] sm:$0xf]
    %v5423 = vld [vmem:[#allocation11 + $0x20c] sm:$0xf]
    %v5424 = vld [vmem:[#allocation11 + $0x210] sm:$0xf]
    %v5425 = vld [vmem:[#allocation11 + $0x214] sm:$0xf]
    %v5426 = vld [vmem:[#allocation11 + $0x218] sm:$0xf]
    %v5427 = vld [vmem:[#allocation11 + $0x21c] sm:$0xf]
    %v5428 = vld [vmem:[#allocation11 + $0x220] sm:$0xf]
    %v5429 = vld [vmem:[#allocation11 + $0x224] sm:$0xf]
    %v5430 = vld [vmem:[#allocation11 + $0x228] sm:$0xf]
    %v5431 = vld [vmem:[#allocation11 + $0x22c] sm:$0xf]
    %v5432 = vld [vmem:[#allocation11 + $0x230] sm:$0xf]
    %v5433 = vld [vmem:[#allocation11 + $0x234] sm:$0xf]
    %v5434 = vld [vmem:[#allocation11 + $0x238] sm:$0xf]
    %v5435 = vld [vmem:[#allocation11 + $0x23c] sm:$0xf]
    %vm5436 = vsmask.f32 5376
    %v5437 = vrot.slane %v791, 2
    %v5438 = vrot.slane %v793, 3
    %v5439 = vor.u32 %v5437, %v5438
    %v5440 = vrot.slane %v826, 2
    %v5441 = vrot.slane %v798, 3
    %v5442 = vor.u32 %v5440, %v5441
    %v5443 = vsel %vm5436, %v5439, %v5442
    %v5444 = vrot.slane %v803, 2
    %v5445 = vrot.slane %v805, 3
    %v5446 = vor.u32 %v5444, %v5445
    %v5447 = vrot.slane %v834, 2
    %v5448 = vrot.slane %v810, 3
    %v5449 = vor.u32 %v5447, %v5448
    %v5450 = vsel %vm5436, %v5446, %v5449
    %v5451 = vrot.slane %v815, 2
    %v5452 = vrot.slane %v817, 3
    %v5453 = vor.u32 %v5451, %v5452
    %v5454 = vrot.slane %v842, 2
    %v5455 = vrot.slane %v822, 3
    %v5456 = vor.u32 %v5454, %v5455
    %v5457 = vsel %vm5436, %v5453, %v5456
    %v5459 = vshrl.u32 %v801, 16
    %v5461 = vrot.slane %v5459, 2
    %v5462 = vshll.u32 %v801, 16
    %v5464 = vrot.slane %v5462, 3
    %v5465 = vor.u32 %v5461, %v5464
    %v5467 = vshrl.u32 %v833, 16
    %v5469 = vrot.slane %v5467, 2
    %v5470 = vshll.u32 %v833, 16
    %v5472 = vrot.slane %v5470, 3
    %v5473 = vor.u32 %v5469, %v5472
    %v5474 = vsel %vm5436, %v5465, %v5473
    %v5476 = vshrl.u32 %v813, 16
    %v5478 = vrot.slane %v5476, 2
    %v5479 = vshll.u32 %v813, 16
    %v5481 = vrot.slane %v5479, 3
    %v5482 = vor.u32 %v5478, %v5481
    %v5484 = vshrl.u32 %v841, 16
    %v5486 = vrot.slane %v5484, 2
    %v5487 = vshll.u32 %v841, 16
    %v5489 = vrot.slane %v5487, 3
    %v5490 = vor.u32 %v5486, %v5489
    %v5491 = vsel %vm5436, %v5482, %v5490
    %v5493 = vshrl.u32 %v825, 16
    %v5495 = vrot.slane %v5493, 2
    %v5496 = vshll.u32 %v825, 16
    %v5498 = vrot.slane %v5496, 3
    %v5499 = vor.u32 %v5495, %v5498
    %v5501 = vshrl.u32 %v849, 16
    %v5503 = vrot.slane %v5501, 2
    %v5504 = vshll.u32 %v849, 16
    %v5506 = vrot.slane %v5504, 3
    %v5507 = vor.u32 %v5503, %v5506
    %v5508 = vsel %vm5436, %v5499, %v5507
    %v5510 = vshrl.u32 %v2092, 16
    %v5512 = vrot.slane %v5510, 2
    %v5513 = vshll.u32 %v2092, 16
    %v5515 = vrot.slane %v5513, 3
    %v5516 = vor.u32 %v5512, %v5515
    %v5518 = vshrl.u32 %v2100, 16
    %v5520 = vrot.slane %v5518, 2
    %v5521 = vshll.u32 %v2100, 16
    %v5523 = vrot.slane %v5521, 3
    %v5524 = vor.u32 %v5520, %v5523
    %v5525 = vsel %vm5436, %v5516, %v5524
    %v5527 = vshrl.u32 %v2095, 16
    %v5529 = vrot.slane %v5527, 2
    %v5530 = vshll.u32 %v2095, 16
    %v5532 = vrot.slane %v5530, 3
    %v5533 = vor.u32 %v5529, %v5532
    %v5535 = vshrl.u32 %v2102, 16
    %v5537 = vrot.slane %v5535, 2
    %v5538 = vshll.u32 %v2102, 16
    %v5540 = vrot.slane %v5538, 3
    %v5541 = vor.u32 %v5537, %v5540
    %v5542 = vsel %vm5436, %v5533, %v5541
    %v5544 = vshrl.u32 %v2098, 16
    %v5546 = vrot.slane %v5544, 2
    %v5547 = vshll.u32 %v2098, 16
    %v5549 = vrot.slane %v5547, 3
    %v5550 = vor.u32 %v5546, %v5549
    %v5552 = vshrl.u32 %v2104, 16
    %v5554 = vrot.slane %v5552, 2
    %v5555 = vshll.u32 %v2104, 16
    %v5557 = vrot.slane %v5555, 3
    %v5558 = vor.u32 %v5554, %v5557
    %v5559 = vsel %vm5436, %v5550, %v5558
    %v5560 = vrot.slane %v850, 2
    %v5561 = vrot.slane %v830, 3
    %v5562 = vor.u32 %v5560, %v5561
    %v5563 = vsel %vm5436, %v5442, %v5562
    %v5564 = vrot.slane %v858, 2
    %v5565 = vrot.slane %v838, 3
    %v5566 = vor.u32 %v5564, %v5565
    %v5567 = vsel %vm5436, %v5449, %v5566
    %v5568 = vrot.slane %v866, 2
    %v5569 = vrot.slane %v846, 3
    %v5570 = vor.u32 %v5568, %v5569
    %v5571 = vsel %vm5436, %v5456, %v5570
    %v5573 = vshrl.u32 %v857, 16
    %v5575 = vrot.slane %v5573, 2
    %v5576 = vshll.u32 %v857, 16
    %v5578 = vrot.slane %v5576, 3
    %v5579 = vor.u32 %v5575, %v5578
    %v5580 = vsel %vm5436, %v5473, %v5579
    %v5582 = vshrl.u32 %v865, 16
    %v5584 = vrot.slane %v5582, 2
    %v5585 = vshll.u32 %v865, 16
    %v5587 = vrot.slane %v5585, 3
    %v5588 = vor.u32 %v5584, %v5587
    %v5589 = vsel %vm5436, %v5490, %v5588
    %v5591 = vshrl.u32 %v873, 16
    %v5593 = vrot.slane %v5591, 2
    %v5594 = vshll.u32 %v873, 16
    %v5596 = vrot.slane %v5594, 3
    %v5597 = vor.u32 %v5593, %v5596
    %v5598 = vsel %vm5436, %v5507, %v5597
    %v5600 = vshrl.u32 %v2106, 16
    %v5602 = vrot.slane %v5600, 2
    %v5603 = vshll.u32 %v2106, 16
    %v5605 = vrot.slane %v5603, 3
    %v5606 = vor.u32 %v5602, %v5605
    %v5607 = vsel %vm5436, %v5524, %v5606
    %v5609 = vshrl.u32 %v2108, 16
    %v5611 = vrot.slane %v5609, 2
    %v5612 = vshll.u32 %v2108, 16
    %v5614 = vrot.slane %v5612, 3
    %v5615 = vor.u32 %v5611, %v5614
    %v5616 = vsel %vm5436, %v5541, %v5615
    %v5618 = vshrl.u32 %v2110, 16
    %v5620 = vrot.slane %v5618, 2
    %v5621 = vshll.u32 %v2110, 16
    %v5623 = vrot.slane %v5621, 3
    %v5624 = vor.u32 %v5620, %v5623
    %v5625 = vsel %vm5436, %v5558, %v5624
    %v5626 = vrot.slane %v874, 2
    %v5627 = vrot.slane %v854, 3
    %v5628 = vor.u32 %v5626, %v5627
    %v5629 = vsel %vm5436, %v5562, %v5628
    %v5630 = vrot.slane %v882, 2
    %v5631 = vrot.slane %v862, 3
    %v5632 = vor.u32 %v5630, %v5631
    %v5633 = vsel %vm5436, %v5566, %v5632
    %v5634 = vrot.slane %v890, 2
    %v5635 = vrot.slane %v870, 3
    %v5636 = vor.u32 %v5634, %v5635
    %v5637 = vsel %vm5436, %v5570, %v5636
    %v5639 = vshrl.u32 %v881, 16
    %v5641 = vrot.slane %v5639, 2
    %v5642 = vshll.u32 %v881, 16
    %v5644 = vrot.slane %v5642, 3
    %v5645 = vor.u32 %v5641, %v5644
    %v5646 = vsel %vm5436, %v5579, %v5645
    %v5648 = vshrl.u32 %v889, 16
    %v5650 = vrot.slane %v5648, 2
    %v5651 = vshll.u32 %v889, 16
    %v5653 = vrot.slane %v5651, 3
    %v5654 = vor.u32 %v5650, %v5653
    %v5655 = vsel %vm5436, %v5588, %v5654
    %v5657 = vshrl.u32 %v897, 16
    %v5659 = vrot.slane %v5657, 2
    %v5660 = vshll.u32 %v897, 16
    %v5662 = vrot.slane %v5660, 3
    %v5663 = vor.u32 %v5659, %v5662
    %v5664 = vsel %vm5436, %v5597, %v5663
    %v5666 = vshrl.u32 %v2112, 16
    %v5668 = vrot.slane %v5666, 2
    %v5669 = vshll.u32 %v2112, 16
    %v5671 = vrot.slane %v5669, 3
    %v5672 = vor.u32 %v5668, %v5671
    %v5673 = vsel %vm5436, %v5606, %v5672
    %v5675 = vshrl.u32 %v2114, 16
    %v5677 = vrot.slane %v5675, 2
    %v5678 = vshll.u32 %v2114, 16
    %v5680 = vrot.slane %v5678, 3
    %v5681 = vor.u32 %v5677, %v5680
    %v5682 = vsel %vm5436, %v5615, %v5681
    %v5684 = vshrl.u32 %v2116, 16
    %v5686 = vrot.slane %v5684, 2
    %v5687 = vshll.u32 %v2116, 16
    %v5689 = vrot.slane %v5687, 3
    %v5690 = vor.u32 %v5686, %v5689
    %v5691 = vsel %vm5436, %v5624, %v5690
    %v5692 = vrot.slane %v898, 2
    %v5693 = vrot.slane %v878, 3
    %v5694 = vor.u32 %v5692, %v5693
    %v5695 = vsel %vm5436, %v5628, %v5694
    %v5696 = vrot.slane %v906, 2
    %v5697 = vrot.slane %v886, 3
    %v5698 = vor.u32 %v5696, %v5697
    %v5699 = vsel %vm5436, %v5632, %v5698
    %v5700 = vrot.slane %v914, 2
    %v5701 = vrot.slane %v894, 3
    %v5702 = vor.u32 %v5700, %v5701
    %v5703 = vsel %vm5436, %v5636, %v5702
    %v5705 = vshrl.u32 %v905, 16
    %v5707 = vrot.slane %v5705, 2
    %v5708 = vshll.u32 %v905, 16
    %v5710 = vrot.slane %v5708, 3
    %v5711 = vor.u32 %v5707, %v5710
    %v5712 = vsel %vm5436, %v5645, %v5711
    %v5714 = vshrl.u32 %v913, 16
    %v5716 = vrot.slane %v5714, 2
    %v5717 = vshll.u32 %v913, 16
    %v5719 = vrot.slane %v5717, 3
    %v5720 = vor.u32 %v5716, %v5719
    %v5721 = vsel %vm5436, %v5654, %v5720
    %v5723 = vshrl.u32 %v921, 16
    %v5725 = vrot.slane %v5723, 2
    %v5726 = vshll.u32 %v921, 16
    %v5728 = vrot.slane %v5726, 3
    %v5729 = vor.u32 %v5725, %v5728
    %v5730 = vsel %vm5436, %v5663, %v5729
    %v5732 = vshrl.u32 %v2118, 16
    %v5734 = vrot.slane %v5732, 2
    %v5735 = vshll.u32 %v2118, 16
    %v5737 = vrot.slane %v5735, 3
    %v5738 = vor.u32 %v5734, %v5737
    %v5739 = vsel %vm5436, %v5672, %v5738
    %v5741 = vshrl.u32 %v2120, 16
    %v5743 = vrot.slane %v5741, 2
    %v5744 = vshll.u32 %v2120, 16
    %v5746 = vrot.slane %v5744, 3
    %v5747 = vor.u32 %v5743, %v5746
    %v5748 = vsel %vm5436, %v5681, %v5747
    %v5750 = vshrl.u32 %v2122, 16
    %v5752 = vrot.slane %v5750, 2
    %v5753 = vshll.u32 %v2122, 16
    %v5755 = vrot.slane %v5753, 3
    %v5756 = vor.u32 %v5752, %v5755
    %v5757 = vsel %vm5436, %v5690, %v5756
    %v5758 = vrot.slane %v922, 2
    %v5759 = vrot.slane %v902, 3
    %v5760 = vor.u32 %v5758, %v5759
    %v5761 = vsel %vm5436, %v5694, %v5760
    %v5762 = vrot.slane %v930, 2
    %v5763 = vrot.slane %v910, 3
    %v5764 = vor.u32 %v5762, %v5763
    %v5765 = vsel %vm5436, %v5698, %v5764
    %v5766 = vrot.slane %v938, 2
    %v5767 = vrot.slane %v918, 3
    %v5768 = vor.u32 %v5766, %v5767
    %v5769 = vsel %vm5436, %v5702, %v5768
    %v5771 = vshrl.u32 %v929, 16
    %v5773 = vrot.slane %v5771, 2
    %v5774 = vshll.u32 %v929, 16
    %v5776 = vrot.slane %v5774, 3
    %v5777 = vor.u32 %v5773, %v5776
    %v5778 = vsel %vm5436, %v5711, %v5777
    %v5780 = vshrl.u32 %v937, 16
    %v5782 = vrot.slane %v5780, 2
    %v5783 = vshll.u32 %v937, 16
    %v5785 = vrot.slane %v5783, 3
    %v5786 = vor.u32 %v5782, %v5785
    %v5787 = vsel %vm5436, %v5720, %v5786
    %v5789 = vshrl.u32 %v945, 16
    %v5791 = vrot.slane %v5789, 2
    %v5792 = vshll.u32 %v945, 16
    %v5794 = vrot.slane %v5792, 3
    %v5795 = vor.u32 %v5791, %v5794
    %v5796 = vsel %vm5436, %v5729, %v5795
    %v5798 = vshrl.u32 %v2124, 16
    %v5800 = vrot.slane %v5798, 2
    %v5801 = vshll.u32 %v2124, 16
    %v5803 = vrot.slane %v5801, 3
    %v5804 = vor.u32 %v5800, %v5803
    %v5805 = vsel %vm5436, %v5738, %v5804
    %v5807 = vshrl.u32 %v2126, 16
    %v5809 = vrot.slane %v5807, 2
    %v5810 = vshll.u32 %v2126, 16
    %v5812 = vrot.slane %v5810, 3
    %v5813 = vor.u32 %v5809, %v5812
    %v5814 = vsel %vm5436, %v5747, %v5813
    %v5816 = vshrl.u32 %v2128, 16
    %v5818 = vrot.slane %v5816, 2
    %v5819 = vshll.u32 %v2128, 16
    %v5821 = vrot.slane %v5819, 3
    %v5822 = vor.u32 %v5818, %v5821
    %v5823 = vsel %vm5436, %v5756, %v5822
    %v5824 = vrot.slane %v946, 2
    %v5825 = vrot.slane %v926, 3
    %v5826 = vor.u32 %v5824, %v5825
    %v5827 = vsel %vm5436, %v5760, %v5826
    %v5828 = vrot.slane %v954, 2
    %v5829 = vrot.slane %v934, 3
    %v5830 = vor.u32 %v5828, %v5829
    %v5831 = vsel %vm5436, %v5764, %v5830
    %v5832 = vrot.slane %v962, 2
    %v5833 = vrot.slane %v942, 3
    %v5834 = vor.u32 %v5832, %v5833
    %v5835 = vsel %vm5436, %v5768, %v5834
    %v5837 = vshrl.u32 %v953, 16
    %v5839 = vrot.slane %v5837, 2
    %v5840 = vshll.u32 %v953, 16
    %v5842 = vrot.slane %v5840, 3
    %v5843 = vor.u32 %v5839, %v5842
    %v5844 = vsel %vm5436, %v5777, %v5843
    %v5846 = vshrl.u32 %v961, 16
    %v5848 = vrot.slane %v5846, 2
    %v5849 = vshll.u32 %v961, 16
    %v5851 = vrot.slane %v5849, 3
    %v5852 = vor.u32 %v5848, %v5851
    %v5853 = vsel %vm5436, %v5786, %v5852
    %v5855 = vshrl.u32 %v969, 16
    %v5857 = vrot.slane %v5855, 2
    %v5858 = vshll.u32 %v969, 16
    %v5860 = vrot.slane %v5858, 3
    %v5861 = vor.u32 %v5857, %v5860
    %v5862 = vsel %vm5436, %v5795, %v5861
    %v5864 = vshrl.u32 %v2130, 16
    %v5866 = vrot.slane %v5864, 2
    %v5867 = vshll.u32 %v2130, 16
    %v5869 = vrot.slane %v5867, 3
    %v5870 = vor.u32 %v5866, %v5869
    %v5871 = vsel %vm5436, %v5804, %v5870
    %v5873 = vshrl.u32 %v2132, 16
    %v5875 = vrot.slane %v5873, 2
    %v5876 = vshll.u32 %v2132, 16
    %v5878 = vrot.slane %v5876, 3
    %v5879 = vor.u32 %v5875, %v5878
    %v5880 = vsel %vm5436, %v5813, %v5879
    %v5882 = vshrl.u32 %v2134, 16
    %v5884 = vrot.slane %v5882, 2
    %v5885 = vshll.u32 %v2134, 16
    %v5887 = vrot.slane %v5885, 3
    %v5888 = vor.u32 %v5884, %v5887
    %v5889 = vsel %vm5436, %v5822, %v5888
    %v5890 = vrot.slane %v970, 2
    %v5891 = vrot.slane %v950, 3
    %v5892 = vor.u32 %v5890, %v5891
    %v5893 = vsel %vm5436, %v5826, %v5892
    %v5894 = vrot.slane %v978, 2
    %v5895 = vrot.slane %v958, 3
    %v5896 = vor.u32 %v5894, %v5895
    %v5897 = vsel %vm5436, %v5830, %v5896
    %v5898 = vrot.slane %v982, 2
    %v5899 = vrot.slane %v966, 3
    %v5900 = vor.u32 %v5898, %v5899
    %v5901 = vsel %vm5436, %v5834, %v5900
    %v5903 = vshrl.u32 %v977, 16
    %v5905 = vrot.slane %v5903, 2
    %v5906 = vshll.u32 %v977, 16
    %v5908 = vrot.slane %v5906, 3
    %v5909 = vor.u32 %v5905, %v5908
    %v5910 = vsel %vm5436, %v5843, %v5909
    %v5912 = vshrl.u32 %v981, 16
    %v5914 = vrot.slane %v5912, 2
    %v5915 = vshll.u32 %v981, 16
    %v5917 = vrot.slane %v5915, 3
    %v5918 = vor.u32 %v5914, %v5917
    %v5919 = vsel %vm5436, %v5852, %v5918
    %v5921 = vshrl.u32 %v985, 16
    %v5923 = vrot.slane %v5921, 2
    %v5924 = vshll.u32 %v985, 16
    %v5926 = vrot.slane %v5924, 3
    %v5927 = vor.u32 %v5923, %v5926
    %v5928 = vsel %vm5436, %v5861, %v5927
    %v5930 = vshrl.u32 %v2136, 16
    %v5932 = vrot.slane %v5930, 2
    %v5933 = vshll.u32 %v2136, 16
    %v5935 = vrot.slane %v5933, 3
    %v5936 = vor.u32 %v5932, %v5935
    %v5937 = vsel %vm5436, %v5870, %v5936
    %v5939 = vshrl.u32 %v2137, 16
    %v5941 = vrot.slane %v5939, 2
    %v5942 = vshll.u32 %v2137, 16
    %v5944 = vrot.slane %v5942, 3
    %v5945 = vor.u32 %v5941, %v5944
    %v5946 = vsel %vm5436, %v5879, %v5945
    %v5948 = vshrl.u32 %v2138, 16
    %v5950 = vrot.slane %v5948, 2
    %v5951 = vshll.u32 %v2138, 16
    %v5953 = vrot.slane %v5951, 3
    %v5954 = vor.u32 %v5950, %v5953
    %v5955 = vsel %vm5436, %v5888, %v5954
    %v5956 = vrot.slane %v2726, 2
    %v5957 = vrot.slane %v974, 3
    %v5958 = vor.u32 %v5956, %v5957
    %v5959 = vsel %vm5436, %v5892, %v5958
    %v5960 = vsel %vm5436, %v5896, %v5958
    %v5961 = vsel %vm5436, %v5900, %v5958
    %v5963 = vshrl.u32 %v5291, 16
    %v5965 = vrot.slane %v5963, 2
    %v5966 = vshll.u32 %v5291, 16
    %v5968 = vrot.slane %v5966, 3
    %v5969 = vor.u32 %v5965, %v5968
    %v5970 = vsel %vm5436, %v5909, %v5969
    %v5971 = vsel %vm5436, %v5918, %v5969
    %v5972 = vsel %vm5436, %v5927, %v5969
    %v5974 = vshrl.u32 %v2135, 16
    %v5976 = vrot.slane %v5974, 2
    %v5977 = vshll.u32 %v2135, 16
    %v5979 = vrot.slane %v5977, 3
    %v5980 = vor.u32 %v5976, %v5979
    %v5981 = vsel %vm5436, %v5936, %v5980
    %v5982 = vsel %vm5436, %v5945, %v5980
    %v5983 = vsel %vm5436, %v5954, %v5980
    %v6200 = vunpack.c.l.b16 %v5292
    %v6201 = vunpack.c.l.b16 %v5293
    %v6202 = vunpack.c.l.b16 %v5294
    %v6203 = vunpack.c.l.b16 %v5295
    %v6204 = vunpack.c.l.b16 %v5296
    %v6205 = vunpack.c.l.b16 %v5297
    %v6206 = vunpack.c.l.b16 %v5298
    %v6207 = vunpack.c.l.b16 %v5299
    %v6208 = vunpack.c.l.b16 %v5300
    %v6209 = vunpack.c.l.b16 %v5301
    %v6210 = vunpack.c.l.b16 %v5302
    %v6211 = vunpack.c.l.b16 %v5303
    %v6212 = vunpack.c.l.b16 %v5304
    %v6213 = vunpack.c.l.b16 %v5305
    %v6214 = vunpack.c.l.b16 %v5306
    %v6215 = vunpack.c.l.b16 %v5307
    %v6216 = vunpack.c.l.b16 %v5308
    %v6217 = vunpack.c.l.b16 %v5309
    %v6218 = vunpack.c.l.b16 %v5310
    %v6219 = vunpack.c.l.b16 %v5311
    %v6220 = vunpack.c.l.b16 %v5312
    %v6221 = vunpack.c.l.b16 %v5313
    %v6222 = vunpack.c.l.b16 %v5314
    %v6223 = vunpack.c.l.b16 %v5315
    %v6224 = vunpack.c.l.b16 %v5316
    %v6225 = vunpack.c.l.b16 %v5317
    %v6226 = vunpack.c.l.b16 %v5318
    %v6227 = vunpack.c.l.b16 %v5319
    %v6228 = vunpack.c.l.b16 %v5320
    %v6229 = vunpack.c.l.b16 %v5321
    %v6230 = vunpack.c.l.b16 %v5322
    %v6231 = vunpack.c.l.b16 %v5323
    %v6232 = vunpack.c.l.b16 %v5324
    %v6233 = vunpack.c.l.b16 %v5325
    %v6234 = vunpack.c.l.b16 %v5326
    %v6235 = vunpack.c.l.b16 %v5327
    %v6236 = vunpack.c.l.b16 %v5328
    %v6237 = vunpack.c.l.b16 %v5329
    %v6238 = vunpack.c.l.b16 %v5330
    %v6239 = vunpack.c.l.b16 %v5331
    %v6240 = vunpack.c.l.b16 %v5332
    %v6241 = vunpack.c.l.b16 %v5333
    %v6242 = vunpack.c.l.b16 %v5334
    %v6243 = vunpack.c.l.b16 %v5335
    %v6244 = vunpack.c.l.b16 %v5336
    %v6245 = vunpack.c.l.b16 %v5337
    %v6246 = vunpack.c.l.b16 %v5338
    %v6247 = vunpack.c.l.b16 %v5339
    %v6248 = vunpack.c.l.b16 %v5340
    %v6249 = vunpack.c.l.b16 %v5341
    %v6250 = vunpack.c.l.b16 %v5342
    %v6251 = vunpack.c.l.b16 %v5343
    %v6252 = vunpack.c.l.b16 %v5344
    %v6253 = vunpack.c.l.b16 %v5345
    %v6254 = vunpack.c.l.b16 %v5346
    %v6255 = vunpack.c.l.b16 %v5347
    %v6256 = vunpack.c.l.b16 %v5348
    %v6257 = vunpack.c.l.b16 %v5349
    %v6258 = vunpack.c.l.b16 %v5350
    %v6259 = vunpack.c.l.b16 %v5351
    %v6260 = vunpack.c.l.b16 %v5352
    %v6261 = vunpack.c.l.b16 %v5353
    %v6262 = vunpack.c.l.b16 %v5354
    %v6263 = vunpack.c.l.b16 %v5355
    %v6264 = vunpack.c.l.b16 %v5356
    %v6265 = vunpack.c.l.b16 %v5357
    %v6266 = vunpack.c.l.b16 %v5358
    %v6267 = vunpack.c.l.b16 %v5359
    %v6268 = vunpack.c.l.b16 %v5360
    %v6269 = vunpack.c.l.b16 %v5361
    %v6270 = vunpack.c.l.b16 %v5362
    %v6271 = vunpack.c.l.b16 %v5363
    %v6272 = vunpack.c.l.b16 %v5364
    %v6273 = vunpack.c.l.b16 %v5365
    %v6274 = vunpack.c.l.b16 %v5366
    %v6275 = vunpack.c.l.b16 %v5367
    %v6276 = vunpack.c.l.b16 %v5368
    %v6277 = vunpack.c.l.b16 %v5369
    %v6278 = vunpack.c.l.b16 %v5370
    %v6279 = vunpack.c.l.b16 %v5371
    %v6280 = vunpack.c.l.b16 %v5372
    %v6281 = vunpack.c.l.b16 %v5373
    %v6282 = vunpack.c.l.b16 %v5374
    %v6283 = vunpack.c.l.b16 %v5375
    %v6284 = vunpack.c.l.b16 %v5376
    %v6285 = vunpack.c.l.b16 %v5377
    %v6286 = vunpack.c.l.b16 %v5378
    %v6287 = vunpack.c.l.b16 %v5379
    %v6288 = vunpack.c.l.b16 %v5380
    %v6289 = vunpack.c.l.b16 %v5381
    %v6290 = vunpack.c.l.b16 %v5382
    %v6291 = vunpack.c.l.b16 %v5383
    %v6292 = vunpack.c.l.b16 %v5384
    %v6293 = vunpack.c.l.b16 %v5385
    %v6294 = vunpack.c.l.b16 %v5386
    %v6295 = vunpack.c.l.b16 %v5387
    %v6296 = vunpack.c.l.b16 %v5388
    %v6297 = vunpack.c.l.b16 %v5389
    %v6298 = vunpack.c.l.b16 %v5390
    %v6299 = vunpack.c.l.b16 %v5391
    %v6300 = vunpack.c.l.b16 %v5392
    %v6301 = vunpack.c.l.b16 %v5393
    %v6302 = vunpack.c.l.b16 %v5394
    %v6303 = vunpack.c.l.b16 %v5395
    %v6304 = vunpack.c.l.b16 %v5396
    %v6305 = vunpack.c.l.b16 %v5397
    %v6306 = vunpack.c.l.b16 %v5398
    %v6307 = vunpack.c.l.b16 %v5399
    %v6308 = vunpack.c.l.b16 %v5400
    %v6309 = vunpack.c.l.b16 %v5401
    %v6310 = vunpack.c.l.b16 %v5402
    %v6311 = vunpack.c.l.b16 %v5403
    %v6312 = vunpack.c.l.b16 %v5404
    %v6313 = vunpack.c.l.b16 %v5405
    %v6314 = vunpack.c.l.b16 %v5406
    %v6315 = vunpack.c.l.b16 %v5407
    %v6316 = vunpack.c.l.b16 %v5408
    %v6317 = vunpack.c.l.b16 %v5409
    %v6318 = vunpack.c.l.b16 %v5410
    %v6319 = vunpack.c.l.b16 %v5411
    %v6320 = vunpack.c.l.b16 %v5412
    %v6321 = vunpack.c.l.b16 %v5413
    %v6322 = vunpack.c.l.b16 %v5414
    %v6323 = vunpack.c.l.b16 %v5415
    %v6324 = vunpack.c.l.b16 %v5416
    %v6325 = vunpack.c.l.b16 %v5417
    %v6326 = vunpack.c.l.b16 %v5418
    %v6327 = vunpack.c.l.b16 %v5419
    %v6328 = vunpack.c.l.b16 %v5420
    %v6329 = vunpack.c.l.b16 %v5421
    %v6330 = vunpack.c.l.b16 %v5422
    %v6331 = vunpack.c.l.b16 %v5423
    %v6332 = vunpack.c.l.b16 %v5424
    %v6333 = vunpack.c.l.b16 %v5425
    %v6334 = vunpack.c.l.b16 %v5426
    %v6335 = vunpack.c.l.b16 %v5427
    %v6336 = vunpack.c.l.b16 %v5428
    %v6337 = vunpack.c.l.b16 %v5429
    %v6338 = vunpack.c.l.b16 %v5430
    %v6339 = vunpack.c.l.b16 %v5431
    %v6340 = vunpack.c.l.b16 %v5432
    %v6341 = vunpack.c.l.b16 %v5433
    %v6342 = vunpack.c.l.b16 %v5434
    %v6343 = vunpack.c.l.b16 %v5435
    %v6344 = vpack.c.b16 %v6201, %v6200
    %v6345 = vpack.c.b16 %v6203, %v6202
    %v6346 = vpack.c.b16 %v6205, %v6204
    %v6347 = vpack.c.b16 %v6207, %v6206
    %v6348 = vpack.c.b16 %v6209, %v6208
    %v6349 = vpack.c.b16 %v6211, %v6210
    %v6350 = vpack.c.b16 %v6213, %v6212
    %v6351 = vpack.c.b16 %v6215, %v6214
    %v6352 = vpack.c.b16 %v6217, %v6216
    %v6353 = vpack.c.b16 %v6219, %v6218
    %v6354 = vpack.c.b16 %v6221, %v6220
    %v6355 = vpack.c.b16 %v6223, %v6222
    %v6356 = vpack.c.b16 %v6225, %v6224
    %v6357 = vpack.c.b16 %v6227, %v6226
    %v6358 = vpack.c.b16 %v6229, %v6228
    %v6359 = vpack.c.b16 %v6231, %v6230
    %v6360 = vpack.c.b16 %v6233, %v6232
    %v6361 = vpack.c.b16 %v6235, %v6234
    %v6362 = vpack.c.b16 %v6237, %v6236
    %v6363 = vpack.c.b16 %v6239, %v6238
    %v6364 = vpack.c.b16 %v6241, %v6240
    %v6365 = vpack.c.b16 %v6243, %v6242
    %v6366 = vpack.c.b16 %v6245, %v6244
    %v6367 = vpack.c.b16 %v6247, %v6246
    %v6368 = vpack.c.b16 %v6249, %v6248
    %v6369 = vpack.c.b16 %v6251, %v6250
    %v6370 = vpack.c.b16 %v6253, %v6252
    %v6371 = vpack.c.b16 %v6255, %v6254
    %v6372 = vpack.c.b16 %v6257, %v6256
    %v6373 = vpack.c.b16 %v6259, %v6258
    %v6374 = vpack.c.b16 %v6261, %v6260
    %v6375 = vpack.c.b16 %v6263, %v6262
    %v6376 = vpack.c.b16 %v6265, %v6264
    %v6377 = vpack.c.b16 %v6267, %v6266
    %v6378 = vpack.c.b16 %v6269, %v6268
    %v6379 = vpack.c.b16 %v6271, %v6270
    %v6380 = vpack.c.b16 %v6273, %v6272
    %v6381 = vpack.c.b16 %v6275, %v6274
    %v6382 = vpack.c.b16 %v6277, %v6276
    %v6383 = vpack.c.b16 %v6279, %v6278
    %v6384 = vpack.c.b16 %v6281, %v6280
    %v6385 = vpack.c.b16 %v6283, %v6282
    %v6386 = vpack.c.b16 %v6285, %v6284
    %v6387 = vpack.c.b16 %v6287, %v6286
    %v6388 = vpack.c.b16 %v6289, %v6288
    %v6389 = vpack.c.b16 %v6291, %v6290
    %v6390 = vpack.c.b16 %v6293, %v6292
    %v6391 = vpack.c.b16 %v6295, %v6294
    %v6392 = vpack.c.b16 %v6297, %v6296
    %v6393 = vpack.c.b16 %v6299, %v6298
    %v6394 = vpack.c.b16 %v6301, %v6300
    %v6395 = vpack.c.b16 %v6303, %v6302
    %v6396 = vpack.c.b16 %v6305, %v6304
    %v6397 = vpack.c.b16 %v6307, %v6306
    %v6398 = vpack.c.b16 %v6309, %v6308
    %v6399 = vpack.c.b16 %v6311, %v6310
    %v6400 = vpack.c.b16 %v6313, %v6312
    %v6401 = vpack.c.b16 %v6315, %v6314
    %v6402 = vpack.c.b16 %v6317, %v6316
    %v6403 = vpack.c.b16 %v6319, %v6318
    %v6404 = vpack.c.b16 %v6321, %v6320
    %v6405 = vpack.c.b16 %v6323, %v6322
    %v6406 = vpack.c.b16 %v6325, %v6324
    %v6407 = vpack.c.b16 %v6327, %v6326
    %v6408 = vpack.c.b16 %v6329, %v6328
    %v6409 = vpack.c.b16 %v6331, %v6330
    %v6410 = vpack.c.b16 %v6333, %v6332
    %v6411 = vpack.c.b16 %v6335, %v6334
    %v6412 = vpack.c.b16 %v6337, %v6336
    %v6413 = vpack.c.b16 %v6339, %v6338
    %v6414 = vpack.c.b16 %v6341, %v6340
    %v6415 = vpack.c.b16 %v6343, %v6342
    %6488 = vmatprep.subr.bf16.mxu0 0
    %6489 = vmatpush1.bf16.msra.mxu0 %v6344
    %6490 = vmatprep.subr.bf16.mxu0 0
    %6491 = vmatpush1.bf16.msra.mxu0 %v6345
    %6492 = vmatprep.subr.bf16.mxu0 0
    %6493 = vmatpush1.bf16.msra.mxu0 %v6346
    %6494 = vmatprep.subr.bf16.mxu0 0
    %6495 = vmatpush1.bf16.msra.mxu0 %v6347
    %6496 = vmatprep.subr.bf16.mxu0 0
    %6497 = vmatpush1.bf16.msra.mxu0 %v6348
    %6498 = vmatprep.subr.bf16.mxu0 0
    %6499 = vmatpush1.bf16.msra.mxu0 %v6349
    %6500 = vmatprep.subr.bf16.mxu0 0
    %6501 = vmatpush1.bf16.msra.mxu0 %v6350
    %6502 = vmatprep.subr.bf16.mxu0 0
    %6503 = vmatpush1.bf16.msra.mxu0 %v6351
    %6504 = vmatprep.subr.bf16.mxu0 0
    %6505 = vmatpush1.bf16.msra.mxu0 %v6352
    %6506 = vmatprep.subr.bf16.mxu0 0
    %6507 = vmatpush1.bf16.msra.mxu0 %v6353
    %6508 = vmatprep.subr.bf16.mxu0 0
    %6509 = vmatpush1.bf16.msra.mxu0 %v6354
    %6510 = vmatprep.subr.bf16.mxu0 0
    %6511 = vmatpush1.bf16.msra.mxu0 %v6355
    %6512 = vmatprep.subr.bf16.mxu0 0
    %6513 = vmatpush1.bf16.msra.mxu0 %v6356
    %6514 = vmatprep.subr.bf16.mxu0 0
    %6515 = vmatpush1.bf16.msra.mxu0 %v6357
    %6516 = vmatprep.subr.bf16.mxu0 0
    %6517 = vmatpush1.bf16.msra.mxu0 %v6358
    %6518 = vmatprep.subr.bf16.mxu0 0
    %6519 = vmatpush1.bf16.msra.mxu0 %v6359
    %6520 = vmatprep.mubr.bf16.mxu0 %v5450
    %6521 = vmatmul.mubr.bf16.gmra.mrb[0].mxu0 %v5443
    %v6522 = vpop.f32.mrb[0].mxu0
    %v6523 = vadd.f32 0.0, %v6522
    %v6524 = vpop.f32.mrb[0].mxu0
    %v6525 = vpop.f32.mrb[0].mxu0
    %v6526 = vadd.f32 0.0, %v6525
    %v6527 = vpop.f32.mrb[0].mxu0
    %6528 = vmatprep.mubr.bf16.mxu0 %v5567
    %6529 = vmatmul.mubr.bf16.gmra.mrb[0].mxu0 %v5563
    %v6530 = vpop.f32.mrb[0].mxu0
    %v6531 = vadd.f32 0.0, %v6530
    %v6532 = vpop.f32.mrb[0].mxu0
    %v6533 = vpop.f32.mrb[0].mxu0
    %v6534 = vadd.f32 0.0, %v6533
    %v6535 = vpop.f32.mrb[0].mxu0
    %6536 = vmatprep.mubr.bf16.mxu0 %v5633
    %6537 = vmatmul.mubr.bf16.gmra.mrb[0].mxu0 %v5629
    %v6538 = vpop.f32.mrb[0].mxu0
    %v6539 = vadd.f32 0.0, %v6538
    %v6540 = vpop.f32.mrb[0].mxu0
    %v6541 = vpop.f32.mrb[0].mxu0
    %v6542 = vadd.f32 0.0, %v6541
    %v6543 = vpop.f32.mrb[0].mxu0
    %6544 = vmatprep.mubr.bf16.mxu0 %v5699
    %6545 = vmatmul.mubr.bf16.gmra.mrb[0].mxu0 %v5695
    %v6546 = vpop.f32.mrb[0].mxu0
    %v6547 = vadd.f32 0.0, %v6546
    %v6548 = vpop.f32.mrb[0].mxu0
    %v6549 = vpop.f32.mrb[0].mxu0
    %v6550 = vadd.f32 0.0, %v6549
    %v6551 = vpop.f32.mrb[0].mxu0
    %6552 = vmatprep.mubr.bf16.mxu0 %v5765
    %6553 = vmatmul.mubr.bf16.gmra.mrb[0].mxu0 %v5761
    %v6554 = vpop.f32.mrb[0].mxu0
    %v6555 = vadd.f32 0.0, %v6554
    %v6556 = vpop.f32.mrb[0].mxu0
    %v6557 = vpop.f32.mrb[0].mxu0
    %v6558 = vadd.f32 0.0, %v6557
    %v6559 = vpop.f32.mrb[0].mxu0
    %6560 = vmatprep.mubr.bf16.mxu0 %v5831
    %6561 = vmatmul.mubr.bf16.gmra.mrb[0].mxu0 %v5827
    %v6562 = vpop.f32.mrb[0].mxu0
    %v6563 = vadd.f32 0.0, %v6562
    %v6564 = vpop.f32.mrb[0].mxu0
    %v6565 = vpop.f32.mrb[0].mxu0
    %v6566 = vadd.f32 0.0, %v6565
    %v6567 = vpop.f32.mrb[0].mxu0
    %6568 = vmatprep.mubr.bf16.mxu0 %v5897
    %6569 = vmatmul.mubr.bf16.gmra.mrb[0].mxu0 %v5893
    %v6570 = vpop.f32.mrb[0].mxu0
    %v6571 = vadd.f32 0.0, %v6570
    %v6572 = vpop.f32.mrb[0].mxu0
    %v6573 = vpop.f32.mrb[0].mxu0
    %v6574 = vadd.f32 0.0, %v6573
    %v6575 = vpop.f32.mrb[0].mxu0
    %6576 = vmatprep.mubr.bf16.mxu0 %v5960
    %6577 = vmatmul.mubr.bf16.gmra.mrb[0].mxu0 %v5959
    %v6578 = vpop.f32.mrb[0].mxu0
    %v6579 = vadd.f32 0.0, %v6578
    %v6580 = vpop.f32.mrb[0].mxu0
    %v6581 = vpop.f32.mrb[0].mxu0
    %v6582 = vadd.f32 0.0, %v6581
    %v6583 = vpop.f32.mrb[0].mxu0
    %6584 = vdwg.mxu0
    %6585 = vmatprep.subr.bf16.mxu0 0
    %6586 = vmatpush1.bf16.msra.mxu0 %v6360
    %6587 = vmatprep.subr.bf16.mxu0 0
    %6588 = vmatpush1.bf16.msra.mxu0 %v6361
    %6589 = vmatprep.subr.bf16.mxu0 0
    %6590 = vmatpush1.bf16.msra.mxu0 %v6362
    %6591 = vmatprep.subr.bf16.mxu0 0
    %6592 = vmatpush1.bf16.msra.mxu0 %v6363
    %6593 = vmatprep.subr.bf16.mxu0 0
    %6594 = vmatpush1.bf16.msra.mxu0 %v6364
    %6595 = vmatprep.subr.bf16.mxu0 0
    %6596 = vmatpush1.bf16.msra.mxu0 %v6365
    %6597 = vmatprep.subr.bf16.mxu0 0
    %6598 = vmatpush1.bf16.msra.mxu0 %v6366
    %6599 = vmatprep.subr.bf16.mxu0 0
    %6600 = vmatpush1.bf16.msra.mxu0 %v6367
    %6601 = vmatprep.subr.bf16.mxu0 0
    %6602 = vmatpush1.bf16.msra.mxu0 %v6368
    %6603 = vmatprep.subr.bf16.mxu0 0
    %6604 = vmatpush1.bf16.msra.mxu0 %v6369
    %6605 = vmatprep.subr.bf16.mxu0 0
    %6606 = vmatpush1.bf16.msra.mxu0 %v6370
    %6607 = vmatprep.subr.bf16.mxu0 0
    %6608 = vmatpush1.bf16.msra.mxu0 %v6371
    %6609 = vmatprep.subr.bf16.mxu0 0
    %6610 = vmatpush1.bf16.msra.mxu0 %v6372
    %6611 = vmatprep.subr.bf16.mxu0 0
    %6612 = vmatpush1.bf16.msra.mxu0 %v6373
    %6613 = vmatprep.subr.bf16.mxu0 0
    %6614 = vmatpush1.bf16.msra.mxu0 %v6374
    %6615 = vmatprep.subr.bf16.mxu0 0
    %6616 = vmatpush1.bf16.msra.mxu0 %v6375
    %6617 = vmatprep.mubr.bf16.mxu0 %v5474
    %6618 = vmatmul.mubr.bf16.gmra.mrb[0].mxu0 %v5457
    %v6619 = vpop.f32.mrb[0].mxu0
    %v6620 = vadd.f32 %v6523, %v6619
    %v6621 = vpop.f32.mrb[0].mxu0
    %v6622 = vpop.f32.mrb[0].mxu0
    %v6623 = vadd.f32 %v6526, %v6622
    %v6624 = vpop.f32.mrb[0].mxu0
    %6625 = vmatprep.mubr.bf16.mxu0 %v5580
    %6626 = vmatmul.mubr.bf16.gmra.mrb[0].mxu0 %v5571
    %v6627 = vpop.f32.mrb[0].mxu0
    %v6628 = vadd.f32 %v6531, %v6627
    %v6629 = vpop.f32.mrb[0].mxu0
    %v6630 = vpop.f32.mrb[0].mxu0
    %v6631 = vadd.f32 %v6534, %v6630
    %v6632 = vpop.f32.mrb[0].mxu0
    %6633 = vmatprep.mubr.bf16.mxu0 %v5646
    %6634 = vmatmul.mubr.bf16.gmra.mrb[0].mxu0 %v5637
    %v6635 = vpop.f32.mrb[0].mxu0
    %v6636 = vadd.f32 %v6539, %v6635
    %v6637 = vpop.f32.mrb[0].mxu0
    %v6638 = vpop.f32.mrb[0].mxu0
    %v6639 = vadd.f32 %v6542, %v6638
    %v6640 = vpop.f32.mrb[0].mxu0
    %6641 = vmatprep.mubr.bf16.mxu0 %v5712
    %6642 = vmatmul.mubr.bf16.gmra.mrb[0].mxu0 %v5703
    %v6643 = vpop.f32.mrb[0].mxu0
    %v6644 = vadd.f32 %v6547, %v6643
    %v6645 = vpop.f32.mrb[0].mxu0
    %v6646 = vpop.f32.mrb[0].mxu0
    %v6647 = vadd.f32 %v6550, %v6646
    %v6648 = vpop.f32.mrb[0].mxu0
    %6649 = vmatprep.mubr.bf16.mxu0 %v5778
    %6650 = vmatmul.mubr.bf16.gmra.mrb[0].mxu0 %v5769
    %v6651 = vpop.f32.mrb[0].mxu0
    %v6652 = vadd.f32 %v6555, %v6651
    %v6653 = vpop.f32.mrb[0].mxu0
    %v6654 = vpop.f32.mrb[0].mxu0
    %v6655 = vadd.f32 %v6558, %v6654
    %v6656 = vpop.f32.mrb[0].mxu0
    %6657 = vmatprep.mubr.bf16.mxu0 %v5844
    %6658 = vmatmul.mubr.bf16.gmra.mrb[0].mxu0 %v5835
    %v6659 = vpop.f32.mrb[0].mxu0
    %v6660 = vadd.f32 %v6563, %v6659
    %v6661 = vpop.f32.mrb[0].mxu0
    %v6662 = vpop.f32.mrb[0].mxu0
    %v6663 = vadd.f32 %v6566, %v6662
    %v6664 = vpop.f32.mrb[0].mxu0
    %6665 = vmatprep.mubr.bf16.mxu0 %v5910
    %6666 = vmatmul.mubr.bf16.gmra.mrb[0].mxu0 %v5901
    %v6667 = vpop.f32.mrb[0].mxu0
    %v6668 = vadd.f32 %v6571, %v6667
    %v6669 = vpop.f32.mrb[0].mxu0
    %v6670 = vpop.f32.mrb[0].mxu0
    %v6671 = vadd.f32 %v6574, %v6670
    %v6672 = vpop.f32.mrb[0].mxu0
    %6673 = vmatprep.mubr.bf16.mxu0 %v5970
    %6674 = vmatmul.mubr.bf16.gmra.mrb[0].mxu0 %v5961
    %v6675 = vpop.f32.mrb[0].mxu0
    %v6676 = vadd.f32 %v6579, %v6675
    %v6677 = vpop.f32.mrb[0].mxu0
    %v6678 = vpop.f32.mrb[0].mxu0
    %v6679 = vadd.f32 %v6582, %v6678
    %v6680 = vpop.f32.mrb[0].mxu0
    %6681 = vdwg.mxu0
    %6682 = vmatprep.subr.bf16.mxu0 0
    %6683 = vmatpush1.bf16.msra.mxu0 %v6376
    %6684 = vmatprep.subr.bf16.mxu0 0
    %6685 = vmatpush1.bf16.msra.mxu0 %v6377
    %6686 = vmatprep.subr.bf16.mxu0 0
    %6687 = vmatpush1.bf16.msra.mxu0 %v6378
    %6688 = vmatprep.subr.bf16.mxu0 0
    %6689 = vmatpush1.bf16.msra.mxu0 %v6379
    %6690 = vmatprep.subr.bf16.mxu0 0
    %6691 = vmatpush1.bf16.msra.mxu0 %v6380
    %6692 = vmatprep.subr.bf16.mxu0 0
    %6693 = vmatpush1.bf16.msra.mxu0 %v6381
    %6694 = vmatprep.subr.bf16.mxu0 0
    %6695 = vmatpush1.bf16.msra.mxu0 %v6382
    %6696 = vmatprep.subr.bf16.mxu0 0
    %6697 = vmatpush1.bf16.msra.mxu0 %v6383
    %6698 = vmatprep.subr.bf16.mxu0 0
    %6699 = vmatpush1.bf16.msra.mxu0 %v6384
    %6700 = vmatprep.subr.bf16.mxu0 0
    %6701 = vmatpush1.bf16.msra.mxu0 %v6385
    %6702 = vmatprep.subr.bf16.mxu0 0
    %6703 = vmatpush1.bf16.msra.mxu0 %v6386
    %6704 = vmatprep.subr.bf16.mxu0 0
    %6705 = vmatpush1.bf16.msra.mxu0 %v6387
    %6706 = vmatprep.subr.bf16.mxu0 0
    %6707 = vmatpush1.bf16.msra.mxu0 %v6388
    %6708 = vmatprep.subr.bf16.mxu0 0
    %6709 = vmatpush1.bf16.msra.mxu0 %v6389
    %6710 = vmatprep.subr.bf16.mxu0 0
    %6711 = vmatpush1.bf16.msra.mxu0 %v6390
    %6712 = vmatprep.subr.bf16.mxu0 0
    %6713 = vmatpush1.bf16.msra.mxu0 %v6391
    %6714 = vmatprep.mubr.bf16.mxu0 %v5508
    %6715 = vmatmul.mubr.bf16.gmra.mrb[0].mxu0 %v5491
    %v6716 = vpop.f32.mrb[0].mxu0
    %v6717 = vadd.f32 %v6620, %v6716
    %v6718 = vpop.f32.mrb[0].mxu0
    %v6719 = vpop.f32.mrb[0].mxu0
    %v6720 = vadd.f32 %v6623, %v6719
    %v6721 = vpop.f32.mrb[0].mxu0
    %6722 = vmatprep.mubr.bf16.mxu0 %v5598
    %6723 = vmatmul.mubr.bf16.gmra.mrb[0].mxu0 %v5589
    %v6724 = vpop.f32.mrb[0].mxu0
    %v6725 = vadd.f32 %v6628, %v6724
    %v6726 = vpop.f32.mrb[0].mxu0
    %v6727 = vpop.f32.mrb[0].mxu0
    %v6728 = vadd.f32 %v6631, %v6727
    %v6729 = vpop.f32.mrb[0].mxu0
    %6730 = vmatprep.mubr.bf16.mxu0 %v5664
    %6731 = vmatmul.mubr.bf16.gmra.mrb[0].mxu0 %v5655
    %v6732 = vpop.f32.mrb[0].mxu0
    %v6733 = vadd.f32 %v6636, %v6732
    %v6734 = vpop.f32.mrb[0].mxu0
    %v6735 = vpop.f32.mrb[0].mxu0
    %v6736 = vadd.f32 %v6639, %v6735
    %v6737 = vpop.f32.mrb[0].mxu0
    %6738 = vmatprep.mubr.bf16.mxu0 %v5730
    %6739 = vmatmul.mubr.bf16.gmra.mrb[0].mxu0 %v5721
    %v6740 = vpop.f32.mrb[0].mxu0
    %v6741 = vadd.f32 %v6644, %v6740
    %v6742 = vpop.f32.mrb[0].mxu0
    %v6743 = vpop.f32.mrb[0].mxu0
    %v6744 = vadd.f32 %v6647, %v6743
    %v6745 = vpop.f32.mrb[0].mxu0
    %6746 = vmatprep.mubr.bf16.mxu0 %v5796
    %6747 = vmatmul.mubr.bf16.gmra.mrb[0].mxu0 %v5787
    %v6748 = vpop.f32.mrb[0].mxu0
    %v6749 = vadd.f32 %v6652, %v6748
    %v6750 = vpop.f32.mrb[0].mxu0
    %v6751 = vpop.f32.mrb[0].mxu0
    %v6752 = vadd.f32 %v6655, %v6751
    %v6753 = vpop.f32.mrb[0].mxu0
    %6754 = vmatprep.mubr.bf16.mxu0 %v5862
    %6755 = vmatmul.mubr.bf16.gmra.mrb[0].mxu0 %v5853
    %v6756 = vpop.f32.mrb[0].mxu0
    %v6757 = vadd.f32 %v6660, %v6756
    %v6758 = vpop.f32.mrb[0].mxu0
    %v6759 = vpop.f32.mrb[0].mxu0
    %v6760 = vadd.f32 %v6663, %v6759
    %v6761 = vpop.f32.mrb[0].mxu0
    %6762 = vmatprep.mubr.bf16.mxu0 %v5928
    %6763 = vmatmul.mubr.bf16.gmra.mrb[0].mxu0 %v5919
    %v6764 = vpop.f32.mrb[0].mxu0
    %v6765 = vadd.f32 %v6668, %v6764
    %v6766 = vpop.f32.mrb[0].mxu0
    %v6767 = vpop.f32.mrb[0].mxu0
    %v6768 = vadd.f32 %v6671, %v6767
    %v6769 = vpop.f32.mrb[0].mxu0
    %6770 = vmatprep.mubr.bf16.mxu0 %v5972
    %6771 = vmatmul.mubr.bf16.gmra.mrb[0].mxu0 %v5971
    %v6772 = vpop.f32.mrb[0].mxu0
    %v6773 = vadd.f32 %v6676, %v6772
    %v6774 = vpop.f32.mrb[0].mxu0
    %v6775 = vpop.f32.mrb[0].mxu0
    %v6776 = vadd.f32 %v6679, %v6775
    %v6777 = vpop.f32.mrb[0].mxu0
    %6778 = vdwg.mxu0
    %6779 = vmatprep.subr.bf16.mxu0 0
    %6780 = vmatpush1.bf16.msra.mxu0 %v6392
    %6781 = vmatprep.subr.bf16.mxu0 0
    %6782 = vmatpush1.bf16.msra.mxu0 %v6393
    %6783 = vmatprep.subr.bf16.mxu0 0
    %6784 = vmatpush1.bf16.msra.mxu0 %v6394
    %6785 = vmatprep.subr.bf16.mxu0 0
    %6786 = vmatpush1.bf16.msra.mxu0 %v6395
    %6787 = vmatprep.subr.bf16.mxu0 0
    %6788 = vmatpush1.bf16.msra.mxu0 %v6396
    %6789 = vmatprep.subr.bf16.mxu0 0
    %6790 = vmatpush1.bf16.msra.mxu0 %v6397
    %6791 = vmatprep.subr.bf16.mxu0 0
    %6792 = vmatpush1.bf16.msra.mxu0 %v6398
    %6793 = vmatprep.subr.bf16.mxu0 0
    %6794 = vmatpush1.bf16.msra.mxu0 %v6399
    %6795 = vmatprep.subr.bf16.mxu0 0
    %6796 = vmatpush1.bf16.msra.mxu0 %v6400
    %6797 = vmatprep.subr.bf16.mxu0 0
    %6798 = vmatpush1.bf16.msra.mxu0 %v6401
    %6799 = vmatprep.subr.bf16.mxu0 0
    %6800 = vmatpush1.bf16.msra.mxu0 %v6402
    %6801 = vmatprep.subr.bf16.mxu0 0
    %6802 = vmatpush1.bf16.msra.mxu0 %v6403
    %6803 = vmatprep.subr.bf16.mxu0 0
    %6804 = vmatpush1.bf16.msra.mxu0 %v6404
    %6805 = vmatprep.subr.bf16.mxu0 0
    %6806 = vmatpush1.bf16.msra.mxu0 %v6405
    %6807 = vmatprep.subr.bf16.mxu0 0
    %6808 = vmatpush1.bf16.msra.mxu0 %v6406
    %6809 = vmatprep.subr.bf16.mxu0 0
    %6810 = vmatpush1.bf16.msra.mxu0 %v6407
    %6811 = vmatprep.mubr.bf16.mxu0 %v5542
    %6812 = vmatmul.mubr.bf16.gmra.mrb[0].mxu0 %v5525
    %v6813 = vpop.f32.mrb[0].mxu0
    %v6814 = vadd.f32 %v6717, %v6813
    %v6815 = vpop.f32.mrb[0].mxu0
    %v6816 = vpop.f32.mrb[0].mxu0
    %v6817 = vadd.f32 %v6720, %v6816
    %v6818 = vpop.f32.mrb[0].mxu0
    %6819 = vmatprep.mubr.bf16.mxu0 %v5616
    %6820 = vmatmul.mubr.bf16.gmra.mrb[0].mxu0 %v5607
    %v6821 = vpop.f32.mrb[0].mxu0
    %v6822 = vadd.f32 %v6725, %v6821
    %v6823 = vpop.f32.mrb[0].mxu0
    %v6824 = vpop.f32.mrb[0].mxu0
    %v6825 = vadd.f32 %v6728, %v6824
    %v6826 = vpop.f32.mrb[0].mxu0
    %6827 = vmatprep.mubr.bf16.mxu0 %v5682
    %6828 = vmatmul.mubr.bf16.gmra.mrb[0].mxu0 %v5673
    %v6829 = vpop.f32.mrb[0].mxu0
    %v6830 = vadd.f32 %v6733, %v6829
    %v6831 = vpop.f32.mrb[0].mxu0
    %v6832 = vpop.f32.mrb[0].mxu0
    %v6833 = vadd.f32 %v6736, %v6832
    %v6834 = vpop.f32.mrb[0].mxu0
    %6835 = vmatprep.mubr.bf16.mxu0 %v5748
    %6836 = vmatmul.mubr.bf16.gmra.mrb[0].mxu0 %v5739
    %v6837 = vpop.f32.mrb[0].mxu0
    %v6838 = vadd.f32 %v6741, %v6837
    %v6839 = vpop.f32.mrb[0].mxu0
    %v6840 = vpop.f32.mrb[0].mxu0
    %v6841 = vadd.f32 %v6744, %v6840
    %v6842 = vpop.f32.mrb[0].mxu0
    %6843 = vmatprep.mubr.bf16.mxu0 %v5814
    %6844 = vmatmul.mubr.bf16.gmra.mrb[0].mxu0 %v5805
    %v6845 = vpop.f32.mrb[0].mxu0
    %v6846 = vadd.f32 %v6749, %v6845
    %v6847 = vpop.f32.mrb[0].mxu0
    %v6848 = vpop.f32.mrb[0].mxu0
    %v6849 = vadd.f32 %v6752, %v6848
    %v6850 = vpop.f32.mrb[0].mxu0
    %6851 = vmatprep.mubr.bf16.mxu0 %v5880
    %6852 = vmatmul.mubr.bf16.gmra.mrb[0].mxu0 %v5871
    %v6853 = vpop.f32.mrb[0].mxu0
    %v6854 = vadd.f32 %v6757, %v6853
    %v6855 = vpop.f32.mrb[0].mxu0
    %v6856 = vpop.f32.mrb[0].mxu0
    %v6857 = vadd.f32 %v6760, %v6856
    %v6858 = vpop.f32.mrb[0].mxu0
    %6859 = vmatprep.mubr.bf16.mxu0 %v5946
    %6860 = vmatmul.mubr.bf16.gmra.mrb[0].mxu0 %v5937
    %v6861 = vpop.f32.mrb[0].mxu0
    %v6862 = vadd.f32 %v6765, %v6861
    %v6863 = vpop.f32.mrb[0].mxu0
    %v6864 = vpop.f32.mrb[0].mxu0
    %v6865 = vadd.f32 %v6768, %v6864
    %v6866 = vpop.f32.mrb[0].mxu0
    %6867 = vmatprep.mubr.bf16.mxu0 %v5982
    %6868 = vmatmul.mubr.bf16.gmra.mrb[0].mxu0 %v5981
    %v6869 = vpop.f32.mrb[0].mxu0
    %v6870 = vadd.f32 %v6773, %v6869
    %v6871 = vpop.f32.mrb[0].mxu0
    %v6872 = vpop.f32.mrb[0].mxu0
    %v6873 = vadd.f32 %v6776, %v6872
    %v6874 = vpop.f32.mrb[0].mxu0
    %6875 = vdwg.mxu0
    %6876 = vmatprep.subr.bf16.mxu0 0
    %6877 = vmatpush1.bf16.msra.mxu0 %v6408
    %6878 = vmatprep.subr.bf16.mxu0 0
    %6879 = vmatpush1.bf16.msra.mxu0 %v6409
    %6880 = vmatprep.subr.bf16.mxu0 0
    %6881 = vmatpush1.bf16.msra.mxu0 %v6410
    %6882 = vmatprep.subr.bf16.mxu0 0
    %6883 = vmatpush1.bf16.msra.mxu0 %v6411
    %6884 = vmatprep.subr.bf16.mxu0 0
    %6885 = vmatpush1.bf16.msra.mxu0 %v6412
    %6886 = vmatprep.subr.bf16.mxu0 0
    %6887 = vmatpush1.bf16.msra.mxu0 %v6413
    %6888 = vmatprep.subr.bf16.mxu0 0
    %6889 = vmatpush1.bf16.msra.mxu0 %v6414
    %6890 = vmatprep.subr.bf16.mxu0 0
    %6891 = vmatpush1.bf16.msra.mxu0 %v6415
    %6892 = vmatprep.subr.bf16.mxu0 0
    %6893 = vmatpush1.bf16.msra.mxu0 0
    %6894 = vmatprep.subr.bf16.mxu0 0
    %6895 = vmatpush1.bf16.msra.mxu0 0
    %6896 = vmatprep.subr.bf16.mxu0 0
    %6897 = vmatpush1.bf16.msra.mxu0 0
    %6898 = vmatprep.subr.bf16.mxu0 0
    %6899 = vmatpush1.bf16.msra.mxu0 0
    %6900 = vmatprep.subr.bf16.mxu0 0
    %6901 = vmatpush1.bf16.msra.mxu0 0
    %6902 = vmatprep.subr.bf16.mxu0 0
    %6903 = vmatpush1.bf16.msra.mxu0 0
    %6904 = vmatprep.subr.bf16.mxu0 0
    %6905 = vmatpush1.bf16.msra.mxu0 0
    %6906 = vmatprep.subr.bf16.mxu0 0
    %6907 = vmatpush1.bf16.msra.mxu0 0
    %6908 = vmatprep.mubr.bf16.mxu0 0
    %6909 = vmatmul.mubr.bf16.gmra.mrb[0].mxu0 %v5559
    %v6910 = vpop.f32.mrb[0].mxu0
    %v6911 = vadd.f32 %v6814, %v6910
    %v6912 = vpop.f32.mrb[0].mxu0
    %v6913 = vpop.f32.mrb[0].mxu0
    %v6914 = vadd.f32 %v6817, %v6913
    %v6915 = vpop.f32.mrb[0].mxu0
    %6916 = vmatprep.mubr.bf16.mxu0 0
    %6917 = vmatmul.mubr.bf16.gmra.mrb[0].mxu0 %v5625
    %v6918 = vpop.f32.mrb[0].mxu0
    %v6919 = vadd.f32 %v6822, %v6918
    %v6920 = vpop.f32.mrb[0].mxu0
    %v6921 = vpop.f32.mrb[0].mxu0
    %v6922 = vadd.f32 %v6825, %v6921
    %v6923 = vpop.f32.mrb[0].mxu0
    %6924 = vmatprep.mubr.bf16.mxu0 0
    %6925 = vmatmul.mubr.bf16.gmra.mrb[0].mxu0 %v5691
    %v6926 = vpop.f32.mrb[0].mxu0
    %v6927 = vadd.f32 %v6830, %v6926
    %v6928 = vpop.f32.mrb[0].mxu0
    %v6929 = vpop.f32.mrb[0].mxu0
    %v6930 = vadd.f32 %v6833, %v6929
    %v6931 = vpop.f32.mrb[0].mxu0
    %6932 = vmatprep.mubr.bf16.mxu0 0
    %6933 = vmatmul.mubr.bf16.gmra.mrb[0].mxu0 %v5757
    %v6934 = vpop.f32.mrb[0].mxu0
    %v6935 = vadd.f32 %v6838, %v6934
    %v6936 = vpop.f32.mrb[0].mxu0
    %v6937 = vpop.f32.mrb[0].mxu0
    %v6938 = vadd.f32 %v6841, %v6937
    %v6939 = vpop.f32.mrb[0].mxu0
    %6940 = vmatprep.mubr.bf16.mxu0 0
    %6941 = vmatmul.mubr.bf16.gmra.mrb[0].mxu0 %v5823
    %v6942 = vpop.f32.mrb[0].mxu0
    %v6943 = vadd.f32 %v6846, %v6942
    %v6944 = vpop.f32.mrb[0].mxu0
    %v6945 = vpop.f32.mrb[0].mxu0
    %v6946 = vadd.f32 %v6849, %v6945
    %v6947 = vpop.f32.mrb[0].mxu0
    %6948 = vmatprep.mubr.bf16.mxu0 0
    %6949 = vmatmul.mubr.bf16.gmra.mrb[0].mxu0 %v5889
    %v6950 = vpop.f32.mrb[0].mxu0
    %v6951 = vadd.f32 %v6854, %v6950
    %v6952 = vpop.f32.mrb[0].mxu0
    %v6953 = vpop.f32.mrb[0].mxu0
    %v6954 = vadd.f32 %v6857, %v6953
    %v6955 = vpop.f32.mrb[0].mxu0
    %6956 = vmatprep.mubr.bf16.mxu0 0
    %6957 = vmatmul.mubr.bf16.gmra.mrb[0].mxu0 %v5955
    %v6958 = vpop.f32.mrb[0].mxu0
    %v6959 = vadd.f32 %v6862, %v6958
    %v6960 = vpop.f32.mrb[0].mxu0
    %v6961 = vpop.f32.mrb[0].mxu0
    %v6962 = vadd.f32 %v6865, %v6961
    %v6963 = vpop.f32.mrb[0].mxu0
    %6964 = vmatprep.mubr.bf16.mxu0 0
    %6965 = vmatmul.mubr.bf16.gmra.mrb[0].mxu0 %v5983
    %v6966 = vpop.f32.mrb[0].mxu0
    %v6967 = vadd.f32 %v6870, %v6966
    %v6968 = vpop.f32.mrb[0].mxu0
    %v6969 = vpop.f32.mrb[0].mxu0
    %v6970 = vadd.f32 %v6873, %v6969
    %v6971 = vpop.f32.mrb[0].mxu0
    %6972 = vdwg.mxu0
    %v6973 = vadd.f32 %v5100, %v6911
    %v6974 = vadd.f32 %v5104, %v6914
    %v6975 = vadd.f32 %v5110, %v6919
    %v6976 = vadd.f32 %v5114, %v6922
    %v6977 = vadd.f32 %v5120, %v6927
    %v6978 = vadd.f32 %v5124, %v6930
    %v6979 = vadd.f32 %v5130, %v6935
    %v6980 = vadd.f32 %v5134, %v6938
    %v6981 = vadd.f32 %v5140, %v6943
    %v6982 = vadd.f32 %v5144, %v6946
    %v6983 = vadd.f32 %v5150, %v6951
    %v6984 = vadd.f32 %v5154, %v6954
    %v6985 = vadd.f32 %v5160, %v6959
    %v6986 = vadd.f32 %v5164, %v6962
    %v6987 = vadd.f32 %v5170, %v6967
    %v6988 = vadd.f32 %v5174, %v6970
    %v6989 = vld [vmem:[%s6 + $0x4] sm:$0x1]
    %v6990 = vlaneseq
    %v6991 = vshrl.u32 %v6990, 7
    %v6992 = vsub.s32 0, %v6991
    %v6993 = vrot.slane %v6989, %v6992
    %v6994 = vadd.f32 %v6973, %v6993
    %v6995 = vadd.f32 %v6974, %v6993
    %v6996 = vadd.f32 %v6975, %v6993
    %v6997 = vadd.f32 %v6976, %v6993
    %v6998 = vadd.f32 %v6977, %v6993
    %v6999 = vadd.f32 %v6978, %v6993
    %v7000 = vadd.f32 %v6979, %v6993
    %v7001 = vadd.f32 %v6980, %v6993
    %v7002 = vadd.f32 %v6981, %v6993
    %v7003 = vadd.f32 %v6982, %v6993
    %v7004 = vadd.f32 %v6983, %v6993
    %v7005 = vadd.f32 %v6984, %v6993
    %v7006 = vadd.f32 %v6985, %v6993
    %v7007 = vadd.f32 %v6986, %v6993
    %v7008 = vadd.f32 %v6987, %v6993
    %v7009 = vadd.f32 %v6988, %v6993
    %v7010 = vtanh.pop %v6994
    %v7011 = vtanh.pop %v6995
    %v7012 = vtanh.pop %v6996
    %v7013 = vtanh.pop %v6997
    %v7014 = vtanh.pop %v6998
    %v7015 = vtanh.pop %v6999
    %v7016 = vtanh.pop %v7000
    %v7017 = vtanh.pop %v7001
    %v7018 = vtanh.pop %v7002
    %v7019 = vtanh.pop %v7003
    %v7020 = vtanh.pop %v7004
    %v7021 = vtanh.pop %v7005
    %v7022 = vtanh.pop %v7006
    %v7023 = vtanh.pop %v7007
    %v7024 = vtanh.pop %v7008
    %v7025 = vtanh.pop %v7009
    %vm7026 = vcmp.lt.s32.totalorder %v302, 9
    %vm7027 = vcmp.lt.s32.totalorder %v303, 9
    %v7028 = vsel %vm7026, 1, 0
    %v7029 = vsel %vm7027, 1, 0
    %vm7030 = vcmp.eq.s32.totalorder %v7028, 1
    %vm7031 = vcmp.eq.s32.totalorder %v7029, 1
    %v7032 = vsel %vm7030, %v7010, -2.0
    %v7033 = vsel %vm7031, %v7011, -2.0
    %v7034 = vsel %vm7030, %v7012, -2.0
    %v7035 = vsel %vm7031, %v7013, -2.0
    %v7036 = vsel %vm7030, %v7014, -2.0
    %v7037 = vsel %vm7031, %v7015, -2.0
    %v7038 = vsel %vm7030, %v7016, -2.0
    %v7039 = vsel %vm7031, %v7017, -2.0
    %v7040 = vsel %vm7030, %v7018, -2.0
    %v7041 = vsel %vm7031, %v7019, -2.0
    %v7042 = vsel %vm7030, %v7020, -2.0
    %v7043 = vsel %vm7031, %v7021, -2.0
    %v7044 = vsel %vm7030, %v7022, -2.0
    %v7045 = vsel %vm7031, %v7023, -2.0
    %v7046 = vsel %vm7030, %v7024, -2.0
    %v7047 = vsel %vm7031, %v7025, -2.0
    %v7048 = vmax.f32 %v7032, %v7033
    %v7049 = vrot.slane %v7048, 4
    %v7050 = vmax.f32 %v7048, %v7049
    %v7051 = vrot.slane %v7050, 2
    %v7052 = vmax.f32 %v7050, %v7051
    %v7053 = vrot.slane %v7052, 1
    %v7054 = vmax.f32 %v7052, %v7053
    %v7055 = vmax.f32 %v7034, %v7035
    %v7056 = vrot.slane %v7055, 4
    %v7057 = vmax.f32 %v7055, %v7056
    %v7058 = vrot.slane %v7057, 2
    %v7059 = vmax.f32 %v7057, %v7058
    %v7060 = vrot.slane %v7059, 1
    %v7061 = vmax.f32 %v7059, %v7060
    %v7062 = vmax.f32 %v7036, %v7037
    %v7063 = vrot.slane %v7062, 4
    %v7064 = vmax.f32 %v7062, %v7063
    %v7065 = vrot.slane %v7064, 2
    %v7066 = vmax.f32 %v7064, %v7065
    %v7067 = vrot.slane %v7066, 1
    %v7068 = vmax.f32 %v7066, %v7067
    %v7069 = vmax.f32 %v7038, %v7039
    %v7070 = vrot.slane %v7069, 4
    %v7071 = vmax.f32 %v7069, %v7070
    %v7072 = vrot.slane %v7071, 2
    %v7073 = vmax.f32 %v7071, %v7072
    %v7074 = vrot.slane %v7073, 1
    %v7075 = vmax.f32 %v7073, %v7074
    %v7076 = vmax.f32 %v7040, %v7041
    %v7077 = vrot.slane %v7076, 4
    %v7078 = vmax.f32 %v7076, %v7077
    %v7079 = vrot.slane %v7078, 2
    %v7080 = vmax.f32 %v7078, %v7079
    %v7081 = vrot.slane %v7080, 1
    %v7082 = vmax.f32 %v7080, %v7081
    %v7083 = vmax.f32 %v7042, %v7043
    %v7084 = vrot.slane %v7083, 4
    %v7085 = vmax.f32 %v7083, %v7084
    %v7086 = vrot.slane %v7085, 2
    %v7087 = vmax.f32 %v7085, %v7086
    %v7088 = vrot.slane %v7087, 1
    %v7089 = vmax.f32 %v7087, %v7088
    %v7090 = vmax.f32 %v7044, %v7045
    %v7091 = vrot.slane %v7090, 4
    %v7092 = vmax.f32 %v7090, %v7091
    %v7093 = vrot.slane %v7092, 2
    %v7094 = vmax.f32 %v7092, %v7093
    %v7095 = vrot.slane %v7094, 1
    %v7096 = vmax.f32 %v7094, %v7095
    %v7097 = vmax.f32 %v7046, %v7047
    %v7098 = vrot.slane %v7097, 4
    %v7099 = vmax.f32 %v7097, %v7098
    %v7100 = vrot.slane %v7099, 2
    %v7101 = vmax.f32 %v7099, %v7100
    %v7102 = vrot.slane %v7101, 1
    %v7103 = vmax.f32 %v7101, %v7102
    %vm7112 = vcmask 1041409
    %v7113 = vsel %vm7112, %v746, %v739
    %vm7114 = vcmask 1042434
    %v7115 = vsel %vm7114, %v753, %v7113
    %vm7116 = vcmask 1043459
    %v7117 = vsel %vm7116, %v760, %v7115
    %vm7118 = vcmask 1044484
    %v7119 = vsel %vm7118, %v767, %v7117
    %vm7120 = vcmask 1045509
    %v7121 = vsel %vm7120, %v774, %v7119
    %vm7122 = vcmask 1046534
    %v7123 = vsel %vm7122, %v781, %v7121
    %vm7124 = vcmask 1047559
    %v7125 = vsel %vm7124, %v788, %v7123
    %v7135 = vsel %vm7112, %v1997, %v1990
    %v7136 = vsel %vm7114, %v2004, %v7135
    %v7137 = vsel %vm7116, %v2011, %v7136
    %v7138 = vsel %vm7118, %v2018, %v7137
    %v7139 = vsel %vm7120, %v2025, %v7138
    %v7140 = vsel %vm7122, %v2032, %v7139
    %v7141 = vsel %vm7124, %v2039, %v7140
    %v7151 = vsel %vm7112, %v2589, %v2582
    %v7152 = vsel %vm7114, %v2596, %v7151
    %v7153 = vsel %vm7116, %v2603, %v7152
    %v7154 = vsel %vm7118, %v2610, %v7153
    %v7155 = vsel %vm7120, %v2617, %v7154
    %v7156 = vsel %vm7122, %v2624, %v7155
    %v7157 = vsel %vm7124, %v2631, %v7156
    %v7167 = vsel %vm7112, %v5248, %v5241
    %v7168 = vsel %vm7114, %v5255, %v7167
    %v7169 = vsel %vm7116, %v5262, %v7168
    %v7170 = vsel %vm7118, %v5269, %v7169
    %v7171 = vsel %vm7120, %v5276, %v7170
    %v7172 = vsel %vm7122, %v5283, %v7171
    %v7173 = vsel %vm7124, %v5290, %v7172
    %v7183 = vsel %vm7112, %v7061, %v7054
    %v7184 = vsel %vm7114, %v7068, %v7183
    %v7185 = vsel %vm7116, %v7075, %v7184
    %v7186 = vsel %vm7118, %v7082, %v7185
    %v7187 = vsel %vm7120, %v7089, %v7186
    %v7188 = vsel %vm7122, %v7096, %v7187
    %v7189 = vsel %vm7124, %v7103, %v7188
    %v7191 = vpack.c.bf16 %v7125, %v7125
    %v7192 = vpack.c.bf16 %v7141, %v7141
    %v7193 = vpack.c.bf16 %v7157, %v7157
    %v7194 = vpack.c.bf16 %v7173, %v7173
    %v7195 = vpack.c.bf16 %v7189, %v7189
    %v7196 = vld [vmem:[#allocation13] sm:$0xf]
    %v7197 = vld [vmem:[#allocation13 + $0x4] sm:$0xf]
    %v7198 = vld [vmem:[#allocation13 + $0x8] sm:$0xf]
    %v7199 = vld [vmem:[#allocation13 + $0xc] sm:$0xf]
    %v7200 = vld [vmem:[#allocation13 + $0x10] sm:$0xf]
    %v7201 = vld [vmem:[#allocation13 + $0x14] sm:$0xf]
    %v7202 = vld [vmem:[#allocation13 + $0x18] sm:$0xf]
    %v7203 = vld [vmem:[#allocation13 + $0x1c] sm:$0xf]
    %v7204 = vld [vmem:[#allocation13 + $0x20] sm:$0xf]
    %v7205 = vld [vmem:[#allocation13 + $0x24] sm:$0xf]
    %v7206 = vld [vmem:[#allocation13 + $0x28] sm:$0xf]
    %v7207 = vld [vmem:[#allocation13 + $0x2c] sm:$0xf]
    %v7208 = vld [vmem:[#allocation13 + $0x30] sm:$0xf]
    %v7209 = vld [vmem:[#allocation13 + $0x34] sm:$0xf]
    %v7210 = vld [vmem:[#allocation13 + $0x38] sm:$0xf]
    %v7211 = vld [vmem:[#allocation13 + $0x3c] sm:$0xf]
    %v7212 = vld [vmem:[#allocation13 + $0x40] sm:$0xf]
    %v7213 = vld [vmem:[#allocation13 + $0x44] sm:$0xf]
    %v7214 = vld [vmem:[#allocation13 + $0x48] sm:$0xf]
    %v7215 = vld [vmem:[#allocation13 + $0x4c] sm:$0xf]
    %v7216 = vld [vmem:[#allocation13 + $0x50] sm:$0xf]
    %v7217 = vld [vmem:[#allocation13 + $0x54] sm:$0xf]
    %v7218 = vld [vmem:[#allocation13 + $0x58] sm:$0xf]
    %v7219 = vld [vmem:[#allocation13 + $0x5c] sm:$0xf]
    %v7220 = vld [vmem:[#allocation13 + $0x60] sm:$0xf]
    %v7221 = vld [vmem:[#allocation13 + $0x64] sm:$0xf]
    %v7222 = vld [vmem:[#allocation13 + $0x68] sm:$0xf]
    %v7223 = vld [vmem:[#allocation13 + $0x6c] sm:$0xf]
    %v7224 = vld [vmem:[#allocation13 + $0x70] sm:$0xf]
    %v7225 = vld [vmem:[#allocation13 + $0x74] sm:$0xf]
    %v7226 = vld [vmem:[#allocation13 + $0x78] sm:$0xf]
    %v7227 = vld [vmem:[#allocation13 + $0x7c] sm:$0xf]
    %v7228 = vld [vmem:[#allocation13 + $0x80] sm:$0xf]
    %v7229 = vld [vmem:[#allocation13 + $0x84] sm:$0xf]
    %v7230 = vld [vmem:[#allocation13 + $0x88] sm:$0xf]
    %v7231 = vld [vmem:[#allocation13 + $0x8c] sm:$0xf]
    %v7232 = vld [vmem:[#allocation13 + $0x90] sm:$0xf]
    %v7233 = vld [vmem:[#allocation13 + $0x94] sm:$0xf]
    %v7234 = vld [vmem:[#allocation13 + $0x98] sm:$0xf]
    %v7235 = vld [vmem:[#allocation13 + $0x9c] sm:$0xf]
    %v7236 = vld [vmem:[#allocation13 + $0xa0] sm:$0xf]
    %v7237 = vld [vmem:[#allocation13 + $0xa4] sm:$0xf]
    %v7238 = vld [vmem:[#allocation13 + $0xa8] sm:$0xf]
    %v7239 = vld [vmem:[#allocation13 + $0xac] sm:$0xf]
    %v7240 = vld [vmem:[#allocation13 + $0xb0] sm:$0xf]
    %v7241 = vld [vmem:[#allocation13 + $0xb4] sm:$0xf]
    %v7242 = vld [vmem:[#allocation13 + $0xb8] sm:$0xf]
    %v7243 = vld [vmem:[#allocation13 + $0xbc] sm:$0xf]
    %v7244 = vld [vmem:[#allocation13 + $0xc0] sm:$0xf]
    %v7245 = vld [vmem:[#allocation13 + $0xc4] sm:$0xf]
    %v7246 = vld [vmem:[#allocation13 + $0xc8] sm:$0xf]
    %v7247 = vld [vmem:[#allocation13 + $0xcc] sm:$0xf]
    %v7248 = vld [vmem:[#allocation13 + $0xd0] sm:$0xf]
    %v7249 = vld [vmem:[#allocation13 + $0xd4] sm:$0xf]
    %v7250 = vld [vmem:[#allocation13 + $0xd8] sm:$0xf]
    %v7251 = vld [vmem:[#allocation13 + $0xdc] sm:$0xf]
    %v7252 = vld [vmem:[#allocation13 + $0xe0] sm:$0xf]
    %v7253 = vld [vmem:[#allocation13 + $0xe4] sm:$0xf]
    %v7254 = vld [vmem:[#allocation13 + $0xe8] sm:$0xf]
    %v7255 = vld [vmem:[#allocation13 + $0xec] sm:$0xf]
    %v7256 = vld [vmem:[#allocation13 + $0xf0] sm:$0xf]
    %v7257 = vld [vmem:[#allocation13 + $0xf4] sm:$0xf]
    %v7258 = vld [vmem:[#allocation13 + $0xf8] sm:$0xf]
    %v7259 = vld [vmem:[#allocation13 + $0xfc] sm:$0xf]
    %v7260 = vld [vmem:[#allocation13 + $0x100] sm:$0xf]
    %v7261 = vld [vmem:[#allocation13 + $0x104] sm:$0xf]
    %v7262 = vld [vmem:[#allocation13 + $0x108] sm:$0xf]
    %v7263 = vld [vmem:[#allocation13 + $0x10c] sm:$0xf]
    %v7264 = vld [vmem:[#allocation13 + $0x110] sm:$0xf]
    %v7265 = vld [vmem:[#allocation13 + $0x114] sm:$0xf]
    %v7266 = vld [vmem:[#allocation13 + $0x118] sm:$0xf]
    %v7267 = vld [vmem:[#allocation13 + $0x11c] sm:$0xf]
    %v7268 = vld [vmem:[#allocation13 + $0x120] sm:$0xf]
    %v7269 = vld [vmem:[#allocation13 + $0x124] sm:$0xf]
    %v7270 = vld [vmem:[#allocation13 + $0x128] sm:$0xf]
    %v7271 = vld [vmem:[#allocation13 + $0x12c] sm:$0xf]
    %v7272 = vld [vmem:[#allocation13 + $0x130] sm:$0xf]
    %v7273 = vld [vmem:[#allocation13 + $0x134] sm:$0xf]
    %v7274 = vld [vmem:[#allocation13 + $0x138] sm:$0xf]
    %v7275 = vld [vmem:[#allocation13 + $0x13c] sm:$0xf]
    %v7276 = vld [vmem:[%s8] sm:$0x1]
    %v7278 = vlaneseq
    %v7279 = vshrl.u32 %v7278, 7
    %v7280 = vsub.s32 0, %v7279
    %v7281 = vrot.slane %v7276, %v7280
    %v7363 = vunpack.c.l.b16 %v7196
    %v7364 = vunpack.c.l.b16 %v7197
    %v7365 = vunpack.c.l.b16 %v7198
    %v7366 = vunpack.c.l.b16 %v7199
    %v7367 = vunpack.c.l.b16 %v7200
    %v7368 = vunpack.c.l.b16 %v7201
    %v7369 = vunpack.c.l.b16 %v7202
    %v7370 = vunpack.c.l.b16 %v7203
    %v7371 = vunpack.c.l.b16 %v7204
    %v7372 = vunpack.c.l.b16 %v7205
    %v7373 = vunpack.c.l.b16 %v7206
    %v7374 = vunpack.c.l.b16 %v7207
    %v7375 = vunpack.c.l.b16 %v7208
    %v7376 = vunpack.c.l.b16 %v7209
    %v7377 = vunpack.c.l.b16 %v7210
    %v7378 = vunpack.c.l.b16 %v7211
    %v7379 = vunpack.c.l.b16 %v7212
    %v7380 = vunpack.c.l.b16 %v7213
    %v7381 = vunpack.c.l.b16 %v7214
    %v7382 = vunpack.c.l.b16 %v7215
    %v7383 = vunpack.c.l.b16 %v7216
    %v7384 = vunpack.c.l.b16 %v7217
    %v7385 = vunpack.c.l.b16 %v7218
    %v7386 = vunpack.c.l.b16 %v7219
    %v7387 = vunpack.c.l.b16 %v7220
    %v7388 = vunpack.c.l.b16 %v7221
    %v7389 = vunpack.c.l.b16 %v7222
    %v7390 = vunpack.c.l.b16 %v7223
    %v7391 = vunpack.c.l.b16 %v7224
    %v7392 = vunpack.c.l.b16 %v7225
    %v7393 = vunpack.c.l.b16 %v7226
    %v7394 = vunpack.c.l.b16 %v7227
    %v7395 = vunpack.c.l.b16 %v7228
    %v7396 = vunpack.c.l.b16 %v7229
    %v7397 = vunpack.c.l.b16 %v7230
    %v7398 = vunpack.c.l.b16 %v7231
    %v7399 = vunpack.c.l.b16 %v7232
    %v7400 = vunpack.c.l.b16 %v7233
    %v7401 = vunpack.c.l.b16 %v7234
    %v7402 = vunpack.c.l.b16 %v7235
    %v7403 = vunpack.c.l.b16 %v7236
    %v7404 = vunpack.c.l.b16 %v7237
    %v7405 = vunpack.c.l.b16 %v7238
    %v7406 = vunpack.c.l.b16 %v7239
    %v7407 = vunpack.c.l.b16 %v7240
    %v7408 = vunpack.c.l.b16 %v7241
    %v7409 = vunpack.c.l.b16 %v7242
    %v7410 = vunpack.c.l.b16 %v7243
    %v7411 = vunpack.c.l.b16 %v7244
    %v7412 = vunpack.c.l.b16 %v7245
    %v7413 = vunpack.c.l.b16 %v7246
    %v7414 = vunpack.c.l.b16 %v7247
    %v7415 = vunpack.c.l.b16 %v7248
    %v7416 = vunpack.c.l.b16 %v7249
    %v7417 = vunpack.c.l.b16 %v7250
    %v7418 = vunpack.c.l.b16 %v7251
    %v7419 = vunpack.c.l.b16 %v7252
    %v7420 = vunpack.c.l.b16 %v7253
    %v7421 = vunpack.c.l.b16 %v7254
    %v7422 = vunpack.c.l.b16 %v7255
    %v7423 = vunpack.c.l.b16 %v7256
    %v7424 = vunpack.c.l.b16 %v7257
    %v7425 = vunpack.c.l.b16 %v7258
    %v7426 = vunpack.c.l.b16 %v7259
    %v7427 = vunpack.c.l.b16 %v7260
    %v7428 = vunpack.c.l.b16 %v7261
    %v7429 = vunpack.c.l.b16 %v7262
    %v7430 = vunpack.c.l.b16 %v7263
    %v7431 = vunpack.c.l.b16 %v7264
    %v7432 = vunpack.c.l.b16 %v7265
    %v7433 = vunpack.c.l.b16 %v7266
    %v7434 = vunpack.c.l.b16 %v7267
    %v7435 = vunpack.c.l.b16 %v7268
    %v7436 = vunpack.c.l.b16 %v7269
    %v7437 = vunpack.c.l.b16 %v7270
    %v7438 = vunpack.c.l.b16 %v7271
    %v7439 = vunpack.c.l.b16 %v7272
    %v7440 = vunpack.c.l.b16 %v7273
    %v7441 = vunpack.c.l.b16 %v7274
    %v7442 = vunpack.c.l.b16 %v7275
    %v7443 = vpack.c.b16 %v7364, %v7363
    %v7444 = vpack.c.b16 %v7366, %v7365
    %v7445 = vpack.c.b16 %v7368, %v7367
    %v7446 = vpack.c.b16 %v7370, %v7369
    %v7447 = vpack.c.b16 %v7372, %v7371
    %v7448 = vpack.c.b16 %v7374, %v7373
    %v7449 = vpack.c.b16 %v7376, %v7375
    %v7450 = vpack.c.b16 %v7378, %v7377
    %v7451 = vpack.c.b16 %v7380, %v7379
    %v7452 = vpack.c.b16 %v7382, %v7381
    %v7453 = vpack.c.b16 %v7384, %v7383
    %v7454 = vpack.c.b16 %v7386, %v7385
    %v7455 = vpack.c.b16 %v7388, %v7387
    %v7456 = vpack.c.b16 %v7390, %v7389
    %v7457 = vpack.c.b16 %v7392, %v7391
    %v7458 = vpack.c.b16 %v7394, %v7393
    %v7459 = vpack.c.b16 %v7396, %v7395
    %v7460 = vpack.c.b16 %v7398, %v7397
    %v7461 = vpack.c.b16 %v7400, %v7399
    %v7462 = vpack.c.b16 %v7402, %v7401
    %v7463 = vpack.c.b16 %v7404, %v7403
    %v7464 = vpack.c.b16 %v7406, %v7405
    %v7465 = vpack.c.b16 %v7408, %v7407
    %v7466 = vpack.c.b16 %v7410, %v7409
    %v7467 = vpack.c.b16 %v7412, %v7411
    %v7468 = vpack.c.b16 %v7414, %v7413
    %v7469 = vpack.c.b16 %v7416, %v7415
    %v7470 = vpack.c.b16 %v7418, %v7417
    %v7471 = vpack.c.b16 %v7420, %v7419
    %v7472 = vpack.c.b16 %v7422, %v7421
    %v7473 = vpack.c.b16 %v7424, %v7423
    %v7474 = vpack.c.b16 %v7426, %v7425
    %v7475 = vpack.c.b16 %v7428, %v7427
    %v7476 = vpack.c.b16 %v7430, %v7429
    %v7477 = vpack.c.b16 %v7432, %v7431
    %v7478 = vpack.c.b16 %v7434, %v7433
    %v7479 = vpack.c.b16 %v7436, %v7435
    %v7480 = vpack.c.b16 %v7438, %v7437
    %v7481 = vpack.c.b16 %v7440, %v7439
    %v7482 = vpack.c.b16 %v7442, %v7441
    %7523 = vmatprep.subr.bf16.mxu0 0
    %7524 = vmatpush1.bf16.msra.mxu0 %v7443
    %7525 = vmatprep.subr.bf16.mxu0 0
    %7526 = vmatpush1.bf16.msra.mxu0 %v7444
    %7527 = vmatprep.subr.bf16.mxu0 0
    %7528 = vmatpush1.bf16.msra.mxu0 %v7445
    %7529 = vmatprep.subr.bf16.mxu0 0
    %7530 = vmatpush1.bf16.msra.mxu0 %v7446
    %7531 = vmatprep.subr.bf16.mxu0 0
    %7532 = vmatpush1.bf16.msra.mxu0 %v7447
    %7533 = vmatprep.subr.bf16.mxu0 0
    %7534 = vmatpush1.bf16.msra.mxu0 %v7448
    %7535 = vmatprep.subr.bf16.mxu0 0
    %7536 = vmatpush1.bf16.msra.mxu0 %v7449
    %7537 = vmatprep.subr.bf16.mxu0 0
    %7538 = vmatpush1.bf16.msra.mxu0 %v7450
    %7539 = vmatprep.subr.bf16.mxu0 0
    %7540 = vmatpush1.bf16.msra.mxu0 %v7451
    %7541 = vmatprep.subr.bf16.mxu0 0
    %7542 = vmatpush1.bf16.msra.mxu0 %v7452
    %7543 = vmatprep.subr.bf16.mxu0 0
    %7544 = vmatpush1.bf16.msra.mxu0 %v7453
    %7545 = vmatprep.subr.bf16.mxu0 0
    %7546 = vmatpush1.bf16.msra.mxu0 %v7454
    %7547 = vmatprep.subr.bf16.mxu0 0
    %7548 = vmatpush1.bf16.msra.mxu0 %v7455
    %7549 = vmatprep.subr.bf16.mxu0 0
    %7550 = vmatpush1.bf16.msra.mxu0 %v7456
    %7551 = vmatprep.subr.bf16.mxu0 0
    %7552 = vmatpush1.bf16.msra.mxu0 %v7457
    %7553 = vmatprep.subr.bf16.mxu0 0
    %7554 = vmatpush1.bf16.msra.mxu0 %v7458
    %7555 = vmatprep.mubr.bf16.mxu0 %v7192
    %7556 = vmatmul.mubr.bf16.gmra.mrb[0].mxu0 %v7191
    %v7557 = vpop.f32.mrb[0].mxu0
    %v7558 = vadd.f32 %v7281, %v7557
    %v7559 = vpop.f32.mrb[0].mxu0
    %v7560 = vpop.f32.mrb[0].mxu0
    %v7561 = vpop.f32.mrb[0].mxu0
    %7562 = vdwg.mxu0
    %7563 = vmatprep.subr.bf16.mxu0 0
    %7564 = vmatpush1.bf16.msra.mxu0 %v7459
    %7565 = vmatprep.subr.bf16.mxu0 0
    %7566 = vmatpush1.bf16.msra.mxu0 %v7460
    %7567 = vmatprep.subr.bf16.mxu0 0
    %7568 = vmatpush1.bf16.msra.mxu0 %v7461
    %7569 = vmatprep.subr.bf16.mxu0 0
    %7570 = vmatpush1.bf16.msra.mxu0 %v7462
    %7571 = vmatprep.subr.bf16.mxu0 0
    %7572 = vmatpush1.bf16.msra.mxu0 %v7463
    %7573 = vmatprep.subr.bf16.mxu0 0
    %7574 = vmatpush1.bf16.msra.mxu0 %v7464
    %7575 = vmatprep.subr.bf16.mxu0 0
    %7576 = vmatpush1.bf16.msra.mxu0 %v7465
    %7577 = vmatprep.subr.bf16.mxu0 0
    %7578 = vmatpush1.bf16.msra.mxu0 %v7466
    %7579 = vmatprep.subr.bf16.mxu0 0
    %7580 = vmatpush1.bf16.msra.mxu0 %v7467
    %7581 = vmatprep.subr.bf16.mxu0 0
    %7582 = vmatpush1.bf16.msra.mxu0 %v7468
    %7583 = vmatprep.subr.bf16.mxu0 0
    %7584 = vmatpush1.bf16.msra.mxu0 %v7469
    %7585 = vmatprep.subr.bf16.mxu0 0
    %7586 = vmatpush1.bf16.msra.mxu0 %v7470
    %7587 = vmatprep.subr.bf16.mxu0 0
    %7588 = vmatpush1.bf16.msra.mxu0 %v7471
    %7589 = vmatprep.subr.bf16.mxu0 0
    %7590 = vmatpush1.bf16.msra.mxu0 %v7472
    %7591 = vmatprep.subr.bf16.mxu0 0
    %7592 = vmatpush1.bf16.msra.mxu0 %v7473
    %7593 = vmatprep.subr.bf16.mxu0 0
    %7594 = vmatpush1.bf16.msra.mxu0 %v7474
    %7595 = vmatprep.mubr.bf16.mxu0 %v7194
    %7596 = vmatmul.mubr.bf16.gmra.mrb[0].mxu0 %v7193
    %v7597 = vpop.f32.mrb[0].mxu0
    %v7598 = vadd.f32 %v7558, %v7597
    %v7599 = vpop.f32.mrb[0].mxu0
    %v7600 = vpop.f32.mrb[0].mxu0
    %v7601 = vpop.f32.mrb[0].mxu0
    %7602 = vdwg.mxu0
    %7603 = vmatprep.subr.bf16.mxu0 0
    %7604 = vmatpush1.bf16.msra.mxu0 %v7475
    %7605 = vmatprep.subr.bf16.mxu0 0
    %7606 = vmatpush1.bf16.msra.mxu0 %v7476
    %7607 = vmatprep.subr.bf16.mxu0 0
    %7608 = vmatpush1.bf16.msra.mxu0 %v7477
    %7609 = vmatprep.subr.bf16.mxu0 0
    %7610 = vmatpush1.bf16.msra.mxu0 %v7478
    %7611 = vmatprep.subr.bf16.mxu0 0
    %7612 = vmatpush1.bf16.msra.mxu0 %v7479
    %7613 = vmatprep.subr.bf16.mxu0 0
    %7614 = vmatpush1.bf16.msra.mxu0 %v7480
    %7615 = vmatprep.subr.bf16.mxu0 0
    %7616 = vmatpush1.bf16.msra.mxu0 %v7481
    %7617 = vmatprep.subr.bf16.mxu0 0
    %7618 = vmatpush1.bf16.msra.mxu0 %v7482
    %7619 = vmatprep.subr.bf16.mxu0 0
    %7620 = vmatpush1.bf16.msra.mxu0 0
    %7621 = vmatprep.subr.bf16.mxu0 0
    %7622 = vmatpush1.bf16.msra.mxu0 0
    %7623 = vmatprep.subr.bf16.mxu0 0
    %7624 = vmatpush1.bf16.msra.mxu0 0
    %7625 = vmatprep.subr.bf16.mxu0 0
    %7626 = vmatpush1.bf16.msra.mxu0 0
    %7627 = vmatprep.subr.bf16.mxu0 0
    %7628 = vmatpush1.bf16.msra.mxu0 0
    %7629 = vmatprep.subr.bf16.mxu0 0
    %7630 = vmatpush1.bf16.msra.mxu0 0
    %7631 = vmatprep.subr.bf16.mxu0 0
    %7632 = vmatpush1.bf16.msra.mxu0 0
    %7633 = vmatprep.subr.bf16.mxu0 0
    %7634 = vmatpush1.bf16.msra.mxu0 0
    %7635 = vmatprep.mubr.bf16.mxu0 0
    %7636 = vmatmul.mubr.bf16.gmra.mrb[0].mxu0 %v7195
    %v7637 = vpop.f32.mrb[0].mxu0
    %v7638 = vadd.f32 %v7598, %v7637
    %v7639 = vpop.f32.mrb[0].mxu0
    %v7640 = vpop.f32.mrb[0].mxu0
    %v7641 = vpop.f32.mrb[0].mxu0
    %7642 = vdwg.mxu0
    %v7643 = vmax.f32 %v7638, 0.0
    %v7644 = vpack.c.bf16 %v7643, %v7643
    %v7645 = vld [vmem:[%s9] sm:$0xf]
    %v7646 = vld [vmem:[%s9 + $0x4] sm:$0xf]
    %v7647 = vld [vmem:[%s9 + $0x8] sm:$0xf]
    %v7648 = vld [vmem:[%s9 + $0xc] sm:$0xf]
    %v7649 = vld [vmem:[%s9 + $0x10] sm:$0xf]
    %v7650 = vld [vmem:[%s9 + $0x14] sm:$0xf]
    %v7651 = vld [vmem:[%s9 + $0x18] sm:$0xf]
    %v7652 = vld [vmem:[%s9 + $0x1c] sm:$0xf]
    %v7653 = vld [vmem:[%s9 + $0x20] sm:$0xf]
    %v7654 = vld [vmem:[%s9 + $0x24] sm:$0xf]
    %v7655 = vld [vmem:[%s9 + $0x28] sm:$0xf]
    %v7656 = vld [vmem:[%s9 + $0x2c] sm:$0xf]
    %v7657 = vld [vmem:[%s9 + $0x30] sm:$0xf]
    %v7658 = vld [vmem:[%s9 + $0x34] sm:$0xf]
    %v7659 = vld [vmem:[%s9 + $0x38] sm:$0xf]
    %v7660 = vld [vmem:[%s9 + $0x3c] sm:$0xf]
    %v7661 = vld [vmem:[%s10] sm:$0x1]
    %v7663 = vlaneseq
    %v7664 = vshrl.u32 %v7663, 7
    %v7665 = vsub.s32 0, %v7664
    %v7666 = vrot.slane %v7661, %v7665
    %v7684 = vunpack.c.l.b16 %v7645
    %v7685 = vunpack.c.l.b16 %v7646
    %v7686 = vunpack.c.l.b16 %v7647
    %v7687 = vunpack.c.l.b16 %v7648
    %v7688 = vunpack.c.l.b16 %v7649
    %v7689 = vunpack.c.l.b16 %v7650
    %v7690 = vunpack.c.l.b16 %v7651
    %v7691 = vunpack.c.l.b16 %v7652
    %v7692 = vunpack.c.l.b16 %v7653
    %v7693 = vunpack.c.l.b16 %v7654
    %v7694 = vunpack.c.l.b16 %v7655
    %v7695 = vunpack.c.l.b16 %v7656
    %v7696 = vunpack.c.l.b16 %v7657
    %v7697 = vunpack.c.l.b16 %v7658
    %v7698 = vunpack.c.l.b16 %v7659
    %v7699 = vunpack.c.l.b16 %v7660
    %v7700 = vpack.c.b16 %v7685, %v7684
    %v7701 = vpack.c.b16 %v7687, %v7686
    %v7702 = vpack.c.b16 %v7689, %v7688
    %v7703 = vpack.c.b16 %v7691, %v7690
    %v7704 = vpack.c.b16 %v7693, %v7692
    %v7705 = vpack.c.b16 %v7695, %v7694
    %v7706 = vpack.c.b16 %v7697, %v7696
    %v7707 = vpack.c.b16 %v7699, %v7698
    %7716 = vmatprep.subr.bf16.mxu0 0
    %7717 = vmatpush1.bf16.msra.mxu0 %v7700
    %7718 = vmatprep.subr.bf16.mxu0 0
    %7719 = vmatpush1.bf16.msra.mxu0 %v7701
    %7720 = vmatprep.subr.bf16.mxu0 0
    %7721 = vmatpush1.bf16.msra.mxu0 %v7702
    %7722 = vmatprep.subr.bf16.mxu0 0
    %7723 = vmatpush1.bf16.msra.mxu0 %v7703
    %7724 = vmatprep.subr.bf16.mxu0 0
    %7725 = vmatpush1.bf16.msra.mxu0 %v7704
    %7726 = vmatprep.subr.bf16.mxu0 0
    %7727 = vmatpush1.bf16.msra.mxu0 %v7705
    %7728 = vmatprep.subr.bf16.mxu0 0
    %7729 = vmatpush1.bf16.msra.mxu0 %v7706
    %7730 = vmatprep.subr.bf16.mxu0 0
    %7731 = vmatpush1.bf16.msra.mxu0 %v7707
    %7732 = vmatprep.subr.bf16.mxu0 0
    %7733 = vmatpush1.bf16.msra.mxu0 0
    %7734 = vmatprep.subr.bf16.mxu0 0
    %7735 = vmatpush1.bf16.msra.mxu0 0
    %7736 = vmatprep.subr.bf16.mxu0 0
    %7737 = vmatpush1.bf16.msra.mxu0 0
    %7738 = vmatprep.subr.bf16.mxu0 0
    %7739 = vmatpush1.bf16.msra.mxu0 0
    %7740 = vmatprep.subr.bf16.mxu0 0
    %7741 = vmatpush1.bf16.msra.mxu0 0
    %7742 = vmatprep.subr.bf16.mxu0 0
    %7743 = vmatpush1.bf16.msra.mxu0 0
    %7744 = vmatprep.subr.bf16.mxu0 0
    %7745 = vmatpush1.bf16.msra.mxu0 0
    %7746 = vmatprep.subr.bf16.mxu0 0
    %7747 = vmatpush1.bf16.msra.mxu0 0
    %7748 = vmatprep.mubr.bf16.mxu0 0
    %7749 = vmatmul.mubr.bf16.gmra.mrb[0].mxu0 %v7644
    %v7750 = vpop.f32.mrb[0].mxu0
    %v7751 = vadd.f32 %v7666, %v7750
    %v7752 = vpop.f32.mrb[0].mxu0
    %v7753 = vpop.f32.mrb[0].mxu0
    %v7754 = vpop.f32.mrb[0].mxu0
    %7755 = vdwg.mxu0
    %v7756 = vmax.f32 %v7751, 0.0
    %v7757 = vpack.c.bf16 %v7756, %v7756
    %v7758 = vld [vmem:[%s11] sm:$0xf]
    %v7759 = vld [vmem:[%s11 + $0x4] sm:$0xf]
    %v7760 = vld [vmem:[%s11 + $0x8] sm:$0xf]
    %v7761 = vld [vmem:[%s11 + $0xc] sm:$0xf]
    %v7762 = vld [vmem:[%s11 + $0x10] sm:$0xf]
    %v7763 = vld [vmem:[%s11 + $0x14] sm:$0xf]
    %v7764 = vld [vmem:[%s11 + $0x18] sm:$0xf]
    %v7765 = vld [vmem:[%s11 + $0x1c] sm:$0xf]
    %v7766 = vld [vmem:[%s12] sm:$0x1]
    %v7768 = vlaneseq
    %v7769 = vshrl.u32 %v7768, 7
    %v7770 = vsub.s32 0, %v7769
    %v7771 = vrot.slane %v7766, %v7770
    %v7781 = vunpack.c.l.b16 %v7758
    %v7782 = vunpack.c.l.b16 %v7759
    %v7783 = vunpack.c.l.b16 %v7760
    %v7784 = vunpack.c.l.b16 %v7761
    %v7785 = vunpack.c.l.b16 %v7762
    %v7786 = vunpack.c.l.b16 %v7763
    %v7787 = vunpack.c.l.b16 %v7764
    %v7788 = vunpack.c.l.b16 %v7765
    %v7789 = vpack.c.b16 %v7782, %v7781
    %v7790 = vpack.c.b16 %v7784, %v7783
    %v7791 = vpack.c.b16 %v7786, %v7785
    %v7792 = vpack.c.b16 %v7788, %v7787
    %vm7797 = vcmask 523264
    %v7799 = vsel %vm7797, %v7757, 0
    %7801 = vmatprep.subr.bf16.mxu0 0
    %7802 = vmatpush1.bf16.msra.mxu0 %v7789
    %7803 = vmatprep.subr.bf16.mxu0 0
    %7804 = vmatpush1.bf16.msra.mxu0 %v7790
    %7805 = vmatprep.subr.bf16.mxu0 0
    %7806 = vmatpush1.bf16.msra.mxu0 %v7791
    %7807 = vmatprep.subr.bf16.mxu0 0
    %7808 = vmatpush1.bf16.msra.mxu0 %v7792
    %7809 = vmatprep.subr.bf16.mxu0 0
    %7810 = vmatpush1.bf16.msra.mxu0 0
    %7811 = vmatprep.subr.bf16.mxu0 0
    %7812 = vmatpush1.bf16.msra.mxu0 0
    %7813 = vmatprep.subr.bf16.mxu0 0
    %7814 = vmatpush1.bf16.msra.mxu0 0
    %7815 = vmatprep.subr.bf16.mxu0 0
    %7816 = vmatpush1.bf16.msra.mxu0 0
    %7817 = vmatprep.subr.bf16.mxu0 0
    %7818 = vmatpush1.bf16.msra.mxu0 0
    %7819 = vmatprep.subr.bf16.mxu0 0
    %7820 = vmatpush1.bf16.msra.mxu0 0
    %7821 = vmatprep.subr.bf16.mxu0 0
    %7822 = vmatpush1.bf16.msra.mxu0 0
    %7823 = vmatprep.subr.bf16.mxu0 0
    %7824 = vmatpush1.bf16.msra.mxu0 0
    %7825 = vmatprep.subr.bf16.mxu0 0
    %7826 = vmatpush1.bf16.msra.mxu0 0
    %7827 = vmatprep.subr.bf16.mxu0 0
    %7828 = vmatpush1.bf16.msra.mxu0 0
    %7829 = vmatprep.subr.bf16.mxu0 0
    %7830 = vmatpush1.bf16.msra.mxu0 0
    %7831 = vmatprep.subr.bf16.mxu0 0
    %7832 = vmatpush1.bf16.msra.mxu0 0
    %7833 = vmatprep.mubr.bf16.mxu0 0
    %7834 = vmatmul.mubr.bf16.gmra.mrb[0].mxu0 %v7799
    %v7835 = vpop.f32.mrb[0].mxu0
    %v7836 = vadd.f32 %v7771, %v7835
    %v7837 = vpop.f32.mrb[0].mxu0
    %v7838 = vpop.f32.mrb[0].mxu0
    %v7839 = vpop.f32.mrb[0].mxu0
    %7840 = vdwg.mxu0
    %7841 = vmax.xlane.f32.xlu0 %v7836
    %v7842 = vpop.xlane.xlu0 %7841
    %v7843 = vsub.f32 %v7836, %v7842
    %v7844 = vmul.f32 %v7843, 1.442695
    %v7845 = vpow.pop %v7844
    %7846 = vadd.xlane.f32.xlu0 %v7845
    %v7847 = vpop.xlane.xlu0 %7846
    %v7848 = vrcp.pop %v7847
    %v7849 = vmul.f32 %v7845, %v7848
    %7850 = vst [vmem:[#allocation14] sm:$0xff] %v7849
    // Predicated region
    $region82: #{tpu_custom_call.1} parent=1 // pred_check
      _
    $region83: #{tpu_custom_call.1} parent=1 // pred_check_branch
      %7852 = sbr.rel (0) target = $region85
    $region84: #{tpu_custom_call.1} parent=1 // pred_region
      %s7854 = ssub.s32 128, 128
      %7855 = vsyncadd [#allocation4], %s7854
      %s7857 = sshll.u32 [#allocation14], 4
      %s7858 = int_to_ptr.vmem [resolvable:$true] %s7857
      %7860 = dma.vmem_to_hbm [thread:$0]  %s7858, 128, %s13, [#allocation4]
    $region85: #{tpu_custom_call.1} parent=1 // pred_fallthru
      _
    // Predicated region
    $region86: #{tpu_custom_call.1} parent=1 // pred_check
      _
    $region87: #{tpu_custom_call.1} parent=1 // pred_check_branch
      %7862 = sbr.rel (0) target = $region89
    $region88: #{tpu_custom_call.1} parent=1 // pred_region
      %7863 = dma.done [#allocation4], 128
    $region89: #{tpu_custom_call.1} parent=1 // pred_fallthru
      _
    %7864 = vsyncpa [#allocation3], 1
    %7865 = vsyncpa [#allocation6], 1
    %7866 = vsyncpa [#allocation9], 1
    %7867 = vsyncpa [#allocation12], 1
    %7868 = vsyncpa [#allocation4], 1

</llo_original>
